<compile_context>
chip_gen: v5e
topology: v5e:2x2
jax: 0.10.0
libtpu: 0.0.40
codegen_flags: <defaults>
</compile_context>

<pallas_src>
import jax
import jax.numpy as jnp
from jax import lax
from jax.experimental import pallas as pl
from jax.experimental.pallas import tpu as pltpu

EPS = 1e-5  # nn.InstanceNorm2d default


def _reflect_pad1(v):
    # v: (C, H, W) -> (C, H+2, W+2), nn.ReflectionPad2d(1).
    # Separable pad; corners come out right because the column pad reflects the
    # already row-padded array (xp[0, 0] == v[1, 1]).
    H, W = v.shape[1], v.shape[2]
    v = jnp.concatenate([v[:, 1:2, :], v, v[:, H - 2:H - 1, :]], axis=1)
    v = jnp.concatenate([v[:, :, 1:2], v, v[:, :, W - 2:W - 1]], axis=2)
    return v


def _conv3x3_reflect(v, w_ref):
    # v: (C, H, W) value in vregs; w_ref: flat (Cout*Cin*9,) f32 SMEM ref,
    # PyTorch OIHW flatten order.  Returns (Cout, H, W).  No bias (cancelled by
    # the following InstanceNorm).  Conv is 9*C*C scalar-broadcast MACs on the
    # VPU; the 9 taps per input channel are static shifted slices of the padded
    # sample and are reused across all output channels.
    C, H, W = v.shape
    vp = _reflect_pad1(v)                                   # (C, H+2, W+2)
    acc = [None] * C
    for ci in range(C):
        for ky in range(3):
            for kx in range(3):
                tap = vp[ci, ky:ky + H, kx:kx + W]          # (H, W)
                for co in range(C):
                    w = w_ref[((co * C + ci) * 3 + ky) * 3 + kx]  # SMEM scalar
                    term = w * tap
                    acc[co] = term if acc[co] is None else acc[co] + term
    return jnp.stack(acc, axis=0)                           # (C, H, W)


def _mean_hw(t):
    # Mean over the last two (spatial) dims, done as two single-axis
    # reductions (lane reduce then sublane reduce) for robust lowering.
    return jnp.mean(jnp.mean(t, axis=2, keepdims=True), axis=1, keepdims=True)


def _instance_norm(y):
    # nn.InstanceNorm2d(affine=False): per-channel stats over H*W, biased var.
    m = _mean_hw(y)
    c = y - m
    var = _mean_hw(c * c)
    return c * lax.rsqrt(var + EPS)


def _resnet_block_kernel(x_ref, w1_ref, w2_ref, o_ref):
    # x_ref / o_ref: (C, H, W) VMEM block for one sample (batch dim squeezed).
    # w1_ref / w2_ref: (C*C*9,) f32 in SMEM.
    x = x_ref[...]
    h = jnp.maximum(_instance_norm(_conv3x3_reflect(x, w1_ref)), 0.0)
    y = _instance_norm(_conv3x3_reflect(h, w2_ref))
    o_ref[...] = x + y


def resnet_block(x, w1, b1, w2, b2):
    # b1/b2 accepted for parameter parity with nn.Conv2d but intentionally
    # unused: a per-channel constant bias is exactly removed by the following
    # InstanceNorm2d (mean subtraction; variance is shift-invariant).
    del b1, b2
    N, C, H, W = x.shape
    return pl.pallas_call(
        _resnet_block_kernel,
        out_shape=jax.ShapeDtypeStruct((N, C, H, W), jnp.float32),
        grid=(N,),
        in_specs=[
            pl.BlockSpec((None, C, H, W), lambda b: (b, 0, 0, 0)),
            pl.BlockSpec(memory_space=pltpu.MemorySpace.SMEM),
            pl.BlockSpec(memory_space=pltpu.MemorySpace.SMEM),
        ],
        out_specs=pl.BlockSpec((None, C, H, W), lambda b: (b, 0, 0, 0)),
        compiler_params=pltpu.CompilerParams(
            dimension_semantics=("parallel",)),
    )(x, w1.reshape(-1), w2.reshape(-1))


# ----------------------------------------------------------------------------
# Plain-JAX reference mirroring the PyTorch forward (with bias), for checking.
# ----------------------------------------------------------------------------
def _reflect_pad_nchw(x, p):
    return jnp.pad(x, ((0, 0), (0, 0), (p, p), (p, p)), mode="reflect")


def resnet_block_reference(x, w1, b1, w2, b2):
    dn = ("NCHW", "OIHW", "NCHW")

    def conv(v, w, b):
        y = lax.conv_general_dilated(_reflect_pad_nchw(v, 1), w, (1, 1),
                                     "VALID", dimension_numbers=dn)
        return y + b[None, :, None, None]

    def inorm(v):
        m = jnp.mean(v, axis=(2, 3), keepdims=True)
        var = jnp.mean(jnp.square(v - m), axis=(2, 3), keepdims=True)
        return (v - m) * lax.rsqrt(var + EPS)

    h = jnp.maximum(inorm(conv(x, w1, b1)), 0.0)
    return x + inorm(conv(h, w2, b2))


if __name__ == "__main__":
    key = jax.random.PRNGKey(0)
    kx, k1, k2, k3, k4 = jax.random.split(key, 5)
    N, C, H, W = 2, 4, 16, 16  # dim=4
    x = jax.random.normal(kx, (N, C, H, W), jnp.float32)

    # Deterministic parameter init (Conv2d-style uniform(-1/sqrt(fan_in), +)).
    fan_in = C * 9
    bound = 1.0 / (fan_in ** 0.5)
    w1 = jax.random.uniform(k1, (C, C, 3, 3), jnp.float32, -bound, bound)
    b1 = jax.random.uniform(k2, (C,), jnp.float32, -bound, bound)
    w2 = jax.random.uniform(k3, (C, C, 3, 3), jnp.float32, -bound, bound)
    b2 = jax.random.uniform(k4, (C,), jnp.float32, -bound, bound)

    out = jax.block_until_ready(resnet_block(x, w1, b1, w2, b2))
    ref = resnet_block_reference(x, w1, b1, w2, b2)
    assert out.shape == (N, C, H, W)
    assert jnp.allclose(out, ref, atol=1e-4, rtol=1e-4), \
        float(jnp.max(jnp.abs(out - ref)))
    print("KERNEL_OK")
</pallas_src>

<mosaic_0001>
module attributes {stable_mosaic.version = 11 : i64} {
  func.func @_resnet_block_kernel(%arg0: i32, %arg1: memref<1x4x16x16xf32, #tpu.memory_space<vmem>>, %arg2: memref<144xf32, #tpu.memory_space<smem>>, %arg3: memref<144xf32, #tpu.memory_space<smem>>, %arg4: memref<1x4x16x16xf32, #tpu.memory_space<vmem>>) attributes {dimension_semantics = [#tpu.dimension_semantics<parallel>], iteration_bounds = array<i64: 2>, scalar_prefetch = 0 : i64, scratch_operands = 0 : i64, tpu.core_type = #tpu.core_type<tc>, window_params = [{transform_indices = @transform_0, window_bounds = array<i64: 1, 4, 16, 16>}, {transform_indices = @transform_1, window_bounds = array<i64: 144>}, {transform_indices = @transform_2, window_bounds = array<i64: 144>}, {transform_indices = @transform_3, window_bounds = array<i64: 1, 4, 16, 16>}]} {
    %c0 = arith.constant 0 : index
    %c0_0 = arith.constant 0 : index
    %c0_1 = arith.constant 0 : index
    %c0_2 = arith.constant 0 : index
    %0 = vector.load %arg1[%c0, %c0_0, %c0_1, %c0_2] : memref<1x4x16x16xf32, #tpu.memory_space<vmem>>, vector<1x4x16x16xf32>
    %1 = vector.shape_cast %0 : vector<1x4x16x16xf32> to vector<4x16x16xf32>
    %2 = vector.extract_strided_slice %1 {offsets = [0, 1, 0], sizes = [4, 1, 16], strides = [1, 1, 1]} : vector<4x16x16xf32> to vector<4x1x16xf32>
    %3 = vector.extract_strided_slice %1 {offsets = [0, 14, 0], sizes = [4, 1, 16], strides = [1, 1, 1]} : vector<4x16x16xf32> to vector<4x1x16xf32>
    %4 = tpu.concatenate %2, %1, %3 in 1 : vector<4x1x16xf32>, vector<4x16x16xf32>, vector<4x1x16xf32> -> vector<4x18x16xf32>
    %5 = vector.extract_strided_slice %4 {offsets = [0, 0, 1], sizes = [4, 18, 1], strides = [1, 1, 1]} : vector<4x18x16xf32> to vector<4x18x1xf32>
    %6 = vector.extract_strided_slice %4 {offsets = [0, 0, 14], sizes = [4, 18, 1], strides = [1, 1, 1]} : vector<4x18x16xf32> to vector<4x18x1xf32>
    %7 = tpu.concatenate %5, %4, %6 in 2 : vector<4x18x1xf32>, vector<4x18x16xf32>, vector<4x18x1xf32> -> vector<4x18x18xf32>
    %8 = vector.extract_strided_slice %7 {offsets = [0, 0, 0], sizes = [1, 16, 16], strides = [1, 1, 1]} : vector<4x18x18xf32> to vector<1x16x16xf32>
    %9 = vector.shape_cast %8 : vector<1x16x16xf32> to vector<16x16xf32>
    %c0_3 = arith.constant 0 : index
    %10 = memref.load %arg2[%c0_3] : memref<144xf32, #tpu.memory_space<smem>>
    %11 = vector.broadcast %10 : f32 to vector<16x16xf32>
    %12 = arith.mulf %11, %9 : vector<16x16xf32>
    %c36 = arith.constant 36 : index
    %13 = memref.load %arg2[%c36] : memref<144xf32, #tpu.memory_space<smem>>
    %14 = vector.broadcast %13 : f32 to vector<16x16xf32>
    %15 = arith.mulf %14, %9 : vector<16x16xf32>
    %c72 = arith.constant 72 : index
    %16 = memref.load %arg2[%c72] : memref<144xf32, #tpu.memory_space<smem>>
    %17 = vector.broadcast %16 : f32 to vector<16x16xf32>
    %18 = arith.mulf %17, %9 : vector<16x16xf32>
    %c108 = arith.constant 108 : index
    %19 = memref.load %arg2[%c108] : memref<144xf32, #tpu.memory_space<smem>>
    %20 = vector.broadcast %19 : f32 to vector<16x16xf32>
    %21 = arith.mulf %20, %9 : vector<16x16xf32>
    %22 = vector.extract_strided_slice %7 {offsets = [0, 0, 1], sizes = [1, 16, 16], strides = [1, 1, 1]} : vector<4x18x18xf32> to vector<1x16x16xf32>
    %23 = vector.shape_cast %22 : vector<1x16x16xf32> to vector<16x16xf32>
    %c1 = arith.constant 1 : index
    %24 = memref.load %arg2[%c1] : memref<144xf32, #tpu.memory_space<smem>>
    %25 = vector.broadcast %24 : f32 to vector<16x16xf32>
    %26 = arith.mulf %25, %23 : vector<16x16xf32>
    %27 = arith.addf %12, %26 : vector<16x16xf32>
    %c37 = arith.constant 37 : index
    %28 = memref.load %arg2[%c37] : memref<144xf32, #tpu.memory_space<smem>>
    %29 = vector.broadcast %28 : f32 to vector<16x16xf32>
    %30 = arith.mulf %29, %23 : vector<16x16xf32>
    %31 = arith.addf %15, %30 : vector<16x16xf32>
    %c73 = arith.constant 73 : index
    %32 = memref.load %arg2[%c73] : memref<144xf32, #tpu.memory_space<smem>>
    %33 = vector.broadcast %32 : f32 to vector<16x16xf32>
    %34 = arith.mulf %33, %23 : vector<16x16xf32>
    %35 = arith.addf %18, %34 : vector<16x16xf32>
    %c109 = arith.constant 109 : index
    %36 = memref.load %arg2[%c109] : memref<144xf32, #tpu.memory_space<smem>>
    %37 = vector.broadcast %36 : f32 to vector<16x16xf32>
    %38 = arith.mulf %37, %23 : vector<16x16xf32>
    %39 = arith.addf %21, %38 : vector<16x16xf32>
    %40 = vector.extract_strided_slice %7 {offsets = [0, 0, 2], sizes = [1, 16, 16], strides = [1, 1, 1]} : vector<4x18x18xf32> to vector<1x16x16xf32>
    %41 = vector.shape_cast %40 : vector<1x16x16xf32> to vector<16x16xf32>
    %c2 = arith.constant 2 : index
    %42 = memref.load %arg2[%c2] : memref<144xf32, #tpu.memory_space<smem>>
    %43 = vector.broadcast %42 : f32 to vector<16x16xf32>
    %44 = arith.mulf %43, %41 : vector<16x16xf32>
    %45 = arith.addf %27, %44 : vector<16x16xf32>
    %c38 = arith.constant 38 : index
    %46 = memref.load %arg2[%c38] : memref<144xf32, #tpu.memory_space<smem>>
    %47 = vector.broadcast %46 : f32 to vector<16x16xf32>
    %48 = arith.mulf %47, %41 : vector<16x16xf32>
    %49 = arith.addf %31, %48 : vector<16x16xf32>
    %c74 = arith.constant 74 : index
    %50 = memref.load %arg2[%c74] : memref<144xf32, #tpu.memory_space<smem>>
    %51 = vector.broadcast %50 : f32 to vector<16x16xf32>
    %52 = arith.mulf %51, %41 : vector<16x16xf32>
    %53 = arith.addf %35, %52 : vector<16x16xf32>
    %c110 = arith.constant 110 : index
    %54 = memref.load %arg2[%c110] : memref<144xf32, #tpu.memory_space<smem>>
    %55 = vector.broadcast %54 : f32 to vector<16x16xf32>
    %56 = arith.mulf %55, %41 : vector<16x16xf32>
    %57 = arith.addf %39, %56 : vector<16x16xf32>
    %58 = vector.extract_strided_slice %7 {offsets = [0, 1, 0], sizes = [1, 16, 16], strides = [1, 1, 1]} : vector<4x18x18xf32> to vector<1x16x16xf32>
    %59 = vector.shape_cast %58 : vector<1x16x16xf32> to vector<16x16xf32>
    %c3 = arith.constant 3 : index
    %60 = memref.load %arg2[%c3] : memref<144xf32, #tpu.memory_space<smem>>
    %61 = vector.broadcast %60 : f32 to vector<16x16xf32>
    %62 = arith.mulf %61, %59 : vector<16x16xf32>
    %63 = arith.addf %45, %62 : vector<16x16xf32>
    %c39 = arith.constant 39 : index
    %64 = memref.load %arg2[%c39] : memref<144xf32, #tpu.memory_space<smem>>
    %65 = vector.broadcast %64 : f32 to vector<16x16xf32>
    %66 = arith.mulf %65, %59 : vector<16x16xf32>
    %67 = arith.addf %49, %66 : vector<16x16xf32>
    %c75 = arith.constant 75 : index
    %68 = memref.load %arg2[%c75] : memref<144xf32, #tpu.memory_space<smem>>
    %69 = vector.broadcast %68 : f32 to vector<16x16xf32>
    %70 = arith.mulf %69, %59 : vector<16x16xf32>
    %71 = arith.addf %53, %70 : vector<16x16xf32>
    %c111 = arith.constant 111 : index
    %72 = memref.load %arg2[%c111] : memref<144xf32, #tpu.memory_space<smem>>
    %73 = vector.broadcast %72 : f32 to vector<16x16xf32>
    %74 = arith.mulf %73, %59 : vector<16x16xf32>
    %75 = arith.addf %57, %74 : vector<16x16xf32>
    %76 = vector.extract_strided_slice %7 {offsets = [0, 1, 1], sizes = [1, 16, 16], strides = [1, 1, 1]} : vector<4x18x18xf32> to vector<1x16x16xf32>
    %77 = vector.shape_cast %76 : vector<1x16x16xf32> to vector<16x16xf32>
    %c4 = arith.constant 4 : index
    %78 = memref.load %arg2[%c4] : memref<144xf32, #tpu.memory_space<smem>>
    %79 = vector.broadcast %78 : f32 to vector<16x16xf32>
    %80 = arith.mulf %79, %77 : vector<16x16xf32>
    %81 = arith.addf %63, %80 : vector<16x16xf32>
    %c40 = arith.constant 40 : index
    %82 = memref.load %arg2[%c40] : memref<144xf32, #tpu.memory_space<smem>>
    %83 = vector.broadcast %82 : f32 to vector<16x16xf32>
    %84 = arith.mulf %83, %77 : vector<16x16xf32>
    %85 = arith.addf %67, %84 : vector<16x16xf32>
    %c76 = arith.constant 76 : index
    %86 = memref.load %arg2[%c76] : memref<144xf32, #tpu.memory_space<smem>>
    %87 = vector.broadcast %86 : f32 to vector<16x16xf32>
    %88 = arith.mulf %87, %77 : vector<16x16xf32>
    %89 = arith.addf %71, %88 : vector<16x16xf32>
    %c112 = arith.constant 112 : index
    %90 = memref.load %arg2[%c112] : memref<144xf32, #tpu.memory_space<smem>>
    %91 = vector.broadcast %90 : f32 to vector<16x16xf32>
    %92 = arith.mulf %91, %77 : vector<16x16xf32>
    %93 = arith.addf %75, %92 : vector<16x16xf32>
    %94 = vector.extract_strided_slice %7 {offsets = [0, 1, 2], sizes = [1, 16, 16], strides = [1, 1, 1]} : vector<4x18x18xf32> to vector<1x16x16xf32>
    %95 = vector.shape_cast %94 : vector<1x16x16xf32> to vector<16x16xf32>
    %c5 = arith.constant 5 : index
    %96 = memref.load %arg2[%c5] : memref<144xf32, #tpu.memory_space<smem>>
    %97 = vector.broadcast %96 : f32 to vector<16x16xf32>
    %98 = arith.mulf %97, %95 : vector<16x16xf32>
    %99 = arith.addf %81, %98 : vector<16x16xf32>
    %c41 = arith.constant 41 : index
    %100 = memref.load %arg2[%c41] : memref<144xf32, #tpu.memory_space<smem>>
    %101 = vector.broadcast %100 : f32 to vector<16x16xf32>
    %102 = arith.mulf %101, %95 : vector<16x16xf32>
    %103 = arith.addf %85, %102 : vector<16x16xf32>
    %c77 = arith.constant 77 : index
    %104 = memref.load %arg2[%c77] : memref<144xf32, #tpu.memory_space<smem>>
    %105 = vector.broadcast %104 : f32 to vector<16x16xf32>
    %106 = arith.mulf %105, %95 : vector<16x16xf32>
    %107 = arith.addf %89, %106 : vector<16x16xf32>
    %c113 = arith.constant 113 : index
    %108 = memref.load %arg2[%c113] : memref<144xf32, #tpu.memory_space<smem>>
    %109 = vector.broadcast %108 : f32 to vector<16x16xf32>
    %110 = arith.mulf %109, %95 : vector<16x16xf32>
    %111 = arith.addf %93, %110 : vector<16x16xf32>
    %112 = vector.extract_strided_slice %7 {offsets = [0, 2, 0], sizes = [1, 16, 16], strides = [1, 1, 1]} : vector<4x18x18xf32> to vector<1x16x16xf32>
    %113 = vector.shape_cast %112 : vector<1x16x16xf32> to vector<16x16xf32>
    %c6 = arith.constant 6 : index
    %114 = memref.load %arg2[%c6] : memref<144xf32, #tpu.memory_space<smem>>
    %115 = vector.broadcast %114 : f32 to vector<16x16xf32>
    %116 = arith.mulf %115, %113 : vector<16x16xf32>
    %117 = arith.addf %99, %116 : vector<16x16xf32>
    %c42 = arith.constant 42 : index
    %118 = memref.load %arg2[%c42] : memref<144xf32, #tpu.memory_space<smem>>
    %119 = vector.broadcast %118 : f32 to vector<16x16xf32>
    %120 = arith.mulf %119, %113 : vector<16x16xf32>
    %121 = arith.addf %103, %120 : vector<16x16xf32>
    %c78 = arith.constant 78 : index
    %122 = memref.load %arg2[%c78] : memref<144xf32, #tpu.memory_space<smem>>
    %123 = vector.broadcast %122 : f32 to vector<16x16xf32>
    %124 = arith.mulf %123, %113 : vector<16x16xf32>
    %125 = arith.addf %107, %124 : vector<16x16xf32>
    %c114 = arith.constant 114 : index
    %126 = memref.load %arg2[%c114] : memref<144xf32, #tpu.memory_space<smem>>
    %127 = vector.broadcast %126 : f32 to vector<16x16xf32>
    %128 = arith.mulf %127, %113 : vector<16x16xf32>
    %129 = arith.addf %111, %128 : vector<16x16xf32>
    %130 = vector.extract_strided_slice %7 {offsets = [0, 2, 1], sizes = [1, 16, 16], strides = [1, 1, 1]} : vector<4x18x18xf32> to vector<1x16x16xf32>
    %131 = vector.shape_cast %130 : vector<1x16x16xf32> to vector<16x16xf32>
    %c7 = arith.constant 7 : index
    %132 = memref.load %arg2[%c7] : memref<144xf32, #tpu.memory_space<smem>>
    %133 = vector.broadcast %132 : f32 to vector<16x16xf32>
    %134 = arith.mulf %133, %131 : vector<16x16xf32>
    %135 = arith.addf %117, %134 : vector<16x16xf32>
    %c43 = arith.constant 43 : index
    %136 = memref.load %arg2[%c43] : memref<144xf32, #tpu.memory_space<smem>>
    %137 = vector.broadcast %136 : f32 to vector<16x16xf32>
    %138 = arith.mulf %137, %131 : vector<16x16xf32>
    %139 = arith.addf %121, %138 : vector<16x16xf32>
    %c79 = arith.constant 79 : index
    %140 = memref.load %arg2[%c79] : memref<144xf32, #tpu.memory_space<smem>>
    %141 = vector.broadcast %140 : f32 to vector<16x16xf32>
    %142 = arith.mulf %141, %131 : vector<16x16xf32>
    %143 = arith.addf %125, %142 : vector<16x16xf32>
    %c115 = arith.constant 115 : index
    %144 = memref.load %arg2[%c115] : memref<144xf32, #tpu.memory_space<smem>>
    %145 = vector.broadcast %144 : f32 to vector<16x16xf32>
    %146 = arith.mulf %145, %131 : vector<16x16xf32>
    %147 = arith.addf %129, %146 : vector<16x16xf32>
    %148 = vector.extract_strided_slice %7 {offsets = [0, 2, 2], sizes = [1, 16, 16], strides = [1, 1, 1]} : vector<4x18x18xf32> to vector<1x16x16xf32>
    %149 = vector.shape_cast %148 : vector<1x16x16xf32> to vector<16x16xf32>
    %c8 = arith.constant 8 : index
    %150 = memref.load %arg2[%c8] : memref<144xf32, #tpu.memory_space<smem>>
    %151 = vector.broadcast %150 : f32 to vector<16x16xf32>
    %152 = arith.mulf %151, %149 : vector<16x16xf32>
    %153 = arith.addf %135, %152 : vector<16x16xf32>
    %c44 = arith.constant 44 : index
    %154 = memref.load %arg2[%c44] : memref<144xf32, #tpu.memory_space<smem>>
    %155 = vector.broadcast %154 : f32 to vector<16x16xf32>
    %156 = arith.mulf %155, %149 : vector<16x16xf32>
    %157 = arith.addf %139, %156 : vector<16x16xf32>
    %c80 = arith.constant 80 : index
    %158 = memref.load %arg2[%c80] : memref<144xf32, #tpu.memory_space<smem>>
    %159 = vector.broadcast %158 : f32 to vector<16x16xf32>
    %160 = arith.mulf %159, %149 : vector<16x16xf32>
    %161 = arith.addf %143, %160 : vector<16x16xf32>
    %c116 = arith.constant 116 : index
    %162 = memref.load %arg2[%c116] : memref<144xf32, #tpu.memory_space<smem>>
    %163 = vector.broadcast %162 : f32 to vector<16x16xf32>
    %164 = arith.mulf %163, %149 : vector<16x16xf32>
    %165 = arith.addf %147, %164 : vector<16x16xf32>
    %166 = vector.extract_strided_slice %7 {offsets = [1, 0, 0], sizes = [1, 16, 16], strides = [1, 1, 1]} : vector<4x18x18xf32> to vector<1x16x16xf32>
    %167 = vector.shape_cast %166 : vector<1x16x16xf32> to vector<16x16xf32>
    %c9 = arith.constant 9 : index
    %168 = memref.load %arg2[%c9] : memref<144xf32, #tpu.memory_space<smem>>
    %169 = vector.broadcast %168 : f32 to vector<16x16xf32>
    %170 = arith.mulf %169, %167 : vector<16x16xf32>
    %171 = arith.addf %153, %170 : vector<16x16xf32>
    %c45 = arith.constant 45 : index
    %172 = memref.load %arg2[%c45] : memref<144xf32, #tpu.memory_space<smem>>
    %173 = vector.broadcast %172 : f32 to vector<16x16xf32>
    %174 = arith.mulf %173, %167 : vector<16x16xf32>
    %175 = arith.addf %157, %174 : vector<16x16xf32>
    %c81 = arith.constant 81 : index
    %176 = memref.load %arg2[%c81] : memref<144xf32, #tpu.memory_space<smem>>
    %177 = vector.broadcast %176 : f32 to vector<16x16xf32>
    %178 = arith.mulf %177, %167 : vector<16x16xf32>
    %179 = arith.addf %161, %178 : vector<16x16xf32>
    %c117 = arith.constant 117 : index
    %180 = memref.load %arg2[%c117] : memref<144xf32, #tpu.memory_space<smem>>
    %181 = vector.broadcast %180 : f32 to vector<16x16xf32>
    %182 = arith.mulf %181, %167 : vector<16x16xf32>
    %183 = arith.addf %165, %182 : vector<16x16xf32>
    %184 = vector.extract_strided_slice %7 {offsets = [1, 0, 1], sizes = [1, 16, 16], strides = [1, 1, 1]} : vector<4x18x18xf32> to vector<1x16x16xf32>
    %185 = vector.shape_cast %184 : vector<1x16x16xf32> to vector<16x16xf32>
    %c10 = arith.constant 10 : index
    %186 = memref.load %arg2[%c10] : memref<144xf32, #tpu.memory_space<smem>>
    %187 = vector.broadcast %186 : f32 to vector<16x16xf32>
    %188 = arith.mulf %187, %185 : vector<16x16xf32>
    %189 = arith.addf %171, %188 : vector<16x16xf32>
    %c46 = arith.constant 46 : index
    %190 = memref.load %arg2[%c46] : memref<144xf32, #tpu.memory_space<smem>>
    %191 = vector.broadcast %190 : f32 to vector<16x16xf32>
    %192 = arith.mulf %191, %185 : vector<16x16xf32>
    %193 = arith.addf %175, %192 : vector<16x16xf32>
    %c82 = arith.constant 82 : index
    %194 = memref.load %arg2[%c82] : memref<144xf32, #tpu.memory_space<smem>>
    %195 = vector.broadcast %194 : f32 to vector<16x16xf32>
    %196 = arith.mulf %195, %185 : vector<16x16xf32>
    %197 = arith.addf %179, %196 : vector<16x16xf32>
    %c118 = arith.constant 118 : index
    %198 = memref.load %arg2[%c118] : memref<144xf32, #tpu.memory_space<smem>>
    %199 = vector.broadcast %198 : f32 to vector<16x16xf32>
    %200 = arith.mulf %199, %185 : vector<16x16xf32>
    %201 = arith.addf %183, %200 : vector<16x16xf32>
    %202 = vector.extract_strided_slice %7 {offsets = [1, 0, 2], sizes = [1, 16, 16], strides = [1, 1, 1]} : vector<4x18x18xf32> to vector<1x16x16xf32>
    %203 = vector.shape_cast %202 : vector<1x16x16xf32> to vector<16x16xf32>
    %c11 = arith.constant 11 : index
    %204 = memref.load %arg2[%c11] : memref<144xf32, #tpu.memory_space<smem>>
    %205 = vector.broadcast %204 : f32 to vector<16x16xf32>
    %206 = arith.mulf %205, %203 : vector<16x16xf32>
    %207 = arith.addf %189, %206 : vector<16x16xf32>
    %c47 = arith.constant 47 : index
    %208 = memref.load %arg2[%c47] : memref<144xf32, #tpu.memory_space<smem>>
    %209 = vector.broadcast %208 : f32 to vector<16x16xf32>
    %210 = arith.mulf %209, %203 : vector<16x16xf32>
    %211 = arith.addf %193, %210 : vector<16x16xf32>
    %c83 = arith.constant 83 : index
    %212 = memref.load %arg2[%c83] : memref<144xf32, #tpu.memory_space<smem>>
    %213 = vector.broadcast %212 : f32 to vector<16x16xf32>
    %214 = arith.mulf %213, %203 : vector<16x16xf32>
    %215 = arith.addf %197, %214 : vector<16x16xf32>
    %c119 = arith.constant 119 : index
    %216 = memref.load %arg2[%c119] : memref<144xf32, #tpu.memory_space<smem>>
    %217 = vector.broadcast %216 : f32 to vector<16x16xf32>
    %218 = arith.mulf %217, %203 : vector<16x16xf32>
    %219 = arith.addf %201, %218 : vector<16x16xf32>
    %220 = vector.extract_strided_slice %7 {offsets = [1, 1, 0], sizes = [1, 16, 16], strides = [1, 1, 1]} : vector<4x18x18xf32> to vector<1x16x16xf32>
    %221 = vector.shape_cast %220 : vector<1x16x16xf32> to vector<16x16xf32>
    %c12 = arith.constant 12 : index
    %222 = memref.load %arg2[%c12] : memref<144xf32, #tpu.memory_space<smem>>
    %223 = vector.broadcast %222 : f32 to vector<16x16xf32>
    %224 = arith.mulf %223, %221 : vector<16x16xf32>
    %225 = arith.addf %207, %224 : vector<16x16xf32>
    %c48 = arith.constant 48 : index
    %226 = memref.load %arg2[%c48] : memref<144xf32, #tpu.memory_space<smem>>
    %227 = vector.broadcast %226 : f32 to vector<16x16xf32>
    %228 = arith.mulf %227, %221 : vector<16x16xf32>
    %229 = arith.addf %211, %228 : vector<16x16xf32>
    %c84 = arith.constant 84 : index
    %230 = memref.load %arg2[%c84] : memref<144xf32, #tpu.memory_space<smem>>
    %231 = vector.broadcast %230 : f32 to vector<16x16xf32>
    %232 = arith.mulf %231, %221 : vector<16x16xf32>
    %233 = arith.addf %215, %232 : vector<16x16xf32>
    %c120 = arith.constant 120 : index
    %234 = memref.load %arg2[%c120] : memref<144xf32, #tpu.memory_space<smem>>
    %235 = vector.broadcast %234 : f32 to vector<16x16xf32>
    %236 = arith.mulf %235, %221 : vector<16x16xf32>
    %237 = arith.addf %219, %236 : vector<16x16xf32>
    %238 = vector.extract_strided_slice %7 {offsets = [1, 1, 1], sizes = [1, 16, 16], strides = [1, 1, 1]} : vector<4x18x18xf32> to vector<1x16x16xf32>
    %239 = vector.shape_cast %238 : vector<1x16x16xf32> to vector<16x16xf32>
    %c13 = arith.constant 13 : index
    %240 = memref.load %arg2[%c13] : memref<144xf32, #tpu.memory_space<smem>>
    %241 = vector.broadcast %240 : f32 to vector<16x16xf32>
    %242 = arith.mulf %241, %239 : vector<16x16xf32>
    %243 = arith.addf %225, %242 : vector<16x16xf32>
    %c49 = arith.constant 49 : index
    %244 = memref.load %arg2[%c49] : memref<144xf32, #tpu.memory_space<smem>>
    %245 = vector.broadcast %244 : f32 to vector<16x16xf32>
    %246 = arith.mulf %245, %239 : vector<16x16xf32>
    %247 = arith.addf %229, %246 : vector<16x16xf32>
    %c85 = arith.constant 85 : index
    %248 = memref.load %arg2[%c85] : memref<144xf32, #tpu.memory_space<smem>>
    %249 = vector.broadcast %248 : f32 to vector<16x16xf32>
    %250 = arith.mulf %249, %239 : vector<16x16xf32>
    %251 = arith.addf %233, %250 : vector<16x16xf32>
    %c121 = arith.constant 121 : index
    %252 = memref.load %arg2[%c121] : memref<144xf32, #tpu.memory_space<smem>>
    %253 = vector.broadcast %252 : f32 to vector<16x16xf32>
    %254 = arith.mulf %253, %239 : vector<16x16xf32>
    %255 = arith.addf %237, %254 : vector<16x16xf32>
    %256 = vector.extract_strided_slice %7 {offsets = [1, 1, 2], sizes = [1, 16, 16], strides = [1, 1, 1]} : vector<4x18x18xf32> to vector<1x16x16xf32>
    %257 = vector.shape_cast %256 : vector<1x16x16xf32> to vector<16x16xf32>
    %c14 = arith.constant 14 : index
    %258 = memref.load %arg2[%c14] : memref<144xf32, #tpu.memory_space<smem>>
    %259 = vector.broadcast %258 : f32 to vector<16x16xf32>
    %260 = arith.mulf %259, %257 : vector<16x16xf32>
    %261 = arith.addf %243, %260 : vector<16x16xf32>
    %c50 = arith.constant 50 : index
    %262 = memref.load %arg2[%c50] : memref<144xf32, #tpu.memory_space<smem>>
    %263 = vector.broadcast %262 : f32 to vector<16x16xf32>
    %264 = arith.mulf %263, %257 : vector<16x16xf32>
    %265 = arith.addf %247, %264 : vector<16x16xf32>
    %c86 = arith.constant 86 : index
    %266 = memref.load %arg2[%c86] : memref<144xf32, #tpu.memory_space<smem>>
    %267 = vector.broadcast %266 : f32 to vector<16x16xf32>
    %268 = arith.mulf %267, %257 : vector<16x16xf32>
    %269 = arith.addf %251, %268 : vector<16x16xf32>
    %c122 = arith.constant 122 : index
    %270 = memref.load %arg2[%c122] : memref<144xf32, #tpu.memory_space<smem>>
    %271 = vector.broadcast %270 : f32 to vector<16x16xf32>
    %272 = arith.mulf %271, %257 : vector<16x16xf32>
    %273 = arith.addf %255, %272 : vector<16x16xf32>
    %274 = vector.extract_strided_slice %7 {offsets = [1, 2, 0], sizes = [1, 16, 16], strides = [1, 1, 1]} : vector<4x18x18xf32> to vector<1x16x16xf32>
    %275 = vector.shape_cast %274 : vector<1x16x16xf32> to vector<16x16xf32>
    %c15 = arith.constant 15 : index
    %276 = memref.load %arg2[%c15] : memref<144xf32, #tpu.memory_space<smem>>
    %277 = vector.broadcast %276 : f32 to vector<16x16xf32>
    %278 = arith.mulf %277, %275 : vector<16x16xf32>
    %279 = arith.addf %261, %278 : vector<16x16xf32>
    %c51 = arith.constant 51 : index
    %280 = memref.load %arg2[%c51] : memref<144xf32, #tpu.memory_space<smem>>
    %281 = vector.broadcast %280 : f32 to vector<16x16xf32>
    %282 = arith.mulf %281, %275 : vector<16x16xf32>
    %283 = arith.addf %265, %282 : vector<16x16xf32>
    %c87 = arith.constant 87 : index
    %284 = memref.load %arg2[%c87] : memref<144xf32, #tpu.memory_space<smem>>
    %285 = vector.broadcast %284 : f32 to vector<16x16xf32>
    %286 = arith.mulf %285, %275 : vector<16x16xf32>
    %287 = arith.addf %269, %286 : vector<16x16xf32>
    %c123 = arith.constant 123 : index
    %288 = memref.load %arg2[%c123] : memref<144xf32, #tpu.memory_space<smem>>
    %289 = vector.broadcast %288 : f32 to vector<16x16xf32>
    %290 = arith.mulf %289, %275 : vector<16x16xf32>
    %291 = arith.addf %273, %290 : vector<16x16xf32>
    %292 = vector.extract_strided_slice %7 {offsets = [1, 2, 1], sizes = [1, 16, 16], strides = [1, 1, 1]} : vector<4x18x18xf32> to vector<1x16x16xf32>
    %293 = vector.shape_cast %292 : vector<1x16x16xf32> to vector<16x16xf32>
    %c16 = arith.constant 16 : index
    %294 = memref.load %arg2[%c16] : memref<144xf32, #tpu.memory_space<smem>>
    %295 = vector.broadcast %294 : f32 to vector<16x16xf32>
    %296 = arith.mulf %295, %293 : vector<16x16xf32>
    %297 = arith.addf %279, %296 : vector<16x16xf32>
    %c52 = arith.constant 52 : index
    %298 = memref.load %arg2[%c52] : memref<144xf32, #tpu.memory_space<smem>>
    %299 = vector.broadcast %298 : f32 to vector<16x16xf32>
    %300 = arith.mulf %299, %293 : vector<16x16xf32>
    %301 = arith.addf %283, %300 : vector<16x16xf32>
    %c88 = arith.constant 88 : index
    %302 = memref.load %arg2[%c88] : memref<144xf32, #tpu.memory_space<smem>>
    %303 = vector.broadcast %302 : f32 to vector<16x16xf32>
    %304 = arith.mulf %303, %293 : vector<16x16xf32>
    %305 = arith.addf %287, %304 : vector<16x16xf32>
    %c124 = arith.constant 124 : index
    %306 = memref.load %arg2[%c124] : memref<144xf32, #tpu.memory_space<smem>>
    %307 = vector.broadcast %306 : f32 to vector<16x16xf32>
    %308 = arith.mulf %307, %293 : vector<16x16xf32>
    %309 = arith.addf %291, %308 : vector<16x16xf32>
    %310 = vector.extract_strided_slice %7 {offsets = [1, 2, 2], sizes = [1, 16, 16], strides = [1, 1, 1]} : vector<4x18x18xf32> to vector<1x16x16xf32>
    %311 = vector.shape_cast %310 : vector<1x16x16xf32> to vector<16x16xf32>
    %c17 = arith.constant 17 : index
    %312 = memref.load %arg2[%c17] : memref<144xf32, #tpu.memory_space<smem>>
    %313 = vector.broadcast %312 : f32 to vector<16x16xf32>
    %314 = arith.mulf %313, %311 : vector<16x16xf32>
    %315 = arith.addf %297, %314 : vector<16x16xf32>
    %c53 = arith.constant 53 : index
    %316 = memref.load %arg2[%c53] : memref<144xf32, #tpu.memory_space<smem>>
    %317 = vector.broadcast %316 : f32 to vector<16x16xf32>
    %318 = arith.mulf %317, %311 : vector<16x16xf32>
    %319 = arith.addf %301, %318 : vector<16x16xf32>
    %c89 = arith.constant 89 : index
    %320 = memref.load %arg2[%c89] : memref<144xf32, #tpu.memory_space<smem>>
    %321 = vector.broadcast %320 : f32 to vector<16x16xf32>
    %322 = arith.mulf %321, %311 : vector<16x16xf32>
    %323 = arith.addf %305, %322 : vector<16x16xf32>
    %c125 = arith.constant 125 : index
    %324 = memref.load %arg2[%c125] : memref<144xf32, #tpu.memory_space<smem>>
    %325 = vector.broadcast %324 : f32 to vector<16x16xf32>
    %326 = arith.mulf %325, %311 : vector<16x16xf32>
    %327 = arith.addf %309, %326 : vector<16x16xf32>
    %328 = vector.extract_strided_slice %7 {offsets = [2, 0, 0], sizes = [1, 16, 16], strides = [1, 1, 1]} : vector<4x18x18xf32> to vector<1x16x16xf32>
    %329 = vector.shape_cast %328 : vector<1x16x16xf32> to vector<16x16xf32>
    %c18 = arith.constant 18 : index
    %330 = memref.load %arg2[%c18] : memref<144xf32, #tpu.memory_space<smem>>
    %331 = vector.broadcast %330 : f32 to vector<16x16xf32>
    %332 = arith.mulf %331, %329 : vector<16x16xf32>
    %333 = arith.addf %315, %332 : vector<16x16xf32>
    %c54 = arith.constant 54 : index
    %334 = memref.load %arg2[%c54] : memref<144xf32, #tpu.memory_space<smem>>
    %335 = vector.broadcast %334 : f32 to vector<16x16xf32>
    %336 = arith.mulf %335, %329 : vector<16x16xf32>
    %337 = arith.addf %319, %336 : vector<16x16xf32>
    %c90 = arith.constant 90 : index
    %338 = memref.load %arg2[%c90] : memref<144xf32, #tpu.memory_space<smem>>
    %339 = vector.broadcast %338 : f32 to vector<16x16xf32>
    %340 = arith.mulf %339, %329 : vector<16x16xf32>
    %341 = arith.addf %323, %340 : vector<16x16xf32>
    %c126 = arith.constant 126 : index
    %342 = memref.load %arg2[%c126] : memref<144xf32, #tpu.memory_space<smem>>
    %343 = vector.broadcast %342 : f32 to vector<16x16xf32>
    %344 = arith.mulf %343, %329 : vector<16x16xf32>
    %345 = arith.addf %327, %344 : vector<16x16xf32>
    %346 = vector.extract_strided_slice %7 {offsets = [2, 0, 1], sizes = [1, 16, 16], strides = [1, 1, 1]} : vector<4x18x18xf32> to vector<1x16x16xf32>
    %347 = vector.shape_cast %346 : vector<1x16x16xf32> to vector<16x16xf32>
    %c19 = arith.constant 19 : index
    %348 = memref.load %arg2[%c19] : memref<144xf32, #tpu.memory_space<smem>>
    %349 = vector.broadcast %348 : f32 to vector<16x16xf32>
    %350 = arith.mulf %349, %347 : vector<16x16xf32>
    %351 = arith.addf %333, %350 : vector<16x16xf32>
    %c55 = arith.constant 55 : index
    %352 = memref.load %arg2[%c55] : memref<144xf32, #tpu.memory_space<smem>>
    %353 = vector.broadcast %352 : f32 to vector<16x16xf32>
    %354 = arith.mulf %353, %347 : vector<16x16xf32>
    %355 = arith.addf %337, %354 : vector<16x16xf32>
    %c91 = arith.constant 91 : index
    %356 = memref.load %arg2[%c91] : memref<144xf32, #tpu.memory_space<smem>>
    %357 = vector.broadcast %356 : f32 to vector<16x16xf32>
    %358 = arith.mulf %357, %347 : vector<16x16xf32>
    %359 = arith.addf %341, %358 : vector<16x16xf32>
    %c127 = arith.constant 127 : index
    %360 = memref.load %arg2[%c127] : memref<144xf32, #tpu.memory_space<smem>>
    %361 = vector.broadcast %360 : f32 to vector<16x16xf32>
    %362 = arith.mulf %361, %347 : vector<16x16xf32>
    %363 = arith.addf %345, %362 : vector<16x16xf32>
    %364 = vector.extract_strided_slice %7 {offsets = [2, 0, 2], sizes = [1, 16, 16], strides = [1, 1, 1]} : vector<4x18x18xf32> to vector<1x16x16xf32>
    %365 = vector.shape_cast %364 : vector<1x16x16xf32> to vector<16x16xf32>
    %c20 = arith.constant 20 : index
    %366 = memref.load %arg2[%c20] : memref<144xf32, #tpu.memory_space<smem>>
    %367 = vector.broadcast %366 : f32 to vector<16x16xf32>
    %368 = arith.mulf %367, %365 : vector<16x16xf32>
    %369 = arith.addf %351, %368 : vector<16x16xf32>
    %c56 = arith.constant 56 : index
    %370 = memref.load %arg2[%c56] : memref<144xf32, #tpu.memory_space<smem>>
    %371 = vector.broadcast %370 : f32 to vector<16x16xf32>
    %372 = arith.mulf %371, %365 : vector<16x16xf32>
    %373 = arith.addf %355, %372 : vector<16x16xf32>
    %c92 = arith.constant 92 : index
    %374 = memref.load %arg2[%c92] : memref<144xf32, #tpu.memory_space<smem>>
    %375 = vector.broadcast %374 : f32 to vector<16x16xf32>
    %376 = arith.mulf %375, %365 : vector<16x16xf32>
    %377 = arith.addf %359, %376 : vector<16x16xf32>
    %c128 = arith.constant 128 : index
    %378 = memref.load %arg2[%c128] : memref<144xf32, #tpu.memory_space<smem>>
    %379 = vector.broadcast %378 : f32 to vector<16x16xf32>
    %380 = arith.mulf %379, %365 : vector<16x16xf32>
    %381 = arith.addf %363, %380 : vector<16x16xf32>
    %382 = vector.extract_strided_slice %7 {offsets = [2, 1, 0], sizes = [1, 16, 16], strides = [1, 1, 1]} : vector<4x18x18xf32> to vector<1x16x16xf32>
    %383 = vector.shape_cast %382 : vector<1x16x16xf32> to vector<16x16xf32>
    %c21 = arith.constant 21 : index
    %384 = memref.load %arg2[%c21] : memref<144xf32, #tpu.memory_space<smem>>
    %385 = vector.broadcast %384 : f32 to vector<16x16xf32>
    %386 = arith.mulf %385, %383 : vector<16x16xf32>
    %387 = arith.addf %369, %386 : vector<16x16xf32>
    %c57 = arith.constant 57 : index
    %388 = memref.load %arg2[%c57] : memref<144xf32, #tpu.memory_space<smem>>
    %389 = vector.broadcast %388 : f32 to vector<16x16xf32>
    %390 = arith.mulf %389, %383 : vector<16x16xf32>
    %391 = arith.addf %373, %390 : vector<16x16xf32>
    %c93 = arith.constant 93 : index
    %392 = memref.load %arg2[%c93] : memref<144xf32, #tpu.memory_space<smem>>
    %393 = vector.broadcast %392 : f32 to vector<16x16xf32>
    %394 = arith.mulf %393, %383 : vector<16x16xf32>
    %395 = arith.addf %377, %394 : vector<16x16xf32>
    %c129 = arith.constant 129 : index
    %396 = memref.load %arg2[%c129] : memref<144xf32, #tpu.memory_space<smem>>
    %397 = vector.broadcast %396 : f32 to vector<16x16xf32>
    %398 = arith.mulf %397, %383 : vector<16x16xf32>
    %399 = arith.addf %381, %398 : vector<16x16xf32>
    %400 = vector.extract_strided_slice %7 {offsets = [2, 1, 1], sizes = [1, 16, 16], strides = [1, 1, 1]} : vector<4x18x18xf32> to vector<1x16x16xf32>
    %401 = vector.shape_cast %400 : vector<1x16x16xf32> to vector<16x16xf32>
    %c22 = arith.constant 22 : index
    %402 = memref.load %arg2[%c22] : memref<144xf32, #tpu.memory_space<smem>>
    %403 = vector.broadcast %402 : f32 to vector<16x16xf32>
    %404 = arith.mulf %403, %401 : vector<16x16xf32>
    %405 = arith.addf %387, %404 : vector<16x16xf32>
    %c58 = arith.constant 58 : index
    %406 = memref.load %arg2[%c58] : memref<144xf32, #tpu.memory_space<smem>>
    %407 = vector.broadcast %406 : f32 to vector<16x16xf32>
    %408 = arith.mulf %407, %401 : vector<16x16xf32>
    %409 = arith.addf %391, %408 : vector<16x16xf32>
    %c94 = arith.constant 94 : index
    %410 = memref.load %arg2[%c94] : memref<144xf32, #tpu.memory_space<smem>>
    %411 = vector.broadcast %410 : f32 to vector<16x16xf32>
    %412 = arith.mulf %411, %401 : vector<16x16xf32>
    %413 = arith.addf %395, %412 : vector<16x16xf32>
    %c130 = arith.constant 130 : index
    %414 = memref.load %arg2[%c130] : memref<144xf32, #tpu.memory_space<smem>>
    %415 = vector.broadcast %414 : f32 to vector<16x16xf32>
    %416 = arith.mulf %415, %401 : vector<16x16xf32>
    %417 = arith.addf %399, %416 : vector<16x16xf32>
    %418 = vector.extract_strided_slice %7 {offsets = [2, 1, 2], sizes = [1, 16, 16], strides = [1, 1, 1]} : vector<4x18x18xf32> to vector<1x16x16xf32>
    %419 = vector.shape_cast %418 : vector<1x16x16xf32> to vector<16x16xf32>
    %c23 = arith.constant 23 : index
    %420 = memref.load %arg2[%c23] : memref<144xf32, #tpu.memory_space<smem>>
    %421 = vector.broadcast %420 : f32 to vector<16x16xf32>
    %422 = arith.mulf %421, %419 : vector<16x16xf32>
    %423 = arith.addf %405, %422 : vector<16x16xf32>
    %c59 = arith.constant 59 : index
    %424 = memref.load %arg2[%c59] : memref<144xf32, #tpu.memory_space<smem>>
    %425 = vector.broadcast %424 : f32 to vector<16x16xf32>
    %426 = arith.mulf %425, %419 : vector<16x16xf32>
    %427 = arith.addf %409, %426 : vector<16x16xf32>
    %c95 = arith.constant 95 : index
    %428 = memref.load %arg2[%c95] : memref<144xf32, #tpu.memory_space<smem>>
    %429 = vector.broadcast %428 : f32 to vector<16x16xf32>
    %430 = arith.mulf %429, %419 : vector<16x16xf32>
    %431 = arith.addf %413, %430 : vector<16x16xf32>
    %c131 = arith.constant 131 : index
    %432 = memref.load %arg2[%c131] : memref<144xf32, #tpu.memory_space<smem>>
    %433 = vector.broadcast %432 : f32 to vector<16x16xf32>
    %434 = arith.mulf %433, %419 : vector<16x16xf32>
    %435 = arith.addf %417, %434 : vector<16x16xf32>
    %436 = vector.extract_strided_slice %7 {offsets = [2, 2, 0], sizes = [1, 16, 16], strides = [1, 1, 1]} : vector<4x18x18xf32> to vector<1x16x16xf32>
    %437 = vector.shape_cast %436 : vector<1x16x16xf32> to vector<16x16xf32>
    %c24 = arith.constant 24 : index
    %438 = memref.load %arg2[%c24] : memref<144xf32, #tpu.memory_space<smem>>
    %439 = vector.broadcast %438 : f32 to vector<16x16xf32>
    %440 = arith.mulf %439, %437 : vector<16x16xf32>
    %441 = arith.addf %423, %440 : vector<16x16xf32>
    %c60 = arith.constant 60 : index
    %442 = memref.load %arg2[%c60] : memref<144xf32, #tpu.memory_space<smem>>
    %443 = vector.broadcast %442 : f32 to vector<16x16xf32>
    %444 = arith.mulf %443, %437 : vector<16x16xf32>
    %445 = arith.addf %427, %444 : vector<16x16xf32>
    %c96 = arith.constant 96 : index
    %446 = memref.load %arg2[%c96] : memref<144xf32, #tpu.memory_space<smem>>
    %447 = vector.broadcast %446 : f32 to vector<16x16xf32>
    %448 = arith.mulf %447, %437 : vector<16x16xf32>
    %449 = arith.addf %431, %448 : vector<16x16xf32>
    %c132 = arith.constant 132 : index
    %450 = memref.load %arg2[%c132] : memref<144xf32, #tpu.memory_space<smem>>
    %451 = vector.broadcast %450 : f32 to vector<16x16xf32>
    %452 = arith.mulf %451, %437 : vector<16x16xf32>
    %453 = arith.addf %435, %452 : vector<16x16xf32>
    %454 = vector.extract_strided_slice %7 {offsets = [2, 2, 1], sizes = [1, 16, 16], strides = [1, 1, 1]} : vector<4x18x18xf32> to vector<1x16x16xf32>
    %455 = vector.shape_cast %454 : vector<1x16x16xf32> to vector<16x16xf32>
    %c25 = arith.constant 25 : index
    %456 = memref.load %arg2[%c25] : memref<144xf32, #tpu.memory_space<smem>>
    %457 = vector.broadcast %456 : f32 to vector<16x16xf32>
    %458 = arith.mulf %457, %455 : vector<16x16xf32>
    %459 = arith.addf %441, %458 : vector<16x16xf32>
    %c61 = arith.constant 61 : index
    %460 = memref.load %arg2[%c61] : memref<144xf32, #tpu.memory_space<smem>>
    %461 = vector.broadcast %460 : f32 to vector<16x16xf32>
    %462 = arith.mulf %461, %455 : vector<16x16xf32>
    %463 = arith.addf %445, %462 : vector<16x16xf32>
    %c97 = arith.constant 97 : index
    %464 = memref.load %arg2[%c97] : memref<144xf32, #tpu.memory_space<smem>>
    %465 = vector.broadcast %464 : f32 to vector<16x16xf32>
    %466 = arith.mulf %465, %455 : vector<16x16xf32>
    %467 = arith.addf %449, %466 : vector<16x16xf32>
    %c133 = arith.constant 133 : index
    %468 = memref.load %arg2[%c133] : memref<144xf32, #tpu.memory_space<smem>>
    %469 = vector.broadcast %468 : f32 to vector<16x16xf32>
    %470 = arith.mulf %469, %455 : vector<16x16xf32>
    %471 = arith.addf %453, %470 : vector<16x16xf32>
    %472 = vector.extract_strided_slice %7 {offsets = [2, 2, 2], sizes = [1, 16, 16], strides = [1, 1, 1]} : vector<4x18x18xf32> to vector<1x16x16xf32>
    %473 = vector.shape_cast %472 : vector<1x16x16xf32> to vector<16x16xf32>
    %c26 = arith.constant 26 : index
    %474 = memref.load %arg2[%c26] : memref<144xf32, #tpu.memory_space<smem>>
    %475 = vector.broadcast %474 : f32 to vector<16x16xf32>
    %476 = arith.mulf %475, %473 : vector<16x16xf32>
    %477 = arith.addf %459, %476 : vector<16x16xf32>
    %c62 = arith.constant 62 : index
    %478 = memref.load %arg2[%c62] : memref<144xf32, #tpu.memory_space<smem>>
    %479 = vector.broadcast %478 : f32 to vector<16x16xf32>
    %480 = arith.mulf %479, %473 : vector<16x16xf32>
    %481 = arith.addf %463, %480 : vector<16x16xf32>
    %c98 = arith.constant 98 : index
    %482 = memref.load %arg2[%c98] : memref<144xf32, #tpu.memory_space<smem>>
    %483 = vector.broadcast %482 : f32 to vector<16x16xf32>
    %484 = arith.mulf %483, %473 : vector<16x16xf32>
    %485 = arith.addf %467, %484 : vector<16x16xf32>
    %c134 = arith.constant 134 : index
    %486 = memref.load %arg2[%c134] : memref<144xf32, #tpu.memory_space<smem>>
    %487 = vector.broadcast %486 : f32 to vector<16x16xf32>
    %488 = arith.mulf %487, %473 : vector<16x16xf32>
    %489 = arith.addf %471, %488 : vector<16x16xf32>
    %490 = vector.extract_strided_slice %7 {offsets = [3, 0, 0], sizes = [1, 16, 16], strides = [1, 1, 1]} : vector<4x18x18xf32> to vector<1x16x16xf32>
    %491 = vector.shape_cast %490 : vector<1x16x16xf32> to vector<16x16xf32>
    %c27 = arith.constant 27 : index
    %492 = memref.load %arg2[%c27] : memref<144xf32, #tpu.memory_space<smem>>
    %493 = vector.broadcast %492 : f32 to vector<16x16xf32>
    %494 = arith.mulf %493, %491 : vector<16x16xf32>
    %495 = arith.addf %477, %494 : vector<16x16xf32>
    %c63 = arith.constant 63 : index
    %496 = memref.load %arg2[%c63] : memref<144xf32, #tpu.memory_space<smem>>
    %497 = vector.broadcast %496 : f32 to vector<16x16xf32>
    %498 = arith.mulf %497, %491 : vector<16x16xf32>
    %499 = arith.addf %481, %498 : vector<16x16xf32>
    %c99 = arith.constant 99 : index
    %500 = memref.load %arg2[%c99] : memref<144xf32, #tpu.memory_space<smem>>
    %501 = vector.broadcast %500 : f32 to vector<16x16xf32>
    %502 = arith.mulf %501, %491 : vector<16x16xf32>
    %503 = arith.addf %485, %502 : vector<16x16xf32>
    %c135 = arith.constant 135 : index
    %504 = memref.load %arg2[%c135] : memref<144xf32, #tpu.memory_space<smem>>
    %505 = vector.broadcast %504 : f32 to vector<16x16xf32>
    %506 = arith.mulf %505, %491 : vector<16x16xf32>
    %507 = arith.addf %489, %506 : vector<16x16xf32>
    %508 = vector.extract_strided_slice %7 {offsets = [3, 0, 1], sizes = [1, 16, 16], strides = [1, 1, 1]} : vector<4x18x18xf32> to vector<1x16x16xf32>
    %509 = vector.shape_cast %508 : vector<1x16x16xf32> to vector<16x16xf32>
    %c28 = arith.constant 28 : index
    %510 = memref.load %arg2[%c28] : memref<144xf32, #tpu.memory_space<smem>>
    %511 = vector.broadcast %510 : f32 to vector<16x16xf32>
    %512 = arith.mulf %511, %509 : vector<16x16xf32>
    %513 = arith.addf %495, %512 : vector<16x16xf32>
    %c64 = arith.constant 64 : index
    %514 = memref.load %arg2[%c64] : memref<144xf32, #tpu.memory_space<smem>>
    %515 = vector.broadcast %514 : f32 to vector<16x16xf32>
    %516 = arith.mulf %515, %509 : vector<16x16xf32>
    %517 = arith.addf %499, %516 : vector<16x16xf32>
    %c100 = arith.constant 100 : index
    %518 = memref.load %arg2[%c100] : memref<144xf32, #tpu.memory_space<smem>>
    %519 = vector.broadcast %518 : f32 to vector<16x16xf32>
    %520 = arith.mulf %519, %509 : vector<16x16xf32>
    %521 = arith.addf %503, %520 : vector<16x16xf32>
    %c136 = arith.constant 136 : index
    %522 = memref.load %arg2[%c136] : memref<144xf32, #tpu.memory_space<smem>>
    %523 = vector.broadcast %522 : f32 to vector<16x16xf32>
    %524 = arith.mulf %523, %509 : vector<16x16xf32>
    %525 = arith.addf %507, %524 : vector<16x16xf32>
    %526 = vector.extract_strided_slice %7 {offsets = [3, 0, 2], sizes = [1, 16, 16], strides = [1, 1, 1]} : vector<4x18x18xf32> to vector<1x16x16xf32>
    %527 = vector.shape_cast %526 : vector<1x16x16xf32> to vector<16x16xf32>
    %c29 = arith.constant 29 : index
    %528 = memref.load %arg2[%c29] : memref<144xf32, #tpu.memory_space<smem>>
    %529 = vector.broadcast %528 : f32 to vector<16x16xf32>
    %530 = arith.mulf %529, %527 : vector<16x16xf32>
    %531 = arith.addf %513, %530 : vector<16x16xf32>
    %c65 = arith.constant 65 : index
    %532 = memref.load %arg2[%c65] : memref<144xf32, #tpu.memory_space<smem>>
    %533 = vector.broadcast %532 : f32 to vector<16x16xf32>
    %534 = arith.mulf %533, %527 : vector<16x16xf32>
    %535 = arith.addf %517, %534 : vector<16x16xf32>
    %c101 = arith.constant 101 : index
    %536 = memref.load %arg2[%c101] : memref<144xf32, #tpu.memory_space<smem>>
    %537 = vector.broadcast %536 : f32 to vector<16x16xf32>
    %538 = arith.mulf %537, %527 : vector<16x16xf32>
    %539 = arith.addf %521, %538 : vector<16x16xf32>
    %c137 = arith.constant 137 : index
    %540 = memref.load %arg2[%c137] : memref<144xf32, #tpu.memory_space<smem>>
    %541 = vector.broadcast %540 : f32 to vector<16x16xf32>
    %542 = arith.mulf %541, %527 : vector<16x16xf32>
    %543 = arith.addf %525, %542 : vector<16x16xf32>
    %544 = vector.extract_strided_slice %7 {offsets = [3, 1, 0], sizes = [1, 16, 16], strides = [1, 1, 1]} : vector<4x18x18xf32> to vector<1x16x16xf32>
    %545 = vector.shape_cast %544 : vector<1x16x16xf32> to vector<16x16xf32>
    %c30 = arith.constant 30 : index
    %546 = memref.load %arg2[%c30] : memref<144xf32, #tpu.memory_space<smem>>
    %547 = vector.broadcast %546 : f32 to vector<16x16xf32>
    %548 = arith.mulf %547, %545 : vector<16x16xf32>
    %549 = arith.addf %531, %548 : vector<16x16xf32>
    %c66 = arith.constant 66 : index
    %550 = memref.load %arg2[%c66] : memref<144xf32, #tpu.memory_space<smem>>
    %551 = vector.broadcast %550 : f32 to vector<16x16xf32>
    %552 = arith.mulf %551, %545 : vector<16x16xf32>
    %553 = arith.addf %535, %552 : vector<16x16xf32>
    %c102 = arith.constant 102 : index
    %554 = memref.load %arg2[%c102] : memref<144xf32, #tpu.memory_space<smem>>
    %555 = vector.broadcast %554 : f32 to vector<16x16xf32>
    %556 = arith.mulf %555, %545 : vector<16x16xf32>
    %557 = arith.addf %539, %556 : vector<16x16xf32>
    %c138 = arith.constant 138 : index
    %558 = memref.load %arg2[%c138] : memref<144xf32, #tpu.memory_space<smem>>
    %559 = vector.broadcast %558 : f32 to vector<16x16xf32>
    %560 = arith.mulf %559, %545 : vector<16x16xf32>
    %561 = arith.addf %543, %560 : vector<16x16xf32>
    %562 = vector.extract_strided_slice %7 {offsets = [3, 1, 1], sizes = [1, 16, 16], strides = [1, 1, 1]} : vector<4x18x18xf32> to vector<1x16x16xf32>
    %563 = vector.shape_cast %562 : vector<1x16x16xf32> to vector<16x16xf32>
    %c31 = arith.constant 31 : index
    %564 = memref.load %arg2[%c31] : memref<144xf32, #tpu.memory_space<smem>>
    %565 = vector.broadcast %564 : f32 to vector<16x16xf32>
    %566 = arith.mulf %565, %563 : vector<16x16xf32>
    %567 = arith.addf %549, %566 : vector<16x16xf32>
    %c67 = arith.constant 67 : index
    %568 = memref.load %arg2[%c67] : memref<144xf32, #tpu.memory_space<smem>>
    %569 = vector.broadcast %568 : f32 to vector<16x16xf32>
    %570 = arith.mulf %569, %563 : vector<16x16xf32>
    %571 = arith.addf %553, %570 : vector<16x16xf32>
    %c103 = arith.constant 103 : index
    %572 = memref.load %arg2[%c103] : memref<144xf32, #tpu.memory_space<smem>>
    %573 = vector.broadcast %572 : f32 to vector<16x16xf32>
    %574 = arith.mulf %573, %563 : vector<16x16xf32>
    %575 = arith.addf %557, %574 : vector<16x16xf32>
    %c139 = arith.constant 139 : index
    %576 = memref.load %arg2[%c139] : memref<144xf32, #tpu.memory_space<smem>>
    %577 = vector.broadcast %576 : f32 to vector<16x16xf32>
    %578 = arith.mulf %577, %563 : vector<16x16xf32>
    %579 = arith.addf %561, %578 : vector<16x16xf32>
    %580 = vector.extract_strided_slice %7 {offsets = [3, 1, 2], sizes = [1, 16, 16], strides = [1, 1, 1]} : vector<4x18x18xf32> to vector<1x16x16xf32>
    %581 = vector.shape_cast %580 : vector<1x16x16xf32> to vector<16x16xf32>
    %c32 = arith.constant 32 : index
    %582 = memref.load %arg2[%c32] : memref<144xf32, #tpu.memory_space<smem>>
    %583 = vector.broadcast %582 : f32 to vector<16x16xf32>
    %584 = arith.mulf %583, %581 : vector<16x16xf32>
    %585 = arith.addf %567, %584 : vector<16x16xf32>
    %c68 = arith.constant 68 : index
    %586 = memref.load %arg2[%c68] : memref<144xf32, #tpu.memory_space<smem>>
    %587 = vector.broadcast %586 : f32 to vector<16x16xf32>
    %588 = arith.mulf %587, %581 : vector<16x16xf32>
    %589 = arith.addf %571, %588 : vector<16x16xf32>
    %c104 = arith.constant 104 : index
    %590 = memref.load %arg2[%c104] : memref<144xf32, #tpu.memory_space<smem>>
    %591 = vector.broadcast %590 : f32 to vector<16x16xf32>
    %592 = arith.mulf %591, %581 : vector<16x16xf32>
    %593 = arith.addf %575, %592 : vector<16x16xf32>
    %c140 = arith.constant 140 : index
    %594 = memref.load %arg2[%c140] : memref<144xf32, #tpu.memory_space<smem>>
    %595 = vector.broadcast %594 : f32 to vector<16x16xf32>
    %596 = arith.mulf %595, %581 : vector<16x16xf32>
    %597 = arith.addf %579, %596 : vector<16x16xf32>
    %598 = vector.extract_strided_slice %7 {offsets = [3, 2, 0], sizes = [1, 16, 16], strides = [1, 1, 1]} : vector<4x18x18xf32> to vector<1x16x16xf32>
    %599 = vector.shape_cast %598 : vector<1x16x16xf32> to vector<16x16xf32>
    %c33 = arith.constant 33 : index
    %600 = memref.load %arg2[%c33] : memref<144xf32, #tpu.memory_space<smem>>
    %601 = vector.broadcast %600 : f32 to vector<16x16xf32>
    %602 = arith.mulf %601, %599 : vector<16x16xf32>
    %603 = arith.addf %585, %602 : vector<16x16xf32>
    %c69 = arith.constant 69 : index
    %604 = memref.load %arg2[%c69] : memref<144xf32, #tpu.memory_space<smem>>
    %605 = vector.broadcast %604 : f32 to vector<16x16xf32>
    %606 = arith.mulf %605, %599 : vector<16x16xf32>
    %607 = arith.addf %589, %606 : vector<16x16xf32>
    %c105 = arith.constant 105 : index
    %608 = memref.load %arg2[%c105] : memref<144xf32, #tpu.memory_space<smem>>
    %609 = vector.broadcast %608 : f32 to vector<16x16xf32>
    %610 = arith.mulf %609, %599 : vector<16x16xf32>
    %611 = arith.addf %593, %610 : vector<16x16xf32>
    %c141 = arith.constant 141 : index
    %612 = memref.load %arg2[%c141] : memref<144xf32, #tpu.memory_space<smem>>
    %613 = vector.broadcast %612 : f32 to vector<16x16xf32>
    %614 = arith.mulf %613, %599 : vector<16x16xf32>
    %615 = arith.addf %597, %614 : vector<16x16xf32>
    %616 = vector.extract_strided_slice %7 {offsets = [3, 2, 1], sizes = [1, 16, 16], strides = [1, 1, 1]} : vector<4x18x18xf32> to vector<1x16x16xf32>
    %617 = vector.shape_cast %616 : vector<1x16x16xf32> to vector<16x16xf32>
    %c34 = arith.constant 34 : index
    %618 = memref.load %arg2[%c34] : memref<144xf32, #tpu.memory_space<smem>>
    %619 = vector.broadcast %618 : f32 to vector<16x16xf32>
    %620 = arith.mulf %619, %617 : vector<16x16xf32>
    %621 = arith.addf %603, %620 : vector<16x16xf32>
    %c70 = arith.constant 70 : index
    %622 = memref.load %arg2[%c70] : memref<144xf32, #tpu.memory_space<smem>>
    %623 = vector.broadcast %622 : f32 to vector<16x16xf32>
    %624 = arith.mulf %623, %617 : vector<16x16xf32>
    %625 = arith.addf %607, %624 : vector<16x16xf32>
    %c106 = arith.constant 106 : index
    %626 = memref.load %arg2[%c106] : memref<144xf32, #tpu.memory_space<smem>>
    %627 = vector.broadcast %626 : f32 to vector<16x16xf32>
    %628 = arith.mulf %627, %617 : vector<16x16xf32>
    %629 = arith.addf %611, %628 : vector<16x16xf32>
    %c142 = arith.constant 142 : index
    %630 = memref.load %arg2[%c142] : memref<144xf32, #tpu.memory_space<smem>>
    %631 = vector.broadcast %630 : f32 to vector<16x16xf32>
    %632 = arith.mulf %631, %617 : vector<16x16xf32>
    %633 = arith.addf %615, %632 : vector<16x16xf32>
    %634 = vector.extract_strided_slice %7 {offsets = [3, 2, 2], sizes = [1, 16, 16], strides = [1, 1, 1]} : vector<4x18x18xf32> to vector<1x16x16xf32>
    %635 = vector.shape_cast %634 : vector<1x16x16xf32> to vector<16x16xf32>
    %c35 = arith.constant 35 : index
    %636 = memref.load %arg2[%c35] : memref<144xf32, #tpu.memory_space<smem>>
    %637 = vector.broadcast %636 : f32 to vector<16x16xf32>
    %638 = arith.mulf %637, %635 : vector<16x16xf32>
    %639 = arith.addf %621, %638 : vector<16x16xf32>
    %c71 = arith.constant 71 : index
    %640 = memref.load %arg2[%c71] : memref<144xf32, #tpu.memory_space<smem>>
    %641 = vector.broadcast %640 : f32 to vector<16x16xf32>
    %642 = arith.mulf %641, %635 : vector<16x16xf32>
    %643 = arith.addf %625, %642 : vector<16x16xf32>
    %c107 = arith.constant 107 : index
    %644 = memref.load %arg2[%c107] : memref<144xf32, #tpu.memory_space<smem>>
    %645 = vector.broadcast %644 : f32 to vector<16x16xf32>
    %646 = arith.mulf %645, %635 : vector<16x16xf32>
    %647 = arith.addf %629, %646 : vector<16x16xf32>
    %c143 = arith.constant 143 : index
    %648 = memref.load %arg2[%c143] : memref<144xf32, #tpu.memory_space<smem>>
    %649 = vector.broadcast %648 : f32 to vector<16x16xf32>
    %650 = arith.mulf %649, %635 : vector<16x16xf32>
    %651 = arith.addf %633, %650 : vector<16x16xf32>
    %652 = vector.shape_cast %639 : vector<16x16xf32> to vector<1x16x16xf32>
    %653 = vector.shape_cast %643 : vector<16x16xf32> to vector<1x16x16xf32>
    %654 = vector.shape_cast %647 : vector<16x16xf32> to vector<1x16x16xf32>
    %655 = vector.shape_cast %651 : vector<16x16xf32> to vector<1x16x16xf32>
    %656 = tpu.concatenate %652, %653, %654, %655 in 0 : vector<1x16x16xf32>, vector<1x16x16xf32>, vector<1x16x16xf32>, vector<1x16x16xf32> -> vector<4x16x16xf32>
    %cst = arith.constant dense<0.000000e+00> : vector<4x16xf32>
    %657 = vector.multi_reduction <add>, %656, %cst [2] : vector<4x16x16xf32> to vector<4x16xf32>
    %658 = vector.shape_cast %657 : vector<4x16xf32> to vector<4x16x1xf32>
    %cst_4 = arith.constant 1.600000e+01 : f32
    %659 = vector.broadcast %cst_4 : f32 to vector<4x16x1xf32>
    %660 = arith.divf %658, %659 : vector<4x16x1xf32>
    %cst_5 = arith.constant dense<0.000000e+00> : vector<4x1xf32>
    %661 = vector.multi_reduction <add>, %660, %cst_5 [1] : vector<4x16x1xf32> to vector<4x1xf32>
    %662 = vector.shape_cast %661 : vector<4x1xf32> to vector<4x1x1xf32>
    %cst_6 = arith.constant 1.600000e+01 : f32
    %663 = vector.broadcast %cst_6 : f32 to vector<4x1x1xf32>
    %664 = arith.divf %662, %663 : vector<4x1x1xf32>
    %665 = vector.broadcast %664 : vector<4x1x1xf32> to vector<4x16x16xf32>
    %666 = arith.subf %656, %665 : vector<4x16x16xf32>
    %667 = arith.mulf %666, %666 : vector<4x16x16xf32>
    %cst_7 = arith.constant dense<0.000000e+00> : vector<4x16xf32>
    %668 = vector.multi_reduction <add>, %667, %cst_7 [2] : vector<4x16x16xf32> to vector<4x16xf32>
    %669 = vector.shape_cast %668 : vector<4x16xf32> to vector<4x16x1xf32>
    %cst_8 = arith.constant 1.600000e+01 : f32
    %670 = vector.broadcast %cst_8 : f32 to vector<4x16x1xf32>
    %671 = arith.divf %669, %670 : vector<4x16x1xf32>
    %cst_9 = arith.constant dense<0.000000e+00> : vector<4x1xf32>
    %672 = vector.multi_reduction <add>, %671, %cst_9 [1] : vector<4x16x1xf32> to vector<4x1xf32>
    %673 = vector.shape_cast %672 : vector<4x1xf32> to vector<4x1x1xf32>
    %cst_10 = arith.constant 1.600000e+01 : f32
    %674 = vector.broadcast %cst_10 : f32 to vector<4x1x1xf32>
    %675 = arith.divf %673, %674 : vector<4x1x1xf32>
    %cst_11 = arith.constant 9.99999974E-6 : f32
    %676 = vector.broadcast %cst_11 : f32 to vector<4x1x1xf32>
    %677 = arith.addf %675, %676 : vector<4x1x1xf32>
    %678 = math.rsqrt %677 : vector<4x1x1xf32>
    %679 = vector.broadcast %678 : vector<4x1x1xf32> to vector<4x16x16xf32>
    %680 = arith.mulf %666, %679 : vector<4x16x16xf32>
    %cst_12 = arith.constant 0.000000e+00 : f32
    %681 = vector.broadcast %cst_12 : f32 to vector<4x16x16xf32>
    %682 = arith.maximumf %680, %681 : vector<4x16x16xf32>
    %683 = vector.extract_strided_slice %682 {offsets = [0, 1, 0], sizes = [4, 1, 16], strides = [1, 1, 1]} : vector<4x16x16xf32> to vector<4x1x16xf32>
    %684 = vector.extract_strided_slice %682 {offsets = [0, 14, 0], sizes = [4, 1, 16], strides = [1, 1, 1]} : vector<4x16x16xf32> to vector<4x1x16xf32>
    %685 = tpu.concatenate %683, %682, %684 in 1 : vector<4x1x16xf32>, vector<4x16x16xf32>, vector<4x1x16xf32> -> vector<4x18x16xf32>
    %686 = vector.extract_strided_slice %685 {offsets = [0, 0, 1], sizes = [4, 18, 1], strides = [1, 1, 1]} : vector<4x18x16xf32> to vector<4x18x1xf32>
    %687 = vector.extract_strided_slice %685 {offsets = [0, 0, 14], sizes = [4, 18, 1], strides = [1, 1, 1]} : vector<4x18x16xf32> to vector<4x18x1xf32>
    %688 = tpu.concatenate %686, %685, %687 in 2 : vector<4x18x1xf32>, vector<4x18x16xf32>, vector<4x18x1xf32> -> vector<4x18x18xf32>
    %689 = vector.extract_strided_slice %688 {offsets = [0, 0, 0], sizes = [1, 16, 16], strides = [1, 1, 1]} : vector<4x18x18xf32> to vector<1x16x16xf32>
    %690 = vector.shape_cast %689 : vector<1x16x16xf32> to vector<16x16xf32>
    %c0_13 = arith.constant 0 : index
    %691 = memref.load %arg3[%c0_13] : memref<144xf32, #tpu.memory_space<smem>>
    %692 = vector.broadcast %691 : f32 to vector<16x16xf32>
    %693 = arith.mulf %692, %690 : vector<16x16xf32>
    %c36_14 = arith.constant 36 : index
    %694 = memref.load %arg3[%c36_14] : memref<144xf32, #tpu.memory_space<smem>>
    %695 = vector.broadcast %694 : f32 to vector<16x16xf32>
    %696 = arith.mulf %695, %690 : vector<16x16xf32>
    %c72_15 = arith.constant 72 : index
    %697 = memref.load %arg3[%c72_15] : memref<144xf32, #tpu.memory_space<smem>>
    %698 = vector.broadcast %697 : f32 to vector<16x16xf32>
    %699 = arith.mulf %698, %690 : vector<16x16xf32>
    %c108_16 = arith.constant 108 : index
    %700 = memref.load %arg3[%c108_16] : memref<144xf32, #tpu.memory_space<smem>>
    %701 = vector.broadcast %700 : f32 to vector<16x16xf32>
    %702 = arith.mulf %701, %690 : vector<16x16xf32>
    %703 = vector.extract_strided_slice %688 {offsets = [0, 0, 1], sizes = [1, 16, 16], strides = [1, 1, 1]} : vector<4x18x18xf32> to vector<1x16x16xf32>
    %704 = vector.shape_cast %703 : vector<1x16x16xf32> to vector<16x16xf32>
    %c1_17 = arith.constant 1 : index
    %705 = memref.load %arg3[%c1_17] : memref<144xf32, #tpu.memory_space<smem>>
    %706 = vector.broadcast %705 : f32 to vector<16x16xf32>
    %707 = arith.mulf %706, %704 : vector<16x16xf32>
    %708 = arith.addf %693, %707 : vector<16x16xf32>
    %c37_18 = arith.constant 37 : index
    %709 = memref.load %arg3[%c37_18] : memref<144xf32, #tpu.memory_space<smem>>
    %710 = vector.broadcast %709 : f32 to vector<16x16xf32>
    %711 = arith.mulf %710, %704 : vector<16x16xf32>
    %712 = arith.addf %696, %711 : vector<16x16xf32>
    %c73_19 = arith.constant 73 : index
    %713 = memref.load %arg3[%c73_19] : memref<144xf32, #tpu.memory_space<smem>>
    %714 = vector.broadcast %713 : f32 to vector<16x16xf32>
    %715 = arith.mulf %714, %704 : vector<16x16xf32>
    %716 = arith.addf %699, %715 : vector<16x16xf32>
    %c109_20 = arith.constant 109 : index
    %717 = memref.load %arg3[%c109_20] : memref<144xf32, #tpu.memory_space<smem>>
    %718 = vector.broadcast %717 : f32 to vector<16x16xf32>
    %719 = arith.mulf %718, %704 : vector<16x16xf32>
    %720 = arith.addf %702, %719 : vector<16x16xf32>
    %721 = vector.extract_strided_slice %688 {offsets = [0, 0, 2], sizes = [1, 16, 16], strides = [1, 1, 1]} : vector<4x18x18xf32> to vector<1x16x16xf32>
    %722 = vector.shape_cast %721 : vector<1x16x16xf32> to vector<16x16xf32>
    %c2_21 = arith.constant 2 : index
    %723 = memref.load %arg3[%c2_21] : memref<144xf32, #tpu.memory_space<smem>>
    %724 = vector.broadcast %723 : f32 to vector<16x16xf32>
    %725 = arith.mulf %724, %722 : vector<16x16xf32>
    %726 = arith.addf %708, %725 : vector<16x16xf32>
    %c38_22 = arith.constant 38 : index
    %727 = memref.load %arg3[%c38_22] : memref<144xf32, #tpu.memory_space<smem>>
    %728 = vector.broadcast %727 : f32 to vector<16x16xf32>
    %729 = arith.mulf %728, %722 : vector<16x16xf32>
    %730 = arith.addf %712, %729 : vector<16x16xf32>
    %c74_23 = arith.constant 74 : index
    %731 = memref.load %arg3[%c74_23] : memref<144xf32, #tpu.memory_space<smem>>
    %732 = vector.broadcast %731 : f32 to vector<16x16xf32>
    %733 = arith.mulf %732, %722 : vector<16x16xf32>
    %734 = arith.addf %716, %733 : vector<16x16xf32>
    %c110_24 = arith.constant 110 : index
    %735 = memref.load %arg3[%c110_24] : memref<144xf32, #tpu.memory_space<smem>>
    %736 = vector.broadcast %735 : f32 to vector<16x16xf32>
    %737 = arith.mulf %736, %722 : vector<16x16xf32>
    %738 = arith.addf %720, %737 : vector<16x16xf32>
    %739 = vector.extract_strided_slice %688 {offsets = [0, 1, 0], sizes = [1, 16, 16], strides = [1, 1, 1]} : vector<4x18x18xf32> to vector<1x16x16xf32>
    %740 = vector.shape_cast %739 : vector<1x16x16xf32> to vector<16x16xf32>
    %c3_25 = arith.constant 3 : index
    %741 = memref.load %arg3[%c3_25] : memref<144xf32, #tpu.memory_space<smem>>
    %742 = vector.broadcast %741 : f32 to vector<16x16xf32>
    %743 = arith.mulf %742, %740 : vector<16x16xf32>
    %744 = arith.addf %726, %743 : vector<16x16xf32>
    %c39_26 = arith.constant 39 : index
    %745 = memref.load %arg3[%c39_26] : memref<144xf32, #tpu.memory_space<smem>>
    %746 = vector.broadcast %745 : f32 to vector<16x16xf32>
    %747 = arith.mulf %746, %740 : vector<16x16xf32>
    %748 = arith.addf %730, %747 : vector<16x16xf32>
    %c75_27 = arith.constant 75 : index
    %749 = memref.load %arg3[%c75_27] : memref<144xf32, #tpu.memory_space<smem>>
    %750 = vector.broadcast %749 : f32 to vector<16x16xf32>
    %751 = arith.mulf %750, %740 : vector<16x16xf32>
    %752 = arith.addf %734, %751 : vector<16x16xf32>
    %c111_28 = arith.constant 111 : index
    %753 = memref.load %arg3[%c111_28] : memref<144xf32, #tpu.memory_space<smem>>
    %754 = vector.broadcast %753 : f32 to vector<16x16xf32>
    %755 = arith.mulf %754, %740 : vector<16x16xf32>
    %756 = arith.addf %738, %755 : vector<16x16xf32>
    %757 = vector.extract_strided_slice %688 {offsets = [0, 1, 1], sizes = [1, 16, 16], strides = [1, 1, 1]} : vector<4x18x18xf32> to vector<1x16x16xf32>
    %758 = vector.shape_cast %757 : vector<1x16x16xf32> to vector<16x16xf32>
    %c4_29 = arith.constant 4 : index
    %759 = memref.load %arg3[%c4_29] : memref<144xf32, #tpu.memory_space<smem>>
    %760 = vector.broadcast %759 : f32 to vector<16x16xf32>
    %761 = arith.mulf %760, %758 : vector<16x16xf32>
    %762 = arith.addf %744, %761 : vector<16x16xf32>
    %c40_30 = arith.constant 40 : index
    %763 = memref.load %arg3[%c40_30] : memref<144xf32, #tpu.memory_space<smem>>
    %764 = vector.broadcast %763 : f32 to vector<16x16xf32>
    %765 = arith.mulf %764, %758 : vector<16x16xf32>
    %766 = arith.addf %748, %765 : vector<16x16xf32>
    %c76_31 = arith.constant 76 : index
    %767 = memref.load %arg3[%c76_31] : memref<144xf32, #tpu.memory_space<smem>>
    %768 = vector.broadcast %767 : f32 to vector<16x16xf32>
    %769 = arith.mulf %768, %758 : vector<16x16xf32>
    %770 = arith.addf %752, %769 : vector<16x16xf32>
    %c112_32 = arith.constant 112 : index
    %771 = memref.load %arg3[%c112_32] : memref<144xf32, #tpu.memory_space<smem>>
    %772 = vector.broadcast %771 : f32 to vector<16x16xf32>
    %773 = arith.mulf %772, %758 : vector<16x16xf32>
    %774 = arith.addf %756, %773 : vector<16x16xf32>
    %775 = vector.extract_strided_slice %688 {offsets = [0, 1, 2], sizes = [1, 16, 16], strides = [1, 1, 1]} : vector<4x18x18xf32> to vector<1x16x16xf32>
    %776 = vector.shape_cast %775 : vector<1x16x16xf32> to vector<16x16xf32>
    %c5_33 = arith.constant 5 : index
    %777 = memref.load %arg3[%c5_33] : memref<144xf32, #tpu.memory_space<smem>>
    %778 = vector.broadcast %777 : f32 to vector<16x16xf32>
    %779 = arith.mulf %778, %776 : vector<16x16xf32>
    %780 = arith.addf %762, %779 : vector<16x16xf32>
    %c41_34 = arith.constant 41 : index
    %781 = memref.load %arg3[%c41_34] : memref<144xf32, #tpu.memory_space<smem>>
    %782 = vector.broadcast %781 : f32 to vector<16x16xf32>
    %783 = arith.mulf %782, %776 : vector<16x16xf32>
    %784 = arith.addf %766, %783 : vector<16x16xf32>
    %c77_35 = arith.constant 77 : index
    %785 = memref.load %arg3[%c77_35] : memref<144xf32, #tpu.memory_space<smem>>
    %786 = vector.broadcast %785 : f32 to vector<16x16xf32>
    %787 = arith.mulf %786, %776 : vector<16x16xf32>
    %788 = arith.addf %770, %787 : vector<16x16xf32>
    %c113_36 = arith.constant 113 : index
    %789 = memref.load %arg3[%c113_36] : memref<144xf32, #tpu.memory_space<smem>>
    %790 = vector.broadcast %789 : f32 to vector<16x16xf32>
    %791 = arith.mulf %790, %776 : vector<16x16xf32>
    %792 = arith.addf %774, %791 : vector<16x16xf32>
    %793 = vector.extract_strided_slice %688 {offsets = [0, 2, 0], sizes = [1, 16, 16], strides = [1, 1, 1]} : vector<4x18x18xf32> to vector<1x16x16xf32>
    %794 = vector.shape_cast %793 : vector<1x16x16xf32> to vector<16x16xf32>
    %c6_37 = arith.constant 6 : index
    %795 = memref.load %arg3[%c6_37] : memref<144xf32, #tpu.memory_space<smem>>
    %796 = vector.broadcast %795 : f32 to vector<16x16xf32>
    %797 = arith.mulf %796, %794 : vector<16x16xf32>
    %798 = arith.addf %780, %797 : vector<16x16xf32>
    %c42_38 = arith.constant 42 : index
    %799 = memref.load %arg3[%c42_38] : memref<144xf32, #tpu.memory_space<smem>>
    %800 = vector.broadcast %799 : f32 to vector<16x16xf32>
    %801 = arith.mulf %800, %794 : vector<16x16xf32>
    %802 = arith.addf %784, %801 : vector<16x16xf32>
    %c78_39 = arith.constant 78 : index
    %803 = memref.load %arg3[%c78_39] : memref<144xf32, #tpu.memory_space<smem>>
    %804 = vector.broadcast %803 : f32 to vector<16x16xf32>
    %805 = arith.mulf %804, %794 : vector<16x16xf32>
    %806 = arith.addf %788, %805 : vector<16x16xf32>
    %c114_40 = arith.constant 114 : index
    %807 = memref.load %arg3[%c114_40] : memref<144xf32, #tpu.memory_space<smem>>
    %808 = vector.broadcast %807 : f32 to vector<16x16xf32>
    %809 = arith.mulf %808, %794 : vector<16x16xf32>
    %810 = arith.addf %792, %809 : vector<16x16xf32>
    %811 = vector.extract_strided_slice %688 {offsets = [0, 2, 1], sizes = [1, 16, 16], strides = [1, 1, 1]} : vector<4x18x18xf32> to vector<1x16x16xf32>
    %812 = vector.shape_cast %811 : vector<1x16x16xf32> to vector<16x16xf32>
    %c7_41 = arith.constant 7 : index
    %813 = memref.load %arg3[%c7_41] : memref<144xf32, #tpu.memory_space<smem>>
    %814 = vector.broadcast %813 : f32 to vector<16x16xf32>
    %815 = arith.mulf %814, %812 : vector<16x16xf32>
    %816 = arith.addf %798, %815 : vector<16x16xf32>
    %c43_42 = arith.constant 43 : index
    %817 = memref.load %arg3[%c43_42] : memref<144xf32, #tpu.memory_space<smem>>
    %818 = vector.broadcast %817 : f32 to vector<16x16xf32>
    %819 = arith.mulf %818, %812 : vector<16x16xf32>
    %820 = arith.addf %802, %819 : vector<16x16xf32>
    %c79_43 = arith.constant 79 : index
    %821 = memref.load %arg3[%c79_43] : memref<144xf32, #tpu.memory_space<smem>>
    %822 = vector.broadcast %821 : f32 to vector<16x16xf32>
    %823 = arith.mulf %822, %812 : vector<16x16xf32>
    %824 = arith.addf %806, %823 : vector<16x16xf32>
    %c115_44 = arith.constant 115 : index
    %825 = memref.load %arg3[%c115_44] : memref<144xf32, #tpu.memory_space<smem>>
    %826 = vector.broadcast %825 : f32 to vector<16x16xf32>
    %827 = arith.mulf %826, %812 : vector<16x16xf32>
    %828 = arith.addf %810, %827 : vector<16x16xf32>
    %829 = vector.extract_strided_slice %688 {offsets = [0, 2, 2], sizes = [1, 16, 16], strides = [1, 1, 1]} : vector<4x18x18xf32> to vector<1x16x16xf32>
    %830 = vector.shape_cast %829 : vector<1x16x16xf32> to vector<16x16xf32>
    %c8_45 = arith.constant 8 : index
    %831 = memref.load %arg3[%c8_45] : memref<144xf32, #tpu.memory_space<smem>>
    %832 = vector.broadcast %831 : f32 to vector<16x16xf32>
    %833 = arith.mulf %832, %830 : vector<16x16xf32>
    %834 = arith.addf %816, %833 : vector<16x16xf32>
    %c44_46 = arith.constant 44 : index
    %835 = memref.load %arg3[%c44_46] : memref<144xf32, #tpu.memory_space<smem>>
    %836 = vector.broadcast %835 : f32 to vector<16x16xf32>
    %837 = arith.mulf %836, %830 : vector<16x16xf32>
    %838 = arith.addf %820, %837 : vector<16x16xf32>
    %c80_47 = arith.constant 80 : index
    %839 = memref.load %arg3[%c80_47] : memref<144xf32, #tpu.memory_space<smem>>
    %840 = vector.broadcast %839 : f32 to vector<16x16xf32>
    %841 = arith.mulf %840, %830 : vector<16x16xf32>
    %842 = arith.addf %824, %841 : vector<16x16xf32>
    %c116_48 = arith.constant 116 : index
    %843 = memref.load %arg3[%c116_48] : memref<144xf32, #tpu.memory_space<smem>>
    %844 = vector.broadcast %843 : f32 to vector<16x16xf32>
    %845 = arith.mulf %844, %830 : vector<16x16xf32>
    %846 = arith.addf %828, %845 : vector<16x16xf32>
    %847 = vector.extract_strided_slice %688 {offsets = [1, 0, 0], sizes = [1, 16, 16], strides = [1, 1, 1]} : vector<4x18x18xf32> to vector<1x16x16xf32>
    %848 = vector.shape_cast %847 : vector<1x16x16xf32> to vector<16x16xf32>
    %c9_49 = arith.constant 9 : index
    %849 = memref.load %arg3[%c9_49] : memref<144xf32, #tpu.memory_space<smem>>
    %850 = vector.broadcast %849 : f32 to vector<16x16xf32>
    %851 = arith.mulf %850, %848 : vector<16x16xf32>
    %852 = arith.addf %834, %851 : vector<16x16xf32>
    %c45_50 = arith.constant 45 : index
    %853 = memref.load %arg3[%c45_50] : memref<144xf32, #tpu.memory_space<smem>>
    %854 = vector.broadcast %853 : f32 to vector<16x16xf32>
    %855 = arith.mulf %854, %848 : vector<16x16xf32>
    %856 = arith.addf %838, %855 : vector<16x16xf32>
    %c81_51 = arith.constant 81 : index
    %857 = memref.load %arg3[%c81_51] : memref<144xf32, #tpu.memory_space<smem>>
    %858 = vector.broadcast %857 : f32 to vector<16x16xf32>
    %859 = arith.mulf %858, %848 : vector<16x16xf32>
    %860 = arith.addf %842, %859 : vector<16x16xf32>
    %c117_52 = arith.constant 117 : index
    %861 = memref.load %arg3[%c117_52] : memref<144xf32, #tpu.memory_space<smem>>
    %862 = vector.broadcast %861 : f32 to vector<16x16xf32>
    %863 = arith.mulf %862, %848 : vector<16x16xf32>
    %864 = arith.addf %846, %863 : vector<16x16xf32>
    %865 = vector.extract_strided_slice %688 {offsets = [1, 0, 1], sizes = [1, 16, 16], strides = [1, 1, 1]} : vector<4x18x18xf32> to vector<1x16x16xf32>
    %866 = vector.shape_cast %865 : vector<1x16x16xf32> to vector<16x16xf32>
    %c10_53 = arith.constant 10 : index
    %867 = memref.load %arg3[%c10_53] : memref<144xf32, #tpu.memory_space<smem>>
    %868 = vector.broadcast %867 : f32 to vector<16x16xf32>
    %869 = arith.mulf %868, %866 : vector<16x16xf32>
    %870 = arith.addf %852, %869 : vector<16x16xf32>
    %c46_54 = arith.constant 46 : index
    %871 = memref.load %arg3[%c46_54] : memref<144xf32, #tpu.memory_space<smem>>
    %872 = vector.broadcast %871 : f32 to vector<16x16xf32>
    %873 = arith.mulf %872, %866 : vector<16x16xf32>
    %874 = arith.addf %856, %873 : vector<16x16xf32>
    %c82_55 = arith.constant 82 : index
    %875 = memref.load %arg3[%c82_55] : memref<144xf32, #tpu.memory_space<smem>>
    %876 = vector.broadcast %875 : f32 to vector<16x16xf32>
    %877 = arith.mulf %876, %866 : vector<16x16xf32>
    %878 = arith.addf %860, %877 : vector<16x16xf32>
    %c118_56 = arith.constant 118 : index
    %879 = memref.load %arg3[%c118_56] : memref<144xf32, #tpu.memory_space<smem>>
    %880 = vector.broadcast %879 : f32 to vector<16x16xf32>
    %881 = arith.mulf %880, %866 : vector<16x16xf32>
    %882 = arith.addf %864, %881 : vector<16x16xf32>
    %883 = vector.extract_strided_slice %688 {offsets = [1, 0, 2], sizes = [1, 16, 16], strides = [1, 1, 1]} : vector<4x18x18xf32> to vector<1x16x16xf32>
    %884 = vector.shape_cast %883 : vector<1x16x16xf32> to vector<16x16xf32>
    %c11_57 = arith.constant 11 : index
    %885 = memref.load %arg3[%c11_57] : memref<144xf32, #tpu.memory_space<smem>>
    %886 = vector.broadcast %885 : f32 to vector<16x16xf32>
    %887 = arith.mulf %886, %884 : vector<16x16xf32>
    %888 = arith.addf %870, %887 : vector<16x16xf32>
    %c47_58 = arith.constant 47 : index
    %889 = memref.load %arg3[%c47_58] : memref<144xf32, #tpu.memory_space<smem>>
    %890 = vector.broadcast %889 : f32 to vector<16x16xf32>
    %891 = arith.mulf %890, %884 : vector<16x16xf32>
    %892 = arith.addf %874, %891 : vector<16x16xf32>
    %c83_59 = arith.constant 83 : index
    %893 = memref.load %arg3[%c83_59] : memref<144xf32, #tpu.memory_space<smem>>
    %894 = vector.broadcast %893 : f32 to vector<16x16xf32>
    %895 = arith.mulf %894, %884 : vector<16x16xf32>
    %896 = arith.addf %878, %895 : vector<16x16xf32>
    %c119_60 = arith.constant 119 : index
    %897 = memref.load %arg3[%c119_60] : memref<144xf32, #tpu.memory_space<smem>>
    %898 = vector.broadcast %897 : f32 to vector<16x16xf32>
    %899 = arith.mulf %898, %884 : vector<16x16xf32>
    %900 = arith.addf %882, %899 : vector<16x16xf32>
    %901 = vector.extract_strided_slice %688 {offsets = [1, 1, 0], sizes = [1, 16, 16], strides = [1, 1, 1]} : vector<4x18x18xf32> to vector<1x16x16xf32>
    %902 = vector.shape_cast %901 : vector<1x16x16xf32> to vector<16x16xf32>
    %c12_61 = arith.constant 12 : index
    %903 = memref.load %arg3[%c12_61] : memref<144xf32, #tpu.memory_space<smem>>
    %904 = vector.broadcast %903 : f32 to vector<16x16xf32>
    %905 = arith.mulf %904, %902 : vector<16x16xf32>
    %906 = arith.addf %888, %905 : vector<16x16xf32>
    %c48_62 = arith.constant 48 : index
    %907 = memref.load %arg3[%c48_62] : memref<144xf32, #tpu.memory_space<smem>>
    %908 = vector.broadcast %907 : f32 to vector<16x16xf32>
    %909 = arith.mulf %908, %902 : vector<16x16xf32>
    %910 = arith.addf %892, %909 : vector<16x16xf32>
    %c84_63 = arith.constant 84 : index
    %911 = memref.load %arg3[%c84_63] : memref<144xf32, #tpu.memory_space<smem>>
    %912 = vector.broadcast %911 : f32 to vector<16x16xf32>
    %913 = arith.mulf %912, %902 : vector<16x16xf32>
    %914 = arith.addf %896, %913 : vector<16x16xf32>
    %c120_64 = arith.constant 120 : index
    %915 = memref.load %arg3[%c120_64] : memref<144xf32, #tpu.memory_space<smem>>
    %916 = vector.broadcast %915 : f32 to vector<16x16xf32>
    %917 = arith.mulf %916, %902 : vector<16x16xf32>
    %918 = arith.addf %900, %917 : vector<16x16xf32>
    %919 = vector.extract_strided_slice %688 {offsets = [1, 1, 1], sizes = [1, 16, 16], strides = [1, 1, 1]} : vector<4x18x18xf32> to vector<1x16x16xf32>
    %920 = vector.shape_cast %919 : vector<1x16x16xf32> to vector<16x16xf32>
    %c13_65 = arith.constant 13 : index
    %921 = memref.load %arg3[%c13_65] : memref<144xf32, #tpu.memory_space<smem>>
    %922 = vector.broadcast %921 : f32 to vector<16x16xf32>
    %923 = arith.mulf %922, %920 : vector<16x16xf32>
    %924 = arith.addf %906, %923 : vector<16x16xf32>
    %c49_66 = arith.constant 49 : index
    %925 = memref.load %arg3[%c49_66] : memref<144xf32, #tpu.memory_space<smem>>
    %926 = vector.broadcast %925 : f32 to vector<16x16xf32>
    %927 = arith.mulf %926, %920 : vector<16x16xf32>
    %928 = arith.addf %910, %927 : vector<16x16xf32>
    %c85_67 = arith.constant 85 : index
    %929 = memref.load %arg3[%c85_67] : memref<144xf32, #tpu.memory_space<smem>>
    %930 = vector.broadcast %929 : f32 to vector<16x16xf32>
    %931 = arith.mulf %930, %920 : vector<16x16xf32>
    %932 = arith.addf %914, %931 : vector<16x16xf32>
    %c121_68 = arith.constant 121 : index
    %933 = memref.load %arg3[%c121_68] : memref<144xf32, #tpu.memory_space<smem>>
    %934 = vector.broadcast %933 : f32 to vector<16x16xf32>
    %935 = arith.mulf %934, %920 : vector<16x16xf32>
    %936 = arith.addf %918, %935 : vector<16x16xf32>
    %937 = vector.extract_strided_slice %688 {offsets = [1, 1, 2], sizes = [1, 16, 16], strides = [1, 1, 1]} : vector<4x18x18xf32> to vector<1x16x16xf32>
    %938 = vector.shape_cast %937 : vector<1x16x16xf32> to vector<16x16xf32>
    %c14_69 = arith.constant 14 : index
    %939 = memref.load %arg3[%c14_69] : memref<144xf32, #tpu.memory_space<smem>>
    %940 = vector.broadcast %939 : f32 to vector<16x16xf32>
    %941 = arith.mulf %940, %938 : vector<16x16xf32>
    %942 = arith.addf %924, %941 : vector<16x16xf32>
    %c50_70 = arith.constant 50 : index
    %943 = memref.load %arg3[%c50_70] : memref<144xf32, #tpu.memory_space<smem>>
    %944 = vector.broadcast %943 : f32 to vector<16x16xf32>
    %945 = arith.mulf %944, %938 : vector<16x16xf32>
    %946 = arith.addf %928, %945 : vector<16x16xf32>
    %c86_71 = arith.constant 86 : index
    %947 = memref.load %arg3[%c86_71] : memref<144xf32, #tpu.memory_space<smem>>
    %948 = vector.broadcast %947 : f32 to vector<16x16xf32>
    %949 = arith.mulf %948, %938 : vector<16x16xf32>
    %950 = arith.addf %932, %949 : vector<16x16xf32>
    %c122_72 = arith.constant 122 : index
    %951 = memref.load %arg3[%c122_72] : memref<144xf32, #tpu.memory_space<smem>>
    %952 = vector.broadcast %951 : f32 to vector<16x16xf32>
    %953 = arith.mulf %952, %938 : vector<16x16xf32>
    %954 = arith.addf %936, %953 : vector<16x16xf32>
    %955 = vector.extract_strided_slice %688 {offsets = [1, 2, 0], sizes = [1, 16, 16], strides = [1, 1, 1]} : vector<4x18x18xf32> to vector<1x16x16xf32>
    %956 = vector.shape_cast %955 : vector<1x16x16xf32> to vector<16x16xf32>
    %c15_73 = arith.constant 15 : index
    %957 = memref.load %arg3[%c15_73] : memref<144xf32, #tpu.memory_space<smem>>
    %958 = vector.broadcast %957 : f32 to vector<16x16xf32>
    %959 = arith.mulf %958, %956 : vector<16x16xf32>
    %960 = arith.addf %942, %959 : vector<16x16xf32>
    %c51_74 = arith.constant 51 : index
    %961 = memref.load %arg3[%c51_74] : memref<144xf32, #tpu.memory_space<smem>>
    %962 = vector.broadcast %961 : f32 to vector<16x16xf32>
    %963 = arith.mulf %962, %956 : vector<16x16xf32>
    %964 = arith.addf %946, %963 : vector<16x16xf32>
    %c87_75 = arith.constant 87 : index
    %965 = memref.load %arg3[%c87_75] : memref<144xf32, #tpu.memory_space<smem>>
    %966 = vector.broadcast %965 : f32 to vector<16x16xf32>
    %967 = arith.mulf %966, %956 : vector<16x16xf32>
    %968 = arith.addf %950, %967 : vector<16x16xf32>
    %c123_76 = arith.constant 123 : index
    %969 = memref.load %arg3[%c123_76] : memref<144xf32, #tpu.memory_space<smem>>
    %970 = vector.broadcast %969 : f32 to vector<16x16xf32>
    %971 = arith.mulf %970, %956 : vector<16x16xf32>
    %972 = arith.addf %954, %971 : vector<16x16xf32>
    %973 = vector.extract_strided_slice %688 {offsets = [1, 2, 1], sizes = [1, 16, 16], strides = [1, 1, 1]} : vector<4x18x18xf32> to vector<1x16x16xf32>
    %974 = vector.shape_cast %973 : vector<1x16x16xf32> to vector<16x16xf32>
    %c16_77 = arith.constant 16 : index
    %975 = memref.load %arg3[%c16_77] : memref<144xf32, #tpu.memory_space<smem>>
    %976 = vector.broadcast %975 : f32 to vector<16x16xf32>
    %977 = arith.mulf %976, %974 : vector<16x16xf32>
    %978 = arith.addf %960, %977 : vector<16x16xf32>
    %c52_78 = arith.constant 52 : index
    %979 = memref.load %arg3[%c52_78] : memref<144xf32, #tpu.memory_space<smem>>
    %980 = vector.broadcast %979 : f32 to vector<16x16xf32>
    %981 = arith.mulf %980, %974 : vector<16x16xf32>
    %982 = arith.addf %964, %981 : vector<16x16xf32>
    %c88_79 = arith.constant 88 : index
    %983 = memref.load %arg3[%c88_79] : memref<144xf32, #tpu.memory_space<smem>>
    %984 = vector.broadcast %983 : f32 to vector<16x16xf32>
    %985 = arith.mulf %984, %974 : vector<16x16xf32>
    %986 = arith.addf %968, %985 : vector<16x16xf32>
    %c124_80 = arith.constant 124 : index
    %987 = memref.load %arg3[%c124_80] : memref<144xf32, #tpu.memory_space<smem>>
    %988 = vector.broadcast %987 : f32 to vector<16x16xf32>
    %989 = arith.mulf %988, %974 : vector<16x16xf32>
    %990 = arith.addf %972, %989 : vector<16x16xf32>
    %991 = vector.extract_strided_slice %688 {offsets = [1, 2, 2], sizes = [1, 16, 16], strides = [1, 1, 1]} : vector<4x18x18xf32> to vector<1x16x16xf32>
    %992 = vector.shape_cast %991 : vector<1x16x16xf32> to vector<16x16xf32>
    %c17_81 = arith.constant 17 : index
    %993 = memref.load %arg3[%c17_81] : memref<144xf32, #tpu.memory_space<smem>>
    %994 = vector.broadcast %993 : f32 to vector<16x16xf32>
    %995 = arith.mulf %994, %992 : vector<16x16xf32>
    %996 = arith.addf %978, %995 : vector<16x16xf32>
    %c53_82 = arith.constant 53 : index
    %997 = memref.load %arg3[%c53_82] : memref<144xf32, #tpu.memory_space<smem>>
    %998 = vector.broadcast %997 : f32 to vector<16x16xf32>
    %999 = arith.mulf %998, %992 : vector<16x16xf32>
    %1000 = arith.addf %982, %999 : vector<16x16xf32>
    %c89_83 = arith.constant 89 : index
    %1001 = memref.load %arg3[%c89_83] : memref<144xf32, #tpu.memory_space<smem>>
    %1002 = vector.broadcast %1001 : f32 to vector<16x16xf32>
    %1003 = arith.mulf %1002, %992 : vector<16x16xf32>
    %1004 = arith.addf %986, %1003 : vector<16x16xf32>
    %c125_84 = arith.constant 125 : index
    %1005 = memref.load %arg3[%c125_84] : memref<144xf32, #tpu.memory_space<smem>>
    %1006 = vector.broadcast %1005 : f32 to vector<16x16xf32>
    %1007 = arith.mulf %1006, %992 : vector<16x16xf32>
    %1008 = arith.addf %990, %1007 : vector<16x16xf32>
    %1009 = vector.extract_strided_slice %688 {offsets = [2, 0, 0], sizes = [1, 16, 16], strides = [1, 1, 1]} : vector<4x18x18xf32> to vector<1x16x16xf32>
    %1010 = vector.shape_cast %1009 : vector<1x16x16xf32> to vector<16x16xf32>
    %c18_85 = arith.constant 18 : index
    %1011 = memref.load %arg3[%c18_85] : memref<144xf32, #tpu.memory_space<smem>>
    %1012 = vector.broadcast %1011 : f32 to vector<16x16xf32>
    %1013 = arith.mulf %1012, %1010 : vector<16x16xf32>
    %1014 = arith.addf %996, %1013 : vector<16x16xf32>
    %c54_86 = arith.constant 54 : index
    %1015 = memref.load %arg3[%c54_86] : memref<144xf32, #tpu.memory_space<smem>>
    %1016 = vector.broadcast %1015 : f32 to vector<16x16xf32>
    %1017 = arith.mulf %1016, %1010 : vector<16x16xf32>
    %1018 = arith.addf %1000, %1017 : vector<16x16xf32>
    %c90_87 = arith.constant 90 : index
    %1019 = memref.load %arg3[%c90_87] : memref<144xf32, #tpu.memory_space<smem>>
    %1020 = vector.broadcast %1019 : f32 to vector<16x16xf32>
    %1021 = arith.mulf %1020, %1010 : vector<16x16xf32>
    %1022 = arith.addf %1004, %1021 : vector<16x16xf32>
    %c126_88 = arith.constant 126 : index
    %1023 = memref.load %arg3[%c126_88] : memref<144xf32, #tpu.memory_space<smem>>
    %1024 = vector.broadcast %1023 : f32 to vector<16x16xf32>
    %1025 = arith.mulf %1024, %1010 : vector<16x16xf32>
    %1026 = arith.addf %1008, %1025 : vector<16x16xf32>
    %1027 = vector.extract_strided_slice %688 {offsets = [2, 0, 1], sizes = [1, 16, 16], strides = [1, 1, 1]} : vector<4x18x18xf32> to vector<1x16x16xf32>
    %1028 = vector.shape_cast %1027 : vector<1x16x16xf32> to vector<16x16xf32>
    %c19_89 = arith.constant 19 : index
    %1029 = memref.load %arg3[%c19_89] : memref<144xf32, #tpu.memory_space<smem>>
    %1030 = vector.broadcast %1029 : f32 to vector<16x16xf32>
    %1031 = arith.mulf %1030, %1028 : vector<16x16xf32>
    %1032 = arith.addf %1014, %1031 : vector<16x16xf32>
    %c55_90 = arith.constant 55 : index
    %1033 = memref.load %arg3[%c55_90] : memref<144xf32, #tpu.memory_space<smem>>
    %1034 = vector.broadcast %1033 : f32 to vector<16x16xf32>
    %1035 = arith.mulf %1034, %1028 : vector<16x16xf32>
    %1036 = arith.addf %1018, %1035 : vector<16x16xf32>
    %c91_91 = arith.constant 91 : index
    %1037 = memref.load %arg3[%c91_91] : memref<144xf32, #tpu.memory_space<smem>>
    %1038 = vector.broadcast %1037 : f32 to vector<16x16xf32>
    %1039 = arith.mulf %1038, %1028 : vector<16x16xf32>
    %1040 = arith.addf %1022, %1039 : vector<16x16xf32>
    %c127_92 = arith.constant 127 : index
    %1041 = memref.load %arg3[%c127_92] : memref<144xf32, #tpu.memory_space<smem>>
    %1042 = vector.broadcast %1041 : f32 to vector<16x16xf32>
    %1043 = arith.mulf %1042, %1028 : vector<16x16xf32>
    %1044 = arith.addf %1026, %1043 : vector<16x16xf32>
    %1045 = vector.extract_strided_slice %688 {offsets = [2, 0, 2], sizes = [1, 16, 16], strides = [1, 1, 1]} : vector<4x18x18xf32> to vector<1x16x16xf32>
    %1046 = vector.shape_cast %1045 : vector<1x16x16xf32> to vector<16x16xf32>
    %c20_93 = arith.constant 20 : index
    %1047 = memref.load %arg3[%c20_93] : memref<144xf32, #tpu.memory_space<smem>>
    %1048 = vector.broadcast %1047 : f32 to vector<16x16xf32>
    %1049 = arith.mulf %1048, %1046 : vector<16x16xf32>
    %1050 = arith.addf %1032, %1049 : vector<16x16xf32>
    %c56_94 = arith.constant 56 : index
    %1051 = memref.load %arg3[%c56_94] : memref<144xf32, #tpu.memory_space<smem>>
    %1052 = vector.broadcast %1051 : f32 to vector<16x16xf32>
    %1053 = arith.mulf %1052, %1046 : vector<16x16xf32>
    %1054 = arith.addf %1036, %1053 : vector<16x16xf32>
    %c92_95 = arith.constant 92 : index
    %1055 = memref.load %arg3[%c92_95] : memref<144xf32, #tpu.memory_space<smem>>
    %1056 = vector.broadcast %1055 : f32 to vector<16x16xf32>
    %1057 = arith.mulf %1056, %1046 : vector<16x16xf32>
    %1058 = arith.addf %1040, %1057 : vector<16x16xf32>
    %c128_96 = arith.constant 128 : index
    %1059 = memref.load %arg3[%c128_96] : memref<144xf32, #tpu.memory_space<smem>>
    %1060 = vector.broadcast %1059 : f32 to vector<16x16xf32>
    %1061 = arith.mulf %1060, %1046 : vector<16x16xf32>
    %1062 = arith.addf %1044, %1061 : vector<16x16xf32>
    %1063 = vector.extract_strided_slice %688 {offsets = [2, 1, 0], sizes = [1, 16, 16], strides = [1, 1, 1]} : vector<4x18x18xf32> to vector<1x16x16xf32>
    %1064 = vector.shape_cast %1063 : vector<1x16x16xf32> to vector<16x16xf32>
    %c21_97 = arith.constant 21 : index
    %1065 = memref.load %arg3[%c21_97] : memref<144xf32, #tpu.memory_space<smem>>
    %1066 = vector.broadcast %1065 : f32 to vector<16x16xf32>
    %1067 = arith.mulf %1066, %1064 : vector<16x16xf32>
    %1068 = arith.addf %1050, %1067 : vector<16x16xf32>
    %c57_98 = arith.constant 57 : index
    %1069 = memref.load %arg3[%c57_98] : memref<144xf32, #tpu.memory_space<smem>>
    %1070 = vector.broadcast %1069 : f32 to vector<16x16xf32>
    %1071 = arith.mulf %1070, %1064 : vector<16x16xf32>
    %1072 = arith.addf %1054, %1071 : vector<16x16xf32>
    %c93_99 = arith.constant 93 : index
    %1073 = memref.load %arg3[%c93_99] : memref<144xf32, #tpu.memory_space<smem>>
    %1074 = vector.broadcast %1073 : f32 to vector<16x16xf32>
    %1075 = arith.mulf %1074, %1064 : vector<16x16xf32>
    %1076 = arith.addf %1058, %1075 : vector<16x16xf32>
    %c129_100 = arith.constant 129 : index
    %1077 = memref.load %arg3[%c129_100] : memref<144xf32, #tpu.memory_space<smem>>
    %1078 = vector.broadcast %1077 : f32 to vector<16x16xf32>
    %1079 = arith.mulf %1078, %1064 : vector<16x16xf32>
    %1080 = arith.addf %1062, %1079 : vector<16x16xf32>
    %1081 = vector.extract_strided_slice %688 {offsets = [2, 1, 1], sizes = [1, 16, 16], strides = [1, 1, 1]} : vector<4x18x18xf32> to vector<1x16x16xf32>
    %1082 = vector.shape_cast %1081 : vector<1x16x16xf32> to vector<16x16xf32>
    %c22_101 = arith.constant 22 : index
    %1083 = memref.load %arg3[%c22_101] : memref<144xf32, #tpu.memory_space<smem>>
    %1084 = vector.broadcast %1083 : f32 to vector<16x16xf32>
    %1085 = arith.mulf %1084, %1082 : vector<16x16xf32>
    %1086 = arith.addf %1068, %1085 : vector<16x16xf32>
    %c58_102 = arith.constant 58 : index
    %1087 = memref.load %arg3[%c58_102] : memref<144xf32, #tpu.memory_space<smem>>
    %1088 = vector.broadcast %1087 : f32 to vector<16x16xf32>
    %1089 = arith.mulf %1088, %1082 : vector<16x16xf32>
    %1090 = arith.addf %1072, %1089 : vector<16x16xf32>
    %c94_103 = arith.constant 94 : index
    %1091 = memref.load %arg3[%c94_103] : memref<144xf32, #tpu.memory_space<smem>>
    %1092 = vector.broadcast %1091 : f32 to vector<16x16xf32>
    %1093 = arith.mulf %1092, %1082 : vector<16x16xf32>
    %1094 = arith.addf %1076, %1093 : vector<16x16xf32>
    %c130_104 = arith.constant 130 : index
    %1095 = memref.load %arg3[%c130_104] : memref<144xf32, #tpu.memory_space<smem>>
    %1096 = vector.broadcast %1095 : f32 to vector<16x16xf32>
    %1097 = arith.mulf %1096, %1082 : vector<16x16xf32>
    %1098 = arith.addf %1080, %1097 : vector<16x16xf32>
    %1099 = vector.extract_strided_slice %688 {offsets = [2, 1, 2], sizes = [1, 16, 16], strides = [1, 1, 1]} : vector<4x18x18xf32> to vector<1x16x16xf32>
    %1100 = vector.shape_cast %1099 : vector<1x16x16xf32> to vector<16x16xf32>
    %c23_105 = arith.constant 23 : index
    %1101 = memref.load %arg3[%c23_105] : memref<144xf32, #tpu.memory_space<smem>>
    %1102 = vector.broadcast %1101 : f32 to vector<16x16xf32>
    %1103 = arith.mulf %1102, %1100 : vector<16x16xf32>
    %1104 = arith.addf %1086, %1103 : vector<16x16xf32>
    %c59_106 = arith.constant 59 : index
    %1105 = memref.load %arg3[%c59_106] : memref<144xf32, #tpu.memory_space<smem>>
    %1106 = vector.broadcast %1105 : f32 to vector<16x16xf32>
    %1107 = arith.mulf %1106, %1100 : vector<16x16xf32>
    %1108 = arith.addf %1090, %1107 : vector<16x16xf32>
    %c95_107 = arith.constant 95 : index
    %1109 = memref.load %arg3[%c95_107] : memref<144xf32, #tpu.memory_space<smem>>
    %1110 = vector.broadcast %1109 : f32 to vector<16x16xf32>
    %1111 = arith.mulf %1110, %1100 : vector<16x16xf32>
    %1112 = arith.addf %1094, %1111 : vector<16x16xf32>
    %c131_108 = arith.constant 131 : index
    %1113 = memref.load %arg3[%c131_108] : memref<144xf32, #tpu.memory_space<smem>>
    %1114 = vector.broadcast %1113 : f32 to vector<16x16xf32>
    %1115 = arith.mulf %1114, %1100 : vector<16x16xf32>
    %1116 = arith.addf %1098, %1115 : vector<16x16xf32>
    %1117 = vector.extract_strided_slice %688 {offsets = [2, 2, 0], sizes = [1, 16, 16], strides = [1, 1, 1]} : vector<4x18x18xf32> to vector<1x16x16xf32>
    %1118 = vector.shape_cast %1117 : vector<1x16x16xf32> to vector<16x16xf32>
    %c24_109 = arith.constant 24 : index
    %1119 = memref.load %arg3[%c24_109] : memref<144xf32, #tpu.memory_space<smem>>
    %1120 = vector.broadcast %1119 : f32 to vector<16x16xf32>
    %1121 = arith.mulf %1120, %1118 : vector<16x16xf32>
    %1122 = arith.addf %1104, %1121 : vector<16x16xf32>
    %c60_110 = arith.constant 60 : index
    %1123 = memref.load %arg3[%c60_110] : memref<144xf32, #tpu.memory_space<smem>>
    %1124 = vector.broadcast %1123 : f32 to vector<16x16xf32>
    %1125 = arith.mulf %1124, %1118 : vector<16x16xf32>
    %1126 = arith.addf %1108, %1125 : vector<16x16xf32>
    %c96_111 = arith.constant 96 : index
    %1127 = memref.load %arg3[%c96_111] : memref<144xf32, #tpu.memory_space<smem>>
    %1128 = vector.broadcast %1127 : f32 to vector<16x16xf32>
    %1129 = arith.mulf %1128, %1118 : vector<16x16xf32>
    %1130 = arith.addf %1112, %1129 : vector<16x16xf32>
    %c132_112 = arith.constant 132 : index
    %1131 = memref.load %arg3[%c132_112] : memref<144xf32, #tpu.memory_space<smem>>
    %1132 = vector.broadcast %1131 : f32 to vector<16x16xf32>
    %1133 = arith.mulf %1132, %1118 : vector<16x16xf32>
    %1134 = arith.addf %1116, %1133 : vector<16x16xf32>
    %1135 = vector.extract_strided_slice %688 {offsets = [2, 2, 1], sizes = [1, 16, 16], strides = [1, 1, 1]} : vector<4x18x18xf32> to vector<1x16x16xf32>
    %1136 = vector.shape_cast %1135 : vector<1x16x16xf32> to vector<16x16xf32>
    %c25_113 = arith.constant 25 : index
    %1137 = memref.load %arg3[%c25_113] : memref<144xf32, #tpu.memory_space<smem>>
    %1138 = vector.broadcast %1137 : f32 to vector<16x16xf32>
    %1139 = arith.mulf %1138, %1136 : vector<16x16xf32>
    %1140 = arith.addf %1122, %1139 : vector<16x16xf32>
    %c61_114 = arith.constant 61 : index
    %1141 = memref.load %arg3[%c61_114] : memref<144xf32, #tpu.memory_space<smem>>
    %1142 = vector.broadcast %1141 : f32 to vector<16x16xf32>
    %1143 = arith.mulf %1142, %1136 : vector<16x16xf32>
    %1144 = arith.addf %1126, %1143 : vector<16x16xf32>
    %c97_115 = arith.constant 97 : index
    %1145 = memref.load %arg3[%c97_115] : memref<144xf32, #tpu.memory_space<smem>>
    %1146 = vector.broadcast %1145 : f32 to vector<16x16xf32>
    %1147 = arith.mulf %1146, %1136 : vector<16x16xf32>
    %1148 = arith.addf %1130, %1147 : vector<16x16xf32>
    %c133_116 = arith.constant 133 : index
    %1149 = memref.load %arg3[%c133_116] : memref<144xf32, #tpu.memory_space<smem>>
    %1150 = vector.broadcast %1149 : f32 to vector<16x16xf32>
    %1151 = arith.mulf %1150, %1136 : vector<16x16xf32>
    %1152 = arith.addf %1134, %1151 : vector<16x16xf32>
    %1153 = vector.extract_strided_slice %688 {offsets = [2, 2, 2], sizes = [1, 16, 16], strides = [1, 1, 1]} : vector<4x18x18xf32> to vector<1x16x16xf32>
    %1154 = vector.shape_cast %1153 : vector<1x16x16xf32> to vector<16x16xf32>
    %c26_117 = arith.constant 26 : index
    %1155 = memref.load %arg3[%c26_117] : memref<144xf32, #tpu.memory_space<smem>>
    %1156 = vector.broadcast %1155 : f32 to vector<16x16xf32>
    %1157 = arith.mulf %1156, %1154 : vector<16x16xf32>
    %1158 = arith.addf %1140, %1157 : vector<16x16xf32>
    %c62_118 = arith.constant 62 : index
    %1159 = memref.load %arg3[%c62_118] : memref<144xf32, #tpu.memory_space<smem>>
    %1160 = vector.broadcast %1159 : f32 to vector<16x16xf32>
    %1161 = arith.mulf %1160, %1154 : vector<16x16xf32>
    %1162 = arith.addf %1144, %1161 : vector<16x16xf32>
    %c98_119 = arith.constant 98 : index
    %1163 = memref.load %arg3[%c98_119] : memref<144xf32, #tpu.memory_space<smem>>
    %1164 = vector.broadcast %1163 : f32 to vector<16x16xf32>
    %1165 = arith.mulf %1164, %1154 : vector<16x16xf32>
    %1166 = arith.addf %1148, %1165 : vector<16x16xf32>
    %c134_120 = arith.constant 134 : index
    %1167 = memref.load %arg3[%c134_120] : memref<144xf32, #tpu.memory_space<smem>>
    %1168 = vector.broadcast %1167 : f32 to vector<16x16xf32>
    %1169 = arith.mulf %1168, %1154 : vector<16x16xf32>
    %1170 = arith.addf %1152, %1169 : vector<16x16xf32>
    %1171 = vector.extract_strided_slice %688 {offsets = [3, 0, 0], sizes = [1, 16, 16], strides = [1, 1, 1]} : vector<4x18x18xf32> to vector<1x16x16xf32>
    %1172 = vector.shape_cast %1171 : vector<1x16x16xf32> to vector<16x16xf32>
    %c27_121 = arith.constant 27 : index
    %1173 = memref.load %arg3[%c27_121] : memref<144xf32, #tpu.memory_space<smem>>
    %1174 = vector.broadcast %1173 : f32 to vector<16x16xf32>
    %1175 = arith.mulf %1174, %1172 : vector<16x16xf32>
    %1176 = arith.addf %1158, %1175 : vector<16x16xf32>
    %c63_122 = arith.constant 63 : index
    %1177 = memref.load %arg3[%c63_122] : memref<144xf32, #tpu.memory_space<smem>>
    %1178 = vector.broadcast %1177 : f32 to vector<16x16xf32>
    %1179 = arith.mulf %1178, %1172 : vector<16x16xf32>
    %1180 = arith.addf %1162, %1179 : vector<16x16xf32>
    %c99_123 = arith.constant 99 : index
    %1181 = memref.load %arg3[%c99_123] : memref<144xf32, #tpu.memory_space<smem>>
    %1182 = vector.broadcast %1181 : f32 to vector<16x16xf32>
    %1183 = arith.mulf %1182, %1172 : vector<16x16xf32>
    %1184 = arith.addf %1166, %1183 : vector<16x16xf32>
    %c135_124 = arith.constant 135 : index
    %1185 = memref.load %arg3[%c135_124] : memref<144xf32, #tpu.memory_space<smem>>
    %1186 = vector.broadcast %1185 : f32 to vector<16x16xf32>
    %1187 = arith.mulf %1186, %1172 : vector<16x16xf32>
    %1188 = arith.addf %1170, %1187 : vector<16x16xf32>
    %1189 = vector.extract_strided_slice %688 {offsets = [3, 0, 1], sizes = [1, 16, 16], strides = [1, 1, 1]} : vector<4x18x18xf32> to vector<1x16x16xf32>
    %1190 = vector.shape_cast %1189 : vector<1x16x16xf32> to vector<16x16xf32>
    %c28_125 = arith.constant 28 : index
    %1191 = memref.load %arg3[%c28_125] : memref<144xf32, #tpu.memory_space<smem>>
    %1192 = vector.broadcast %1191 : f32 to vector<16x16xf32>
    %1193 = arith.mulf %1192, %1190 : vector<16x16xf32>
    %1194 = arith.addf %1176, %1193 : vector<16x16xf32>
    %c64_126 = arith.constant 64 : index
    %1195 = memref.load %arg3[%c64_126] : memref<144xf32, #tpu.memory_space<smem>>
    %1196 = vector.broadcast %1195 : f32 to vector<16x16xf32>
    %1197 = arith.mulf %1196, %1190 : vector<16x16xf32>
    %1198 = arith.addf %1180, %1197 : vector<16x16xf32>
    %c100_127 = arith.constant 100 : index
    %1199 = memref.load %arg3[%c100_127] : memref<144xf32, #tpu.memory_space<smem>>
    %1200 = vector.broadcast %1199 : f32 to vector<16x16xf32>
    %1201 = arith.mulf %1200, %1190 : vector<16x16xf32>
    %1202 = arith.addf %1184, %1201 : vector<16x16xf32>
    %c136_128 = arith.constant 136 : index
    %1203 = memref.load %arg3[%c136_128] : memref<144xf32, #tpu.memory_space<smem>>
    %1204 = vector.broadcast %1203 : f32 to vector<16x16xf32>
    %1205 = arith.mulf %1204, %1190 : vector<16x16xf32>
    %1206 = arith.addf %1188, %1205 : vector<16x16xf32>
    %1207 = vector.extract_strided_slice %688 {offsets = [3, 0, 2], sizes = [1, 16, 16], strides = [1, 1, 1]} : vector<4x18x18xf32> to vector<1x16x16xf32>
    %1208 = vector.shape_cast %1207 : vector<1x16x16xf32> to vector<16x16xf32>
    %c29_129 = arith.constant 29 : index
    %1209 = memref.load %arg3[%c29_129] : memref<144xf32, #tpu.memory_space<smem>>
    %1210 = vector.broadcast %1209 : f32 to vector<16x16xf32>
    %1211 = arith.mulf %1210, %1208 : vector<16x16xf32>
    %1212 = arith.addf %1194, %1211 : vector<16x16xf32>
    %c65_130 = arith.constant 65 : index
    %1213 = memref.load %arg3[%c65_130] : memref<144xf32, #tpu.memory_space<smem>>
    %1214 = vector.broadcast %1213 : f32 to vector<16x16xf32>
    %1215 = arith.mulf %1214, %1208 : vector<16x16xf32>
    %1216 = arith.addf %1198, %1215 : vector<16x16xf32>
    %c101_131 = arith.constant 101 : index
    %1217 = memref.load %arg3[%c101_131] : memref<144xf32, #tpu.memory_space<smem>>
    %1218 = vector.broadcast %1217 : f32 to vector<16x16xf32>
    %1219 = arith.mulf %1218, %1208 : vector<16x16xf32>
    %1220 = arith.addf %1202, %1219 : vector<16x16xf32>
    %c137_132 = arith.constant 137 : index
    %1221 = memref.load %arg3[%c137_132] : memref<144xf32, #tpu.memory_space<smem>>
    %1222 = vector.broadcast %1221 : f32 to vector<16x16xf32>
    %1223 = arith.mulf %1222, %1208 : vector<16x16xf32>
    %1224 = arith.addf %1206, %1223 : vector<16x16xf32>
    %1225 = vector.extract_strided_slice %688 {offsets = [3, 1, 0], sizes = [1, 16, 16], strides = [1, 1, 1]} : vector<4x18x18xf32> to vector<1x16x16xf32>
    %1226 = vector.shape_cast %1225 : vector<1x16x16xf32> to vector<16x16xf32>
    %c30_133 = arith.constant 30 : index
    %1227 = memref.load %arg3[%c30_133] : memref<144xf32, #tpu.memory_space<smem>>
    %1228 = vector.broadcast %1227 : f32 to vector<16x16xf32>
    %1229 = arith.mulf %1228, %1226 : vector<16x16xf32>
    %1230 = arith.addf %1212, %1229 : vector<16x16xf32>
    %c66_134 = arith.constant 66 : index
    %1231 = memref.load %arg3[%c66_134] : memref<144xf32, #tpu.memory_space<smem>>
    %1232 = vector.broadcast %1231 : f32 to vector<16x16xf32>
    %1233 = arith.mulf %1232, %1226 : vector<16x16xf32>
    %1234 = arith.addf %1216, %1233 : vector<16x16xf32>
    %c102_135 = arith.constant 102 : index
    %1235 = memref.load %arg3[%c102_135] : memref<144xf32, #tpu.memory_space<smem>>
    %1236 = vector.broadcast %1235 : f32 to vector<16x16xf32>
    %1237 = arith.mulf %1236, %1226 : vector<16x16xf32>
    %1238 = arith.addf %1220, %1237 : vector<16x16xf32>
    %c138_136 = arith.constant 138 : index
    %1239 = memref.load %arg3[%c138_136] : memref<144xf32, #tpu.memory_space<smem>>
    %1240 = vector.broadcast %1239 : f32 to vector<16x16xf32>
    %1241 = arith.mulf %1240, %1226 : vector<16x16xf32>
    %1242 = arith.addf %1224, %1241 : vector<16x16xf32>
    %1243 = vector.extract_strided_slice %688 {offsets = [3, 1, 1], sizes = [1, 16, 16], strides = [1, 1, 1]} : vector<4x18x18xf32> to vector<1x16x16xf32>
    %1244 = vector.shape_cast %1243 : vector<1x16x16xf32> to vector<16x16xf32>
    %c31_137 = arith.constant 31 : index
    %1245 = memref.load %arg3[%c31_137] : memref<144xf32, #tpu.memory_space<smem>>
    %1246 = vector.broadcast %1245 : f32 to vector<16x16xf32>
    %1247 = arith.mulf %1246, %1244 : vector<16x16xf32>
    %1248 = arith.addf %1230, %1247 : vector<16x16xf32>
    %c67_138 = arith.constant 67 : index
    %1249 = memref.load %arg3[%c67_138] : memref<144xf32, #tpu.memory_space<smem>>
    %1250 = vector.broadcast %1249 : f32 to vector<16x16xf32>
    %1251 = arith.mulf %1250, %1244 : vector<16x16xf32>
    %1252 = arith.addf %1234, %1251 : vector<16x16xf32>
    %c103_139 = arith.constant 103 : index
    %1253 = memref.load %arg3[%c103_139] : memref<144xf32, #tpu.memory_space<smem>>
    %1254 = vector.broadcast %1253 : f32 to vector<16x16xf32>
    %1255 = arith.mulf %1254, %1244 : vector<16x16xf32>
    %1256 = arith.addf %1238, %1255 : vector<16x16xf32>
    %c139_140 = arith.constant 139 : index
    %1257 = memref.load %arg3[%c139_140] : memref<144xf32, #tpu.memory_space<smem>>
    %1258 = vector.broadcast %1257 : f32 to vector<16x16xf32>
    %1259 = arith.mulf %1258, %1244 : vector<16x16xf32>
    %1260 = arith.addf %1242, %1259 : vector<16x16xf32>
    %1261 = vector.extract_strided_slice %688 {offsets = [3, 1, 2], sizes = [1, 16, 16], strides = [1, 1, 1]} : vector<4x18x18xf32> to vector<1x16x16xf32>
    %1262 = vector.shape_cast %1261 : vector<1x16x16xf32> to vector<16x16xf32>
    %c32_141 = arith.constant 32 : index
    %1263 = memref.load %arg3[%c32_141] : memref<144xf32, #tpu.memory_space<smem>>
    %1264 = vector.broadcast %1263 : f32 to vector<16x16xf32>
    %1265 = arith.mulf %1264, %1262 : vector<16x16xf32>
    %1266 = arith.addf %1248, %1265 : vector<16x16xf32>
    %c68_142 = arith.constant 68 : index
    %1267 = memref.load %arg3[%c68_142] : memref<144xf32, #tpu.memory_space<smem>>
    %1268 = vector.broadcast %1267 : f32 to vector<16x16xf32>
    %1269 = arith.mulf %1268, %1262 : vector<16x16xf32>
    %1270 = arith.addf %1252, %1269 : vector<16x16xf32>
    %c104_143 = arith.constant 104 : index
    %1271 = memref.load %arg3[%c104_143] : memref<144xf32, #tpu.memory_space<smem>>
    %1272 = vector.broadcast %1271 : f32 to vector<16x16xf32>
    %1273 = arith.mulf %1272, %1262 : vector<16x16xf32>
    %1274 = arith.addf %1256, %1273 : vector<16x16xf32>
    %c140_144 = arith.constant 140 : index
    %1275 = memref.load %arg3[%c140_144] : memref<144xf32, #tpu.memory_space<smem>>
    %1276 = vector.broadcast %1275 : f32 to vector<16x16xf32>
    %1277 = arith.mulf %1276, %1262 : vector<16x16xf32>
    %1278 = arith.addf %1260, %1277 : vector<16x16xf32>
    %1279 = vector.extract_strided_slice %688 {offsets = [3, 2, 0], sizes = [1, 16, 16], strides = [1, 1, 1]} : vector<4x18x18xf32> to vector<1x16x16xf32>
    %1280 = vector.shape_cast %1279 : vector<1x16x16xf32> to vector<16x16xf32>
    %c33_145 = arith.constant 33 : index
    %1281 = memref.load %arg3[%c33_145] : memref<144xf32, #tpu.memory_space<smem>>
    %1282 = vector.broadcast %1281 : f32 to vector<16x16xf32>
    %1283 = arith.mulf %1282, %1280 : vector<16x16xf32>
    %1284 = arith.addf %1266, %1283 : vector<16x16xf32>
    %c69_146 = arith.constant 69 : index
    %1285 = memref.load %arg3[%c69_146] : memref<144xf32, #tpu.memory_space<smem>>
    %1286 = vector.broadcast %1285 : f32 to vector<16x16xf32>
    %1287 = arith.mulf %1286, %1280 : vector<16x16xf32>
    %1288 = arith.addf %1270, %1287 : vector<16x16xf32>
    %c105_147 = arith.constant 105 : index
    %1289 = memref.load %arg3[%c105_147] : memref<144xf32, #tpu.memory_space<smem>>
    %1290 = vector.broadcast %1289 : f32 to vector<16x16xf32>
    %1291 = arith.mulf %1290, %1280 : vector<16x16xf32>
    %1292 = arith.addf %1274, %1291 : vector<16x16xf32>
    %c141_148 = arith.constant 141 : index
    %1293 = memref.load %arg3[%c141_148] : memref<144xf32, #tpu.memory_space<smem>>
    %1294 = vector.broadcast %1293 : f32 to vector<16x16xf32>
    %1295 = arith.mulf %1294, %1280 : vector<16x16xf32>
    %1296 = arith.addf %1278, %1295 : vector<16x16xf32>
    %1297 = vector.extract_strided_slice %688 {offsets = [3, 2, 1], sizes = [1, 16, 16], strides = [1, 1, 1]} : vector<4x18x18xf32> to vector<1x16x16xf32>
    %1298 = vector.shape_cast %1297 : vector<1x16x16xf32> to vector<16x16xf32>
    %c34_149 = arith.constant 34 : index
    %1299 = memref.load %arg3[%c34_149] : memref<144xf32, #tpu.memory_space<smem>>
    %1300 = vector.broadcast %1299 : f32 to vector<16x16xf32>
    %1301 = arith.mulf %1300, %1298 : vector<16x16xf32>
    %1302 = arith.addf %1284, %1301 : vector<16x16xf32>
    %c70_150 = arith.constant 70 : index
    %1303 = memref.load %arg3[%c70_150] : memref<144xf32, #tpu.memory_space<smem>>
    %1304 = vector.broadcast %1303 : f32 to vector<16x16xf32>
    %1305 = arith.mulf %1304, %1298 : vector<16x16xf32>
    %1306 = arith.addf %1288, %1305 : vector<16x16xf32>
    %c106_151 = arith.constant 106 : index
    %1307 = memref.load %arg3[%c106_151] : memref<144xf32, #tpu.memory_space<smem>>
    %1308 = vector.broadcast %1307 : f32 to vector<16x16xf32>
    %1309 = arith.mulf %1308, %1298 : vector<16x16xf32>
    %1310 = arith.addf %1292, %1309 : vector<16x16xf32>
    %c142_152 = arith.constant 142 : index
    %1311 = memref.load %arg3[%c142_152] : memref<144xf32, #tpu.memory_space<smem>>
    %1312 = vector.broadcast %1311 : f32 to vector<16x16xf32>
    %1313 = arith.mulf %1312, %1298 : vector<16x16xf32>
    %1314 = arith.addf %1296, %1313 : vector<16x16xf32>
    %1315 = vector.extract_strided_slice %688 {offsets = [3, 2, 2], sizes = [1, 16, 16], strides = [1, 1, 1]} : vector<4x18x18xf32> to vector<1x16x16xf32>
    %1316 = vector.shape_cast %1315 : vector<1x16x16xf32> to vector<16x16xf32>
    %c35_153 = arith.constant 35 : index
    %1317 = memref.load %arg3[%c35_153] : memref<144xf32, #tpu.memory_space<smem>>
    %1318 = vector.broadcast %1317 : f32 to vector<16x16xf32>
    %1319 = arith.mulf %1318, %1316 : vector<16x16xf32>
    %1320 = arith.addf %1302, %1319 : vector<16x16xf32>
    %c71_154 = arith.constant 71 : index
    %1321 = memref.load %arg3[%c71_154] : memref<144xf32, #tpu.memory_space<smem>>
    %1322 = vector.broadcast %1321 : f32 to vector<16x16xf32>
    %1323 = arith.mulf %1322, %1316 : vector<16x16xf32>
    %1324 = arith.addf %1306, %1323 : vector<16x16xf32>
    %c107_155 = arith.constant 107 : index
    %1325 = memref.load %arg3[%c107_155] : memref<144xf32, #tpu.memory_space<smem>>
    %1326 = vector.broadcast %1325 : f32 to vector<16x16xf32>
    %1327 = arith.mulf %1326, %1316 : vector<16x16xf32>
    %1328 = arith.addf %1310, %1327 : vector<16x16xf32>
    %c143_156 = arith.constant 143 : index
    %1329 = memref.load %arg3[%c143_156] : memref<144xf32, #tpu.memory_space<smem>>
    %1330 = vector.broadcast %1329 : f32 to vector<16x16xf32>
    %1331 = arith.mulf %1330, %1316 : vector<16x16xf32>
    %1332 = arith.addf %1314, %1331 : vector<16x16xf32>
    %1333 = vector.shape_cast %1320 : vector<16x16xf32> to vector<1x16x16xf32>
    %1334 = vector.shape_cast %1324 : vector<16x16xf32> to vector<1x16x16xf32>
    %1335 = vector.shape_cast %1328 : vector<16x16xf32> to vector<1x16x16xf32>
    %1336 = vector.shape_cast %1332 : vector<16x16xf32> to vector<1x16x16xf32>
    %1337 = tpu.concatenate %1333, %1334, %1335, %1336 in 0 : vector<1x16x16xf32>, vector<1x16x16xf32>, vector<1x16x16xf32>, vector<1x16x16xf32> -> vector<4x16x16xf32>
    %cst_157 = arith.constant dense<0.000000e+00> : vector<4x16xf32>
    %1338 = vector.multi_reduction <add>, %1337, %cst_157 [2] : vector<4x16x16xf32> to vector<4x16xf32>
    %1339 = vector.shape_cast %1338 : vector<4x16xf32> to vector<4x16x1xf32>
    %cst_158 = arith.constant 1.600000e+01 : f32
    %1340 = vector.broadcast %cst_158 : f32 to vector<4x16x1xf32>
    %1341 = arith.divf %1339, %1340 : vector<4x16x1xf32>
    %cst_159 = arith.constant dense<0.000000e+00> : vector<4x1xf32>
    %1342 = vector.multi_reduction <add>, %1341, %cst_159 [1] : vector<4x16x1xf32> to vector<4x1xf32>
    %1343 = vector.shape_cast %1342 : vector<4x1xf32> to vector<4x1x1xf32>
    %cst_160 = arith.constant 1.600000e+01 : f32
    %1344 = vector.broadcast %cst_160 : f32 to vector<4x1x1xf32>
    %1345 = arith.divf %1343, %1344 : vector<4x1x1xf32>
    %1346 = vector.broadcast %1345 : vector<4x1x1xf32> to vector<4x16x16xf32>
    %1347 = arith.subf %1337, %1346 : vector<4x16x16xf32>
    %1348 = arith.mulf %1347, %1347 : vector<4x16x16xf32>
    %cst_161 = arith.constant dense<0.000000e+00> : vector<4x16xf32>
    %1349 = vector.multi_reduction <add>, %1348, %cst_161 [2] : vector<4x16x16xf32> to vector<4x16xf32>
    %1350 = vector.shape_cast %1349 : vector<4x16xf32> to vector<4x16x1xf32>
    %cst_162 = arith.constant 1.600000e+01 : f32
    %1351 = vector.broadcast %cst_162 : f32 to vector<4x16x1xf32>
    %1352 = arith.divf %1350, %1351 : vector<4x16x1xf32>
    %cst_163 = arith.constant dense<0.000000e+00> : vector<4x1xf32>
    %1353 = vector.multi_reduction <add>, %1352, %cst_163 [1] : vector<4x16x1xf32> to vector<4x1xf32>
    %1354 = vector.shape_cast %1353 : vector<4x1xf32> to vector<4x1x1xf32>
    %cst_164 = arith.constant 1.600000e+01 : f32
    %1355 = vector.broadcast %cst_164 : f32 to vector<4x1x1xf32>
    %1356 = arith.divf %1354, %1355 : vector<4x1x1xf32>
    %cst_165 = arith.constant 9.99999974E-6 : f32
    %1357 = vector.broadcast %cst_165 : f32 to vector<4x1x1xf32>
    %1358 = arith.addf %1356, %1357 : vector<4x1x1xf32>
    %1359 = math.rsqrt %1358 : vector<4x1x1xf32>
    %1360 = vector.broadcast %1359 : vector<4x1x1xf32> to vector<4x16x16xf32>
    %1361 = arith.mulf %1347, %1360 : vector<4x16x16xf32>
    %1362 = arith.addf %1, %1361 : vector<4x16x16xf32>
    %c0_166 = arith.constant 0 : index
    %c0_167 = arith.constant 0 : index
    %c0_168 = arith.constant 0 : index
    %c0_169 = arith.constant 0 : index
    %1363 = vector.load %arg4[%c0_166, %c0_167, %c0_168, %c0_169] : memref<1x4x16x16xf32, #tpu.memory_space<vmem>>, vector<1x4x16x16xf32>
    %1364 = vector.shape_cast %1363 : vector<1x4x16x16xf32> to vector<4x16x16xf32>
    %1365 = vector.shape_cast %1362 : vector<4x16x16xf32> to vector<1x4x16x16xf32>
    tpu.vector_store %arg4[%c0_166, %c0_167, %c0_168, %c0_169], %1365 {strides = array<i32>} : memref<1x4x16x16xf32, #tpu.memory_space<vmem>>, vector<1x4x16x16xf32>,
    return
  }
  func.func @transform_0(%arg0: i32) -> (i32, i32, i32, i32) {
    %c0_i32 = arith.constant 0 : i32
    %c0_i32_0 = arith.constant 0 : i32
    %c0_i32_1 = arith.constant 0 : i32
    %c0_i32_2 = arith.constant 0 : i32
    return %arg0, %c0_i32, %c0_i32_0, %c0_i32_1 : i32, i32, i32, i32
  }
  func.func @transform_1(%arg0: i32) -> i32 {
    %c0_i32 = arith.constant 0 : i32
    %c0_i32_0 = arith.constant 0 : i32
    return %c0_i32 : i32
  }
  func.func @transform_2(%arg0: i32) -> i32 {
    %c0_i32 = arith.constant 0 : i32
    %c0_i32_0 = arith.constant 0 : i32
    return %c0_i32 : i32
  }
  func.func @transform_3(%arg0: i32) -> (i32, i32, i32, i32) {
    %c0_i32 = arith.constant 0 : i32
    %c0_i32_0 = arith.constant 0 : i32
    %c0_i32_1 = arith.constant 0 : i32
    %c0_i32_2 = arith.constant 0 : i32
    return %arg0, %c0_i32, %c0_i32_0, %c0_i32_1 : i32, i32, i32, i32
  }
}

</mosaic_0001>

<llo_original>
// kernel: tpu_custom_call.1
$region0: #{tpu_custom_call.1}
  #allocation0 [shape = 'u32[]', space=smem, size = 0x4, offset = 0x4, fixed_abs, tag = 'smem constant byte address 0x4 - core index']
  #allocation1 [shape = 'u32[72,128]{1,0:T(1,128)}', space=vmem, size = 0x9000, scoped, tag = 'internal scratch']
  %s0 = inlined_call_operand.hbm [shape: f32[2,4,16,16], index: 0, kind: input, shape index: {}]
  %s1 = inlined_call_operand.hbm [shape: f32[144], index: 1, kind: input, shape index: {}]
  %s2 = inlined_call_operand.hbm [shape: f32[144], index: 2, kind: input, shape index: {}]
  %s3 = inlined_call_operand.hbm [shape: f32[2,4,16,16], index: 3, kind: output, shape index: {}]
  %s4 = sld [smem:[#allocation0]]
  $region57: #{tpu_custom_call.1} parent=0
    _
  %s6 = ssub.s32 1, %s4
  %s7 = scalar_select 0, %s6, %s4
  $region1: #{tpu_custom_call.1} parent=0
    #allocation2 [shape = 'u8[65536]{0}', space=vmem, size = 0x10000, scoped, tag = 'input window, operand 0']
    #allocation3 [shape = 's32[2]{0}', space=sflag, size = 0x8, scoped, tag = 'scoped memory for tpu_custom_call.1']
    #allocation4 [shape = 's32[2]{0}', space=sflag, size = 0x8, scoped, tag = 'scoped memory for tpu_custom_call.1']
    #allocation5 [shape = 's32[2]{0}', space=sflag, size = 0x8, scoped, tag = 'scoped memory for tpu_custom_call.1']
    #allocation6 [shape = 'u8[1024]{0}', space=smem, size = 0x400, scoped, tag = 'input window, operand 1, single buffered']
    #allocation7 [shape = 'u8[1024]{0}', space=smem, size = 0x400, scoped, tag = 'input window, operand 2, single buffered']
    #allocation8 [shape = 's32[1]{0}', space=sflag, size = 0x4, scoped, tag = 'scoped memory for tpu_custom_call.1']
    #allocation9 [shape = 'u8[65536]{0}', space=vmem, size = 0x10000, scoped, tag = 'output window, operand 0']
    %8 = vsyncpa [#allocation3], 0
    %s9 = scalar_lea.sflag [#allocation3], 1
    %10 = vsyncpa %s9, 0
    %11 = vsyncpa [#allocation5], 0
    %12 = vsyncpa [#allocation8], 0
    %13 = vsyncpa [#allocation4], 0
    %s14 = scalar_lea.sflag [#allocation4], 1
    %15 = vsyncpa %s14, 0
    loop: start=0, step=1, limit=4
    $region2: #{tpu_custom_call.1} parent=1 // loop_pre_header
      _
    $region3: #{tpu_custom_call.1} parent=1 // loop_header
      %s17 = sphi 0, %s21
      %p18 = scmp.ge.s32.totalorder %s17, 4
      %s27 = sphi 0, %s29
      %s30 = sphi 0, %s27
      %s31 = sphi 0, %s30
      %s47 = sphi 0, %s31
      %s51 = sphi 0, %s51
      %s53 = sphi 0, %s51
      %s54 = sphi 0, %s53
      %s68 = sphi 0, %s54
      %s72 = sphi 0, %s72
      %s74 = sphi 0, %s72
      %s75 = sphi 0, %s74
      %s89 = sphi 0, %s75
      %s95 = sphi 0, %s97
      %s98 = sphi 0, %s95
      %s99 = sphi 0, %s98
      %s115 = sphi 0, %s99
    $region4: #{tpu_custom_call.1} parent=1 // loop_header_branch
      %20 = sbr.rel (%p18) target = $region8
    $region5: #{tpu_custom_call.1} parent=1 // loop_body
      %s22 = ssub.s32 %s17, 1
      %s23 = ssub.s32 %s17, 2
      %s24 = sadd.s32 %s17, 1
      %s25 = ssub.s32 %s17, %s24
      %p26 = scmp.eq.s32.totalorder %s25, 0
      %s28 = sadd.s32 %s27, 1
      %s29 = scalar_select %p26, %s27, %s28
      %p32 = pneg %p26
      %p33 = scmp.eq.s32.totalorder %s17, 1
      %p34 = por %p32, %p33
      %p35 = scmp.ne.s32.totalorder %s27, %s30
      %p36 = scmp.eq.s32.totalorder %s17, 0
      %p37 = por %p35, %p36
      %p38 = scmp.ne.s32.totalorder %s27, %s30
      %p39 = scmp.eq.s32.totalorder %s22, 1
      %p40 = por %p38, %p39
      %p41 = scmp.ne.s32.totalorder %s30, %s31
      %p42 = scmp.eq.s32.totalorder %s22, 0
      %p43 = por %p41, %p42
      %p44 = scmp.ne.s32.totalorder %s30, %s31
      %p45 = scmp.eq.s32.totalorder %s23, 1
      %p46 = por %p44, %p45
      %p48 = scmp.ne.s32.totalorder %s31, %s47
      %p49 = scmp.eq.s32.totalorder %s23, 0
      %p50 = por %p48, %p49
      %s52 = sadd.s32 %s51, 1
      %p55 = scmp.eq.s32.totalorder %s17, 1
      %p56 = scmp.ne.s32.totalorder %s51, %s53
      %p57 = scmp.eq.s32.totalorder %s17, 0
      %p58 = por %p56, %p57
      %p59 = scmp.ne.s32.totalorder %s51, %s53
      %p60 = scmp.eq.s32.totalorder %s22, 1
      %p61 = por %p59, %p60
      %p62 = scmp.ne.s32.totalorder %s53, %s54
      %p63 = scmp.eq.s32.totalorder %s22, 0
      %p64 = por %p62, %p63
      %p65 = scmp.ne.s32.totalorder %s53, %s54
      %p66 = scmp.eq.s32.totalorder %s23, 1
      %p67 = por %p65, %p66
      %p69 = scmp.ne.s32.totalorder %s54, %s68
      %p70 = scmp.eq.s32.totalorder %s23, 0
      %p71 = por %p69, %p70
      %s73 = sadd.s32 %s72, 1
      %p76 = scmp.eq.s32.totalorder %s17, 1
      %p77 = scmp.ne.s32.totalorder %s72, %s74
      %p78 = scmp.eq.s32.totalorder %s17, 0
      %p79 = por %p77, %p78
      %p80 = scmp.ne.s32.totalorder %s72, %s74
      %p81 = scmp.eq.s32.totalorder %s22, 1
      %p82 = por %p80, %p81
      %p83 = scmp.ne.s32.totalorder %s74, %s75
      %p84 = scmp.eq.s32.totalorder %s22, 0
      %p85 = por %p83, %p84
      %p86 = scmp.ne.s32.totalorder %s74, %s75
      %p87 = scmp.eq.s32.totalorder %s23, 1
      %p88 = por %p86, %p87
      %p90 = scmp.ne.s32.totalorder %s75, %s89
      %p91 = scmp.eq.s32.totalorder %s23, 0
      %p92 = por %p90, %p91
      %s93 = ssub.s32 %s17, %s24
      %p94 = scmp.eq.s32.totalorder %s93, 0
      %s96 = sadd.s32 %s95, 1
      %s97 = scalar_select %p94, %s95, %s96
      %p100 = pneg %p94
      %p101 = scmp.eq.s32.totalorder %s17, 1
      %p102 = por %p100, %p101
      %p103 = scmp.ne.s32.totalorder %s95, %s98
      %p104 = scmp.eq.s32.totalorder %s17, 0
      %p105 = por %p103, %p104
      %p106 = scmp.ne.s32.totalorder %s95, %s98
      %p107 = scmp.eq.s32.totalorder %s22, 1
      %p108 = por %p106, %p107
      %p109 = scmp.ne.s32.totalorder %s98, %s99
      %p110 = scmp.eq.s32.totalorder %s22, 0
      %p111 = por %p109, %p110
      %p112 = scmp.ne.s32.totalorder %s98, %s99
      %p113 = scmp.eq.s32.totalorder %s23, 1
      %p114 = por %p112, %p113
      %p116 = scmp.ne.s32.totalorder %s99, %s115
      %p117 = scmp.eq.s32.totalorder %s23, 0
      %p118 = por %p116, %p117
      %p119 = scmp.le.s32.totalorder 1, %s17
      %p120 = scmp.lt.s32.totalorder %s17, 3
      %p121 = pnand %p119, %p120
      %p122 = pneg %p121
      // Predicated region
      $region9: #{tpu_custom_call.1} parent=5 // pred_check
        _
      $region10: #{tpu_custom_call.1} parent=5 // pred_check_branch
        %124 = sbr.rel (%p121) target = $region12
      $region11: #{tpu_custom_call.1} parent=5 // pred_region
        %s125 = ssub.s32 %s17, 1
        // Predicated region
        $region13: #{tpu_custom_call.1} parent=11 // pred_check
          %p126 = pneg %p64
        $region14: #{tpu_custom_call.1} parent=11 // pred_check_branch
          %128 = sbr.rel (%p126) target = $region16
        $region15: #{tpu_custom_call.1} parent=11 // pred_region
          %130 = vsyncadd [#allocation5], 0
          %s132 = sshll.u32 %s1, 4
          %s133 = int_to_ptr.hbm [resolvable:$true] %s132
          %135 = dma.hbm_to_smem %s133, 32, [#allocation6], [#allocation5]
        $region16: #{tpu_custom_call.1} parent=11 // pred_fallthru
          _
        // Predicated region
        $region17: #{tpu_custom_call.1} parent=11 // pred_check
          %p136 = pneg %p85
        $region18: #{tpu_custom_call.1} parent=11 // pred_check_branch
          %138 = sbr.rel (%p136) target = $region20
        $region19: #{tpu_custom_call.1} parent=11 // pred_region
          %140 = vsyncadd [#allocation8], 0
          %s142 = sshll.u32 %s2, 4
          %s143 = int_to_ptr.hbm [resolvable:$true] %s142
          %145 = dma.hbm_to_smem %s143, 32, [#allocation7], [#allocation8]
        $region20: #{tpu_custom_call.1} parent=11 // pred_fallthru
          _
      $region12: #{tpu_custom_call.1} parent=5 // pred_fallthru
        _
      %p146 = scmp.lt.s32.totalorder %s17, 2
      // Predicated region
      $region21: #{tpu_custom_call.1} parent=5 // pred_check
        %p147 = pneg %p146
      $region22: #{tpu_custom_call.1} parent=5 // pred_check_branch
        %149 = sbr.rel (%p147) target = $region24
      $region23: #{tpu_custom_call.1} parent=5 // pred_region
        // Predicated region
        $region25: #{tpu_custom_call.1} parent=23 // pred_check
          %p150 = pneg %p37
        $region26: #{tpu_custom_call.1} parent=23 // pred_check_branch
          %152 = sbr.rel (%p150) target = $region28
        $region27: #{tpu_custom_call.1} parent=23 // pred_region
          %s153 = sand.u32 %s27, 1
          %s154 = scalar_lea.sflag [#allocation3], %s153
          %s155 = sand.u32 %s27, 1
          %s156 = smul.addr %s155, 64
          %s157 = scalar_lea.vmem [#allocation2], %s156
          %159 = vsyncadd %s154, 0
          %s160 = smul.addr %s17, 8
          %s161 = smul.addr %s160, 8
          %s162 = scalar_lea.hbm %s0, %s161
          %s163 = sshll.u32 %s162, 4
          %s164 = int_to_ptr.hbm [resolvable:$true] %s163
          %s165 = sshll.u32 %s157, 4
          %s166 = int_to_ptr.vmem [resolvable:$true] %s165
          %171 = dma.hbm_to_vmem [thread:$0]  %s164, 1024, %s166, %s154, 128, 128, 8
        $region28: #{tpu_custom_call.1} parent=23 // pred_fallthru
          _
      $region24: #{tpu_custom_call.1} parent=5 // pred_fallthru
        _
      %p172 = scmp.le.s32.totalorder 1, %s17
      %p173 = scmp.lt.s32.totalorder %s17, 3
      %p174 = pnand %p172, %p173
      %p175 = pneg %p174
      // Predicated region
      $region29: #{tpu_custom_call.1} parent=5 // pred_check
        _
      $region30: #{tpu_custom_call.1} parent=5 // pred_check_branch
        %177 = sbr.rel (%p174) target = $region32
      $region31: #{tpu_custom_call.1} parent=5 // pred_region
        %s178 = ssub.s32 %s17, 1
        %s179 = sand.u32 %s30, 1
        %s180 = scalar_lea.sflag [#allocation3], %s179
        %s181 = sand.u32 %s30, 1
        %s182 = smul.addr %s181, 64
        %s183 = scalar_lea.vmem [#allocation2], %s182
        // Predicated region
        $region33: #{tpu_custom_call.1} parent=31 // pred_check
          %p184 = pneg %p43
        $region34: #{tpu_custom_call.1} parent=31 // pred_check_branch
          %186 = sbr.rel (%p184) target = $region36
        $region35: #{tpu_custom_call.1} parent=31 // pred_region
          %188 = dma.done %s180, 1024
        $region36: #{tpu_custom_call.1} parent=31 // pred_fallthru
          _
        // Predicated region
        $region37: #{tpu_custom_call.1} parent=31 // pred_check
          %p189 = pneg %p64
        $region38: #{tpu_custom_call.1} parent=31 // pred_check_branch
          %191 = sbr.rel (%p189) target = $region40
        $region39: #{tpu_custom_call.1} parent=31 // pred_region
          %193 = dma.done [#allocation5], 32
        $region40: #{tpu_custom_call.1} parent=31 // pred_fallthru
          _
        // Predicated region
        $region41: #{tpu_custom_call.1} parent=31 // pred_check
          %p194 = pneg %p85
        $region42: #{tpu_custom_call.1} parent=31 // pred_check_branch
          %196 = sbr.rel (%p194) target = $region44
        $region43: #{tpu_custom_call.1} parent=31 // pred_region
          %198 = dma.done [#allocation8], 32
        $region44: #{tpu_custom_call.1} parent=31 // pred_fallthru
          _
        %199 = sfence
        %s200 = sand.u32 %s30, 1
        %s201 = scalar_lea.sflag [#allocation3], %s200
        %s202 = sand.u32 %s30, 1
        %s203 = smul.addr %s202, 64
        %s204 = scalar_lea.vmem [#allocation2], %s203
        %p205 = pneg %p43
        %p206 = pneg %p40
        %p207 = pneg %p64
        %p208 = pneg %p61
        %p209 = pneg %p85
        %p210 = pneg %p82
        %p211 = pneg %p111
        %p212 = pneg %p108
        %s213 = sand.u32 %s98, 1
        %s214 = scalar_lea.sflag [#allocation4], %s213
        %s215 = sand.u32 %s98, 1
        %s216 = smul.addr %s215, 64
        %s217 = scalar_lea.vmem [#allocation9], %s216
        %v218 = vld [vmem:[%s183] sm:$0xff]
        %v219 = vld [vmem:[%s183 + $0x8] sm:$0xff]
        %v220 = vld [vmem:[%s183 + $0x10] sm:$0xff]
        %v221 = vld [vmem:[%s183 + $0x18] sm:$0xff]
        %v222 = vld [vmem:[%s183 + $0x20] sm:$0xff]
        %v223 = vld [vmem:[%s183 + $0x28] sm:$0xff]
        %v224 = vld [vmem:[%s183 + $0x30] sm:$0xff]
        %v225 = vld [vmem:[%s183 + $0x38] sm:$0xff]
        %v230 = vrot.slane %v218, 1
        %v231 = vrot.slane %v220, 1
        %v232 = vrot.slane %v222, 1
        %v233 = vrot.slane %v224, 1
        %vm242 = vcmask 1040384
        %v243 = vrot.slane %v218, 7
        %v244 = vrot.slane %v219, 7
        %v245 = vsel %vm242, %v243, %v244
        %v246 = vrot.slane %v220, 7
        %v247 = vrot.slane %v221, 7
        %v248 = vsel %vm242, %v246, %v247
        %v249 = vrot.slane %v222, 7
        %v250 = vrot.slane %v223, 7
        %v251 = vsel %vm242, %v249, %v250
        %v252 = vrot.slane %v224, 7
        %v253 = vrot.slane %v225, 7
        %v254 = vsel %vm242, %v252, %v253
        %v263 = vrot.slane %v219, 5
        %v264 = vrot.slane %v221, 5
        %v265 = vrot.slane %v223, 5
        %v266 = vrot.slane %v225, 5
        %v271 = vsel %vm242, %v230, %v243
        %v272 = vsel %vm242, %v231, %v246
        %v273 = vsel %vm242, %v232, %v249
        %v274 = vsel %vm242, %v233, %v252
        %v275 = vsel %vm242, %v244, %v263
        %v276 = vsel %vm242, %v247, %v264
        %v277 = vsel %vm242, %v250, %v265
        %v278 = vsel %vm242, %v253, %v266
        %287 = vrot.lane.b32.xlu0 %v271, 127
        %v288 = vpop.permute.xlu0 %287
        %289 = vrot.lane.b32.xlu0 %v245, 127
        %v290 = vpop.permute.xlu0 %289
        %291 = vrot.lane.b32.xlu0 %v275, 127
        %v292 = vpop.permute.xlu0 %291
        %293 = vrot.lane.b32.xlu0 %v272, 127
        %v294 = vpop.permute.xlu0 %293
        %295 = vrot.lane.b32.xlu0 %v248, 127
        %v296 = vpop.permute.xlu0 %295
        %297 = vrot.lane.b32.xlu0 %v276, 127
        %v298 = vpop.permute.xlu0 %297
        %299 = vrot.lane.b32.xlu0 %v273, 127
        %v300 = vpop.permute.xlu0 %299
        %301 = vrot.lane.b32.xlu0 %v251, 127
        %v302 = vpop.permute.xlu0 %301
        %303 = vrot.lane.b32.xlu0 %v277, 127
        %v304 = vpop.permute.xlu0 %303
        %305 = vrot.lane.b32.xlu0 %v274, 127
        %v306 = vpop.permute.xlu0 %305
        %307 = vrot.lane.b32.xlu0 %v254, 127
        %v308 = vpop.permute.xlu0 %307
        %309 = vrot.lane.b32.xlu0 %v278, 127
        %v310 = vpop.permute.xlu0 %309
        %323 = vrot.lane.b32.xlu0 %v271, 1
        %v324 = vpop.permute.xlu0 %323
        %325 = vrot.lane.b32.xlu0 %v245, 1
        %v326 = vpop.permute.xlu0 %325
        %327 = vrot.lane.b32.xlu0 %v275, 1
        %v328 = vpop.permute.xlu0 %327
        %329 = vrot.lane.b32.xlu0 %v272, 1
        %v330 = vpop.permute.xlu0 %329
        %331 = vrot.lane.b32.xlu0 %v248, 1
        %v332 = vpop.permute.xlu0 %331
        %333 = vrot.lane.b32.xlu0 %v276, 1
        %v334 = vpop.permute.xlu0 %333
        %335 = vrot.lane.b32.xlu0 %v273, 1
        %v336 = vpop.permute.xlu0 %335
        %337 = vrot.lane.b32.xlu0 %v251, 1
        %v338 = vpop.permute.xlu0 %337
        %339 = vrot.lane.b32.xlu0 %v277, 1
        %v340 = vpop.permute.xlu0 %339
        %341 = vrot.lane.b32.xlu0 %v274, 1
        %v342 = vpop.permute.xlu0 %341
        %343 = vrot.lane.b32.xlu0 %v254, 1
        %v344 = vpop.permute.xlu0 %343
        %345 = vrot.lane.b32.xlu0 %v278, 1
        %v346 = vpop.permute.xlu0 %345
        %359 = vrot.lane.b32.xlu0 %v271, 3
        %v360 = vpop.permute.xlu0 %359
        %361 = vrot.lane.b32.xlu0 %v245, 3
        %v362 = vpop.permute.xlu0 %361
        %363 = vrot.lane.b32.xlu0 %v275, 3
        %v364 = vpop.permute.xlu0 %363
        %365 = vrot.lane.b32.xlu0 %v272, 3
        %v366 = vpop.permute.xlu0 %365
        %367 = vrot.lane.b32.xlu0 %v248, 3
        %v368 = vpop.permute.xlu0 %367
        %369 = vrot.lane.b32.xlu0 %v276, 3
        %v370 = vpop.permute.xlu0 %369
        %371 = vrot.lane.b32.xlu0 %v273, 3
        %v372 = vpop.permute.xlu0 %371
        %373 = vrot.lane.b32.xlu0 %v251, 3
        %v374 = vpop.permute.xlu0 %373
        %375 = vrot.lane.b32.xlu0 %v277, 3
        %v376 = vpop.permute.xlu0 %375
        %377 = vrot.lane.b32.xlu0 %v274, 3
        %v378 = vpop.permute.xlu0 %377
        %379 = vrot.lane.b32.xlu0 %v254, 3
        %v380 = vpop.permute.xlu0 %379
        %381 = vrot.lane.b32.xlu0 %v278, 3
        %v382 = vpop.permute.xlu0 %381
        %vm395 = vcmask 7168
        %v396 = vsel %vm395, %v288, %v324
        %v397 = vsel %vm395, %v290, %v326
        %v398 = vsel %vm395, %v292, %v328
        %v399 = vsel %vm395, %v294, %v330
        %v400 = vsel %vm395, %v296, %v332
        %v401 = vsel %vm395, %v298, %v334
        %v402 = vsel %vm395, %v300, %v336
        %v403 = vsel %vm395, %v302, %v338
        %v404 = vsel %vm395, %v304, %v340
        %v405 = vsel %vm395, %v306, %v342
        %v406 = vsel %vm395, %v308, %v344
        %v407 = vsel %vm395, %v310, %v346
        %vm408 = vcmask 138240
        %v409 = vsel %vm408, %v396, %v360
        %v410 = vsel %vm408, %v397, %v362
        %v411 = vsel %vm408, %v398, %v364
        %v412 = vsel %vm408, %v399, %v366
        %v413 = vsel %vm408, %v400, %v368
        %v414 = vsel %vm408, %v401, %v370
        %v415 = vsel %vm408, %v402, %v372
        %v416 = vsel %vm408, %v403, %v374
        %v417 = vsel %vm408, %v404, %v376
        %v418 = vsel %vm408, %v405, %v378
        %v419 = vsel %vm408, %v406, %v380
        %v420 = vsel %vm408, %v407, %v382
        %s421 = sld [smem:[#allocation6]]
        %v422 = vstv %s421
        %v423 = vmul.f32 %v422, %v409
        %v424 = vmul.f32 %v422, %v410
        %s425 = sld [smem:[#allocation6 + $0x24]]
        %v426 = vstv %s425
        %v427 = vmul.f32 %v426, %v409
        %v428 = vmul.f32 %v426, %v410
        %s429 = sld [smem:[#allocation6 + $0x48]]
        %v430 = vstv %s429
        %v431 = vmul.f32 %v430, %v409
        %v432 = vmul.f32 %v430, %v410
        %s433 = sld [smem:[#allocation6 + $0x6c]]
        %v434 = vstv %s433
        %v435 = vmul.f32 %v434, %v409
        %v436 = vmul.f32 %v434, %v410
        %s437 = sld [smem:[#allocation6 + $0x1]]
        %v438 = vstv %s437
        %v439 = vmul.f32 %v438, %v409
        %v440 = vmul.f32 %v438, %v410
        %443 = vrot.lane.b32.xlu0 %v439, 127
        %v444 = vpop.permute.xlu0 %443
        %445 = vrot.lane.b32.xlu0 %v440, 127
        %v446 = vpop.permute.xlu0 %445
        %v449 = vadd.f32 %v423, %v444
        %v450 = vadd.f32 %v424, %v446
        %s451 = sld [smem:[#allocation6 + $0x25]]
        %v452 = vstv %s451
        %v453 = vmul.f32 %v452, %v409
        %v454 = vmul.f32 %v452, %v410
        %457 = vrot.lane.b32.xlu0 %v453, 127
        %v458 = vpop.permute.xlu0 %457
        %459 = vrot.lane.b32.xlu0 %v454, 127
        %v460 = vpop.permute.xlu0 %459
        %v463 = vadd.f32 %v427, %v458
        %v464 = vadd.f32 %v428, %v460
        %s465 = sld [smem:[#allocation6 + $0x49]]
        %v466 = vstv %s465
        %v467 = vmul.f32 %v466, %v409
        %v468 = vmul.f32 %v466, %v410
        %471 = vrot.lane.b32.xlu0 %v467, 127
        %v472 = vpop.permute.xlu0 %471
        %473 = vrot.lane.b32.xlu0 %v468, 127
        %v474 = vpop.permute.xlu0 %473
        %v477 = vadd.f32 %v431, %v472
        %v478 = vadd.f32 %v432, %v474
        %s479 = sld [smem:[#allocation6 + $0x6d]]
        %v480 = vstv %s479
        %v481 = vmul.f32 %v480, %v409
        %v482 = vmul.f32 %v480, %v410
        %485 = vrot.lane.b32.xlu0 %v481, 127
        %v486 = vpop.permute.xlu0 %485
        %487 = vrot.lane.b32.xlu0 %v482, 127
        %v488 = vpop.permute.xlu0 %487
        %v491 = vadd.f32 %v435, %v486
        %v492 = vadd.f32 %v436, %v488
        %s493 = sld [smem:[#allocation6 + $0x2]]
        %v494 = vstv %s493
        %v495 = vmul.f32 %v494, %v409
        %v496 = vmul.f32 %v494, %v410
        %499 = vrot.lane.b32.xlu0 %v495, 126
        %v500 = vpop.permute.xlu0 %499
        %501 = vrot.lane.b32.xlu0 %v496, 126
        %v502 = vpop.permute.xlu0 %501
        %v505 = vadd.f32 %v449, %v500
        %v506 = vadd.f32 %v450, %v502
        %s507 = sld [smem:[#allocation6 + $0x26]]
        %v508 = vstv %s507
        %v509 = vmul.f32 %v508, %v409
        %v510 = vmul.f32 %v508, %v410
        %513 = vrot.lane.b32.xlu0 %v509, 126
        %v514 = vpop.permute.xlu0 %513
        %515 = vrot.lane.b32.xlu0 %v510, 126
        %v516 = vpop.permute.xlu0 %515
        %v519 = vadd.f32 %v463, %v514
        %v520 = vadd.f32 %v464, %v516
        %s521 = sld [smem:[#allocation6 + $0x4a]]
        %v522 = vstv %s521
        %v523 = vmul.f32 %v522, %v409
        %v524 = vmul.f32 %v522, %v410
        %527 = vrot.lane.b32.xlu0 %v523, 126
        %v528 = vpop.permute.xlu0 %527
        %529 = vrot.lane.b32.xlu0 %v524, 126
        %v530 = vpop.permute.xlu0 %529
        %v533 = vadd.f32 %v477, %v528
        %v534 = vadd.f32 %v478, %v530
        %s535 = sld [smem:[#allocation6 + $0x6e]]
        %v536 = vstv %s535
        %v537 = vmul.f32 %v536, %v409
        %v538 = vmul.f32 %v536, %v410
        %541 = vrot.lane.b32.xlu0 %v537, 126
        %v542 = vpop.permute.xlu0 %541
        %543 = vrot.lane.b32.xlu0 %v538, 126
        %v544 = vpop.permute.xlu0 %543
        %v547 = vadd.f32 %v491, %v542
        %v548 = vadd.f32 %v492, %v544
        %s549 = sld [smem:[#allocation6 + $0x3]]
        %v550 = vstv %s549
        %v551 = vmul.f32 %v550, %v409
        %v552 = vmul.f32 %v550, %v410
        %v553 = vmul.f32 %v550, %v411
        %vm557 = vcmask 1046528
        %v558 = vrot.slane %v551, 1
        %v559 = vrot.slane %v552, 1
        %v560 = vsel %vm557, %v558, %v559
        %v561 = vrot.slane %v553, 1
        %v562 = vsel %vm557, %v559, %v561
        %v565 = vadd.f32 %v505, %v560
        %v566 = vadd.f32 %v506, %v562
        %s567 = sld [smem:[#allocation6 + $0x27]]
        %v568 = vstv %s567
        %v569 = vmul.f32 %v568, %v409
        %v570 = vmul.f32 %v568, %v410
        %v571 = vmul.f32 %v568, %v411
        %v575 = vrot.slane %v569, 1
        %v576 = vrot.slane %v570, 1
        %v577 = vsel %vm557, %v575, %v576
        %v578 = vrot.slane %v571, 1
        %v579 = vsel %vm557, %v576, %v578
        %v582 = vadd.f32 %v519, %v577
        %v583 = vadd.f32 %v520, %v579
        %s584 = sld [smem:[#allocation6 + $0x4b]]
        %v585 = vstv %s584
        %v586 = vmul.f32 %v585, %v409
        %v587 = vmul.f32 %v585, %v410
        %v588 = vmul.f32 %v585, %v411
        %v592 = vrot.slane %v586, 1
        %v593 = vrot.slane %v587, 1
        %v594 = vsel %vm557, %v592, %v593
        %v595 = vrot.slane %v588, 1
        %v596 = vsel %vm557, %v593, %v595
        %v599 = vadd.f32 %v533, %v594
        %v600 = vadd.f32 %v534, %v596
        %s601 = sld [smem:[#allocation6 + $0x6f]]
        %v602 = vstv %s601
        %v603 = vmul.f32 %v602, %v409
        %v604 = vmul.f32 %v602, %v410
        %v605 = vmul.f32 %v602, %v411
        %v609 = vrot.slane %v603, 1
        %v610 = vrot.slane %v604, 1
        %v611 = vsel %vm557, %v609, %v610
        %v612 = vrot.slane %v605, 1
        %v613 = vsel %vm557, %v610, %v612
        %v616 = vadd.f32 %v547, %v611
        %v617 = vadd.f32 %v548, %v613
        %s618 = sld [smem:[#allocation6 + $0x4]]
        %v619 = vstv %s618
        %v620 = vmul.f32 %v619, %v409
        %v621 = vmul.f32 %v619, %v410
        %v622 = vmul.f32 %v619, %v411
        %v626 = vrot.slane %v620, 1
        %v627 = vrot.slane %v621, 1
        %v628 = vsel %vm557, %v626, %v627
        %v629 = vrot.slane %v622, 1
        %v630 = vsel %vm557, %v627, %v629
        %631 = vrot.lane.b32.xlu0 %v628, 127
        %v632 = vpop.permute.xlu0 %631
        %633 = vrot.lane.b32.xlu0 %v630, 127
        %v634 = vpop.permute.xlu0 %633
        %v637 = vadd.f32 %v565, %v632
        %v638 = vadd.f32 %v566, %v634
        %s639 = sld [smem:[#allocation6 + $0x28]]
        %v640 = vstv %s639
        %v641 = vmul.f32 %v640, %v409
        %v642 = vmul.f32 %v640, %v410
        %v643 = vmul.f32 %v640, %v411
        %v647 = vrot.slane %v641, 1
        %v648 = vrot.slane %v642, 1
        %v649 = vsel %vm557, %v647, %v648
        %v650 = vrot.slane %v643, 1
        %v651 = vsel %vm557, %v648, %v650
        %652 = vrot.lane.b32.xlu0 %v649, 127
        %v653 = vpop.permute.xlu0 %652
        %654 = vrot.lane.b32.xlu0 %v651, 127
        %v655 = vpop.permute.xlu0 %654
        %v658 = vadd.f32 %v582, %v653
        %v659 = vadd.f32 %v583, %v655
        %s660 = sld [smem:[#allocation6 + $0x4c]]
        %v661 = vstv %s660
        %v662 = vmul.f32 %v661, %v409
        %v663 = vmul.f32 %v661, %v410
        %v664 = vmul.f32 %v661, %v411
        %v668 = vrot.slane %v662, 1
        %v669 = vrot.slane %v663, 1
        %v670 = vsel %vm557, %v668, %v669
        %v671 = vrot.slane %v664, 1
        %v672 = vsel %vm557, %v669, %v671
        %673 = vrot.lane.b32.xlu0 %v670, 127
        %v674 = vpop.permute.xlu0 %673
        %675 = vrot.lane.b32.xlu0 %v672, 127
        %v676 = vpop.permute.xlu0 %675
        %v679 = vadd.f32 %v599, %v674
        %v680 = vadd.f32 %v600, %v676
        %s681 = sld [smem:[#allocation6 + $0x70]]
        %v682 = vstv %s681
        %v683 = vmul.f32 %v682, %v409
        %v684 = vmul.f32 %v682, %v410
        %v685 = vmul.f32 %v682, %v411
        %v689 = vrot.slane %v683, 1
        %v690 = vrot.slane %v684, 1
        %v691 = vsel %vm557, %v689, %v690
        %v692 = vrot.slane %v685, 1
        %v693 = vsel %vm557, %v690, %v692
        %694 = vrot.lane.b32.xlu0 %v691, 127
        %v695 = vpop.permute.xlu0 %694
        %696 = vrot.lane.b32.xlu0 %v693, 127
        %v697 = vpop.permute.xlu0 %696
        %v700 = vadd.f32 %v616, %v695
        %v701 = vadd.f32 %v617, %v697
        %s702 = sld [smem:[#allocation6 + $0x5]]
        %v703 = vstv %s702
        %v704 = vmul.f32 %v703, %v409
        %v705 = vmul.f32 %v703, %v410
        %v706 = vmul.f32 %v703, %v411
        %v710 = vrot.slane %v704, 1
        %v711 = vrot.slane %v705, 1
        %v712 = vsel %vm557, %v710, %v711
        %v713 = vrot.slane %v706, 1
        %v714 = vsel %vm557, %v711, %v713
        %715 = vrot.lane.b32.xlu0 %v712, 126
        %v716 = vpop.permute.xlu0 %715
        %717 = vrot.lane.b32.xlu0 %v714, 126
        %v718 = vpop.permute.xlu0 %717
        %v721 = vadd.f32 %v637, %v716
        %v722 = vadd.f32 %v638, %v718
        %s723 = sld [smem:[#allocation6 + $0x29]]
        %v724 = vstv %s723
        %v725 = vmul.f32 %v724, %v409
        %v726 = vmul.f32 %v724, %v410
        %v727 = vmul.f32 %v724, %v411
        %v731 = vrot.slane %v725, 1
        %v732 = vrot.slane %v726, 1
        %v733 = vsel %vm557, %v731, %v732
        %v734 = vrot.slane %v727, 1
        %v735 = vsel %vm557, %v732, %v734
        %736 = vrot.lane.b32.xlu0 %v733, 126
        %v737 = vpop.permute.xlu0 %736
        %738 = vrot.lane.b32.xlu0 %v735, 126
        %v739 = vpop.permute.xlu0 %738
        %v742 = vadd.f32 %v658, %v737
        %v743 = vadd.f32 %v659, %v739
        %s744 = sld [smem:[#allocation6 + $0x4d]]
        %v745 = vstv %s744
        %v746 = vmul.f32 %v745, %v409
        %v747 = vmul.f32 %v745, %v410
        %v748 = vmul.f32 %v745, %v411
        %v752 = vrot.slane %v746, 1
        %v753 = vrot.slane %v747, 1
        %v754 = vsel %vm557, %v752, %v753
        %v755 = vrot.slane %v748, 1
        %v756 = vsel %vm557, %v753, %v755
        %757 = vrot.lane.b32.xlu0 %v754, 126
        %v758 = vpop.permute.xlu0 %757
        %759 = vrot.lane.b32.xlu0 %v756, 126
        %v760 = vpop.permute.xlu0 %759
        %v763 = vadd.f32 %v679, %v758
        %v764 = vadd.f32 %v680, %v760
        %s765 = sld [smem:[#allocation6 + $0x71]]
        %v766 = vstv %s765
        %v767 = vmul.f32 %v766, %v409
        %v768 = vmul.f32 %v766, %v410
        %v769 = vmul.f32 %v766, %v411
        %v773 = vrot.slane %v767, 1
        %v774 = vrot.slane %v768, 1
        %v775 = vsel %vm557, %v773, %v774
        %v776 = vrot.slane %v769, 1
        %v777 = vsel %vm557, %v774, %v776
        %778 = vrot.lane.b32.xlu0 %v775, 126
        %v779 = vpop.permute.xlu0 %778
        %780 = vrot.lane.b32.xlu0 %v777, 126
        %v781 = vpop.permute.xlu0 %780
        %v784 = vadd.f32 %v700, %v779
        %v785 = vadd.f32 %v701, %v781
        %s786 = sld [smem:[#allocation6 + $0x6]]
        %v787 = vstv %s786
        %v788 = vmul.f32 %v787, %v409
        %v789 = vmul.f32 %v787, %v410
        %v790 = vmul.f32 %v787, %v411
        %vm794 = vcmask 1045504
        %v795 = vrot.slane %v788, 2
        %v796 = vrot.slane %v789, 2
        %v797 = vsel %vm794, %v795, %v796
        %v798 = vrot.slane %v790, 2
        %v799 = vsel %vm794, %v796, %v798
        %v802 = vadd.f32 %v721, %v797
        %v803 = vadd.f32 %v722, %v799
        %s804 = sld [smem:[#allocation6 + $0x2a]]
        %v805 = vstv %s804
        %v806 = vmul.f32 %v805, %v409
        %v807 = vmul.f32 %v805, %v410
        %v808 = vmul.f32 %v805, %v411
        %v812 = vrot.slane %v806, 2
        %v813 = vrot.slane %v807, 2
        %v814 = vsel %vm794, %v812, %v813
        %v815 = vrot.slane %v808, 2
        %v816 = vsel %vm794, %v813, %v815
        %v819 = vadd.f32 %v742, %v814
        %v820 = vadd.f32 %v743, %v816
        %s821 = sld [smem:[#allocation6 + $0x4e]]
        %v822 = vstv %s821
        %v823 = vmul.f32 %v822, %v409
        %v824 = vmul.f32 %v822, %v410
        %v825 = vmul.f32 %v822, %v411
        %v829 = vrot.slane %v823, 2
        %v830 = vrot.slane %v824, 2
        %v831 = vsel %vm794, %v829, %v830
        %v832 = vrot.slane %v825, 2
        %v833 = vsel %vm794, %v830, %v832
        %v836 = vadd.f32 %v763, %v831
        %v837 = vadd.f32 %v764, %v833
        %s838 = sld [smem:[#allocation6 + $0x72]]
        %v839 = vstv %s838
        %v840 = vmul.f32 %v839, %v409
        %v841 = vmul.f32 %v839, %v410
        %v842 = vmul.f32 %v839, %v411
        %v846 = vrot.slane %v840, 2
        %v847 = vrot.slane %v841, 2
        %v848 = vsel %vm794, %v846, %v847
        %v849 = vrot.slane %v842, 2
        %v850 = vsel %vm794, %v847, %v849
        %v853 = vadd.f32 %v784, %v848
        %v854 = vadd.f32 %v785, %v850
        %s855 = sld [smem:[#allocation6 + $0x7]]
        %v856 = vstv %s855
        %v857 = vmul.f32 %v856, %v409
        %v858 = vmul.f32 %v856, %v410
        %v859 = vmul.f32 %v856, %v411
        %v863 = vrot.slane %v857, 2
        %v864 = vrot.slane %v858, 2
        %v865 = vsel %vm794, %v863, %v864
        %v866 = vrot.slane %v859, 2
        %v867 = vsel %vm794, %v864, %v866
        %868 = vrot.lane.b32.xlu0 %v865, 127
        %v869 = vpop.permute.xlu0 %868
        %870 = vrot.lane.b32.xlu0 %v867, 127
        %v871 = vpop.permute.xlu0 %870
        %v874 = vadd.f32 %v802, %v869
        %v875 = vadd.f32 %v803, %v871
        %s876 = sld [smem:[#allocation6 + $0x2b]]
        %v877 = vstv %s876
        %v878 = vmul.f32 %v877, %v409
        %v879 = vmul.f32 %v877, %v410
        %v880 = vmul.f32 %v877, %v411
        %v884 = vrot.slane %v878, 2
        %v885 = vrot.slane %v879, 2
        %v886 = vsel %vm794, %v884, %v885
        %v887 = vrot.slane %v880, 2
        %v888 = vsel %vm794, %v885, %v887
        %889 = vrot.lane.b32.xlu0 %v886, 127
        %v890 = vpop.permute.xlu0 %889
        %891 = vrot.lane.b32.xlu0 %v888, 127
        %v892 = vpop.permute.xlu0 %891
        %v895 = vadd.f32 %v819, %v890
        %v896 = vadd.f32 %v820, %v892
        %s897 = sld [smem:[#allocation6 + $0x4f]]
        %v898 = vstv %s897
        %v899 = vmul.f32 %v898, %v409
        %v900 = vmul.f32 %v898, %v410
        %v901 = vmul.f32 %v898, %v411
        %v905 = vrot.slane %v899, 2
        %v906 = vrot.slane %v900, 2
        %v907 = vsel %vm794, %v905, %v906
        %v908 = vrot.slane %v901, 2
        %v909 = vsel %vm794, %v906, %v908
        %910 = vrot.lane.b32.xlu0 %v907, 127
        %v911 = vpop.permute.xlu0 %910
        %912 = vrot.lane.b32.xlu0 %v909, 127
        %v913 = vpop.permute.xlu0 %912
        %v916 = vadd.f32 %v836, %v911
        %v917 = vadd.f32 %v837, %v913
        %s918 = sld [smem:[#allocation6 + $0x73]]
        %v919 = vstv %s918
        %v920 = vmul.f32 %v919, %v409
        %v921 = vmul.f32 %v919, %v410
        %v922 = vmul.f32 %v919, %v411
        %v926 = vrot.slane %v920, 2
        %v927 = vrot.slane %v921, 2
        %v928 = vsel %vm794, %v926, %v927
        %v929 = vrot.slane %v922, 2
        %v930 = vsel %vm794, %v927, %v929
        %931 = vrot.lane.b32.xlu0 %v928, 127
        %v932 = vpop.permute.xlu0 %931
        %933 = vrot.lane.b32.xlu0 %v930, 127
        %v934 = vpop.permute.xlu0 %933
        %v937 = vadd.f32 %v853, %v932
        %v938 = vadd.f32 %v854, %v934
        %s939 = sld [smem:[#allocation6 + $0x8]]
        %v940 = vstv %s939
        %v941 = vmul.f32 %v940, %v409
        %v942 = vmul.f32 %v940, %v410
        %v943 = vmul.f32 %v940, %v411
        %v947 = vrot.slane %v941, 2
        %v948 = vrot.slane %v942, 2
        %v949 = vsel %vm794, %v947, %v948
        %v950 = vrot.slane %v943, 2
        %v951 = vsel %vm794, %v948, %v950
        %952 = vrot.lane.b32.xlu0 %v949, 126
        %v953 = vpop.permute.xlu0 %952
        %954 = vrot.lane.b32.xlu0 %v951, 126
        %v955 = vpop.permute.xlu0 %954
        %v958 = vadd.f32 %v874, %v953
        %v959 = vadd.f32 %v875, %v955
        %s960 = sld [smem:[#allocation6 + $0x2c]]
        %v961 = vstv %s960
        %v962 = vmul.f32 %v961, %v409
        %v963 = vmul.f32 %v961, %v410
        %v964 = vmul.f32 %v961, %v411
        %v968 = vrot.slane %v962, 2
        %v969 = vrot.slane %v963, 2
        %v970 = vsel %vm794, %v968, %v969
        %v971 = vrot.slane %v964, 2
        %v972 = vsel %vm794, %v969, %v971
        %973 = vrot.lane.b32.xlu0 %v970, 126
        %v974 = vpop.permute.xlu0 %973
        %975 = vrot.lane.b32.xlu0 %v972, 126
        %v976 = vpop.permute.xlu0 %975
        %v979 = vadd.f32 %v895, %v974
        %v980 = vadd.f32 %v896, %v976
        %s981 = sld [smem:[#allocation6 + $0x50]]
        %v982 = vstv %s981
        %v983 = vmul.f32 %v982, %v409
        %v984 = vmul.f32 %v982, %v410
        %v985 = vmul.f32 %v982, %v411
        %v989 = vrot.slane %v983, 2
        %v990 = vrot.slane %v984, 2
        %v991 = vsel %vm794, %v989, %v990
        %v992 = vrot.slane %v985, 2
        %v993 = vsel %vm794, %v990, %v992
        %994 = vrot.lane.b32.xlu0 %v991, 126
        %v995 = vpop.permute.xlu0 %994
        %996 = vrot.lane.b32.xlu0 %v993, 126
        %v997 = vpop.permute.xlu0 %996
        %v1000 = vadd.f32 %v916, %v995
        %v1001 = vadd.f32 %v917, %v997
        %s1002 = sld [smem:[#allocation6 + $0x74]]
        %v1003 = vstv %s1002
        %v1004 = vmul.f32 %v1003, %v409
        %v1005 = vmul.f32 %v1003, %v410
        %v1006 = vmul.f32 %v1003, %v411
        %v1010 = vrot.slane %v1004, 2
        %v1011 = vrot.slane %v1005, 2
        %v1012 = vsel %vm794, %v1010, %v1011
        %v1013 = vrot.slane %v1006, 2
        %v1014 = vsel %vm794, %v1011, %v1013
        %1015 = vrot.lane.b32.xlu0 %v1012, 126
        %v1016 = vpop.permute.xlu0 %1015
        %1017 = vrot.lane.b32.xlu0 %v1014, 126
        %v1018 = vpop.permute.xlu0 %1017
        %v1021 = vadd.f32 %v937, %v1016
        %v1022 = vadd.f32 %v938, %v1018
        %s1023 = sld [smem:[#allocation6 + $0x9]]
        %v1024 = vstv %s1023
        %v1025 = vmul.f32 %v1024, %v412
        %v1026 = vmul.f32 %v1024, %v413
        %v1027 = vadd.f32 %v958, %v1025
        %v1028 = vadd.f32 %v959, %v1026
        %s1029 = sld [smem:[#allocation6 + $0x2d]]
        %v1030 = vstv %s1029
        %v1031 = vmul.f32 %v1030, %v412
        %v1032 = vmul.f32 %v1030, %v413
        %v1033 = vadd.f32 %v979, %v1031
        %v1034 = vadd.f32 %v980, %v1032
        %s1035 = sld [smem:[#allocation6 + $0x51]]
        %v1036 = vstv %s1035
        %v1037 = vmul.f32 %v1036, %v412
        %v1038 = vmul.f32 %v1036, %v413
        %v1039 = vadd.f32 %v1000, %v1037
        %v1040 = vadd.f32 %v1001, %v1038
        %s1041 = sld [smem:[#allocation6 + $0x75]]
        %v1042 = vstv %s1041
        %v1043 = vmul.f32 %v1042, %v412
        %v1044 = vmul.f32 %v1042, %v413
        %v1045 = vadd.f32 %v1021, %v1043
        %v1046 = vadd.f32 %v1022, %v1044
        %s1047 = sld [smem:[#allocation6 + $0xa]]
        %v1048 = vstv %s1047
        %v1049 = vmul.f32 %v1048, %v412
        %v1050 = vmul.f32 %v1048, %v413
        %1053 = vrot.lane.b32.xlu0 %v1049, 127
        %v1054 = vpop.permute.xlu0 %1053
        %1055 = vrot.lane.b32.xlu0 %v1050, 127
        %v1056 = vpop.permute.xlu0 %1055
        %v1059 = vadd.f32 %v1027, %v1054
        %v1060 = vadd.f32 %v1028, %v1056
        %s1061 = sld [smem:[#allocation6 + $0x2e]]
        %v1062 = vstv %s1061
        %v1063 = vmul.f32 %v1062, %v412
        %v1064 = vmul.f32 %v1062, %v413
        %1067 = vrot.lane.b32.xlu0 %v1063, 127
        %v1068 = vpop.permute.xlu0 %1067
        %1069 = vrot.lane.b32.xlu0 %v1064, 127
        %v1070 = vpop.permute.xlu0 %1069
        %v1073 = vadd.f32 %v1033, %v1068
        %v1074 = vadd.f32 %v1034, %v1070
        %s1075 = sld [smem:[#allocation6 + $0x52]]
        %v1076 = vstv %s1075
        %v1077 = vmul.f32 %v1076, %v412
        %v1078 = vmul.f32 %v1076, %v413
        %1081 = vrot.lane.b32.xlu0 %v1077, 127
        %v1082 = vpop.permute.xlu0 %1081
        %1083 = vrot.lane.b32.xlu0 %v1078, 127
        %v1084 = vpop.permute.xlu0 %1083
        %v1087 = vadd.f32 %v1039, %v1082
        %v1088 = vadd.f32 %v1040, %v1084
        %s1089 = sld [smem:[#allocation6 + $0x76]]
        %v1090 = vstv %s1089
        %v1091 = vmul.f32 %v1090, %v412
        %v1092 = vmul.f32 %v1090, %v413
        %1095 = vrot.lane.b32.xlu0 %v1091, 127
        %v1096 = vpop.permute.xlu0 %1095
        %1097 = vrot.lane.b32.xlu0 %v1092, 127
        %v1098 = vpop.permute.xlu0 %1097
        %v1101 = vadd.f32 %v1045, %v1096
        %v1102 = vadd.f32 %v1046, %v1098
        %s1103 = sld [smem:[#allocation6 + $0xb]]
        %v1104 = vstv %s1103
        %v1105 = vmul.f32 %v1104, %v412
        %v1106 = vmul.f32 %v1104, %v413
        %1109 = vrot.lane.b32.xlu0 %v1105, 126
        %v1110 = vpop.permute.xlu0 %1109
        %1111 = vrot.lane.b32.xlu0 %v1106, 126
        %v1112 = vpop.permute.xlu0 %1111
        %v1115 = vadd.f32 %v1059, %v1110
        %v1116 = vadd.f32 %v1060, %v1112
        %s1117 = sld [smem:[#allocation6 + $0x2f]]
        %v1118 = vstv %s1117
        %v1119 = vmul.f32 %v1118, %v412
        %v1120 = vmul.f32 %v1118, %v413
        %1123 = vrot.lane.b32.xlu0 %v1119, 126
        %v1124 = vpop.permute.xlu0 %1123
        %1125 = vrot.lane.b32.xlu0 %v1120, 126
        %v1126 = vpop.permute.xlu0 %1125
        %v1129 = vadd.f32 %v1073, %v1124
        %v1130 = vadd.f32 %v1074, %v1126
        %s1131 = sld [smem:[#allocation6 + $0x53]]
        %v1132 = vstv %s1131
        %v1133 = vmul.f32 %v1132, %v412
        %v1134 = vmul.f32 %v1132, %v413
        %1137 = vrot.lane.b32.xlu0 %v1133, 126
        %v1138 = vpop.permute.xlu0 %1137
        %1139 = vrot.lane.b32.xlu0 %v1134, 126
        %v1140 = vpop.permute.xlu0 %1139
        %v1143 = vadd.f32 %v1087, %v1138
        %v1144 = vadd.f32 %v1088, %v1140
        %s1145 = sld [smem:[#allocation6 + $0x77]]
        %v1146 = vstv %s1145
        %v1147 = vmul.f32 %v1146, %v412
        %v1148 = vmul.f32 %v1146, %v413
        %1151 = vrot.lane.b32.xlu0 %v1147, 126
        %v1152 = vpop.permute.xlu0 %1151
        %1153 = vrot.lane.b32.xlu0 %v1148, 126
        %v1154 = vpop.permute.xlu0 %1153
        %v1157 = vadd.f32 %v1101, %v1152
        %v1158 = vadd.f32 %v1102, %v1154
        %s1159 = sld [smem:[#allocation6 + $0xc]]
        %v1160 = vstv %s1159
        %v1161 = vmul.f32 %v1160, %v412
        %v1162 = vmul.f32 %v1160, %v413
        %v1163 = vmul.f32 %v1160, %v414
        %v1167 = vrot.slane %v1161, 1
        %v1168 = vrot.slane %v1162, 1
        %v1169 = vsel %vm557, %v1167, %v1168
        %v1170 = vrot.slane %v1163, 1
        %v1171 = vsel %vm557, %v1168, %v1170
        %v1174 = vadd.f32 %v1115, %v1169
        %v1175 = vadd.f32 %v1116, %v1171
        %s1176 = sld [smem:[#allocation6 + $0x30]]
        %v1177 = vstv %s1176
        %v1178 = vmul.f32 %v1177, %v412
        %v1179 = vmul.f32 %v1177, %v413
        %v1180 = vmul.f32 %v1177, %v414
        %v1184 = vrot.slane %v1178, 1
        %v1185 = vrot.slane %v1179, 1
        %v1186 = vsel %vm557, %v1184, %v1185
        %v1187 = vrot.slane %v1180, 1
        %v1188 = vsel %vm557, %v1185, %v1187
        %v1191 = vadd.f32 %v1129, %v1186
        %v1192 = vadd.f32 %v1130, %v1188
        %s1193 = sld [smem:[#allocation6 + $0x54]]
        %v1194 = vstv %s1193
        %v1195 = vmul.f32 %v1194, %v412
        %v1196 = vmul.f32 %v1194, %v413
        %v1197 = vmul.f32 %v1194, %v414
        %v1201 = vrot.slane %v1195, 1
        %v1202 = vrot.slane %v1196, 1
        %v1203 = vsel %vm557, %v1201, %v1202
        %v1204 = vrot.slane %v1197, 1
        %v1205 = vsel %vm557, %v1202, %v1204
        %v1208 = vadd.f32 %v1143, %v1203
        %v1209 = vadd.f32 %v1144, %v1205
        %s1210 = sld [smem:[#allocation6 + $0x78]]
        %v1211 = vstv %s1210
        %v1212 = vmul.f32 %v1211, %v412
        %v1213 = vmul.f32 %v1211, %v413
        %v1214 = vmul.f32 %v1211, %v414
        %v1218 = vrot.slane %v1212, 1
        %v1219 = vrot.slane %v1213, 1
        %v1220 = vsel %vm557, %v1218, %v1219
        %v1221 = vrot.slane %v1214, 1
        %v1222 = vsel %vm557, %v1219, %v1221
        %v1225 = vadd.f32 %v1157, %v1220
        %v1226 = vadd.f32 %v1158, %v1222
        %s1227 = sld [smem:[#allocation6 + $0xd]]
        %v1228 = vstv %s1227
        %v1229 = vmul.f32 %v1228, %v412
        %v1230 = vmul.f32 %v1228, %v413
        %v1231 = vmul.f32 %v1228, %v414
        %v1235 = vrot.slane %v1229, 1
        %v1236 = vrot.slane %v1230, 1
        %v1237 = vsel %vm557, %v1235, %v1236
        %v1238 = vrot.slane %v1231, 1
        %v1239 = vsel %vm557, %v1236, %v1238
        %1240 = vrot.lane.b32.xlu0 %v1237, 127
        %v1241 = vpop.permute.xlu0 %1240
        %1242 = vrot.lane.b32.xlu0 %v1239, 127
        %v1243 = vpop.permute.xlu0 %1242
        %v1246 = vadd.f32 %v1174, %v1241
        %v1247 = vadd.f32 %v1175, %v1243
        %s1248 = sld [smem:[#allocation6 + $0x31]]
        %v1249 = vstv %s1248
        %v1250 = vmul.f32 %v1249, %v412
        %v1251 = vmul.f32 %v1249, %v413
        %v1252 = vmul.f32 %v1249, %v414
        %v1256 = vrot.slane %v1250, 1
        %v1257 = vrot.slane %v1251, 1
        %v1258 = vsel %vm557, %v1256, %v1257
        %v1259 = vrot.slane %v1252, 1
        %v1260 = vsel %vm557, %v1257, %v1259
        %1261 = vrot.lane.b32.xlu0 %v1258, 127
        %v1262 = vpop.permute.xlu0 %1261
        %1263 = vrot.lane.b32.xlu0 %v1260, 127
        %v1264 = vpop.permute.xlu0 %1263
        %v1267 = vadd.f32 %v1191, %v1262
        %v1268 = vadd.f32 %v1192, %v1264
        %s1269 = sld [smem:[#allocation6 + $0x55]]
        %v1270 = vstv %s1269
        %v1271 = vmul.f32 %v1270, %v412
        %v1272 = vmul.f32 %v1270, %v413
        %v1273 = vmul.f32 %v1270, %v414
        %v1277 = vrot.slane %v1271, 1
        %v1278 = vrot.slane %v1272, 1
        %v1279 = vsel %vm557, %v1277, %v1278
        %v1280 = vrot.slane %v1273, 1
        %v1281 = vsel %vm557, %v1278, %v1280
        %1282 = vrot.lane.b32.xlu0 %v1279, 127
        %v1283 = vpop.permute.xlu0 %1282
        %1284 = vrot.lane.b32.xlu0 %v1281, 127
        %v1285 = vpop.permute.xlu0 %1284
        %v1288 = vadd.f32 %v1208, %v1283
        %v1289 = vadd.f32 %v1209, %v1285
        %s1290 = sld [smem:[#allocation6 + $0x79]]
        %v1291 = vstv %s1290
        %v1292 = vmul.f32 %v1291, %v412
        %v1293 = vmul.f32 %v1291, %v413
        %v1294 = vmul.f32 %v1291, %v414
        %v1298 = vrot.slane %v1292, 1
        %v1299 = vrot.slane %v1293, 1
        %v1300 = vsel %vm557, %v1298, %v1299
        %v1301 = vrot.slane %v1294, 1
        %v1302 = vsel %vm557, %v1299, %v1301
        %1303 = vrot.lane.b32.xlu0 %v1300, 127
        %v1304 = vpop.permute.xlu0 %1303
        %1305 = vrot.lane.b32.xlu0 %v1302, 127
        %v1306 = vpop.permute.xlu0 %1305
        %v1309 = vadd.f32 %v1225, %v1304
        %v1310 = vadd.f32 %v1226, %v1306
        %s1311 = sld [smem:[#allocation6 + $0xe]]
        %v1312 = vstv %s1311
        %v1313 = vmul.f32 %v1312, %v412
        %v1314 = vmul.f32 %v1312, %v413
        %v1315 = vmul.f32 %v1312, %v414
        %v1319 = vrot.slane %v1313, 1
        %v1320 = vrot.slane %v1314, 1
        %v1321 = vsel %vm557, %v1319, %v1320
        %v1322 = vrot.slane %v1315, 1
        %v1323 = vsel %vm557, %v1320, %v1322
        %1324 = vrot.lane.b32.xlu0 %v1321, 126
        %v1325 = vpop.permute.xlu0 %1324
        %1326 = vrot.lane.b32.xlu0 %v1323, 126
        %v1327 = vpop.permute.xlu0 %1326
        %v1330 = vadd.f32 %v1246, %v1325
        %v1331 = vadd.f32 %v1247, %v1327
        %s1332 = sld [smem:[#allocation6 + $0x32]]
        %v1333 = vstv %s1332
        %v1334 = vmul.f32 %v1333, %v412
        %v1335 = vmul.f32 %v1333, %v413
        %v1336 = vmul.f32 %v1333, %v414
        %v1340 = vrot.slane %v1334, 1
        %v1341 = vrot.slane %v1335, 1
        %v1342 = vsel %vm557, %v1340, %v1341
        %v1343 = vrot.slane %v1336, 1
        %v1344 = vsel %vm557, %v1341, %v1343
        %1345 = vrot.lane.b32.xlu0 %v1342, 126
        %v1346 = vpop.permute.xlu0 %1345
        %1347 = vrot.lane.b32.xlu0 %v1344, 126
        %v1348 = vpop.permute.xlu0 %1347
        %v1351 = vadd.f32 %v1267, %v1346
        %v1352 = vadd.f32 %v1268, %v1348
        %s1353 = sld [smem:[#allocation6 + $0x56]]
        %v1354 = vstv %s1353
        %v1355 = vmul.f32 %v1354, %v412
        %v1356 = vmul.f32 %v1354, %v413
        %v1357 = vmul.f32 %v1354, %v414
        %v1361 = vrot.slane %v1355, 1
        %v1362 = vrot.slane %v1356, 1
        %v1363 = vsel %vm557, %v1361, %v1362
        %v1364 = vrot.slane %v1357, 1
        %v1365 = vsel %vm557, %v1362, %v1364
        %1366 = vrot.lane.b32.xlu0 %v1363, 126
        %v1367 = vpop.permute.xlu0 %1366
        %1368 = vrot.lane.b32.xlu0 %v1365, 126
        %v1369 = vpop.permute.xlu0 %1368
        %v1372 = vadd.f32 %v1288, %v1367
        %v1373 = vadd.f32 %v1289, %v1369
        %s1374 = sld [smem:[#allocation6 + $0x7a]]
        %v1375 = vstv %s1374
        %v1376 = vmul.f32 %v1375, %v412
        %v1377 = vmul.f32 %v1375, %v413
        %v1378 = vmul.f32 %v1375, %v414
        %v1382 = vrot.slane %v1376, 1
        %v1383 = vrot.slane %v1377, 1
        %v1384 = vsel %vm557, %v1382, %v1383
        %v1385 = vrot.slane %v1378, 1
        %v1386 = vsel %vm557, %v1383, %v1385
        %1387 = vrot.lane.b32.xlu0 %v1384, 126
        %v1388 = vpop.permute.xlu0 %1387
        %1389 = vrot.lane.b32.xlu0 %v1386, 126
        %v1390 = vpop.permute.xlu0 %1389
        %v1393 = vadd.f32 %v1309, %v1388
        %v1394 = vadd.f32 %v1310, %v1390
        %s1395 = sld [smem:[#allocation6 + $0xf]]
        %v1396 = vstv %s1395
        %v1397 = vmul.f32 %v1396, %v412
        %v1398 = vmul.f32 %v1396, %v413
        %v1399 = vmul.f32 %v1396, %v414
        %v1403 = vrot.slane %v1397, 2
        %v1404 = vrot.slane %v1398, 2
        %v1405 = vsel %vm794, %v1403, %v1404
        %v1406 = vrot.slane %v1399, 2
        %v1407 = vsel %vm794, %v1404, %v1406
        %v1410 = vadd.f32 %v1330, %v1405
        %v1411 = vadd.f32 %v1331, %v1407
        %s1412 = sld [smem:[#allocation6 + $0x33]]
        %v1413 = vstv %s1412
        %v1414 = vmul.f32 %v1413, %v412
        %v1415 = vmul.f32 %v1413, %v413
        %v1416 = vmul.f32 %v1413, %v414
        %v1420 = vrot.slane %v1414, 2
        %v1421 = vrot.slane %v1415, 2
        %v1422 = vsel %vm794, %v1420, %v1421
        %v1423 = vrot.slane %v1416, 2
        %v1424 = vsel %vm794, %v1421, %v1423
        %v1427 = vadd.f32 %v1351, %v1422
        %v1428 = vadd.f32 %v1352, %v1424
        %s1429 = sld [smem:[#allocation6 + $0x57]]
        %v1430 = vstv %s1429
        %v1431 = vmul.f32 %v1430, %v412
        %v1432 = vmul.f32 %v1430, %v413
        %v1433 = vmul.f32 %v1430, %v414
        %v1437 = vrot.slane %v1431, 2
        %v1438 = vrot.slane %v1432, 2
        %v1439 = vsel %vm794, %v1437, %v1438
        %v1440 = vrot.slane %v1433, 2
        %v1441 = vsel %vm794, %v1438, %v1440
        %v1444 = vadd.f32 %v1372, %v1439
        %v1445 = vadd.f32 %v1373, %v1441
        %s1446 = sld [smem:[#allocation6 + $0x7b]]
        %v1447 = vstv %s1446
        %v1448 = vmul.f32 %v1447, %v412
        %v1449 = vmul.f32 %v1447, %v413
        %v1450 = vmul.f32 %v1447, %v414
        %v1454 = vrot.slane %v1448, 2
        %v1455 = vrot.slane %v1449, 2
        %v1456 = vsel %vm794, %v1454, %v1455
        %v1457 = vrot.slane %v1450, 2
        %v1458 = vsel %vm794, %v1455, %v1457
        %v1461 = vadd.f32 %v1393, %v1456
        %v1462 = vadd.f32 %v1394, %v1458
        %s1463 = sld [smem:[#allocation6 + $0x10]]
        %v1464 = vstv %s1463
        %v1465 = vmul.f32 %v1464, %v412
        %v1466 = vmul.f32 %v1464, %v413
        %v1467 = vmul.f32 %v1464, %v414
        %v1471 = vrot.slane %v1465, 2
        %v1472 = vrot.slane %v1466, 2
        %v1473 = vsel %vm794, %v1471, %v1472
        %v1474 = vrot.slane %v1467, 2
        %v1475 = vsel %vm794, %v1472, %v1474
        %1476 = vrot.lane.b32.xlu0 %v1473, 127
        %v1477 = vpop.permute.xlu0 %1476
        %1478 = vrot.lane.b32.xlu0 %v1475, 127
        %v1479 = vpop.permute.xlu0 %1478
        %v1482 = vadd.f32 %v1410, %v1477
        %v1483 = vadd.f32 %v1411, %v1479
        %s1484 = sld [smem:[#allocation6 + $0x34]]
        %v1485 = vstv %s1484
        %v1486 = vmul.f32 %v1485, %v412
        %v1487 = vmul.f32 %v1485, %v413
        %v1488 = vmul.f32 %v1485, %v414
        %v1492 = vrot.slane %v1486, 2
        %v1493 = vrot.slane %v1487, 2
        %v1494 = vsel %vm794, %v1492, %v1493
        %v1495 = vrot.slane %v1488, 2
        %v1496 = vsel %vm794, %v1493, %v1495
        %1497 = vrot.lane.b32.xlu0 %v1494, 127
        %v1498 = vpop.permute.xlu0 %1497
        %1499 = vrot.lane.b32.xlu0 %v1496, 127
        %v1500 = vpop.permute.xlu0 %1499
        %v1503 = vadd.f32 %v1427, %v1498
        %v1504 = vadd.f32 %v1428, %v1500
        %s1505 = sld [smem:[#allocation6 + $0x58]]
        %v1506 = vstv %s1505
        %v1507 = vmul.f32 %v1506, %v412
        %v1508 = vmul.f32 %v1506, %v413
        %v1509 = vmul.f32 %v1506, %v414
        %v1513 = vrot.slane %v1507, 2
        %v1514 = vrot.slane %v1508, 2
        %v1515 = vsel %vm794, %v1513, %v1514
        %v1516 = vrot.slane %v1509, 2
        %v1517 = vsel %vm794, %v1514, %v1516
        %1518 = vrot.lane.b32.xlu0 %v1515, 127
        %v1519 = vpop.permute.xlu0 %1518
        %1520 = vrot.lane.b32.xlu0 %v1517, 127
        %v1521 = vpop.permute.xlu0 %1520
        %v1524 = vadd.f32 %v1444, %v1519
        %v1525 = vadd.f32 %v1445, %v1521
        %s1526 = sld [smem:[#allocation6 + $0x7c]]
        %v1527 = vstv %s1526
        %v1528 = vmul.f32 %v1527, %v412
        %v1529 = vmul.f32 %v1527, %v413
        %v1530 = vmul.f32 %v1527, %v414
        %v1534 = vrot.slane %v1528, 2
        %v1535 = vrot.slane %v1529, 2
        %v1536 = vsel %vm794, %v1534, %v1535
        %v1537 = vrot.slane %v1530, 2
        %v1538 = vsel %vm794, %v1535, %v1537
        %1539 = vrot.lane.b32.xlu0 %v1536, 127
        %v1540 = vpop.permute.xlu0 %1539
        %1541 = vrot.lane.b32.xlu0 %v1538, 127
        %v1542 = vpop.permute.xlu0 %1541
        %v1545 = vadd.f32 %v1461, %v1540
        %v1546 = vadd.f32 %v1462, %v1542
        %s1547 = sld [smem:[#allocation6 + $0x11]]
        %v1548 = vstv %s1547
        %v1549 = vmul.f32 %v1548, %v412
        %v1550 = vmul.f32 %v1548, %v413
        %v1551 = vmul.f32 %v1548, %v414
        %v1555 = vrot.slane %v1549, 2
        %v1556 = vrot.slane %v1550, 2
        %v1557 = vsel %vm794, %v1555, %v1556
        %v1558 = vrot.slane %v1551, 2
        %v1559 = vsel %vm794, %v1556, %v1558
        %1560 = vrot.lane.b32.xlu0 %v1557, 126
        %v1561 = vpop.permute.xlu0 %1560
        %1562 = vrot.lane.b32.xlu0 %v1559, 126
        %v1563 = vpop.permute.xlu0 %1562
        %v1566 = vadd.f32 %v1482, %v1561
        %v1567 = vadd.f32 %v1483, %v1563
        %s1568 = sld [smem:[#allocation6 + $0x35]]
        %v1569 = vstv %s1568
        %v1570 = vmul.f32 %v1569, %v412
        %v1571 = vmul.f32 %v1569, %v413
        %v1572 = vmul.f32 %v1569, %v414
        %v1576 = vrot.slane %v1570, 2
        %v1577 = vrot.slane %v1571, 2
        %v1578 = vsel %vm794, %v1576, %v1577
        %v1579 = vrot.slane %v1572, 2
        %v1580 = vsel %vm794, %v1577, %v1579
        %1581 = vrot.lane.b32.xlu0 %v1578, 126
        %v1582 = vpop.permute.xlu0 %1581
        %1583 = vrot.lane.b32.xlu0 %v1580, 126
        %v1584 = vpop.permute.xlu0 %1583
        %v1587 = vadd.f32 %v1503, %v1582
        %v1588 = vadd.f32 %v1504, %v1584
        %s1589 = sld [smem:[#allocation6 + $0x59]]
        %v1590 = vstv %s1589
        %v1591 = vmul.f32 %v1590, %v412
        %v1592 = vmul.f32 %v1590, %v413
        %v1593 = vmul.f32 %v1590, %v414
        %v1597 = vrot.slane %v1591, 2
        %v1598 = vrot.slane %v1592, 2
        %v1599 = vsel %vm794, %v1597, %v1598
        %v1600 = vrot.slane %v1593, 2
        %v1601 = vsel %vm794, %v1598, %v1600
        %1602 = vrot.lane.b32.xlu0 %v1599, 126
        %v1603 = vpop.permute.xlu0 %1602
        %1604 = vrot.lane.b32.xlu0 %v1601, 126
        %v1605 = vpop.permute.xlu0 %1604
        %v1608 = vadd.f32 %v1524, %v1603
        %v1609 = vadd.f32 %v1525, %v1605
        %s1610 = sld [smem:[#allocation6 + $0x7d]]
        %v1611 = vstv %s1610
        %v1612 = vmul.f32 %v1611, %v412
        %v1613 = vmul.f32 %v1611, %v413
        %v1614 = vmul.f32 %v1611, %v414
        %v1618 = vrot.slane %v1612, 2
        %v1619 = vrot.slane %v1613, 2
        %v1620 = vsel %vm794, %v1618, %v1619
        %v1621 = vrot.slane %v1614, 2
        %v1622 = vsel %vm794, %v1619, %v1621
        %1623 = vrot.lane.b32.xlu0 %v1620, 126
        %v1624 = vpop.permute.xlu0 %1623
        %1625 = vrot.lane.b32.xlu0 %v1622, 126
        %v1626 = vpop.permute.xlu0 %1625
        %v1629 = vadd.f32 %v1545, %v1624
        %v1630 = vadd.f32 %v1546, %v1626
        %s1631 = sld [smem:[#allocation6 + $0x12]]
        %v1632 = vstv %s1631
        %v1633 = vmul.f32 %v1632, %v415
        %v1634 = vmul.f32 %v1632, %v416
        %v1635 = vadd.f32 %v1566, %v1633
        %v1636 = vadd.f32 %v1567, %v1634
        %s1637 = sld [smem:[#allocation6 + $0x36]]
        %v1638 = vstv %s1637
        %v1639 = vmul.f32 %v1638, %v415
        %v1640 = vmul.f32 %v1638, %v416
        %v1641 = vadd.f32 %v1587, %v1639
        %v1642 = vadd.f32 %v1588, %v1640
        %s1643 = sld [smem:[#allocation6 + $0x5a]]
        %v1644 = vstv %s1643
        %v1645 = vmul.f32 %v1644, %v415
        %v1646 = vmul.f32 %v1644, %v416
        %v1647 = vadd.f32 %v1608, %v1645
        %v1648 = vadd.f32 %v1609, %v1646
        %s1649 = sld [smem:[#allocation6 + $0x7e]]
        %v1650 = vstv %s1649
        %v1651 = vmul.f32 %v1650, %v415
        %v1652 = vmul.f32 %v1650, %v416
        %v1653 = vadd.f32 %v1629, %v1651
        %v1654 = vadd.f32 %v1630, %v1652
        %s1655 = sld [smem:[#allocation6 + $0x13]]
        %v1656 = vstv %s1655
        %v1657 = vmul.f32 %v1656, %v415
        %v1658 = vmul.f32 %v1656, %v416
        %1661 = vrot.lane.b32.xlu0 %v1657, 127
        %v1662 = vpop.permute.xlu0 %1661
        %1663 = vrot.lane.b32.xlu0 %v1658, 127
        %v1664 = vpop.permute.xlu0 %1663
        %v1667 = vadd.f32 %v1635, %v1662
        %v1668 = vadd.f32 %v1636, %v1664
        %s1669 = sld [smem:[#allocation6 + $0x37]]
        %v1670 = vstv %s1669
        %v1671 = vmul.f32 %v1670, %v415
        %v1672 = vmul.f32 %v1670, %v416
        %1675 = vrot.lane.b32.xlu0 %v1671, 127
        %v1676 = vpop.permute.xlu0 %1675
        %1677 = vrot.lane.b32.xlu0 %v1672, 127
        %v1678 = vpop.permute.xlu0 %1677
        %v1681 = vadd.f32 %v1641, %v1676
        %v1682 = vadd.f32 %v1642, %v1678
        %s1683 = sld [smem:[#allocation6 + $0x5b]]
        %v1684 = vstv %s1683
        %v1685 = vmul.f32 %v1684, %v415
        %v1686 = vmul.f32 %v1684, %v416
        %1689 = vrot.lane.b32.xlu0 %v1685, 127
        %v1690 = vpop.permute.xlu0 %1689
        %1691 = vrot.lane.b32.xlu0 %v1686, 127
        %v1692 = vpop.permute.xlu0 %1691
        %v1695 = vadd.f32 %v1647, %v1690
        %v1696 = vadd.f32 %v1648, %v1692
        %s1697 = sld [smem:[#allocation6 + $0x7f]]
        %v1698 = vstv %s1697
        %v1699 = vmul.f32 %v1698, %v415
        %v1700 = vmul.f32 %v1698, %v416
        %1703 = vrot.lane.b32.xlu0 %v1699, 127
        %v1704 = vpop.permute.xlu0 %1703
        %1705 = vrot.lane.b32.xlu0 %v1700, 127
        %v1706 = vpop.permute.xlu0 %1705
        %v1709 = vadd.f32 %v1653, %v1704
        %v1710 = vadd.f32 %v1654, %v1706
        %s1711 = sld [smem:[#allocation6 + $0x14]]
        %v1712 = vstv %s1711
        %v1713 = vmul.f32 %v1712, %v415
        %v1714 = vmul.f32 %v1712, %v416
        %1717 = vrot.lane.b32.xlu0 %v1713, 126
        %v1718 = vpop.permute.xlu0 %1717
        %1719 = vrot.lane.b32.xlu0 %v1714, 126
        %v1720 = vpop.permute.xlu0 %1719
        %v1723 = vadd.f32 %v1667, %v1718
        %v1724 = vadd.f32 %v1668, %v1720
        %s1725 = sld [smem:[#allocation6 + $0x38]]
        %v1726 = vstv %s1725
        %v1727 = vmul.f32 %v1726, %v415
        %v1728 = vmul.f32 %v1726, %v416
        %1731 = vrot.lane.b32.xlu0 %v1727, 126
        %v1732 = vpop.permute.xlu0 %1731
        %1733 = vrot.lane.b32.xlu0 %v1728, 126
        %v1734 = vpop.permute.xlu0 %1733
        %v1737 = vadd.f32 %v1681, %v1732
        %v1738 = vadd.f32 %v1682, %v1734
        %s1739 = sld [smem:[#allocation6 + $0x5c]]
        %v1740 = vstv %s1739
        %v1741 = vmul.f32 %v1740, %v415
        %v1742 = vmul.f32 %v1740, %v416
        %1745 = vrot.lane.b32.xlu0 %v1741, 126
        %v1746 = vpop.permute.xlu0 %1745
        %1747 = vrot.lane.b32.xlu0 %v1742, 126
        %v1748 = vpop.permute.xlu0 %1747
        %v1751 = vadd.f32 %v1695, %v1746
        %v1752 = vadd.f32 %v1696, %v1748
        %s1753 = sld [smem:[#allocation6 + $0x80]]
        %v1754 = vstv %s1753
        %v1755 = vmul.f32 %v1754, %v415
        %v1756 = vmul.f32 %v1754, %v416
        %1759 = vrot.lane.b32.xlu0 %v1755, 126
        %v1760 = vpop.permute.xlu0 %1759
        %1761 = vrot.lane.b32.xlu0 %v1756, 126
        %v1762 = vpop.permute.xlu0 %1761
        %v1765 = vadd.f32 %v1709, %v1760
        %v1766 = vadd.f32 %v1710, %v1762
        %s1767 = sld [smem:[#allocation6 + $0x15]]
        %v1768 = vstv %s1767
        %v1769 = vmul.f32 %v1768, %v415
        %v1770 = vmul.f32 %v1768, %v416
        %v1771 = vmul.f32 %v1768, %v417
        %v1775 = vrot.slane %v1769, 1
        %v1776 = vrot.slane %v1770, 1
        %v1777 = vsel %vm557, %v1775, %v1776
        %v1778 = vrot.slane %v1771, 1
        %v1779 = vsel %vm557, %v1776, %v1778
        %v1782 = vadd.f32 %v1723, %v1777
        %v1783 = vadd.f32 %v1724, %v1779
        %s1784 = sld [smem:[#allocation6 + $0x39]]
        %v1785 = vstv %s1784
        %v1786 = vmul.f32 %v1785, %v415
        %v1787 = vmul.f32 %v1785, %v416
        %v1788 = vmul.f32 %v1785, %v417
        %v1792 = vrot.slane %v1786, 1
        %v1793 = vrot.slane %v1787, 1
        %v1794 = vsel %vm557, %v1792, %v1793
        %v1795 = vrot.slane %v1788, 1
        %v1796 = vsel %vm557, %v1793, %v1795
        %v1799 = vadd.f32 %v1737, %v1794
        %v1800 = vadd.f32 %v1738, %v1796
        %s1801 = sld [smem:[#allocation6 + $0x5d]]
        %v1802 = vstv %s1801
        %v1803 = vmul.f32 %v1802, %v415
        %v1804 = vmul.f32 %v1802, %v416
        %v1805 = vmul.f32 %v1802, %v417
        %v1809 = vrot.slane %v1803, 1
        %v1810 = vrot.slane %v1804, 1
        %v1811 = vsel %vm557, %v1809, %v1810
        %v1812 = vrot.slane %v1805, 1
        %v1813 = vsel %vm557, %v1810, %v1812
        %v1816 = vadd.f32 %v1751, %v1811
        %v1817 = vadd.f32 %v1752, %v1813
        %s1818 = sld [smem:[#allocation6 + $0x81]]
        %v1819 = vstv %s1818
        %v1820 = vmul.f32 %v1819, %v415
        %v1821 = vmul.f32 %v1819, %v416
        %v1822 = vmul.f32 %v1819, %v417
        %v1826 = vrot.slane %v1820, 1
        %v1827 = vrot.slane %v1821, 1
        %v1828 = vsel %vm557, %v1826, %v1827
        %v1829 = vrot.slane %v1822, 1
        %v1830 = vsel %vm557, %v1827, %v1829
        %v1833 = vadd.f32 %v1765, %v1828
        %v1834 = vadd.f32 %v1766, %v1830
        %s1835 = sld [smem:[#allocation6 + $0x16]]
        %v1836 = vstv %s1835
        %v1837 = vmul.f32 %v1836, %v415
        %v1838 = vmul.f32 %v1836, %v416
        %v1839 = vmul.f32 %v1836, %v417
        %v1843 = vrot.slane %v1837, 1
        %v1844 = vrot.slane %v1838, 1
        %v1845 = vsel %vm557, %v1843, %v1844
        %v1846 = vrot.slane %v1839, 1
        %v1847 = vsel %vm557, %v1844, %v1846
        %1848 = vrot.lane.b32.xlu0 %v1845, 127
        %v1849 = vpop.permute.xlu0 %1848
        %1850 = vrot.lane.b32.xlu0 %v1847, 127
        %v1851 = vpop.permute.xlu0 %1850
        %v1854 = vadd.f32 %v1782, %v1849
        %v1855 = vadd.f32 %v1783, %v1851
        %s1856 = sld [smem:[#allocation6 + $0x3a]]
        %v1857 = vstv %s1856
        %v1858 = vmul.f32 %v1857, %v415
        %v1859 = vmul.f32 %v1857, %v416
        %v1860 = vmul.f32 %v1857, %v417
        %v1864 = vrot.slane %v1858, 1
        %v1865 = vrot.slane %v1859, 1
        %v1866 = vsel %vm557, %v1864, %v1865
        %v1867 = vrot.slane %v1860, 1
        %v1868 = vsel %vm557, %v1865, %v1867
        %1869 = vrot.lane.b32.xlu0 %v1866, 127
        %v1870 = vpop.permute.xlu0 %1869
        %1871 = vrot.lane.b32.xlu0 %v1868, 127
        %v1872 = vpop.permute.xlu0 %1871
        %v1875 = vadd.f32 %v1799, %v1870
        %v1876 = vadd.f32 %v1800, %v1872
        %s1877 = sld [smem:[#allocation6 + $0x5e]]
        %v1878 = vstv %s1877
        %v1879 = vmul.f32 %v1878, %v415
        %v1880 = vmul.f32 %v1878, %v416
        %v1881 = vmul.f32 %v1878, %v417
        %v1885 = vrot.slane %v1879, 1
        %v1886 = vrot.slane %v1880, 1
        %v1887 = vsel %vm557, %v1885, %v1886
        %v1888 = vrot.slane %v1881, 1
        %v1889 = vsel %vm557, %v1886, %v1888
        %1890 = vrot.lane.b32.xlu0 %v1887, 127
        %v1891 = vpop.permute.xlu0 %1890
        %1892 = vrot.lane.b32.xlu0 %v1889, 127
        %v1893 = vpop.permute.xlu0 %1892
        %v1896 = vadd.f32 %v1816, %v1891
        %v1897 = vadd.f32 %v1817, %v1893
        %s1898 = sld [smem:[#allocation6 + $0x82]]
        %v1899 = vstv %s1898
        %v1900 = vmul.f32 %v1899, %v415
        %v1901 = vmul.f32 %v1899, %v416
        %v1902 = vmul.f32 %v1899, %v417
        %v1906 = vrot.slane %v1900, 1
        %v1907 = vrot.slane %v1901, 1
        %v1908 = vsel %vm557, %v1906, %v1907
        %v1909 = vrot.slane %v1902, 1
        %v1910 = vsel %vm557, %v1907, %v1909
        %1911 = vrot.lane.b32.xlu0 %v1908, 127
        %v1912 = vpop.permute.xlu0 %1911
        %1913 = vrot.lane.b32.xlu0 %v1910, 127
        %v1914 = vpop.permute.xlu0 %1913
        %v1917 = vadd.f32 %v1833, %v1912
        %v1918 = vadd.f32 %v1834, %v1914
        %s1919 = sld [smem:[#allocation6 + $0x17]]
        %v1920 = vstv %s1919
        %v1921 = vmul.f32 %v1920, %v415
        %v1922 = vmul.f32 %v1920, %v416
        %v1923 = vmul.f32 %v1920, %v417
        %v1927 = vrot.slane %v1921, 1
        %v1928 = vrot.slane %v1922, 1
        %v1929 = vsel %vm557, %v1927, %v1928
        %v1930 = vrot.slane %v1923, 1
        %v1931 = vsel %vm557, %v1928, %v1930
        %1932 = vrot.lane.b32.xlu0 %v1929, 126
        %v1933 = vpop.permute.xlu0 %1932
        %1934 = vrot.lane.b32.xlu0 %v1931, 126
        %v1935 = vpop.permute.xlu0 %1934
        %v1938 = vadd.f32 %v1854, %v1933
        %v1939 = vadd.f32 %v1855, %v1935
        %s1940 = sld [smem:[#allocation6 + $0x3b]]
        %v1941 = vstv %s1940
        %v1942 = vmul.f32 %v1941, %v415
        %v1943 = vmul.f32 %v1941, %v416
        %v1944 = vmul.f32 %v1941, %v417
        %v1948 = vrot.slane %v1942, 1
        %v1949 = vrot.slane %v1943, 1
        %v1950 = vsel %vm557, %v1948, %v1949
        %v1951 = vrot.slane %v1944, 1
        %v1952 = vsel %vm557, %v1949, %v1951
        %1953 = vrot.lane.b32.xlu0 %v1950, 126
        %v1954 = vpop.permute.xlu0 %1953
        %1955 = vrot.lane.b32.xlu0 %v1952, 126
        %v1956 = vpop.permute.xlu0 %1955
        %v1959 = vadd.f32 %v1875, %v1954
        %v1960 = vadd.f32 %v1876, %v1956
        %s1961 = sld [smem:[#allocation6 + $0x5f]]
        %v1962 = vstv %s1961
        %v1963 = vmul.f32 %v1962, %v415
        %v1964 = vmul.f32 %v1962, %v416
        %v1965 = vmul.f32 %v1962, %v417
        %v1969 = vrot.slane %v1963, 1
        %v1970 = vrot.slane %v1964, 1
        %v1971 = vsel %vm557, %v1969, %v1970
        %v1972 = vrot.slane %v1965, 1
        %v1973 = vsel %vm557, %v1970, %v1972
        %1974 = vrot.lane.b32.xlu0 %v1971, 126
        %v1975 = vpop.permute.xlu0 %1974
        %1976 = vrot.lane.b32.xlu0 %v1973, 126
        %v1977 = vpop.permute.xlu0 %1976
        %v1980 = vadd.f32 %v1896, %v1975
        %v1981 = vadd.f32 %v1897, %v1977
        %s1982 = sld [smem:[#allocation6 + $0x83]]
        %v1983 = vstv %s1982
        %v1984 = vmul.f32 %v1983, %v415
        %v1985 = vmul.f32 %v1983, %v416
        %v1986 = vmul.f32 %v1983, %v417
        %v1990 = vrot.slane %v1984, 1
        %v1991 = vrot.slane %v1985, 1
        %v1992 = vsel %vm557, %v1990, %v1991
        %v1993 = vrot.slane %v1986, 1
        %v1994 = vsel %vm557, %v1991, %v1993
        %1995 = vrot.lane.b32.xlu0 %v1992, 126
        %v1996 = vpop.permute.xlu0 %1995
        %1997 = vrot.lane.b32.xlu0 %v1994, 126
        %v1998 = vpop.permute.xlu0 %1997
        %v2001 = vadd.f32 %v1917, %v1996
        %v2002 = vadd.f32 %v1918, %v1998
        %s2003 = sld [smem:[#allocation6 + $0x18]]
        %v2004 = vstv %s2003
        %v2005 = vmul.f32 %v2004, %v415
        %v2006 = vmul.f32 %v2004, %v416
        %v2007 = vmul.f32 %v2004, %v417
        %v2011 = vrot.slane %v2005, 2
        %v2012 = vrot.slane %v2006, 2
        %v2013 = vsel %vm794, %v2011, %v2012
        %v2014 = vrot.slane %v2007, 2
        %v2015 = vsel %vm794, %v2012, %v2014
        %v2018 = vadd.f32 %v1938, %v2013
        %v2019 = vadd.f32 %v1939, %v2015
        %s2020 = sld [smem:[#allocation6 + $0x3c]]
        %v2021 = vstv %s2020
        %v2022 = vmul.f32 %v2021, %v415
        %v2023 = vmul.f32 %v2021, %v416
        %v2024 = vmul.f32 %v2021, %v417
        %v2028 = vrot.slane %v2022, 2
        %v2029 = vrot.slane %v2023, 2
        %v2030 = vsel %vm794, %v2028, %v2029
        %v2031 = vrot.slane %v2024, 2
        %v2032 = vsel %vm794, %v2029, %v2031
        %v2035 = vadd.f32 %v1959, %v2030
        %v2036 = vadd.f32 %v1960, %v2032
        %s2037 = sld [smem:[#allocation6 + $0x60]]
        %v2038 = vstv %s2037
        %v2039 = vmul.f32 %v2038, %v415
        %v2040 = vmul.f32 %v2038, %v416
        %v2041 = vmul.f32 %v2038, %v417
        %v2045 = vrot.slane %v2039, 2
        %v2046 = vrot.slane %v2040, 2
        %v2047 = vsel %vm794, %v2045, %v2046
        %v2048 = vrot.slane %v2041, 2
        %v2049 = vsel %vm794, %v2046, %v2048
        %v2052 = vadd.f32 %v1980, %v2047
        %v2053 = vadd.f32 %v1981, %v2049
        %s2054 = sld [smem:[#allocation6 + $0x84]]
        %v2055 = vstv %s2054
        %v2056 = vmul.f32 %v2055, %v415
        %v2057 = vmul.f32 %v2055, %v416
        %v2058 = vmul.f32 %v2055, %v417
        %v2062 = vrot.slane %v2056, 2
        %v2063 = vrot.slane %v2057, 2
        %v2064 = vsel %vm794, %v2062, %v2063
        %v2065 = vrot.slane %v2058, 2
        %v2066 = vsel %vm794, %v2063, %v2065
        %v2069 = vadd.f32 %v2001, %v2064
        %v2070 = vadd.f32 %v2002, %v2066
        %s2071 = sld [smem:[#allocation6 + $0x19]]
        %v2072 = vstv %s2071
        %v2073 = vmul.f32 %v2072, %v415
        %v2074 = vmul.f32 %v2072, %v416
        %v2075 = vmul.f32 %v2072, %v417
        %v2079 = vrot.slane %v2073, 2
        %v2080 = vrot.slane %v2074, 2
        %v2081 = vsel %vm794, %v2079, %v2080
        %v2082 = vrot.slane %v2075, 2
        %v2083 = vsel %vm794, %v2080, %v2082
        %2084 = vrot.lane.b32.xlu0 %v2081, 127
        %v2085 = vpop.permute.xlu0 %2084
        %2086 = vrot.lane.b32.xlu0 %v2083, 127
        %v2087 = vpop.permute.xlu0 %2086
        %v2090 = vadd.f32 %v2018, %v2085
        %v2091 = vadd.f32 %v2019, %v2087
        %s2092 = sld [smem:[#allocation6 + $0x3d]]
        %v2093 = vstv %s2092
        %v2094 = vmul.f32 %v2093, %v415
        %v2095 = vmul.f32 %v2093, %v416
        %v2096 = vmul.f32 %v2093, %v417
        %v2100 = vrot.slane %v2094, 2
        %v2101 = vrot.slane %v2095, 2
        %v2102 = vsel %vm794, %v2100, %v2101
        %v2103 = vrot.slane %v2096, 2
        %v2104 = vsel %vm794, %v2101, %v2103
        %2105 = vrot.lane.b32.xlu0 %v2102, 127
        %v2106 = vpop.permute.xlu0 %2105
        %2107 = vrot.lane.b32.xlu0 %v2104, 127
        %v2108 = vpop.permute.xlu0 %2107
        %v2111 = vadd.f32 %v2035, %v2106
        %v2112 = vadd.f32 %v2036, %v2108
        %s2113 = sld [smem:[#allocation6 + $0x61]]
        %v2114 = vstv %s2113
        %v2115 = vmul.f32 %v2114, %v415
        %v2116 = vmul.f32 %v2114, %v416
        %v2117 = vmul.f32 %v2114, %v417
        %v2121 = vrot.slane %v2115, 2
        %v2122 = vrot.slane %v2116, 2
        %v2123 = vsel %vm794, %v2121, %v2122
        %v2124 = vrot.slane %v2117, 2
        %v2125 = vsel %vm794, %v2122, %v2124
        %2126 = vrot.lane.b32.xlu0 %v2123, 127
        %v2127 = vpop.permute.xlu0 %2126
        %2128 = vrot.lane.b32.xlu0 %v2125, 127
        %v2129 = vpop.permute.xlu0 %2128
        %v2132 = vadd.f32 %v2052, %v2127
        %v2133 = vadd.f32 %v2053, %v2129
        %s2134 = sld [smem:[#allocation6 + $0x85]]
        %v2135 = vstv %s2134
        %v2136 = vmul.f32 %v2135, %v415
        %v2137 = vmul.f32 %v2135, %v416
        %v2138 = vmul.f32 %v2135, %v417
        %v2142 = vrot.slane %v2136, 2
        %v2143 = vrot.slane %v2137, 2
        %v2144 = vsel %vm794, %v2142, %v2143
        %v2145 = vrot.slane %v2138, 2
        %v2146 = vsel %vm794, %v2143, %v2145
        %2147 = vrot.lane.b32.xlu0 %v2144, 127
        %v2148 = vpop.permute.xlu0 %2147
        %2149 = vrot.lane.b32.xlu0 %v2146, 127
        %v2150 = vpop.permute.xlu0 %2149
        %v2153 = vadd.f32 %v2069, %v2148
        %v2154 = vadd.f32 %v2070, %v2150
        %s2155 = sld [smem:[#allocation6 + $0x1a]]
        %v2156 = vstv %s2155
        %v2157 = vmul.f32 %v2156, %v415
        %v2158 = vmul.f32 %v2156, %v416
        %v2159 = vmul.f32 %v2156, %v417
        %v2163 = vrot.slane %v2157, 2
        %v2164 = vrot.slane %v2158, 2
        %v2165 = vsel %vm794, %v2163, %v2164
        %v2166 = vrot.slane %v2159, 2
        %v2167 = vsel %vm794, %v2164, %v2166
        %2168 = vrot.lane.b32.xlu0 %v2165, 126
        %v2169 = vpop.permute.xlu0 %2168
        %2170 = vrot.lane.b32.xlu0 %v2167, 126
        %v2171 = vpop.permute.xlu0 %2170
        %v2174 = vadd.f32 %v2090, %v2169
        %v2175 = vadd.f32 %v2091, %v2171
        %s2176 = sld [smem:[#allocation6 + $0x3e]]
        %v2177 = vstv %s2176
        %v2178 = vmul.f32 %v2177, %v415
        %v2179 = vmul.f32 %v2177, %v416
        %v2180 = vmul.f32 %v2177, %v417
        %v2184 = vrot.slane %v2178, 2
        %v2185 = vrot.slane %v2179, 2
        %v2186 = vsel %vm794, %v2184, %v2185
        %v2187 = vrot.slane %v2180, 2
        %v2188 = vsel %vm794, %v2185, %v2187
        %2189 = vrot.lane.b32.xlu0 %v2186, 126
        %v2190 = vpop.permute.xlu0 %2189
        %2191 = vrot.lane.b32.xlu0 %v2188, 126
        %v2192 = vpop.permute.xlu0 %2191
        %v2195 = vadd.f32 %v2111, %v2190
        %v2196 = vadd.f32 %v2112, %v2192
        %s2197 = sld [smem:[#allocation6 + $0x62]]
        %v2198 = vstv %s2197
        %v2199 = vmul.f32 %v2198, %v415
        %v2200 = vmul.f32 %v2198, %v416
        %v2201 = vmul.f32 %v2198, %v417
        %v2205 = vrot.slane %v2199, 2
        %v2206 = vrot.slane %v2200, 2
        %v2207 = vsel %vm794, %v2205, %v2206
        %v2208 = vrot.slane %v2201, 2
        %v2209 = vsel %vm794, %v2206, %v2208
        %2210 = vrot.lane.b32.xlu0 %v2207, 126
        %v2211 = vpop.permute.xlu0 %2210
        %2212 = vrot.lane.b32.xlu0 %v2209, 126
        %v2213 = vpop.permute.xlu0 %2212
        %v2216 = vadd.f32 %v2132, %v2211
        %v2217 = vadd.f32 %v2133, %v2213
        %s2218 = sld [smem:[#allocation6 + $0x86]]
        %v2219 = vstv %s2218
        %v2220 = vmul.f32 %v2219, %v415
        %v2221 = vmul.f32 %v2219, %v416
        %v2222 = vmul.f32 %v2219, %v417
        %v2226 = vrot.slane %v2220, 2
        %v2227 = vrot.slane %v2221, 2
        %v2228 = vsel %vm794, %v2226, %v2227
        %v2229 = vrot.slane %v2222, 2
        %v2230 = vsel %vm794, %v2227, %v2229
        %2231 = vrot.lane.b32.xlu0 %v2228, 126
        %v2232 = vpop.permute.xlu0 %2231
        %2233 = vrot.lane.b32.xlu0 %v2230, 126
        %v2234 = vpop.permute.xlu0 %2233
        %v2237 = vadd.f32 %v2153, %v2232
        %v2238 = vadd.f32 %v2154, %v2234
        %s2239 = sld [smem:[#allocation6 + $0x1b]]
        %v2240 = vstv %s2239
        %v2241 = vmul.f32 %v2240, %v418
        %v2242 = vmul.f32 %v2240, %v419
        %v2243 = vadd.f32 %v2174, %v2241
        %v2244 = vadd.f32 %v2175, %v2242
        %s2245 = sld [smem:[#allocation6 + $0x3f]]
        %v2246 = vstv %s2245
        %v2247 = vmul.f32 %v2246, %v418
        %v2248 = vmul.f32 %v2246, %v419
        %v2249 = vadd.f32 %v2195, %v2247
        %v2250 = vadd.f32 %v2196, %v2248
        %s2251 = sld [smem:[#allocation6 + $0x63]]
        %v2252 = vstv %s2251
        %v2253 = vmul.f32 %v2252, %v418
        %v2254 = vmul.f32 %v2252, %v419
        %v2255 = vadd.f32 %v2216, %v2253
        %v2256 = vadd.f32 %v2217, %v2254
        %s2257 = sld [smem:[#allocation6 + $0x87]]
        %v2258 = vstv %s2257
        %v2259 = vmul.f32 %v2258, %v418
        %v2260 = vmul.f32 %v2258, %v419
        %v2261 = vadd.f32 %v2237, %v2259
        %v2262 = vadd.f32 %v2238, %v2260
        %s2263 = sld [smem:[#allocation6 + $0x1c]]
        %v2264 = vstv %s2263
        %v2265 = vmul.f32 %v2264, %v418
        %v2266 = vmul.f32 %v2264, %v419
        %2269 = vrot.lane.b32.xlu0 %v2265, 127
        %v2270 = vpop.permute.xlu0 %2269
        %2271 = vrot.lane.b32.xlu0 %v2266, 127
        %v2272 = vpop.permute.xlu0 %2271
        %v2275 = vadd.f32 %v2243, %v2270
        %v2276 = vadd.f32 %v2244, %v2272
        %s2277 = sld [smem:[#allocation6 + $0x40]]
        %v2278 = vstv %s2277
        %v2279 = vmul.f32 %v2278, %v418
        %v2280 = vmul.f32 %v2278, %v419
        %2283 = vrot.lane.b32.xlu0 %v2279, 127
        %v2284 = vpop.permute.xlu0 %2283
        %2285 = vrot.lane.b32.xlu0 %v2280, 127
        %v2286 = vpop.permute.xlu0 %2285
        %v2289 = vadd.f32 %v2249, %v2284
        %v2290 = vadd.f32 %v2250, %v2286
        %s2291 = sld [smem:[#allocation6 + $0x64]]
        %v2292 = vstv %s2291
        %v2293 = vmul.f32 %v2292, %v418
        %v2294 = vmul.f32 %v2292, %v419
        %2297 = vrot.lane.b32.xlu0 %v2293, 127
        %v2298 = vpop.permute.xlu0 %2297
        %2299 = vrot.lane.b32.xlu0 %v2294, 127
        %v2300 = vpop.permute.xlu0 %2299
        %v2303 = vadd.f32 %v2255, %v2298
        %v2304 = vadd.f32 %v2256, %v2300
        %s2305 = sld [smem:[#allocation6 + $0x88]]
        %v2306 = vstv %s2305
        %v2307 = vmul.f32 %v2306, %v418
        %v2308 = vmul.f32 %v2306, %v419
        %2311 = vrot.lane.b32.xlu0 %v2307, 127
        %v2312 = vpop.permute.xlu0 %2311
        %2313 = vrot.lane.b32.xlu0 %v2308, 127
        %v2314 = vpop.permute.xlu0 %2313
        %v2317 = vadd.f32 %v2261, %v2312
        %v2318 = vadd.f32 %v2262, %v2314
        %s2319 = sld [smem:[#allocation6 + $0x1d]]
        %v2320 = vstv %s2319
        %v2321 = vmul.f32 %v2320, %v418
        %v2322 = vmul.f32 %v2320, %v419
        %2325 = vrot.lane.b32.xlu0 %v2321, 126
        %v2326 = vpop.permute.xlu0 %2325
        %2327 = vrot.lane.b32.xlu0 %v2322, 126
        %v2328 = vpop.permute.xlu0 %2327
        %v2331 = vadd.f32 %v2275, %v2326
        %v2332 = vadd.f32 %v2276, %v2328
        %s2333 = sld [smem:[#allocation6 + $0x41]]
        %v2334 = vstv %s2333
        %v2335 = vmul.f32 %v2334, %v418
        %v2336 = vmul.f32 %v2334, %v419
        %2339 = vrot.lane.b32.xlu0 %v2335, 126
        %v2340 = vpop.permute.xlu0 %2339
        %2341 = vrot.lane.b32.xlu0 %v2336, 126
        %v2342 = vpop.permute.xlu0 %2341
        %v2345 = vadd.f32 %v2289, %v2340
        %v2346 = vadd.f32 %v2290, %v2342
        %s2347 = sld [smem:[#allocation6 + $0x65]]
        %v2348 = vstv %s2347
        %v2349 = vmul.f32 %v2348, %v418
        %v2350 = vmul.f32 %v2348, %v419
        %2353 = vrot.lane.b32.xlu0 %v2349, 126
        %v2354 = vpop.permute.xlu0 %2353
        %2355 = vrot.lane.b32.xlu0 %v2350, 126
        %v2356 = vpop.permute.xlu0 %2355
        %v2359 = vadd.f32 %v2303, %v2354
        %v2360 = vadd.f32 %v2304, %v2356
        %s2361 = sld [smem:[#allocation6 + $0x89]]
        %v2362 = vstv %s2361
        %v2363 = vmul.f32 %v2362, %v418
        %v2364 = vmul.f32 %v2362, %v419
        %2367 = vrot.lane.b32.xlu0 %v2363, 126
        %v2368 = vpop.permute.xlu0 %2367
        %2369 = vrot.lane.b32.xlu0 %v2364, 126
        %v2370 = vpop.permute.xlu0 %2369
        %v2373 = vadd.f32 %v2317, %v2368
        %v2374 = vadd.f32 %v2318, %v2370
        %s2375 = sld [smem:[#allocation6 + $0x1e]]
        %v2376 = vstv %s2375
        %v2377 = vmul.f32 %v2376, %v418
        %v2378 = vmul.f32 %v2376, %v419
        %v2379 = vmul.f32 %v2376, %v420
        %v2383 = vrot.slane %v2377, 1
        %v2384 = vrot.slane %v2378, 1
        %v2385 = vsel %vm557, %v2383, %v2384
        %v2386 = vrot.slane %v2379, 1
        %v2387 = vsel %vm557, %v2384, %v2386
        %v2390 = vadd.f32 %v2331, %v2385
        %v2391 = vadd.f32 %v2332, %v2387
        %s2392 = sld [smem:[#allocation6 + $0x42]]
        %v2393 = vstv %s2392
        %v2394 = vmul.f32 %v2393, %v418
        %v2395 = vmul.f32 %v2393, %v419
        %v2396 = vmul.f32 %v2393, %v420
        %v2400 = vrot.slane %v2394, 1
        %v2401 = vrot.slane %v2395, 1
        %v2402 = vsel %vm557, %v2400, %v2401
        %v2403 = vrot.slane %v2396, 1
        %v2404 = vsel %vm557, %v2401, %v2403
        %v2407 = vadd.f32 %v2345, %v2402
        %v2408 = vadd.f32 %v2346, %v2404
        %s2409 = sld [smem:[#allocation6 + $0x66]]
        %v2410 = vstv %s2409
        %v2411 = vmul.f32 %v2410, %v418
        %v2412 = vmul.f32 %v2410, %v419
        %v2413 = vmul.f32 %v2410, %v420
        %v2417 = vrot.slane %v2411, 1
        %v2418 = vrot.slane %v2412, 1
        %v2419 = vsel %vm557, %v2417, %v2418
        %v2420 = vrot.slane %v2413, 1
        %v2421 = vsel %vm557, %v2418, %v2420
        %v2424 = vadd.f32 %v2359, %v2419
        %v2425 = vadd.f32 %v2360, %v2421
        %s2426 = sld [smem:[#allocation6 + $0x8a]]
        %v2427 = vstv %s2426
        %v2428 = vmul.f32 %v2427, %v418
        %v2429 = vmul.f32 %v2427, %v419
        %v2430 = vmul.f32 %v2427, %v420
        %v2434 = vrot.slane %v2428, 1
        %v2435 = vrot.slane %v2429, 1
        %v2436 = vsel %vm557, %v2434, %v2435
        %v2437 = vrot.slane %v2430, 1
        %v2438 = vsel %vm557, %v2435, %v2437
        %v2441 = vadd.f32 %v2373, %v2436
        %v2442 = vadd.f32 %v2374, %v2438
        %s2443 = sld [smem:[#allocation6 + $0x1f]]
        %v2444 = vstv %s2443
        %v2445 = vmul.f32 %v2444, %v418
        %v2446 = vmul.f32 %v2444, %v419
        %v2447 = vmul.f32 %v2444, %v420
        %v2451 = vrot.slane %v2445, 1
        %v2452 = vrot.slane %v2446, 1
        %v2453 = vsel %vm557, %v2451, %v2452
        %v2454 = vrot.slane %v2447, 1
        %v2455 = vsel %vm557, %v2452, %v2454
        %2456 = vrot.lane.b32.xlu0 %v2453, 127
        %v2457 = vpop.permute.xlu0 %2456
        %2458 = vrot.lane.b32.xlu0 %v2455, 127
        %v2459 = vpop.permute.xlu0 %2458
        %v2462 = vadd.f32 %v2390, %v2457
        %v2463 = vadd.f32 %v2391, %v2459
        %s2464 = sld [smem:[#allocation6 + $0x43]]
        %v2465 = vstv %s2464
        %v2466 = vmul.f32 %v2465, %v418
        %v2467 = vmul.f32 %v2465, %v419
        %v2468 = vmul.f32 %v2465, %v420
        %v2472 = vrot.slane %v2466, 1
        %v2473 = vrot.slane %v2467, 1
        %v2474 = vsel %vm557, %v2472, %v2473
        %v2475 = vrot.slane %v2468, 1
        %v2476 = vsel %vm557, %v2473, %v2475
        %2477 = vrot.lane.b32.xlu0 %v2474, 127
        %v2478 = vpop.permute.xlu0 %2477
        %2479 = vrot.lane.b32.xlu0 %v2476, 127
        %v2480 = vpop.permute.xlu0 %2479
        %v2483 = vadd.f32 %v2407, %v2478
        %v2484 = vadd.f32 %v2408, %v2480
        %s2485 = sld [smem:[#allocation6 + $0x67]]
        %v2486 = vstv %s2485
        %v2487 = vmul.f32 %v2486, %v418
        %v2488 = vmul.f32 %v2486, %v419
        %v2489 = vmul.f32 %v2486, %v420
        %v2493 = vrot.slane %v2487, 1
        %v2494 = vrot.slane %v2488, 1
        %v2495 = vsel %vm557, %v2493, %v2494
        %v2496 = vrot.slane %v2489, 1
        %v2497 = vsel %vm557, %v2494, %v2496
        %2498 = vrot.lane.b32.xlu0 %v2495, 127
        %v2499 = vpop.permute.xlu0 %2498
        %2500 = vrot.lane.b32.xlu0 %v2497, 127
        %v2501 = vpop.permute.xlu0 %2500
        %v2504 = vadd.f32 %v2424, %v2499
        %v2505 = vadd.f32 %v2425, %v2501
        %s2506 = sld [smem:[#allocation6 + $0x8b]]
        %v2507 = vstv %s2506
        %v2508 = vmul.f32 %v2507, %v418
        %v2509 = vmul.f32 %v2507, %v419
        %v2510 = vmul.f32 %v2507, %v420
        %v2514 = vrot.slane %v2508, 1
        %v2515 = vrot.slane %v2509, 1
        %v2516 = vsel %vm557, %v2514, %v2515
        %v2517 = vrot.slane %v2510, 1
        %v2518 = vsel %vm557, %v2515, %v2517
        %2519 = vrot.lane.b32.xlu0 %v2516, 127
        %v2520 = vpop.permute.xlu0 %2519
        %2521 = vrot.lane.b32.xlu0 %v2518, 127
        %v2522 = vpop.permute.xlu0 %2521
        %v2525 = vadd.f32 %v2441, %v2520
        %v2526 = vadd.f32 %v2442, %v2522
        %s2527 = sld [smem:[#allocation6 + $0x20]]
        %v2528 = vstv %s2527
        %v2529 = vmul.f32 %v2528, %v418
        %v2530 = vmul.f32 %v2528, %v419
        %v2531 = vmul.f32 %v2528, %v420
        %v2535 = vrot.slane %v2529, 1
        %v2536 = vrot.slane %v2530, 1
        %v2537 = vsel %vm557, %v2535, %v2536
        %v2538 = vrot.slane %v2531, 1
        %v2539 = vsel %vm557, %v2536, %v2538
        %2540 = vrot.lane.b32.xlu0 %v2537, 126
        %v2541 = vpop.permute.xlu0 %2540
        %2542 = vrot.lane.b32.xlu0 %v2539, 126
        %v2543 = vpop.permute.xlu0 %2542
        %v2546 = vadd.f32 %v2462, %v2541
        %v2547 = vadd.f32 %v2463, %v2543
        %s2548 = sld [smem:[#allocation6 + $0x44]]
        %v2549 = vstv %s2548
        %v2550 = vmul.f32 %v2549, %v418
        %v2551 = vmul.f32 %v2549, %v419
        %v2552 = vmul.f32 %v2549, %v420
        %v2556 = vrot.slane %v2550, 1
        %v2557 = vrot.slane %v2551, 1
        %v2558 = vsel %vm557, %v2556, %v2557
        %v2559 = vrot.slane %v2552, 1
        %v2560 = vsel %vm557, %v2557, %v2559
        %2561 = vrot.lane.b32.xlu0 %v2558, 126
        %v2562 = vpop.permute.xlu0 %2561
        %2563 = vrot.lane.b32.xlu0 %v2560, 126
        %v2564 = vpop.permute.xlu0 %2563
        %v2567 = vadd.f32 %v2483, %v2562
        %v2568 = vadd.f32 %v2484, %v2564
        %s2569 = sld [smem:[#allocation6 + $0x68]]
        %v2570 = vstv %s2569
        %v2571 = vmul.f32 %v2570, %v418
        %v2572 = vmul.f32 %v2570, %v419
        %v2573 = vmul.f32 %v2570, %v420
        %v2577 = vrot.slane %v2571, 1
        %v2578 = vrot.slane %v2572, 1
        %v2579 = vsel %vm557, %v2577, %v2578
        %v2580 = vrot.slane %v2573, 1
        %v2581 = vsel %vm557, %v2578, %v2580
        %2582 = vrot.lane.b32.xlu0 %v2579, 126
        %v2583 = vpop.permute.xlu0 %2582
        %2584 = vrot.lane.b32.xlu0 %v2581, 126
        %v2585 = vpop.permute.xlu0 %2584
        %v2588 = vadd.f32 %v2504, %v2583
        %v2589 = vadd.f32 %v2505, %v2585
        %s2590 = sld [smem:[#allocation6 + $0x8c]]
        %v2591 = vstv %s2590
        %v2592 = vmul.f32 %v2591, %v418
        %v2593 = vmul.f32 %v2591, %v419
        %v2594 = vmul.f32 %v2591, %v420
        %v2598 = vrot.slane %v2592, 1
        %v2599 = vrot.slane %v2593, 1
        %v2600 = vsel %vm557, %v2598, %v2599
        %v2601 = vrot.slane %v2594, 1
        %v2602 = vsel %vm557, %v2599, %v2601
        %2603 = vrot.lane.b32.xlu0 %v2600, 126
        %v2604 = vpop.permute.xlu0 %2603
        %2605 = vrot.lane.b32.xlu0 %v2602, 126
        %v2606 = vpop.permute.xlu0 %2605
        %v2609 = vadd.f32 %v2525, %v2604
        %v2610 = vadd.f32 %v2526, %v2606
        %s2611 = sld [smem:[#allocation6 + $0x21]]
        %v2612 = vstv %s2611
        %v2613 = vmul.f32 %v2612, %v418
        %v2614 = vmul.f32 %v2612, %v419
        %v2615 = vmul.f32 %v2612, %v420
        %v2619 = vrot.slane %v2613, 2
        %v2620 = vrot.slane %v2614, 2
        %v2621 = vsel %vm794, %v2619, %v2620
        %v2622 = vrot.slane %v2615, 2
        %v2623 = vsel %vm794, %v2620, %v2622
        %v2626 = vadd.f32 %v2546, %v2621
        %v2627 = vadd.f32 %v2547, %v2623
        %s2628 = sld [smem:[#allocation6 + $0x45]]
        %v2629 = vstv %s2628
        %v2630 = vmul.f32 %v2629, %v418
        %v2631 = vmul.f32 %v2629, %v419
        %v2632 = vmul.f32 %v2629, %v420
        %v2636 = vrot.slane %v2630, 2
        %v2637 = vrot.slane %v2631, 2
        %v2638 = vsel %vm794, %v2636, %v2637
        %v2639 = vrot.slane %v2632, 2
        %v2640 = vsel %vm794, %v2637, %v2639
        %v2643 = vadd.f32 %v2567, %v2638
        %v2644 = vadd.f32 %v2568, %v2640
        %s2645 = sld [smem:[#allocation6 + $0x69]]
        %v2646 = vstv %s2645
        %v2647 = vmul.f32 %v2646, %v418
        %v2648 = vmul.f32 %v2646, %v419
        %v2649 = vmul.f32 %v2646, %v420
        %v2653 = vrot.slane %v2647, 2
        %v2654 = vrot.slane %v2648, 2
        %v2655 = vsel %vm794, %v2653, %v2654
        %v2656 = vrot.slane %v2649, 2
        %v2657 = vsel %vm794, %v2654, %v2656
        %v2660 = vadd.f32 %v2588, %v2655
        %v2661 = vadd.f32 %v2589, %v2657
        %s2662 = sld [smem:[#allocation6 + $0x8d]]
        %v2663 = vstv %s2662
        %v2664 = vmul.f32 %v2663, %v418
        %v2665 = vmul.f32 %v2663, %v419
        %v2666 = vmul.f32 %v2663, %v420
        %v2670 = vrot.slane %v2664, 2
        %v2671 = vrot.slane %v2665, 2
        %v2672 = vsel %vm794, %v2670, %v2671
        %v2673 = vrot.slane %v2666, 2
        %v2674 = vsel %vm794, %v2671, %v2673
        %v2677 = vadd.f32 %v2609, %v2672
        %v2678 = vadd.f32 %v2610, %v2674
        %s2679 = sld [smem:[#allocation6 + $0x22]]
        %v2680 = vstv %s2679
        %v2681 = vmul.f32 %v2680, %v418
        %v2682 = vmul.f32 %v2680, %v419
        %v2683 = vmul.f32 %v2680, %v420
        %v2687 = vrot.slane %v2681, 2
        %v2688 = vrot.slane %v2682, 2
        %v2689 = vsel %vm794, %v2687, %v2688
        %v2690 = vrot.slane %v2683, 2
        %v2691 = vsel %vm794, %v2688, %v2690
        %2692 = vrot.lane.b32.xlu0 %v2689, 127
        %v2693 = vpop.permute.xlu0 %2692
        %2694 = vrot.lane.b32.xlu0 %v2691, 127
        %v2695 = vpop.permute.xlu0 %2694
        %v2698 = vadd.f32 %v2626, %v2693
        %v2699 = vadd.f32 %v2627, %v2695
        %s2700 = sld [smem:[#allocation6 + $0x46]]
        %v2701 = vstv %s2700
        %v2702 = vmul.f32 %v2701, %v418
        %v2703 = vmul.f32 %v2701, %v419
        %v2704 = vmul.f32 %v2701, %v420
        %v2708 = vrot.slane %v2702, 2
        %v2709 = vrot.slane %v2703, 2
        %v2710 = vsel %vm794, %v2708, %v2709
        %v2711 = vrot.slane %v2704, 2
        %v2712 = vsel %vm794, %v2709, %v2711
        %2713 = vrot.lane.b32.xlu0 %v2710, 127
        %v2714 = vpop.permute.xlu0 %2713
        %2715 = vrot.lane.b32.xlu0 %v2712, 127
        %v2716 = vpop.permute.xlu0 %2715
        %v2719 = vadd.f32 %v2643, %v2714
        %v2720 = vadd.f32 %v2644, %v2716
        %s2721 = sld [smem:[#allocation6 + $0x6a]]
        %v2722 = vstv %s2721
        %v2723 = vmul.f32 %v2722, %v418
        %v2724 = vmul.f32 %v2722, %v419
        %v2725 = vmul.f32 %v2722, %v420
        %v2729 = vrot.slane %v2723, 2
        %v2730 = vrot.slane %v2724, 2
        %v2731 = vsel %vm794, %v2729, %v2730
        %v2732 = vrot.slane %v2725, 2
        %v2733 = vsel %vm794, %v2730, %v2732
        %2734 = vrot.lane.b32.xlu0 %v2731, 127
        %v2735 = vpop.permute.xlu0 %2734
        %2736 = vrot.lane.b32.xlu0 %v2733, 127
        %v2737 = vpop.permute.xlu0 %2736
        %v2740 = vadd.f32 %v2660, %v2735
        %v2741 = vadd.f32 %v2661, %v2737
        %s2742 = sld [smem:[#allocation6 + $0x8e]]
        %v2743 = vstv %s2742
        %v2744 = vmul.f32 %v2743, %v418
        %v2745 = vmul.f32 %v2743, %v419
        %v2746 = vmul.f32 %v2743, %v420
        %v2750 = vrot.slane %v2744, 2
        %v2751 = vrot.slane %v2745, 2
        %v2752 = vsel %vm794, %v2750, %v2751
        %v2753 = vrot.slane %v2746, 2
        %v2754 = vsel %vm794, %v2751, %v2753
        %2755 = vrot.lane.b32.xlu0 %v2752, 127
        %v2756 = vpop.permute.xlu0 %2755
        %2757 = vrot.lane.b32.xlu0 %v2754, 127
        %v2758 = vpop.permute.xlu0 %2757
        %v2761 = vadd.f32 %v2677, %v2756
        %v2762 = vadd.f32 %v2678, %v2758
        %s2763 = sld [smem:[#allocation6 + $0x23]]
        %v2764 = vstv %s2763
        %v2765 = vmul.f32 %v2764, %v418
        %v2766 = vmul.f32 %v2764, %v419
        %v2767 = vmul.f32 %v2764, %v420
        %v2771 = vrot.slane %v2765, 2
        %v2772 = vrot.slane %v2766, 2
        %v2773 = vsel %vm794, %v2771, %v2772
        %v2774 = vrot.slane %v2767, 2
        %v2775 = vsel %vm794, %v2772, %v2774
        %2776 = vrot.lane.b32.xlu0 %v2773, 126
        %v2777 = vpop.permute.xlu0 %2776
        %2778 = vrot.lane.b32.xlu0 %v2775, 126
        %v2779 = vpop.permute.xlu0 %2778
        %v2782 = vadd.f32 %v2698, %v2777
        %v2783 = vadd.f32 %v2699, %v2779
        %s2784 = sld [smem:[#allocation6 + $0x47]]
        %v2785 = vstv %s2784
        %v2786 = vmul.f32 %v2785, %v418
        %v2787 = vmul.f32 %v2785, %v419
        %v2788 = vmul.f32 %v2785, %v420
        %v2792 = vrot.slane %v2786, 2
        %v2793 = vrot.slane %v2787, 2
        %v2794 = vsel %vm794, %v2792, %v2793
        %v2795 = vrot.slane %v2788, 2
        %v2796 = vsel %vm794, %v2793, %v2795
        %2797 = vrot.lane.b32.xlu0 %v2794, 126
        %v2798 = vpop.permute.xlu0 %2797
        %2799 = vrot.lane.b32.xlu0 %v2796, 126
        %v2800 = vpop.permute.xlu0 %2799
        %v2803 = vadd.f32 %v2719, %v2798
        %v2804 = vadd.f32 %v2720, %v2800
        %s2805 = sld [smem:[#allocation6 + $0x6b]]
        %v2806 = vstv %s2805
        %v2807 = vmul.f32 %v2806, %v418
        %v2808 = vmul.f32 %v2806, %v419
        %v2809 = vmul.f32 %v2806, %v420
        %v2813 = vrot.slane %v2807, 2
        %v2814 = vrot.slane %v2808, 2
        %v2815 = vsel %vm794, %v2813, %v2814
        %v2816 = vrot.slane %v2809, 2
        %v2817 = vsel %vm794, %v2814, %v2816
        %2818 = vrot.lane.b32.xlu0 %v2815, 126
        %v2819 = vpop.permute.xlu0 %2818
        %2820 = vrot.lane.b32.xlu0 %v2817, 126
        %v2821 = vpop.permute.xlu0 %2820
        %v2824 = vadd.f32 %v2740, %v2819
        %v2825 = vadd.f32 %v2741, %v2821
        %s2826 = sld [smem:[#allocation6 + $0x8f]]
        %v2827 = vstv %s2826
        %v2828 = vmul.f32 %v2827, %v418
        %v2829 = vmul.f32 %v2827, %v419
        %v2830 = vmul.f32 %v2827, %v420
        %v2834 = vrot.slane %v2828, 2
        %v2835 = vrot.slane %v2829, 2
        %v2836 = vsel %vm794, %v2834, %v2835
        %v2837 = vrot.slane %v2830, 2
        %v2838 = vsel %vm794, %v2835, %v2837
        %2839 = vrot.lane.b32.xlu0 %v2836, 126
        %v2840 = vpop.permute.xlu0 %2839
        %2841 = vrot.lane.b32.xlu0 %v2838, 126
        %v2842 = vpop.permute.xlu0 %2841
        %v2845 = vadd.f32 %v2761, %v2840
        %v2846 = vadd.f32 %v2762, %v2842
        %vm2847 = vcmask 130048
        %v2848 = vsel %vm2847, %v2782, 0.0
        %2849 = vadd.xlane.f32.xlu0 %v2848
        %v2850 = vpop.xlane.xlu0 %2849
        %v2851 = vsel %vm2847, %v2783, 0.0
        %2852 = vadd.xlane.f32.xlu0 %v2851
        %v2853 = vpop.xlane.xlu0 %2852
        %v2854 = vsel %vm2847, %v2803, 0.0
        %2855 = vadd.xlane.f32.xlu0 %v2854
        %v2856 = vpop.xlane.xlu0 %2855
        %v2857 = vsel %vm2847, %v2804, 0.0
        %2858 = vadd.xlane.f32.xlu0 %v2857
        %v2859 = vpop.xlane.xlu0 %2858
        %v2860 = vsel %vm2847, %v2824, 0.0
        %2861 = vadd.xlane.f32.xlu0 %v2860
        %v2862 = vpop.xlane.xlu0 %2861
        %v2863 = vsel %vm2847, %v2825, 0.0
        %2864 = vadd.xlane.f32.xlu0 %v2863
        %v2865 = vpop.xlane.xlu0 %2864
        %v2866 = vsel %vm2847, %v2845, 0.0
        %2867 = vadd.xlane.f32.xlu0 %v2866
        %v2868 = vpop.xlane.xlu0 %2867
        %v2869 = vsel %vm2847, %v2846, 0.0
        %2870 = vadd.xlane.f32.xlu0 %v2869
        %v2871 = vpop.xlane.xlu0 %2870
        %v2872 = vrcp.pop 16.0
        %v2873 = vmul.f32 16.0, %v2872
        %v2874 = vsub.f32 1.0, %v2873
        %v2875 = vmul.f32 %v2872, %v2874
        %v2876 = vadd.f32 %v2872, %v2875
        %vm2877 = vweird.f32 %v2872
        %v2878 = vsel %vm2877, %v2872, %v2876
        %v2879 = vmul.f32 %v2850, %v2878
        %v2880 = vmul.f32 %v2853, %v2878
        %v2881 = vmul.f32 %v2856, %v2878
        %v2882 = vmul.f32 %v2859, %v2878
        %v2883 = vmul.f32 %v2862, %v2878
        %v2884 = vmul.f32 %v2865, %v2878
        %v2885 = vmul.f32 %v2868, %v2878
        %v2886 = vmul.f32 %v2871, %v2878
        %v2887 = vadd.f32 %v2879, %v2880
        %v2888 = vrot.slane %v2887, 4
        %v2889 = vadd.f32 %v2887, %v2888
        %v2890 = vrot.slane %v2889, 2
        %v2891 = vadd.f32 %v2889, %v2890
        %v2892 = vrot.slane %v2891, 1
        %v2893 = vadd.f32 %v2891, %v2892
        %v2894 = vadd.f32 %v2881, %v2882
        %v2895 = vrot.slane %v2894, 4
        %v2896 = vadd.f32 %v2894, %v2895
        %v2897 = vrot.slane %v2896, 2
        %v2898 = vadd.f32 %v2896, %v2897
        %v2899 = vrot.slane %v2898, 1
        %v2900 = vadd.f32 %v2898, %v2899
        %v2901 = vadd.f32 %v2883, %v2884
        %v2902 = vrot.slane %v2901, 4
        %v2903 = vadd.f32 %v2901, %v2902
        %v2904 = vrot.slane %v2903, 2
        %v2905 = vadd.f32 %v2903, %v2904
        %v2906 = vrot.slane %v2905, 1
        %v2907 = vadd.f32 %v2905, %v2906
        %v2908 = vadd.f32 %v2885, %v2886
        %v2909 = vrot.slane %v2908, 4
        %v2910 = vadd.f32 %v2908, %v2909
        %v2911 = vrot.slane %v2910, 2
        %v2912 = vadd.f32 %v2910, %v2911
        %v2913 = vrot.slane %v2912, 1
        %v2914 = vadd.f32 %v2912, %v2913
        %v2915 = vmul.f32 %v2893, %v2878
        %v2916 = vmul.f32 %v2900, %v2878
        %v2917 = vmul.f32 %v2907, %v2878
        %v2918 = vmul.f32 %v2914, %v2878
        %v2919 = vsub.f32 %v2782, %v2915
        %v2920 = vsub.f32 %v2783, %v2915
        %v2921 = vsub.f32 %v2803, %v2916
        %v2922 = vsub.f32 %v2804, %v2916
        %v2923 = vsub.f32 %v2824, %v2917
        %v2924 = vsub.f32 %v2825, %v2917
        %v2925 = vsub.f32 %v2845, %v2918
        %v2926 = vsub.f32 %v2846, %v2918
        %v2927 = vmul.f32 %v2919, %v2919
        %v2928 = vmul.f32 %v2920, %v2920
        %v2929 = vmul.f32 %v2921, %v2921
        %v2930 = vmul.f32 %v2922, %v2922
        %v2931 = vmul.f32 %v2923, %v2923
        %v2932 = vmul.f32 %v2924, %v2924
        %v2933 = vmul.f32 %v2925, %v2925
        %v2934 = vmul.f32 %v2926, %v2926
        %v2935 = vsel %vm2847, %v2927, 0.0
        %2936 = vadd.xlane.f32.xlu0 %v2935
        %v2937 = vpop.xlane.xlu0 %2936
        %v2938 = vsel %vm2847, %v2928, 0.0
        %2939 = vadd.xlane.f32.xlu0 %v2938
        %v2940 = vpop.xlane.xlu0 %2939
        %v2941 = vsel %vm2847, %v2929, 0.0
        %2942 = vadd.xlane.f32.xlu0 %v2941
        %v2943 = vpop.xlane.xlu0 %2942
        %v2944 = vsel %vm2847, %v2930, 0.0
        %2945 = vadd.xlane.f32.xlu0 %v2944
        %v2946 = vpop.xlane.xlu0 %2945
        %v2947 = vsel %vm2847, %v2931, 0.0
        %2948 = vadd.xlane.f32.xlu0 %v2947
        %v2949 = vpop.xlane.xlu0 %2948
        %v2950 = vsel %vm2847, %v2932, 0.0
        %2951 = vadd.xlane.f32.xlu0 %v2950
        %v2952 = vpop.xlane.xlu0 %2951
        %v2953 = vsel %vm2847, %v2933, 0.0
        %2954 = vadd.xlane.f32.xlu0 %v2953
        %v2955 = vpop.xlane.xlu0 %2954
        %v2956 = vsel %vm2847, %v2934, 0.0
        %2957 = vadd.xlane.f32.xlu0 %v2956
        %v2958 = vpop.xlane.xlu0 %2957
        %v2959 = vmul.f32 %v2937, %v2878
        %v2960 = vmul.f32 %v2940, %v2878
        %v2961 = vmul.f32 %v2943, %v2878
        %v2962 = vmul.f32 %v2946, %v2878
        %v2963 = vmul.f32 %v2949, %v2878
        %v2964 = vmul.f32 %v2952, %v2878
        %v2965 = vmul.f32 %v2955, %v2878
        %v2966 = vmul.f32 %v2958, %v2878
        %v2967 = vadd.f32 %v2959, %v2960
        %v2968 = vrot.slane %v2967, 4
        %v2969 = vadd.f32 %v2967, %v2968
        %v2970 = vrot.slane %v2969, 2
        %v2971 = vadd.f32 %v2969, %v2970
        %v2972 = vrot.slane %v2971, 1
        %v2973 = vadd.f32 %v2971, %v2972
        %v2974 = vadd.f32 %v2961, %v2962
        %v2975 = vrot.slane %v2974, 4
        %v2976 = vadd.f32 %v2974, %v2975
        %v2977 = vrot.slane %v2976, 2
        %v2978 = vadd.f32 %v2976, %v2977
        %v2979 = vrot.slane %v2978, 1
        %v2980 = vadd.f32 %v2978, %v2979
        %v2981 = vadd.f32 %v2963, %v2964
        %v2982 = vrot.slane %v2981, 4
        %v2983 = vadd.f32 %v2981, %v2982
        %v2984 = vrot.slane %v2983, 2
        %v2985 = vadd.f32 %v2983, %v2984
        %v2986 = vrot.slane %v2985, 1
        %v2987 = vadd.f32 %v2985, %v2986
        %v2988 = vadd.f32 %v2965, %v2966
        %v2989 = vrot.slane %v2988, 4
        %v2990 = vadd.f32 %v2988, %v2989
        %v2991 = vrot.slane %v2990, 2
        %v2992 = vadd.f32 %v2990, %v2991
        %v2993 = vrot.slane %v2992, 1
        %v2994 = vadd.f32 %v2992, %v2993
        %v2995 = vmul.f32 %v2973, %v2878
        %v2996 = vmul.f32 %v2980, %v2878
        %v2997 = vmul.f32 %v2987, %v2878
        %v2998 = vmul.f32 %v2994, %v2878
        %v2999 = vadd.f32 %v2995, 1e-05
        %v3000 = vadd.f32 %v2996, 1e-05
        %v3001 = vadd.f32 %v2997, 1e-05
        %v3002 = vadd.f32 %v2998, 1e-05
        %v3003 = vrsqrt.pop %v2999
        %v3004 = vmul.f32 %v3003, %v2999
        %v3005 = vmul.f32 %v3004, %v3003
        %v3006 = vmul.f32 0.5, %v3005
        %v3007 = vsub.f32 1.5, %v3006
        %v3008 = vmul.f32 %v3003, %v3007
        %vm3009 = vweird.f32 %v2999
        %vm3010 = vweird.f32 %v3003
        %vm3011 = vmor %vm3009, %vm3010
        %v3012 = vsel %vm3011, %v3003, %v3008
        %v3013 = vrsqrt.pop %v3000
        %v3014 = vmul.f32 %v3013, %v3000
        %v3015 = vmul.f32 %v3014, %v3013
        %v3016 = vmul.f32 0.5, %v3015
        %v3017 = vsub.f32 1.5, %v3016
        %v3018 = vmul.f32 %v3013, %v3017
        %vm3019 = vweird.f32 %v3000
        %vm3020 = vweird.f32 %v3013
        %vm3021 = vmor %vm3019, %vm3020
        %v3022 = vsel %vm3021, %v3013, %v3018
        %v3023 = vrsqrt.pop %v3001
        %v3024 = vmul.f32 %v3023, %v3001
        %v3025 = vmul.f32 %v3024, %v3023
        %v3026 = vmul.f32 0.5, %v3025
        %v3027 = vsub.f32 1.5, %v3026
        %v3028 = vmul.f32 %v3023, %v3027
        %vm3029 = vweird.f32 %v3001
        %vm3030 = vweird.f32 %v3023
        %vm3031 = vmor %vm3029, %vm3030
        %v3032 = vsel %vm3031, %v3023, %v3028
        %v3033 = vrsqrt.pop %v3002
        %v3034 = vmul.f32 %v3033, %v3002
        %v3035 = vmul.f32 %v3034, %v3033
        %v3036 = vmul.f32 0.5, %v3035
        %v3037 = vsub.f32 1.5, %v3036
        %v3038 = vmul.f32 %v3033, %v3037
        %vm3039 = vweird.f32 %v3002
        %vm3040 = vweird.f32 %v3033
        %vm3041 = vmor %vm3039, %vm3040
        %v3042 = vsel %vm3041, %v3033, %v3038
        %v3043 = vmul.f32 %v2919, %v3012
        %v3044 = vmul.f32 %v2920, %v3012
        %v3045 = vmul.f32 %v2921, %v3022
        %v3046 = vmul.f32 %v2922, %v3022
        %v3047 = vmul.f32 %v2923, %v3032
        %v3048 = vmul.f32 %v2924, %v3032
        %v3049 = vmul.f32 %v2925, %v3042
        %v3050 = vmul.f32 %v2926, %v3042
        %v3051 = vmax.f32 %v3043, 0.0
        %v3052 = vmax.f32 %v3044, 0.0
        %v3053 = vmax.f32 %v3045, 0.0
        %v3054 = vmax.f32 %v3046, 0.0
        %v3055 = vmax.f32 %v3047, 0.0
        %v3056 = vmax.f32 %v3048, 0.0
        %v3057 = vmax.f32 %v3049, 0.0
        %v3058 = vmax.f32 %v3050, 0.0
        %v3063 = vrot.slane %v3051, 1
        %v3064 = vrot.slane %v3053, 1
        %v3065 = vrot.slane %v3055, 1
        %v3066 = vrot.slane %v3057, 1
        %v3075 = vrot.slane %v3051, 7
        %v3076 = vrot.slane %v3052, 7
        %v3077 = vsel %vm242, %v3075, %v3076
        %v3078 = vrot.slane %v3053, 7
        %v3079 = vrot.slane %v3054, 7
        %v3080 = vsel %vm242, %v3078, %v3079
        %v3081 = vrot.slane %v3055, 7
        %v3082 = vrot.slane %v3056, 7
        %v3083 = vsel %vm242, %v3081, %v3082
        %v3084 = vrot.slane %v3057, 7
        %v3085 = vrot.slane %v3058, 7
        %v3086 = vsel %vm242, %v3084, %v3085
        %v3095 = vrot.slane %v3052, 5
        %v3096 = vrot.slane %v3054, 5
        %v3097 = vrot.slane %v3056, 5
        %v3098 = vrot.slane %v3058, 5
        %v3103 = vsel %vm242, %v3063, %v3075
        %v3104 = vsel %vm242, %v3064, %v3078
        %v3105 = vsel %vm242, %v3065, %v3081
        %v3106 = vsel %vm242, %v3066, %v3084
        %v3107 = vsel %vm242, %v3076, %v3095
        %v3108 = vsel %vm242, %v3079, %v3096
        %v3109 = vsel %vm242, %v3082, %v3097
        %v3110 = vsel %vm242, %v3085, %v3098
        %3119 = vrot.lane.b32.xlu0 %v3103, 127
        %v3120 = vpop.permute.xlu0 %3119
        %3121 = vrot.lane.b32.xlu0 %v3077, 127
        %v3122 = vpop.permute.xlu0 %3121
        %3123 = vrot.lane.b32.xlu0 %v3107, 127
        %v3124 = vpop.permute.xlu0 %3123
        %3125 = vrot.lane.b32.xlu0 %v3104, 127
        %v3126 = vpop.permute.xlu0 %3125
        %3127 = vrot.lane.b32.xlu0 %v3080, 127
        %v3128 = vpop.permute.xlu0 %3127
        %3129 = vrot.lane.b32.xlu0 %v3108, 127
        %v3130 = vpop.permute.xlu0 %3129
        %3131 = vrot.lane.b32.xlu0 %v3105, 127
        %v3132 = vpop.permute.xlu0 %3131
        %3133 = vrot.lane.b32.xlu0 %v3083, 127
        %v3134 = vpop.permute.xlu0 %3133
        %3135 = vrot.lane.b32.xlu0 %v3109, 127
        %v3136 = vpop.permute.xlu0 %3135
        %3137 = vrot.lane.b32.xlu0 %v3106, 127
        %v3138 = vpop.permute.xlu0 %3137
        %3139 = vrot.lane.b32.xlu0 %v3086, 127
        %v3140 = vpop.permute.xlu0 %3139
        %3141 = vrot.lane.b32.xlu0 %v3110, 127
        %v3142 = vpop.permute.xlu0 %3141
        %3155 = vrot.lane.b32.xlu0 %v3103, 1
        %v3156 = vpop.permute.xlu0 %3155
        %3157 = vrot.lane.b32.xlu0 %v3077, 1
        %v3158 = vpop.permute.xlu0 %3157
        %3159 = vrot.lane.b32.xlu0 %v3107, 1
        %v3160 = vpop.permute.xlu0 %3159
        %3161 = vrot.lane.b32.xlu0 %v3104, 1
        %v3162 = vpop.permute.xlu0 %3161
        %3163 = vrot.lane.b32.xlu0 %v3080, 1
        %v3164 = vpop.permute.xlu0 %3163
        %3165 = vrot.lane.b32.xlu0 %v3108, 1
        %v3166 = vpop.permute.xlu0 %3165
        %3167 = vrot.lane.b32.xlu0 %v3105, 1
        %v3168 = vpop.permute.xlu0 %3167
        %3169 = vrot.lane.b32.xlu0 %v3083, 1
        %v3170 = vpop.permute.xlu0 %3169
        %3171 = vrot.lane.b32.xlu0 %v3109, 1
        %v3172 = vpop.permute.xlu0 %3171
        %3173 = vrot.lane.b32.xlu0 %v3106, 1
        %v3174 = vpop.permute.xlu0 %3173
        %3175 = vrot.lane.b32.xlu0 %v3086, 1
        %v3176 = vpop.permute.xlu0 %3175
        %3177 = vrot.lane.b32.xlu0 %v3110, 1
        %v3178 = vpop.permute.xlu0 %3177
        %3191 = vrot.lane.b32.xlu0 %v3103, 3
        %v3192 = vpop.permute.xlu0 %3191
        %3193 = vrot.lane.b32.xlu0 %v3077, 3
        %v3194 = vpop.permute.xlu0 %3193
        %3195 = vrot.lane.b32.xlu0 %v3107, 3
        %v3196 = vpop.permute.xlu0 %3195
        %3197 = vrot.lane.b32.xlu0 %v3104, 3
        %v3198 = vpop.permute.xlu0 %3197
        %3199 = vrot.lane.b32.xlu0 %v3080, 3
        %v3200 = vpop.permute.xlu0 %3199
        %3201 = vrot.lane.b32.xlu0 %v3108, 3
        %v3202 = vpop.permute.xlu0 %3201
        %3203 = vrot.lane.b32.xlu0 %v3105, 3
        %v3204 = vpop.permute.xlu0 %3203
        %3205 = vrot.lane.b32.xlu0 %v3083, 3
        %v3206 = vpop.permute.xlu0 %3205
        %3207 = vrot.lane.b32.xlu0 %v3109, 3
        %v3208 = vpop.permute.xlu0 %3207
        %3209 = vrot.lane.b32.xlu0 %v3106, 3
        %v3210 = vpop.permute.xlu0 %3209
        %3211 = vrot.lane.b32.xlu0 %v3086, 3
        %v3212 = vpop.permute.xlu0 %3211
        %3213 = vrot.lane.b32.xlu0 %v3110, 3
        %v3214 = vpop.permute.xlu0 %3213
        %v3227 = vsel %vm395, %v3120, %v3156
        %v3228 = vsel %vm395, %v3122, %v3158
        %v3229 = vsel %vm395, %v3124, %v3160
        %v3230 = vsel %vm395, %v3126, %v3162
        %v3231 = vsel %vm395, %v3128, %v3164
        %v3232 = vsel %vm395, %v3130, %v3166
        %v3233 = vsel %vm395, %v3132, %v3168
        %v3234 = vsel %vm395, %v3134, %v3170
        %v3235 = vsel %vm395, %v3136, %v3172
        %v3236 = vsel %vm395, %v3138, %v3174
        %v3237 = vsel %vm395, %v3140, %v3176
        %v3238 = vsel %vm395, %v3142, %v3178
        %v3239 = vsel %vm408, %v3227, %v3192
        %v3240 = vsel %vm408, %v3228, %v3194
        %v3241 = vsel %vm408, %v3229, %v3196
        %v3242 = vsel %vm408, %v3230, %v3198
        %v3243 = vsel %vm408, %v3231, %v3200
        %v3244 = vsel %vm408, %v3232, %v3202
        %v3245 = vsel %vm408, %v3233, %v3204
        %v3246 = vsel %vm408, %v3234, %v3206
        %v3247 = vsel %vm408, %v3235, %v3208
        %v3248 = vsel %vm408, %v3236, %v3210
        %v3249 = vsel %vm408, %v3237, %v3212
        %v3250 = vsel %vm408, %v3238, %v3214
        %s3251 = sld [smem:[#allocation7]]
        %v3252 = vstv %s3251
        %v3253 = vmul.f32 %v3252, %v3239
        %v3254 = vmul.f32 %v3252, %v3240
        %s3255 = sld [smem:[#allocation7 + $0x24]]
        %v3256 = vstv %s3255
        %v3257 = vmul.f32 %v3256, %v3239
        %v3258 = vmul.f32 %v3256, %v3240
        %s3259 = sld [smem:[#allocation7 + $0x48]]
        %v3260 = vstv %s3259
        %v3261 = vmul.f32 %v3260, %v3239
        %v3262 = vmul.f32 %v3260, %v3240
        %s3263 = sld [smem:[#allocation7 + $0x6c]]
        %v3264 = vstv %s3263
        %v3265 = vmul.f32 %v3264, %v3239
        %v3266 = vmul.f32 %v3264, %v3240
        %s3267 = sld [smem:[#allocation7 + $0x1]]
        %v3268 = vstv %s3267
        %v3269 = vmul.f32 %v3268, %v3239
        %v3270 = vmul.f32 %v3268, %v3240
        %3273 = vrot.lane.b32.xlu0 %v3269, 127
        %v3274 = vpop.permute.xlu0 %3273
        %3275 = vrot.lane.b32.xlu0 %v3270, 127
        %v3276 = vpop.permute.xlu0 %3275
        %v3279 = vadd.f32 %v3253, %v3274
        %v3280 = vadd.f32 %v3254, %v3276
        %s3281 = sld [smem:[#allocation7 + $0x25]]
        %v3282 = vstv %s3281
        %v3283 = vmul.f32 %v3282, %v3239
        %v3284 = vmul.f32 %v3282, %v3240
        %3287 = vrot.lane.b32.xlu0 %v3283, 127
        %v3288 = vpop.permute.xlu0 %3287
        %3289 = vrot.lane.b32.xlu0 %v3284, 127
        %v3290 = vpop.permute.xlu0 %3289
        %v3293 = vadd.f32 %v3257, %v3288
        %v3294 = vadd.f32 %v3258, %v3290
        %s3295 = sld [smem:[#allocation7 + $0x49]]
        %v3296 = vstv %s3295
        %v3297 = vmul.f32 %v3296, %v3239
        %v3298 = vmul.f32 %v3296, %v3240
        %3301 = vrot.lane.b32.xlu0 %v3297, 127
        %v3302 = vpop.permute.xlu0 %3301
        %3303 = vrot.lane.b32.xlu0 %v3298, 127
        %v3304 = vpop.permute.xlu0 %3303
        %v3307 = vadd.f32 %v3261, %v3302
        %v3308 = vadd.f32 %v3262, %v3304
        %s3309 = sld [smem:[#allocation7 + $0x6d]]
        %v3310 = vstv %s3309
        %v3311 = vmul.f32 %v3310, %v3239
        %v3312 = vmul.f32 %v3310, %v3240
        %3315 = vrot.lane.b32.xlu0 %v3311, 127
        %v3316 = vpop.permute.xlu0 %3315
        %3317 = vrot.lane.b32.xlu0 %v3312, 127
        %v3318 = vpop.permute.xlu0 %3317
        %v3321 = vadd.f32 %v3265, %v3316
        %v3322 = vadd.f32 %v3266, %v3318
        %s3323 = sld [smem:[#allocation7 + $0x2]]
        %v3324 = vstv %s3323
        %v3325 = vmul.f32 %v3324, %v3239
        %v3326 = vmul.f32 %v3324, %v3240
        %3329 = vrot.lane.b32.xlu0 %v3325, 126
        %v3330 = vpop.permute.xlu0 %3329
        %3331 = vrot.lane.b32.xlu0 %v3326, 126
        %v3332 = vpop.permute.xlu0 %3331
        %v3335 = vadd.f32 %v3279, %v3330
        %v3336 = vadd.f32 %v3280, %v3332
        %s3337 = sld [smem:[#allocation7 + $0x26]]
        %v3338 = vstv %s3337
        %v3339 = vmul.f32 %v3338, %v3239
        %v3340 = vmul.f32 %v3338, %v3240
        %3343 = vrot.lane.b32.xlu0 %v3339, 126
        %v3344 = vpop.permute.xlu0 %3343
        %3345 = vrot.lane.b32.xlu0 %v3340, 126
        %v3346 = vpop.permute.xlu0 %3345
        %v3349 = vadd.f32 %v3293, %v3344
        %v3350 = vadd.f32 %v3294, %v3346
        %s3351 = sld [smem:[#allocation7 + $0x4a]]
        %v3352 = vstv %s3351
        %v3353 = vmul.f32 %v3352, %v3239
        %v3354 = vmul.f32 %v3352, %v3240
        %3357 = vrot.lane.b32.xlu0 %v3353, 126
        %v3358 = vpop.permute.xlu0 %3357
        %3359 = vrot.lane.b32.xlu0 %v3354, 126
        %v3360 = vpop.permute.xlu0 %3359
        %v3363 = vadd.f32 %v3307, %v3358
        %v3364 = vadd.f32 %v3308, %v3360
        %s3365 = sld [smem:[#allocation7 + $0x6e]]
        %v3366 = vstv %s3365
        %v3367 = vmul.f32 %v3366, %v3239
        %v3368 = vmul.f32 %v3366, %v3240
        %3371 = vrot.lane.b32.xlu0 %v3367, 126
        %v3372 = vpop.permute.xlu0 %3371
        %3373 = vrot.lane.b32.xlu0 %v3368, 126
        %v3374 = vpop.permute.xlu0 %3373
        %v3377 = vadd.f32 %v3321, %v3372
        %v3378 = vadd.f32 %v3322, %v3374
        %s3379 = sld [smem:[#allocation7 + $0x3]]
        %v3380 = vstv %s3379
        %v3381 = vmul.f32 %v3380, %v3239
        %v3382 = vmul.f32 %v3380, %v3240
        %v3383 = vmul.f32 %v3380, %v3241
        %v3387 = vrot.slane %v3381, 1
        %v3388 = vrot.slane %v3382, 1
        %v3389 = vsel %vm557, %v3387, %v3388
        %v3390 = vrot.slane %v3383, 1
        %v3391 = vsel %vm557, %v3388, %v3390
        %v3394 = vadd.f32 %v3335, %v3389
        %v3395 = vadd.f32 %v3336, %v3391
        %s3396 = sld [smem:[#allocation7 + $0x27]]
        %v3397 = vstv %s3396
        %v3398 = vmul.f32 %v3397, %v3239
        %v3399 = vmul.f32 %v3397, %v3240
        %v3400 = vmul.f32 %v3397, %v3241
        %v3404 = vrot.slane %v3398, 1
        %v3405 = vrot.slane %v3399, 1
        %v3406 = vsel %vm557, %v3404, %v3405
        %v3407 = vrot.slane %v3400, 1
        %v3408 = vsel %vm557, %v3405, %v3407
        %v3411 = vadd.f32 %v3349, %v3406
        %v3412 = vadd.f32 %v3350, %v3408
        %s3413 = sld [smem:[#allocation7 + $0x4b]]
        %v3414 = vstv %s3413
        %v3415 = vmul.f32 %v3414, %v3239
        %v3416 = vmul.f32 %v3414, %v3240
        %v3417 = vmul.f32 %v3414, %v3241
        %v3421 = vrot.slane %v3415, 1
        %v3422 = vrot.slane %v3416, 1
        %v3423 = vsel %vm557, %v3421, %v3422
        %v3424 = vrot.slane %v3417, 1
        %v3425 = vsel %vm557, %v3422, %v3424
        %v3428 = vadd.f32 %v3363, %v3423
        %v3429 = vadd.f32 %v3364, %v3425
        %s3430 = sld [smem:[#allocation7 + $0x6f]]
        %v3431 = vstv %s3430
        %v3432 = vmul.f32 %v3431, %v3239
        %v3433 = vmul.f32 %v3431, %v3240
        %v3434 = vmul.f32 %v3431, %v3241
        %v3438 = vrot.slane %v3432, 1
        %v3439 = vrot.slane %v3433, 1
        %v3440 = vsel %vm557, %v3438, %v3439
        %v3441 = vrot.slane %v3434, 1
        %v3442 = vsel %vm557, %v3439, %v3441
        %v3445 = vadd.f32 %v3377, %v3440
        %v3446 = vadd.f32 %v3378, %v3442
        %s3447 = sld [smem:[#allocation7 + $0x4]]
        %v3448 = vstv %s3447
        %v3449 = vmul.f32 %v3448, %v3239
        %v3450 = vmul.f32 %v3448, %v3240
        %v3451 = vmul.f32 %v3448, %v3241
        %v3455 = vrot.slane %v3449, 1
        %v3456 = vrot.slane %v3450, 1
        %v3457 = vsel %vm557, %v3455, %v3456
        %v3458 = vrot.slane %v3451, 1
        %v3459 = vsel %vm557, %v3456, %v3458
        %3460 = vrot.lane.b32.xlu0 %v3457, 127
        %v3461 = vpop.permute.xlu0 %3460
        %3462 = vrot.lane.b32.xlu0 %v3459, 127
        %v3463 = vpop.permute.xlu0 %3462
        %v3466 = vadd.f32 %v3394, %v3461
        %v3467 = vadd.f32 %v3395, %v3463
        %s3468 = sld [smem:[#allocation7 + $0x28]]
        %v3469 = vstv %s3468
        %v3470 = vmul.f32 %v3469, %v3239
        %v3471 = vmul.f32 %v3469, %v3240
        %v3472 = vmul.f32 %v3469, %v3241
        %v3476 = vrot.slane %v3470, 1
        %v3477 = vrot.slane %v3471, 1
        %v3478 = vsel %vm557, %v3476, %v3477
        %v3479 = vrot.slane %v3472, 1
        %v3480 = vsel %vm557, %v3477, %v3479
        %3481 = vrot.lane.b32.xlu0 %v3478, 127
        %v3482 = vpop.permute.xlu0 %3481
        %3483 = vrot.lane.b32.xlu0 %v3480, 127
        %v3484 = vpop.permute.xlu0 %3483
        %v3487 = vadd.f32 %v3411, %v3482
        %v3488 = vadd.f32 %v3412, %v3484
        %s3489 = sld [smem:[#allocation7 + $0x4c]]
        %v3490 = vstv %s3489
        %v3491 = vmul.f32 %v3490, %v3239
        %v3492 = vmul.f32 %v3490, %v3240
        %v3493 = vmul.f32 %v3490, %v3241
        %v3497 = vrot.slane %v3491, 1
        %v3498 = vrot.slane %v3492, 1
        %v3499 = vsel %vm557, %v3497, %v3498
        %v3500 = vrot.slane %v3493, 1
        %v3501 = vsel %vm557, %v3498, %v3500
        %3502 = vrot.lane.b32.xlu0 %v3499, 127
        %v3503 = vpop.permute.xlu0 %3502
        %3504 = vrot.lane.b32.xlu0 %v3501, 127
        %v3505 = vpop.permute.xlu0 %3504
        %v3508 = vadd.f32 %v3428, %v3503
        %v3509 = vadd.f32 %v3429, %v3505
        %s3510 = sld [smem:[#allocation7 + $0x70]]
        %v3511 = vstv %s3510
        %v3512 = vmul.f32 %v3511, %v3239
        %v3513 = vmul.f32 %v3511, %v3240
        %v3514 = vmul.f32 %v3511, %v3241
        %v3518 = vrot.slane %v3512, 1
        %v3519 = vrot.slane %v3513, 1
        %v3520 = vsel %vm557, %v3518, %v3519
        %v3521 = vrot.slane %v3514, 1
        %v3522 = vsel %vm557, %v3519, %v3521
        %3523 = vrot.lane.b32.xlu0 %v3520, 127
        %v3524 = vpop.permute.xlu0 %3523
        %3525 = vrot.lane.b32.xlu0 %v3522, 127
        %v3526 = vpop.permute.xlu0 %3525
        %v3529 = vadd.f32 %v3445, %v3524
        %v3530 = vadd.f32 %v3446, %v3526
        %s3531 = sld [smem:[#allocation7 + $0x5]]
        %v3532 = vstv %s3531
        %v3533 = vmul.f32 %v3532, %v3239
        %v3534 = vmul.f32 %v3532, %v3240
        %v3535 = vmul.f32 %v3532, %v3241
        %v3539 = vrot.slane %v3533, 1
        %v3540 = vrot.slane %v3534, 1
        %v3541 = vsel %vm557, %v3539, %v3540
        %v3542 = vrot.slane %v3535, 1
        %v3543 = vsel %vm557, %v3540, %v3542
        %3544 = vrot.lane.b32.xlu0 %v3541, 126
        %v3545 = vpop.permute.xlu0 %3544
        %3546 = vrot.lane.b32.xlu0 %v3543, 126
        %v3547 = vpop.permute.xlu0 %3546
        %v3550 = vadd.f32 %v3466, %v3545
        %v3551 = vadd.f32 %v3467, %v3547
        %s3552 = sld [smem:[#allocation7 + $0x29]]
        %v3553 = vstv %s3552
        %v3554 = vmul.f32 %v3553, %v3239
        %v3555 = vmul.f32 %v3553, %v3240
        %v3556 = vmul.f32 %v3553, %v3241
        %v3560 = vrot.slane %v3554, 1
        %v3561 = vrot.slane %v3555, 1
        %v3562 = vsel %vm557, %v3560, %v3561
        %v3563 = vrot.slane %v3556, 1
        %v3564 = vsel %vm557, %v3561, %v3563
        %3565 = vrot.lane.b32.xlu0 %v3562, 126
        %v3566 = vpop.permute.xlu0 %3565
        %3567 = vrot.lane.b32.xlu0 %v3564, 126
        %v3568 = vpop.permute.xlu0 %3567
        %v3571 = vadd.f32 %v3487, %v3566
        %v3572 = vadd.f32 %v3488, %v3568
        %s3573 = sld [smem:[#allocation7 + $0x4d]]
        %v3574 = vstv %s3573
        %v3575 = vmul.f32 %v3574, %v3239
        %v3576 = vmul.f32 %v3574, %v3240
        %v3577 = vmul.f32 %v3574, %v3241
        %v3581 = vrot.slane %v3575, 1
        %v3582 = vrot.slane %v3576, 1
        %v3583 = vsel %vm557, %v3581, %v3582
        %v3584 = vrot.slane %v3577, 1
        %v3585 = vsel %vm557, %v3582, %v3584
        %3586 = vrot.lane.b32.xlu0 %v3583, 126
        %v3587 = vpop.permute.xlu0 %3586
        %3588 = vrot.lane.b32.xlu0 %v3585, 126
        %v3589 = vpop.permute.xlu0 %3588
        %v3592 = vadd.f32 %v3508, %v3587
        %v3593 = vadd.f32 %v3509, %v3589
        %s3594 = sld [smem:[#allocation7 + $0x71]]
        %v3595 = vstv %s3594
        %v3596 = vmul.f32 %v3595, %v3239
        %v3597 = vmul.f32 %v3595, %v3240
        %v3598 = vmul.f32 %v3595, %v3241
        %v3602 = vrot.slane %v3596, 1
        %v3603 = vrot.slane %v3597, 1
        %v3604 = vsel %vm557, %v3602, %v3603
        %v3605 = vrot.slane %v3598, 1
        %v3606 = vsel %vm557, %v3603, %v3605
        %3607 = vrot.lane.b32.xlu0 %v3604, 126
        %v3608 = vpop.permute.xlu0 %3607
        %3609 = vrot.lane.b32.xlu0 %v3606, 126
        %v3610 = vpop.permute.xlu0 %3609
        %v3613 = vadd.f32 %v3529, %v3608
        %v3614 = vadd.f32 %v3530, %v3610
        %s3615 = sld [smem:[#allocation7 + $0x6]]
        %v3616 = vstv %s3615
        %v3617 = vmul.f32 %v3616, %v3239
        %v3618 = vmul.f32 %v3616, %v3240
        %v3619 = vmul.f32 %v3616, %v3241
        %v3623 = vrot.slane %v3617, 2
        %v3624 = vrot.slane %v3618, 2
        %v3625 = vsel %vm794, %v3623, %v3624
        %v3626 = vrot.slane %v3619, 2
        %v3627 = vsel %vm794, %v3624, %v3626
        %v3630 = vadd.f32 %v3550, %v3625
        %v3631 = vadd.f32 %v3551, %v3627
        %s3632 = sld [smem:[#allocation7 + $0x2a]]
        %v3633 = vstv %s3632
        %v3634 = vmul.f32 %v3633, %v3239
        %v3635 = vmul.f32 %v3633, %v3240
        %v3636 = vmul.f32 %v3633, %v3241
        %v3640 = vrot.slane %v3634, 2
        %v3641 = vrot.slane %v3635, 2
        %v3642 = vsel %vm794, %v3640, %v3641
        %v3643 = vrot.slane %v3636, 2
        %v3644 = vsel %vm794, %v3641, %v3643
        %v3647 = vadd.f32 %v3571, %v3642
        %v3648 = vadd.f32 %v3572, %v3644
        %s3649 = sld [smem:[#allocation7 + $0x4e]]
        %v3650 = vstv %s3649
        %v3651 = vmul.f32 %v3650, %v3239
        %v3652 = vmul.f32 %v3650, %v3240
        %v3653 = vmul.f32 %v3650, %v3241
        %v3657 = vrot.slane %v3651, 2
        %v3658 = vrot.slane %v3652, 2
        %v3659 = vsel %vm794, %v3657, %v3658
        %v3660 = vrot.slane %v3653, 2
        %v3661 = vsel %vm794, %v3658, %v3660
        %v3664 = vadd.f32 %v3592, %v3659
        %v3665 = vadd.f32 %v3593, %v3661
        %s3666 = sld [smem:[#allocation7 + $0x72]]
        %v3667 = vstv %s3666
        %v3668 = vmul.f32 %v3667, %v3239
        %v3669 = vmul.f32 %v3667, %v3240
        %v3670 = vmul.f32 %v3667, %v3241
        %v3674 = vrot.slane %v3668, 2
        %v3675 = vrot.slane %v3669, 2
        %v3676 = vsel %vm794, %v3674, %v3675
        %v3677 = vrot.slane %v3670, 2
        %v3678 = vsel %vm794, %v3675, %v3677
        %v3681 = vadd.f32 %v3613, %v3676
        %v3682 = vadd.f32 %v3614, %v3678
        %s3683 = sld [smem:[#allocation7 + $0x7]]
        %v3684 = vstv %s3683
        %v3685 = vmul.f32 %v3684, %v3239
        %v3686 = vmul.f32 %v3684, %v3240
        %v3687 = vmul.f32 %v3684, %v3241
        %v3691 = vrot.slane %v3685, 2
        %v3692 = vrot.slane %v3686, 2
        %v3693 = vsel %vm794, %v3691, %v3692
        %v3694 = vrot.slane %v3687, 2
        %v3695 = vsel %vm794, %v3692, %v3694
        %3696 = vrot.lane.b32.xlu0 %v3693, 127
        %v3697 = vpop.permute.xlu0 %3696
        %3698 = vrot.lane.b32.xlu0 %v3695, 127
        %v3699 = vpop.permute.xlu0 %3698
        %v3702 = vadd.f32 %v3630, %v3697
        %v3703 = vadd.f32 %v3631, %v3699
        %s3704 = sld [smem:[#allocation7 + $0x2b]]
        %v3705 = vstv %s3704
        %v3706 = vmul.f32 %v3705, %v3239
        %v3707 = vmul.f32 %v3705, %v3240
        %v3708 = vmul.f32 %v3705, %v3241
        %v3712 = vrot.slane %v3706, 2
        %v3713 = vrot.slane %v3707, 2
        %v3714 = vsel %vm794, %v3712, %v3713
        %v3715 = vrot.slane %v3708, 2
        %v3716 = vsel %vm794, %v3713, %v3715
        %3717 = vrot.lane.b32.xlu0 %v3714, 127
        %v3718 = vpop.permute.xlu0 %3717
        %3719 = vrot.lane.b32.xlu0 %v3716, 127
        %v3720 = vpop.permute.xlu0 %3719
        %v3723 = vadd.f32 %v3647, %v3718
        %v3724 = vadd.f32 %v3648, %v3720
        %s3725 = sld [smem:[#allocation7 + $0x4f]]
        %v3726 = vstv %s3725
        %v3727 = vmul.f32 %v3726, %v3239
        %v3728 = vmul.f32 %v3726, %v3240
        %v3729 = vmul.f32 %v3726, %v3241
        %v3733 = vrot.slane %v3727, 2
        %v3734 = vrot.slane %v3728, 2
        %v3735 = vsel %vm794, %v3733, %v3734
        %v3736 = vrot.slane %v3729, 2
        %v3737 = vsel %vm794, %v3734, %v3736
        %3738 = vrot.lane.b32.xlu0 %v3735, 127
        %v3739 = vpop.permute.xlu0 %3738
        %3740 = vrot.lane.b32.xlu0 %v3737, 127
        %v3741 = vpop.permute.xlu0 %3740
        %v3744 = vadd.f32 %v3664, %v3739
        %v3745 = vadd.f32 %v3665, %v3741
        %s3746 = sld [smem:[#allocation7 + $0x73]]
        %v3747 = vstv %s3746
        %v3748 = vmul.f32 %v3747, %v3239
        %v3749 = vmul.f32 %v3747, %v3240
        %v3750 = vmul.f32 %v3747, %v3241
        %v3754 = vrot.slane %v3748, 2
        %v3755 = vrot.slane %v3749, 2
        %v3756 = vsel %vm794, %v3754, %v3755
        %v3757 = vrot.slane %v3750, 2
        %v3758 = vsel %vm794, %v3755, %v3757
        %3759 = vrot.lane.b32.xlu0 %v3756, 127
        %v3760 = vpop.permute.xlu0 %3759
        %3761 = vrot.lane.b32.xlu0 %v3758, 127
        %v3762 = vpop.permute.xlu0 %3761
        %v3765 = vadd.f32 %v3681, %v3760
        %v3766 = vadd.f32 %v3682, %v3762
        %s3767 = sld [smem:[#allocation7 + $0x8]]
        %v3768 = vstv %s3767
        %v3769 = vmul.f32 %v3768, %v3239
        %v3770 = vmul.f32 %v3768, %v3240
        %v3771 = vmul.f32 %v3768, %v3241
        %v3775 = vrot.slane %v3769, 2
        %v3776 = vrot.slane %v3770, 2
        %v3777 = vsel %vm794, %v3775, %v3776
        %v3778 = vrot.slane %v3771, 2
        %v3779 = vsel %vm794, %v3776, %v3778
        %3780 = vrot.lane.b32.xlu0 %v3777, 126
        %v3781 = vpop.permute.xlu0 %3780
        %3782 = vrot.lane.b32.xlu0 %v3779, 126
        %v3783 = vpop.permute.xlu0 %3782
        %v3786 = vadd.f32 %v3702, %v3781
        %v3787 = vadd.f32 %v3703, %v3783
        %s3788 = sld [smem:[#allocation7 + $0x2c]]
        %v3789 = vstv %s3788
        %v3790 = vmul.f32 %v3789, %v3239
        %v3791 = vmul.f32 %v3789, %v3240
        %v3792 = vmul.f32 %v3789, %v3241
        %v3796 = vrot.slane %v3790, 2
        %v3797 = vrot.slane %v3791, 2
        %v3798 = vsel %vm794, %v3796, %v3797
        %v3799 = vrot.slane %v3792, 2
        %v3800 = vsel %vm794, %v3797, %v3799
        %3801 = vrot.lane.b32.xlu0 %v3798, 126
        %v3802 = vpop.permute.xlu0 %3801
        %3803 = vrot.lane.b32.xlu0 %v3800, 126
        %v3804 = vpop.permute.xlu0 %3803
        %v3807 = vadd.f32 %v3723, %v3802
        %v3808 = vadd.f32 %v3724, %v3804
        %s3809 = sld [smem:[#allocation7 + $0x50]]
        %v3810 = vstv %s3809
        %v3811 = vmul.f32 %v3810, %v3239
        %v3812 = vmul.f32 %v3810, %v3240
        %v3813 = vmul.f32 %v3810, %v3241
        %v3817 = vrot.slane %v3811, 2
        %v3818 = vrot.slane %v3812, 2
        %v3819 = vsel %vm794, %v3817, %v3818
        %v3820 = vrot.slane %v3813, 2
        %v3821 = vsel %vm794, %v3818, %v3820
        %3822 = vrot.lane.b32.xlu0 %v3819, 126
        %v3823 = vpop.permute.xlu0 %3822
        %3824 = vrot.lane.b32.xlu0 %v3821, 126
        %v3825 = vpop.permute.xlu0 %3824
        %v3828 = vadd.f32 %v3744, %v3823
        %v3829 = vadd.f32 %v3745, %v3825
        %s3830 = sld [smem:[#allocation7 + $0x74]]
        %v3831 = vstv %s3830
        %v3832 = vmul.f32 %v3831, %v3239
        %v3833 = vmul.f32 %v3831, %v3240
        %v3834 = vmul.f32 %v3831, %v3241
        %v3838 = vrot.slane %v3832, 2
        %v3839 = vrot.slane %v3833, 2
        %v3840 = vsel %vm794, %v3838, %v3839
        %v3841 = vrot.slane %v3834, 2
        %v3842 = vsel %vm794, %v3839, %v3841
        %3843 = vrot.lane.b32.xlu0 %v3840, 126
        %v3844 = vpop.permute.xlu0 %3843
        %3845 = vrot.lane.b32.xlu0 %v3842, 126
        %v3846 = vpop.permute.xlu0 %3845
        %v3849 = vadd.f32 %v3765, %v3844
        %v3850 = vadd.f32 %v3766, %v3846
        %s3851 = sld [smem:[#allocation7 + $0x9]]
        %v3852 = vstv %s3851
        %v3853 = vmul.f32 %v3852, %v3242
        %v3854 = vmul.f32 %v3852, %v3243
        %v3855 = vadd.f32 %v3786, %v3853
        %v3856 = vadd.f32 %v3787, %v3854
        %s3857 = sld [smem:[#allocation7 + $0x2d]]
        %v3858 = vstv %s3857
        %v3859 = vmul.f32 %v3858, %v3242
        %v3860 = vmul.f32 %v3858, %v3243
        %v3861 = vadd.f32 %v3807, %v3859
        %v3862 = vadd.f32 %v3808, %v3860
        %s3863 = sld [smem:[#allocation7 + $0x51]]
        %v3864 = vstv %s3863
        %v3865 = vmul.f32 %v3864, %v3242
        %v3866 = vmul.f32 %v3864, %v3243
        %v3867 = vadd.f32 %v3828, %v3865
        %v3868 = vadd.f32 %v3829, %v3866
        %s3869 = sld [smem:[#allocation7 + $0x75]]
        %v3870 = vstv %s3869
        %v3871 = vmul.f32 %v3870, %v3242
        %v3872 = vmul.f32 %v3870, %v3243
        %v3873 = vadd.f32 %v3849, %v3871
        %v3874 = vadd.f32 %v3850, %v3872
        %s3875 = sld [smem:[#allocation7 + $0xa]]
        %v3876 = vstv %s3875
        %v3877 = vmul.f32 %v3876, %v3242
        %v3878 = vmul.f32 %v3876, %v3243
        %3881 = vrot.lane.b32.xlu0 %v3877, 127
        %v3882 = vpop.permute.xlu0 %3881
        %3883 = vrot.lane.b32.xlu0 %v3878, 127
        %v3884 = vpop.permute.xlu0 %3883
        %v3887 = vadd.f32 %v3855, %v3882
        %v3888 = vadd.f32 %v3856, %v3884
        %s3889 = sld [smem:[#allocation7 + $0x2e]]
        %v3890 = vstv %s3889
        %v3891 = vmul.f32 %v3890, %v3242
        %v3892 = vmul.f32 %v3890, %v3243
        %3895 = vrot.lane.b32.xlu0 %v3891, 127
        %v3896 = vpop.permute.xlu0 %3895
        %3897 = vrot.lane.b32.xlu0 %v3892, 127
        %v3898 = vpop.permute.xlu0 %3897
        %v3901 = vadd.f32 %v3861, %v3896
        %v3902 = vadd.f32 %v3862, %v3898
        %s3903 = sld [smem:[#allocation7 + $0x52]]
        %v3904 = vstv %s3903
        %v3905 = vmul.f32 %v3904, %v3242
        %v3906 = vmul.f32 %v3904, %v3243
        %3909 = vrot.lane.b32.xlu0 %v3905, 127
        %v3910 = vpop.permute.xlu0 %3909
        %3911 = vrot.lane.b32.xlu0 %v3906, 127
        %v3912 = vpop.permute.xlu0 %3911
        %v3915 = vadd.f32 %v3867, %v3910
        %v3916 = vadd.f32 %v3868, %v3912
        %s3917 = sld [smem:[#allocation7 + $0x76]]
        %v3918 = vstv %s3917
        %v3919 = vmul.f32 %v3918, %v3242
        %v3920 = vmul.f32 %v3918, %v3243
        %3923 = vrot.lane.b32.xlu0 %v3919, 127
        %v3924 = vpop.permute.xlu0 %3923
        %3925 = vrot.lane.b32.xlu0 %v3920, 127
        %v3926 = vpop.permute.xlu0 %3925
        %v3929 = vadd.f32 %v3873, %v3924
        %v3930 = vadd.f32 %v3874, %v3926
        %s3931 = sld [smem:[#allocation7 + $0xb]]
        %v3932 = vstv %s3931
        %v3933 = vmul.f32 %v3932, %v3242
        %v3934 = vmul.f32 %v3932, %v3243
        %3937 = vrot.lane.b32.xlu0 %v3933, 126
        %v3938 = vpop.permute.xlu0 %3937
        %3939 = vrot.lane.b32.xlu0 %v3934, 126
        %v3940 = vpop.permute.xlu0 %3939
        %v3943 = vadd.f32 %v3887, %v3938
        %v3944 = vadd.f32 %v3888, %v3940
        %s3945 = sld [smem:[#allocation7 + $0x2f]]
        %v3946 = vstv %s3945
        %v3947 = vmul.f32 %v3946, %v3242
        %v3948 = vmul.f32 %v3946, %v3243
        %3951 = vrot.lane.b32.xlu0 %v3947, 126
        %v3952 = vpop.permute.xlu0 %3951
        %3953 = vrot.lane.b32.xlu0 %v3948, 126
        %v3954 = vpop.permute.xlu0 %3953
        %v3957 = vadd.f32 %v3901, %v3952
        %v3958 = vadd.f32 %v3902, %v3954
        %s3959 = sld [smem:[#allocation7 + $0x53]]
        %v3960 = vstv %s3959
        %v3961 = vmul.f32 %v3960, %v3242
        %v3962 = vmul.f32 %v3960, %v3243
        %3965 = vrot.lane.b32.xlu0 %v3961, 126
        %v3966 = vpop.permute.xlu0 %3965
        %3967 = vrot.lane.b32.xlu0 %v3962, 126
        %v3968 = vpop.permute.xlu0 %3967
        %v3971 = vadd.f32 %v3915, %v3966
        %v3972 = vadd.f32 %v3916, %v3968
        %s3973 = sld [smem:[#allocation7 + $0x77]]
        %v3974 = vstv %s3973
        %v3975 = vmul.f32 %v3974, %v3242
        %v3976 = vmul.f32 %v3974, %v3243
        %3979 = vrot.lane.b32.xlu0 %v3975, 126
        %v3980 = vpop.permute.xlu0 %3979
        %3981 = vrot.lane.b32.xlu0 %v3976, 126
        %v3982 = vpop.permute.xlu0 %3981
        %v3985 = vadd.f32 %v3929, %v3980
        %v3986 = vadd.f32 %v3930, %v3982
        %s3987 = sld [smem:[#allocation7 + $0xc]]
        %v3988 = vstv %s3987
        %v3989 = vmul.f32 %v3988, %v3242
        %v3990 = vmul.f32 %v3988, %v3243
        %v3991 = vmul.f32 %v3988, %v3244
        %v3995 = vrot.slane %v3989, 1
        %v3996 = vrot.slane %v3990, 1
        %v3997 = vsel %vm557, %v3995, %v3996
        %v3998 = vrot.slane %v3991, 1
        %v3999 = vsel %vm557, %v3996, %v3998
        %v4002 = vadd.f32 %v3943, %v3997
        %v4003 = vadd.f32 %v3944, %v3999
        %s4004 = sld [smem:[#allocation7 + $0x30]]
        %v4005 = vstv %s4004
        %v4006 = vmul.f32 %v4005, %v3242
        %v4007 = vmul.f32 %v4005, %v3243
        %v4008 = vmul.f32 %v4005, %v3244
        %v4012 = vrot.slane %v4006, 1
        %v4013 = vrot.slane %v4007, 1
        %v4014 = vsel %vm557, %v4012, %v4013
        %v4015 = vrot.slane %v4008, 1
        %v4016 = vsel %vm557, %v4013, %v4015
        %v4019 = vadd.f32 %v3957, %v4014
        %v4020 = vadd.f32 %v3958, %v4016
        %s4021 = sld [smem:[#allocation7 + $0x54]]
        %v4022 = vstv %s4021
        %v4023 = vmul.f32 %v4022, %v3242
        %v4024 = vmul.f32 %v4022, %v3243
        %v4025 = vmul.f32 %v4022, %v3244
        %v4029 = vrot.slane %v4023, 1
        %v4030 = vrot.slane %v4024, 1
        %v4031 = vsel %vm557, %v4029, %v4030
        %v4032 = vrot.slane %v4025, 1
        %v4033 = vsel %vm557, %v4030, %v4032
        %v4036 = vadd.f32 %v3971, %v4031
        %v4037 = vadd.f32 %v3972, %v4033
        %s4038 = sld [smem:[#allocation7 + $0x78]]
        %v4039 = vstv %s4038
        %v4040 = vmul.f32 %v4039, %v3242
        %v4041 = vmul.f32 %v4039, %v3243
        %v4042 = vmul.f32 %v4039, %v3244
        %v4046 = vrot.slane %v4040, 1
        %v4047 = vrot.slane %v4041, 1
        %v4048 = vsel %vm557, %v4046, %v4047
        %v4049 = vrot.slane %v4042, 1
        %v4050 = vsel %vm557, %v4047, %v4049
        %v4053 = vadd.f32 %v3985, %v4048
        %v4054 = vadd.f32 %v3986, %v4050
        %s4055 = sld [smem:[#allocation7 + $0xd]]
        %v4056 = vstv %s4055
        %v4057 = vmul.f32 %v4056, %v3242
        %v4058 = vmul.f32 %v4056, %v3243
        %v4059 = vmul.f32 %v4056, %v3244
        %v4063 = vrot.slane %v4057, 1
        %v4064 = vrot.slane %v4058, 1
        %v4065 = vsel %vm557, %v4063, %v4064
        %v4066 = vrot.slane %v4059, 1
        %v4067 = vsel %vm557, %v4064, %v4066
        %4068 = vrot.lane.b32.xlu0 %v4065, 127
        %v4069 = vpop.permute.xlu0 %4068
        %4070 = vrot.lane.b32.xlu0 %v4067, 127
        %v4071 = vpop.permute.xlu0 %4070
        %v4074 = vadd.f32 %v4002, %v4069
        %v4075 = vadd.f32 %v4003, %v4071
        %s4076 = sld [smem:[#allocation7 + $0x31]]
        %v4077 = vstv %s4076
        %v4078 = vmul.f32 %v4077, %v3242
        %v4079 = vmul.f32 %v4077, %v3243
        %v4080 = vmul.f32 %v4077, %v3244
        %v4084 = vrot.slane %v4078, 1
        %v4085 = vrot.slane %v4079, 1
        %v4086 = vsel %vm557, %v4084, %v4085
        %v4087 = vrot.slane %v4080, 1
        %v4088 = vsel %vm557, %v4085, %v4087
        %4089 = vrot.lane.b32.xlu0 %v4086, 127
        %v4090 = vpop.permute.xlu0 %4089
        %4091 = vrot.lane.b32.xlu0 %v4088, 127
        %v4092 = vpop.permute.xlu0 %4091
        %v4095 = vadd.f32 %v4019, %v4090
        %v4096 = vadd.f32 %v4020, %v4092
        %s4097 = sld [smem:[#allocation7 + $0x55]]
        %v4098 = vstv %s4097
        %v4099 = vmul.f32 %v4098, %v3242
        %v4100 = vmul.f32 %v4098, %v3243
        %v4101 = vmul.f32 %v4098, %v3244
        %v4105 = vrot.slane %v4099, 1
        %v4106 = vrot.slane %v4100, 1
        %v4107 = vsel %vm557, %v4105, %v4106
        %v4108 = vrot.slane %v4101, 1
        %v4109 = vsel %vm557, %v4106, %v4108
        %4110 = vrot.lane.b32.xlu0 %v4107, 127
        %v4111 = vpop.permute.xlu0 %4110
        %4112 = vrot.lane.b32.xlu0 %v4109, 127
        %v4113 = vpop.permute.xlu0 %4112
        %v4116 = vadd.f32 %v4036, %v4111
        %v4117 = vadd.f32 %v4037, %v4113
        %s4118 = sld [smem:[#allocation7 + $0x79]]
        %v4119 = vstv %s4118
        %v4120 = vmul.f32 %v4119, %v3242
        %v4121 = vmul.f32 %v4119, %v3243
        %v4122 = vmul.f32 %v4119, %v3244
        %v4126 = vrot.slane %v4120, 1
        %v4127 = vrot.slane %v4121, 1
        %v4128 = vsel %vm557, %v4126, %v4127
        %v4129 = vrot.slane %v4122, 1
        %v4130 = vsel %vm557, %v4127, %v4129
        %4131 = vrot.lane.b32.xlu0 %v4128, 127
        %v4132 = vpop.permute.xlu0 %4131
        %4133 = vrot.lane.b32.xlu0 %v4130, 127
        %v4134 = vpop.permute.xlu0 %4133
        %v4137 = vadd.f32 %v4053, %v4132
        %v4138 = vadd.f32 %v4054, %v4134
        %s4139 = sld [smem:[#allocation7 + $0xe]]
        %v4140 = vstv %s4139
        %v4141 = vmul.f32 %v4140, %v3242
        %v4142 = vmul.f32 %v4140, %v3243
        %v4143 = vmul.f32 %v4140, %v3244
        %v4147 = vrot.slane %v4141, 1
        %v4148 = vrot.slane %v4142, 1
        %v4149 = vsel %vm557, %v4147, %v4148
        %v4150 = vrot.slane %v4143, 1
        %v4151 = vsel %vm557, %v4148, %v4150
        %4152 = vrot.lane.b32.xlu0 %v4149, 126
        %v4153 = vpop.permute.xlu0 %4152
        %4154 = vrot.lane.b32.xlu0 %v4151, 126
        %v4155 = vpop.permute.xlu0 %4154
        %v4158 = vadd.f32 %v4074, %v4153
        %v4159 = vadd.f32 %v4075, %v4155
        %s4160 = sld [smem:[#allocation7 + $0x32]]
        %v4161 = vstv %s4160
        %v4162 = vmul.f32 %v4161, %v3242
        %v4163 = vmul.f32 %v4161, %v3243
        %v4164 = vmul.f32 %v4161, %v3244
        %v4168 = vrot.slane %v4162, 1
        %v4169 = vrot.slane %v4163, 1
        %v4170 = vsel %vm557, %v4168, %v4169
        %v4171 = vrot.slane %v4164, 1
        %v4172 = vsel %vm557, %v4169, %v4171
        %4173 = vrot.lane.b32.xlu0 %v4170, 126
        %v4174 = vpop.permute.xlu0 %4173
        %4175 = vrot.lane.b32.xlu0 %v4172, 126
        %v4176 = vpop.permute.xlu0 %4175
        %v4179 = vadd.f32 %v4095, %v4174
        %v4180 = vadd.f32 %v4096, %v4176
        %s4181 = sld [smem:[#allocation7 + $0x56]]
        %v4182 = vstv %s4181
        %v4183 = vmul.f32 %v4182, %v3242
        %v4184 = vmul.f32 %v4182, %v3243
        %v4185 = vmul.f32 %v4182, %v3244
        %v4189 = vrot.slane %v4183, 1
        %v4190 = vrot.slane %v4184, 1
        %v4191 = vsel %vm557, %v4189, %v4190
        %v4192 = vrot.slane %v4185, 1
        %v4193 = vsel %vm557, %v4190, %v4192
        %4194 = vrot.lane.b32.xlu0 %v4191, 126
        %v4195 = vpop.permute.xlu0 %4194
        %4196 = vrot.lane.b32.xlu0 %v4193, 126
        %v4197 = vpop.permute.xlu0 %4196
        %v4200 = vadd.f32 %v4116, %v4195
        %v4201 = vadd.f32 %v4117, %v4197
        %s4202 = sld [smem:[#allocation7 + $0x7a]]
        %v4203 = vstv %s4202
        %v4204 = vmul.f32 %v4203, %v3242
        %v4205 = vmul.f32 %v4203, %v3243
        %v4206 = vmul.f32 %v4203, %v3244
        %v4210 = vrot.slane %v4204, 1
        %v4211 = vrot.slane %v4205, 1
        %v4212 = vsel %vm557, %v4210, %v4211
        %v4213 = vrot.slane %v4206, 1
        %v4214 = vsel %vm557, %v4211, %v4213
        %4215 = vrot.lane.b32.xlu0 %v4212, 126
        %v4216 = vpop.permute.xlu0 %4215
        %4217 = vrot.lane.b32.xlu0 %v4214, 126
        %v4218 = vpop.permute.xlu0 %4217
        %v4221 = vadd.f32 %v4137, %v4216
        %v4222 = vadd.f32 %v4138, %v4218
        %s4223 = sld [smem:[#allocation7 + $0xf]]
        %v4224 = vstv %s4223
        %v4225 = vmul.f32 %v4224, %v3242
        %v4226 = vmul.f32 %v4224, %v3243
        %v4227 = vmul.f32 %v4224, %v3244
        %v4231 = vrot.slane %v4225, 2
        %v4232 = vrot.slane %v4226, 2
        %v4233 = vsel %vm794, %v4231, %v4232
        %v4234 = vrot.slane %v4227, 2
        %v4235 = vsel %vm794, %v4232, %v4234
        %v4238 = vadd.f32 %v4158, %v4233
        %v4239 = vadd.f32 %v4159, %v4235
        %s4240 = sld [smem:[#allocation7 + $0x33]]
        %v4241 = vstv %s4240
        %v4242 = vmul.f32 %v4241, %v3242
        %v4243 = vmul.f32 %v4241, %v3243
        %v4244 = vmul.f32 %v4241, %v3244
        %v4248 = vrot.slane %v4242, 2
        %v4249 = vrot.slane %v4243, 2
        %v4250 = vsel %vm794, %v4248, %v4249
        %v4251 = vrot.slane %v4244, 2
        %v4252 = vsel %vm794, %v4249, %v4251
        %v4255 = vadd.f32 %v4179, %v4250
        %v4256 = vadd.f32 %v4180, %v4252
        %s4257 = sld [smem:[#allocation7 + $0x57]]
        %v4258 = vstv %s4257
        %v4259 = vmul.f32 %v4258, %v3242
        %v4260 = vmul.f32 %v4258, %v3243
        %v4261 = vmul.f32 %v4258, %v3244
        %v4265 = vrot.slane %v4259, 2
        %v4266 = vrot.slane %v4260, 2
        %v4267 = vsel %vm794, %v4265, %v4266
        %v4268 = vrot.slane %v4261, 2
        %v4269 = vsel %vm794, %v4266, %v4268
        %v4272 = vadd.f32 %v4200, %v4267
        %v4273 = vadd.f32 %v4201, %v4269
        %s4274 = sld [smem:[#allocation7 + $0x7b]]
        %v4275 = vstv %s4274
        %v4276 = vmul.f32 %v4275, %v3242
        %v4277 = vmul.f32 %v4275, %v3243
        %v4278 = vmul.f32 %v4275, %v3244
        %v4282 = vrot.slane %v4276, 2
        %v4283 = vrot.slane %v4277, 2
        %v4284 = vsel %vm794, %v4282, %v4283
        %v4285 = vrot.slane %v4278, 2
        %v4286 = vsel %vm794, %v4283, %v4285
        %v4289 = vadd.f32 %v4221, %v4284
        %v4290 = vadd.f32 %v4222, %v4286
        %s4291 = sld [smem:[#allocation7 + $0x10]]
        %v4292 = vstv %s4291
        %v4293 = vmul.f32 %v4292, %v3242
        %v4294 = vmul.f32 %v4292, %v3243
        %v4295 = vmul.f32 %v4292, %v3244
        %v4299 = vrot.slane %v4293, 2
        %v4300 = vrot.slane %v4294, 2
        %v4301 = vsel %vm794, %v4299, %v4300
        %v4302 = vrot.slane %v4295, 2
        %v4303 = vsel %vm794, %v4300, %v4302
        %4304 = vrot.lane.b32.xlu0 %v4301, 127
        %v4305 = vpop.permute.xlu0 %4304
        %4306 = vrot.lane.b32.xlu0 %v4303, 127
        %v4307 = vpop.permute.xlu0 %4306
        %v4310 = vadd.f32 %v4238, %v4305
        %v4311 = vadd.f32 %v4239, %v4307
        %s4312 = sld [smem:[#allocation7 + $0x34]]
        %v4313 = vstv %s4312
        %v4314 = vmul.f32 %v4313, %v3242
        %v4315 = vmul.f32 %v4313, %v3243
        %v4316 = vmul.f32 %v4313, %v3244
        %v4320 = vrot.slane %v4314, 2
        %v4321 = vrot.slane %v4315, 2
        %v4322 = vsel %vm794, %v4320, %v4321
        %v4323 = vrot.slane %v4316, 2
        %v4324 = vsel %vm794, %v4321, %v4323
        %4325 = vrot.lane.b32.xlu0 %v4322, 127
        %v4326 = vpop.permute.xlu0 %4325
        %4327 = vrot.lane.b32.xlu0 %v4324, 127
        %v4328 = vpop.permute.xlu0 %4327
        %v4331 = vadd.f32 %v4255, %v4326
        %v4332 = vadd.f32 %v4256, %v4328
        %s4333 = sld [smem:[#allocation7 + $0x58]]
        %v4334 = vstv %s4333
        %v4335 = vmul.f32 %v4334, %v3242
        %v4336 = vmul.f32 %v4334, %v3243
        %v4337 = vmul.f32 %v4334, %v3244
        %v4341 = vrot.slane %v4335, 2
        %v4342 = vrot.slane %v4336, 2
        %v4343 = vsel %vm794, %v4341, %v4342
        %v4344 = vrot.slane %v4337, 2
        %v4345 = vsel %vm794, %v4342, %v4344
        %4346 = vrot.lane.b32.xlu0 %v4343, 127
        %v4347 = vpop.permute.xlu0 %4346
        %4348 = vrot.lane.b32.xlu0 %v4345, 127
        %v4349 = vpop.permute.xlu0 %4348
        %v4352 = vadd.f32 %v4272, %v4347
        %v4353 = vadd.f32 %v4273, %v4349
        %s4354 = sld [smem:[#allocation7 + $0x7c]]
        %v4355 = vstv %s4354
        %v4356 = vmul.f32 %v4355, %v3242
        %v4357 = vmul.f32 %v4355, %v3243
        %v4358 = vmul.f32 %v4355, %v3244
        %v4362 = vrot.slane %v4356, 2
        %v4363 = vrot.slane %v4357, 2
        %v4364 = vsel %vm794, %v4362, %v4363
        %v4365 = vrot.slane %v4358, 2
        %v4366 = vsel %vm794, %v4363, %v4365
        %4367 = vrot.lane.b32.xlu0 %v4364, 127
        %v4368 = vpop.permute.xlu0 %4367
        %4369 = vrot.lane.b32.xlu0 %v4366, 127
        %v4370 = vpop.permute.xlu0 %4369
        %v4373 = vadd.f32 %v4289, %v4368
        %v4374 = vadd.f32 %v4290, %v4370
        %s4375 = sld [smem:[#allocation7 + $0x11]]
        %v4376 = vstv %s4375
        %v4377 = vmul.f32 %v4376, %v3242
        %v4378 = vmul.f32 %v4376, %v3243
        %v4379 = vmul.f32 %v4376, %v3244
        %v4383 = vrot.slane %v4377, 2
        %v4384 = vrot.slane %v4378, 2
        %v4385 = vsel %vm794, %v4383, %v4384
        %v4386 = vrot.slane %v4379, 2
        %v4387 = vsel %vm794, %v4384, %v4386
        %4388 = vrot.lane.b32.xlu0 %v4385, 126
        %v4389 = vpop.permute.xlu0 %4388
        %4390 = vrot.lane.b32.xlu0 %v4387, 126
        %v4391 = vpop.permute.xlu0 %4390
        %v4394 = vadd.f32 %v4310, %v4389
        %v4395 = vadd.f32 %v4311, %v4391
        %s4396 = sld [smem:[#allocation7 + $0x35]]
        %v4397 = vstv %s4396
        %v4398 = vmul.f32 %v4397, %v3242
        %v4399 = vmul.f32 %v4397, %v3243
        %v4400 = vmul.f32 %v4397, %v3244
        %v4404 = vrot.slane %v4398, 2
        %v4405 = vrot.slane %v4399, 2
        %v4406 = vsel %vm794, %v4404, %v4405
        %v4407 = vrot.slane %v4400, 2
        %v4408 = vsel %vm794, %v4405, %v4407
        %4409 = vrot.lane.b32.xlu0 %v4406, 126
        %v4410 = vpop.permute.xlu0 %4409
        %4411 = vrot.lane.b32.xlu0 %v4408, 126
        %v4412 = vpop.permute.xlu0 %4411
        %v4415 = vadd.f32 %v4331, %v4410
        %v4416 = vadd.f32 %v4332, %v4412
        %s4417 = sld [smem:[#allocation7 + $0x59]]
        %v4418 = vstv %s4417
        %v4419 = vmul.f32 %v4418, %v3242
        %v4420 = vmul.f32 %v4418, %v3243
        %v4421 = vmul.f32 %v4418, %v3244
        %v4425 = vrot.slane %v4419, 2
        %v4426 = vrot.slane %v4420, 2
        %v4427 = vsel %vm794, %v4425, %v4426
        %v4428 = vrot.slane %v4421, 2
        %v4429 = vsel %vm794, %v4426, %v4428
        %4430 = vrot.lane.b32.xlu0 %v4427, 126
        %v4431 = vpop.permute.xlu0 %4430
        %4432 = vrot.lane.b32.xlu0 %v4429, 126
        %v4433 = vpop.permute.xlu0 %4432
        %v4436 = vadd.f32 %v4352, %v4431
        %v4437 = vadd.f32 %v4353, %v4433
        %s4438 = sld [smem:[#allocation7 + $0x7d]]
        %v4439 = vstv %s4438
        %v4440 = vmul.f32 %v4439, %v3242
        %v4441 = vmul.f32 %v4439, %v3243
        %v4442 = vmul.f32 %v4439, %v3244
        %v4446 = vrot.slane %v4440, 2
        %v4447 = vrot.slane %v4441, 2
        %v4448 = vsel %vm794, %v4446, %v4447
        %v4449 = vrot.slane %v4442, 2
        %v4450 = vsel %vm794, %v4447, %v4449
        %4451 = vrot.lane.b32.xlu0 %v4448, 126
        %v4452 = vpop.permute.xlu0 %4451
        %4453 = vrot.lane.b32.xlu0 %v4450, 126
        %v4454 = vpop.permute.xlu0 %4453
        %v4457 = vadd.f32 %v4373, %v4452
        %v4458 = vadd.f32 %v4374, %v4454
        %s4459 = sld [smem:[#allocation7 + $0x12]]
        %v4460 = vstv %s4459
        %v4461 = vmul.f32 %v4460, %v3245
        %v4462 = vmul.f32 %v4460, %v3246
        %v4463 = vadd.f32 %v4394, %v4461
        %v4464 = vadd.f32 %v4395, %v4462
        %s4465 = sld [smem:[#allocation7 + $0x36]]
        %v4466 = vstv %s4465
        %v4467 = vmul.f32 %v4466, %v3245
        %v4468 = vmul.f32 %v4466, %v3246
        %v4469 = vadd.f32 %v4415, %v4467
        %v4470 = vadd.f32 %v4416, %v4468
        %s4471 = sld [smem:[#allocation7 + $0x5a]]
        %v4472 = vstv %s4471
        %v4473 = vmul.f32 %v4472, %v3245
        %v4474 = vmul.f32 %v4472, %v3246
        %v4475 = vadd.f32 %v4436, %v4473
        %v4476 = vadd.f32 %v4437, %v4474
        %s4477 = sld [smem:[#allocation7 + $0x7e]]
        %v4478 = vstv %s4477
        %v4479 = vmul.f32 %v4478, %v3245
        %v4480 = vmul.f32 %v4478, %v3246
        %v4481 = vadd.f32 %v4457, %v4479
        %v4482 = vadd.f32 %v4458, %v4480
        %s4483 = sld [smem:[#allocation7 + $0x13]]
        %v4484 = vstv %s4483
        %v4485 = vmul.f32 %v4484, %v3245
        %v4486 = vmul.f32 %v4484, %v3246
        %4489 = vrot.lane.b32.xlu0 %v4485, 127
        %v4490 = vpop.permute.xlu0 %4489
        %4491 = vrot.lane.b32.xlu0 %v4486, 127
        %v4492 = vpop.permute.xlu0 %4491
        %v4495 = vadd.f32 %v4463, %v4490
        %v4496 = vadd.f32 %v4464, %v4492
        %s4497 = sld [smem:[#allocation7 + $0x37]]
        %v4498 = vstv %s4497
        %v4499 = vmul.f32 %v4498, %v3245
        %v4500 = vmul.f32 %v4498, %v3246
        %4503 = vrot.lane.b32.xlu0 %v4499, 127
        %v4504 = vpop.permute.xlu0 %4503
        %4505 = vrot.lane.b32.xlu0 %v4500, 127
        %v4506 = vpop.permute.xlu0 %4505
        %v4509 = vadd.f32 %v4469, %v4504
        %v4510 = vadd.f32 %v4470, %v4506
        %s4511 = sld [smem:[#allocation7 + $0x5b]]
        %v4512 = vstv %s4511
        %v4513 = vmul.f32 %v4512, %v3245
        %v4514 = vmul.f32 %v4512, %v3246
        %4517 = vrot.lane.b32.xlu0 %v4513, 127
        %v4518 = vpop.permute.xlu0 %4517
        %4519 = vrot.lane.b32.xlu0 %v4514, 127
        %v4520 = vpop.permute.xlu0 %4519
        %v4523 = vadd.f32 %v4475, %v4518
        %v4524 = vadd.f32 %v4476, %v4520
        %s4525 = sld [smem:[#allocation7 + $0x7f]]
        %v4526 = vstv %s4525
        %v4527 = vmul.f32 %v4526, %v3245
        %v4528 = vmul.f32 %v4526, %v3246
        %4531 = vrot.lane.b32.xlu0 %v4527, 127
        %v4532 = vpop.permute.xlu0 %4531
        %4533 = vrot.lane.b32.xlu0 %v4528, 127
        %v4534 = vpop.permute.xlu0 %4533
        %v4537 = vadd.f32 %v4481, %v4532
        %v4538 = vadd.f32 %v4482, %v4534
        %s4539 = sld [smem:[#allocation7 + $0x14]]
        %v4540 = vstv %s4539
        %v4541 = vmul.f32 %v4540, %v3245
        %v4542 = vmul.f32 %v4540, %v3246
        %4545 = vrot.lane.b32.xlu0 %v4541, 126
        %v4546 = vpop.permute.xlu0 %4545
        %4547 = vrot.lane.b32.xlu0 %v4542, 126
        %v4548 = vpop.permute.xlu0 %4547
        %v4551 = vadd.f32 %v4495, %v4546
        %v4552 = vadd.f32 %v4496, %v4548
        %s4553 = sld [smem:[#allocation7 + $0x38]]
        %v4554 = vstv %s4553
        %v4555 = vmul.f32 %v4554, %v3245
        %v4556 = vmul.f32 %v4554, %v3246
        %4559 = vrot.lane.b32.xlu0 %v4555, 126
        %v4560 = vpop.permute.xlu0 %4559
        %4561 = vrot.lane.b32.xlu0 %v4556, 126
        %v4562 = vpop.permute.xlu0 %4561
        %v4565 = vadd.f32 %v4509, %v4560
        %v4566 = vadd.f32 %v4510, %v4562
        %s4567 = sld [smem:[#allocation7 + $0x5c]]
        %v4568 = vstv %s4567
        %v4569 = vmul.f32 %v4568, %v3245
        %v4570 = vmul.f32 %v4568, %v3246
        %4573 = vrot.lane.b32.xlu0 %v4569, 126
        %v4574 = vpop.permute.xlu0 %4573
        %4575 = vrot.lane.b32.xlu0 %v4570, 126
        %v4576 = vpop.permute.xlu0 %4575
        %v4579 = vadd.f32 %v4523, %v4574
        %v4580 = vadd.f32 %v4524, %v4576
        %s4581 = sld [smem:[#allocation7 + $0x80]]
        %v4582 = vstv %s4581
        %v4583 = vmul.f32 %v4582, %v3245
        %v4584 = vmul.f32 %v4582, %v3246
        %4587 = vrot.lane.b32.xlu0 %v4583, 126
        %v4588 = vpop.permute.xlu0 %4587
        %4589 = vrot.lane.b32.xlu0 %v4584, 126
        %v4590 = vpop.permute.xlu0 %4589
        %v4593 = vadd.f32 %v4537, %v4588
        %v4594 = vadd.f32 %v4538, %v4590
        %s4595 = sld [smem:[#allocation7 + $0x15]]
        %v4596 = vstv %s4595
        %v4597 = vmul.f32 %v4596, %v3245
        %v4598 = vmul.f32 %v4596, %v3246
        %v4599 = vmul.f32 %v4596, %v3247
        %v4603 = vrot.slane %v4597, 1
        %v4604 = vrot.slane %v4598, 1
        %v4605 = vsel %vm557, %v4603, %v4604
        %v4606 = vrot.slane %v4599, 1
        %v4607 = vsel %vm557, %v4604, %v4606
        %v4610 = vadd.f32 %v4551, %v4605
        %v4611 = vadd.f32 %v4552, %v4607
        %s4612 = sld [smem:[#allocation7 + $0x39]]
        %v4613 = vstv %s4612
        %v4614 = vmul.f32 %v4613, %v3245
        %v4615 = vmul.f32 %v4613, %v3246
        %v4616 = vmul.f32 %v4613, %v3247
        %v4620 = vrot.slane %v4614, 1
        %v4621 = vrot.slane %v4615, 1
        %v4622 = vsel %vm557, %v4620, %v4621
        %v4623 = vrot.slane %v4616, 1
        %v4624 = vsel %vm557, %v4621, %v4623
        %v4627 = vadd.f32 %v4565, %v4622
        %v4628 = vadd.f32 %v4566, %v4624
        %s4629 = sld [smem:[#allocation7 + $0x5d]]
        %v4630 = vstv %s4629
        %v4631 = vmul.f32 %v4630, %v3245
        %v4632 = vmul.f32 %v4630, %v3246
        %v4633 = vmul.f32 %v4630, %v3247
        %v4637 = vrot.slane %v4631, 1
        %v4638 = vrot.slane %v4632, 1
        %v4639 = vsel %vm557, %v4637, %v4638
        %v4640 = vrot.slane %v4633, 1
        %v4641 = vsel %vm557, %v4638, %v4640
        %v4644 = vadd.f32 %v4579, %v4639
        %v4645 = vadd.f32 %v4580, %v4641
        %s4646 = sld [smem:[#allocation7 + $0x81]]
        %v4647 = vstv %s4646
        %v4648 = vmul.f32 %v4647, %v3245
        %v4649 = vmul.f32 %v4647, %v3246
        %v4650 = vmul.f32 %v4647, %v3247
        %v4654 = vrot.slane %v4648, 1
        %v4655 = vrot.slane %v4649, 1
        %v4656 = vsel %vm557, %v4654, %v4655
        %v4657 = vrot.slane %v4650, 1
        %v4658 = vsel %vm557, %v4655, %v4657
        %v4661 = vadd.f32 %v4593, %v4656
        %v4662 = vadd.f32 %v4594, %v4658
        %s4663 = sld [smem:[#allocation7 + $0x16]]
        %v4664 = vstv %s4663
        %v4665 = vmul.f32 %v4664, %v3245
        %v4666 = vmul.f32 %v4664, %v3246
        %v4667 = vmul.f32 %v4664, %v3247
        %v4671 = vrot.slane %v4665, 1
        %v4672 = vrot.slane %v4666, 1
        %v4673 = vsel %vm557, %v4671, %v4672
        %v4674 = vrot.slane %v4667, 1
        %v4675 = vsel %vm557, %v4672, %v4674
        %4676 = vrot.lane.b32.xlu0 %v4673, 127
        %v4677 = vpop.permute.xlu0 %4676
        %4678 = vrot.lane.b32.xlu0 %v4675, 127
        %v4679 = vpop.permute.xlu0 %4678
        %v4682 = vadd.f32 %v4610, %v4677
        %v4683 = vadd.f32 %v4611, %v4679
        %s4684 = sld [smem:[#allocation7 + $0x3a]]
        %v4685 = vstv %s4684
        %v4686 = vmul.f32 %v4685, %v3245
        %v4687 = vmul.f32 %v4685, %v3246
        %v4688 = vmul.f32 %v4685, %v3247
        %v4692 = vrot.slane %v4686, 1
        %v4693 = vrot.slane %v4687, 1
        %v4694 = vsel %vm557, %v4692, %v4693
        %v4695 = vrot.slane %v4688, 1
        %v4696 = vsel %vm557, %v4693, %v4695
        %4697 = vrot.lane.b32.xlu0 %v4694, 127
        %v4698 = vpop.permute.xlu0 %4697
        %4699 = vrot.lane.b32.xlu0 %v4696, 127
        %v4700 = vpop.permute.xlu0 %4699
        %v4703 = vadd.f32 %v4627, %v4698
        %v4704 = vadd.f32 %v4628, %v4700
        %s4705 = sld [smem:[#allocation7 + $0x5e]]
        %v4706 = vstv %s4705
        %v4707 = vmul.f32 %v4706, %v3245
        %v4708 = vmul.f32 %v4706, %v3246
        %v4709 = vmul.f32 %v4706, %v3247
        %v4713 = vrot.slane %v4707, 1
        %v4714 = vrot.slane %v4708, 1
        %v4715 = vsel %vm557, %v4713, %v4714
        %v4716 = vrot.slane %v4709, 1
        %v4717 = vsel %vm557, %v4714, %v4716
        %4718 = vrot.lane.b32.xlu0 %v4715, 127
        %v4719 = vpop.permute.xlu0 %4718
        %4720 = vrot.lane.b32.xlu0 %v4717, 127
        %v4721 = vpop.permute.xlu0 %4720
        %v4724 = vadd.f32 %v4644, %v4719
        %v4725 = vadd.f32 %v4645, %v4721
        %s4726 = sld [smem:[#allocation7 + $0x82]]
        %v4727 = vstv %s4726
        %v4728 = vmul.f32 %v4727, %v3245
        %v4729 = vmul.f32 %v4727, %v3246
        %v4730 = vmul.f32 %v4727, %v3247
        %v4734 = vrot.slane %v4728, 1
        %v4735 = vrot.slane %v4729, 1
        %v4736 = vsel %vm557, %v4734, %v4735
        %v4737 = vrot.slane %v4730, 1
        %v4738 = vsel %vm557, %v4735, %v4737
        %4739 = vrot.lane.b32.xlu0 %v4736, 127
        %v4740 = vpop.permute.xlu0 %4739
        %4741 = vrot.lane.b32.xlu0 %v4738, 127
        %v4742 = vpop.permute.xlu0 %4741
        %v4745 = vadd.f32 %v4661, %v4740
        %v4746 = vadd.f32 %v4662, %v4742
        %s4747 = sld [smem:[#allocation7 + $0x17]]
        %v4748 = vstv %s4747
        %v4749 = vmul.f32 %v4748, %v3245
        %v4750 = vmul.f32 %v4748, %v3246
        %v4751 = vmul.f32 %v4748, %v3247
        %v4755 = vrot.slane %v4749, 1
        %v4756 = vrot.slane %v4750, 1
        %v4757 = vsel %vm557, %v4755, %v4756
        %v4758 = vrot.slane %v4751, 1
        %v4759 = vsel %vm557, %v4756, %v4758
        %4760 = vrot.lane.b32.xlu0 %v4757, 126
        %v4761 = vpop.permute.xlu0 %4760
        %4762 = vrot.lane.b32.xlu0 %v4759, 126
        %v4763 = vpop.permute.xlu0 %4762
        %v4766 = vadd.f32 %v4682, %v4761
        %v4767 = vadd.f32 %v4683, %v4763
        %s4768 = sld [smem:[#allocation7 + $0x3b]]
        %v4769 = vstv %s4768
        %v4770 = vmul.f32 %v4769, %v3245
        %v4771 = vmul.f32 %v4769, %v3246
        %v4772 = vmul.f32 %v4769, %v3247
        %v4776 = vrot.slane %v4770, 1
        %v4777 = vrot.slane %v4771, 1
        %v4778 = vsel %vm557, %v4776, %v4777
        %v4779 = vrot.slane %v4772, 1
        %v4780 = vsel %vm557, %v4777, %v4779
        %4781 = vrot.lane.b32.xlu0 %v4778, 126
        %v4782 = vpop.permute.xlu0 %4781
        %4783 = vrot.lane.b32.xlu0 %v4780, 126
        %v4784 = vpop.permute.xlu0 %4783
        %v4787 = vadd.f32 %v4703, %v4782
        %v4788 = vadd.f32 %v4704, %v4784
        %s4789 = sld [smem:[#allocation7 + $0x5f]]
        %v4790 = vstv %s4789
        %v4791 = vmul.f32 %v4790, %v3245
        %v4792 = vmul.f32 %v4790, %v3246
        %v4793 = vmul.f32 %v4790, %v3247
        %v4797 = vrot.slane %v4791, 1
        %v4798 = vrot.slane %v4792, 1
        %v4799 = vsel %vm557, %v4797, %v4798
        %v4800 = vrot.slane %v4793, 1
        %v4801 = vsel %vm557, %v4798, %v4800
        %4802 = vrot.lane.b32.xlu0 %v4799, 126
        %v4803 = vpop.permute.xlu0 %4802
        %4804 = vrot.lane.b32.xlu0 %v4801, 126
        %v4805 = vpop.permute.xlu0 %4804
        %v4808 = vadd.f32 %v4724, %v4803
        %v4809 = vadd.f32 %v4725, %v4805
        %s4810 = sld [smem:[#allocation7 + $0x83]]
        %v4811 = vstv %s4810
        %v4812 = vmul.f32 %v4811, %v3245
        %v4813 = vmul.f32 %v4811, %v3246
        %v4814 = vmul.f32 %v4811, %v3247
        %v4818 = vrot.slane %v4812, 1
        %v4819 = vrot.slane %v4813, 1
        %v4820 = vsel %vm557, %v4818, %v4819
        %v4821 = vrot.slane %v4814, 1
        %v4822 = vsel %vm557, %v4819, %v4821
        %4823 = vrot.lane.b32.xlu0 %v4820, 126
        %v4824 = vpop.permute.xlu0 %4823
        %4825 = vrot.lane.b32.xlu0 %v4822, 126
        %v4826 = vpop.permute.xlu0 %4825
        %v4829 = vadd.f32 %v4745, %v4824
        %v4830 = vadd.f32 %v4746, %v4826
        %s4831 = sld [smem:[#allocation7 + $0x18]]
        %v4832 = vstv %s4831
        %v4833 = vmul.f32 %v4832, %v3245
        %v4834 = vmul.f32 %v4832, %v3246
        %v4835 = vmul.f32 %v4832, %v3247
        %v4839 = vrot.slane %v4833, 2
        %v4840 = vrot.slane %v4834, 2
        %v4841 = vsel %vm794, %v4839, %v4840
        %v4842 = vrot.slane %v4835, 2
        %v4843 = vsel %vm794, %v4840, %v4842
        %v4846 = vadd.f32 %v4766, %v4841
        %v4847 = vadd.f32 %v4767, %v4843
        %s4848 = sld [smem:[#allocation7 + $0x3c]]
        %v4849 = vstv %s4848
        %v4850 = vmul.f32 %v4849, %v3245
        %v4851 = vmul.f32 %v4849, %v3246
        %v4852 = vmul.f32 %v4849, %v3247
        %v4856 = vrot.slane %v4850, 2
        %v4857 = vrot.slane %v4851, 2
        %v4858 = vsel %vm794, %v4856, %v4857
        %v4859 = vrot.slane %v4852, 2
        %v4860 = vsel %vm794, %v4857, %v4859
        %v4863 = vadd.f32 %v4787, %v4858
        %v4864 = vadd.f32 %v4788, %v4860
        %s4865 = sld [smem:[#allocation7 + $0x60]]
        %v4866 = vstv %s4865
        %v4867 = vmul.f32 %v4866, %v3245
        %v4868 = vmul.f32 %v4866, %v3246
        %v4869 = vmul.f32 %v4866, %v3247
        %v4873 = vrot.slane %v4867, 2
        %v4874 = vrot.slane %v4868, 2
        %v4875 = vsel %vm794, %v4873, %v4874
        %v4876 = vrot.slane %v4869, 2
        %v4877 = vsel %vm794, %v4874, %v4876
        %v4880 = vadd.f32 %v4808, %v4875
        %v4881 = vadd.f32 %v4809, %v4877
        %s4882 = sld [smem:[#allocation7 + $0x84]]
        %v4883 = vstv %s4882
        %v4884 = vmul.f32 %v4883, %v3245
        %v4885 = vmul.f32 %v4883, %v3246
        %v4886 = vmul.f32 %v4883, %v3247
        %v4890 = vrot.slane %v4884, 2
        %v4891 = vrot.slane %v4885, 2
        %v4892 = vsel %vm794, %v4890, %v4891
        %v4893 = vrot.slane %v4886, 2
        %v4894 = vsel %vm794, %v4891, %v4893
        %v4897 = vadd.f32 %v4829, %v4892
        %v4898 = vadd.f32 %v4830, %v4894
        %s4899 = sld [smem:[#allocation7 + $0x19]]
        %v4900 = vstv %s4899
        %v4901 = vmul.f32 %v4900, %v3245
        %v4902 = vmul.f32 %v4900, %v3246
        %v4903 = vmul.f32 %v4900, %v3247
        %v4907 = vrot.slane %v4901, 2
        %v4908 = vrot.slane %v4902, 2
        %v4909 = vsel %vm794, %v4907, %v4908
        %v4910 = vrot.slane %v4903, 2
        %v4911 = vsel %vm794, %v4908, %v4910
        %4912 = vrot.lane.b32.xlu0 %v4909, 127
        %v4913 = vpop.permute.xlu0 %4912
        %4914 = vrot.lane.b32.xlu0 %v4911, 127
        %v4915 = vpop.permute.xlu0 %4914
        %v4918 = vadd.f32 %v4846, %v4913
        %v4919 = vadd.f32 %v4847, %v4915
        %s4920 = sld [smem:[#allocation7 + $0x3d]]
        %v4921 = vstv %s4920
        %v4922 = vmul.f32 %v4921, %v3245
        %v4923 = vmul.f32 %v4921, %v3246
        %v4924 = vmul.f32 %v4921, %v3247
        %v4928 = vrot.slane %v4922, 2
        %v4929 = vrot.slane %v4923, 2
        %v4930 = vsel %vm794, %v4928, %v4929
        %v4931 = vrot.slane %v4924, 2
        %v4932 = vsel %vm794, %v4929, %v4931
        %4933 = vrot.lane.b32.xlu0 %v4930, 127
        %v4934 = vpop.permute.xlu0 %4933
        %4935 = vrot.lane.b32.xlu0 %v4932, 127
        %v4936 = vpop.permute.xlu0 %4935
        %v4939 = vadd.f32 %v4863, %v4934
        %v4940 = vadd.f32 %v4864, %v4936
        %s4941 = sld [smem:[#allocation7 + $0x61]]
        %v4942 = vstv %s4941
        %v4943 = vmul.f32 %v4942, %v3245
        %v4944 = vmul.f32 %v4942, %v3246
        %v4945 = vmul.f32 %v4942, %v3247
        %v4949 = vrot.slane %v4943, 2
        %v4950 = vrot.slane %v4944, 2
        %v4951 = vsel %vm794, %v4949, %v4950
        %v4952 = vrot.slane %v4945, 2
        %v4953 = vsel %vm794, %v4950, %v4952
        %4954 = vrot.lane.b32.xlu0 %v4951, 127
        %v4955 = vpop.permute.xlu0 %4954
        %4956 = vrot.lane.b32.xlu0 %v4953, 127
        %v4957 = vpop.permute.xlu0 %4956
        %v4960 = vadd.f32 %v4880, %v4955
        %v4961 = vadd.f32 %v4881, %v4957
        %s4962 = sld [smem:[#allocation7 + $0x85]]
        %v4963 = vstv %s4962
        %v4964 = vmul.f32 %v4963, %v3245
        %v4965 = vmul.f32 %v4963, %v3246
        %v4966 = vmul.f32 %v4963, %v3247
        %v4970 = vrot.slane %v4964, 2
        %v4971 = vrot.slane %v4965, 2
        %v4972 = vsel %vm794, %v4970, %v4971
        %v4973 = vrot.slane %v4966, 2
        %v4974 = vsel %vm794, %v4971, %v4973
        %4975 = vrot.lane.b32.xlu0 %v4972, 127
        %v4976 = vpop.permute.xlu0 %4975
        %4977 = vrot.lane.b32.xlu0 %v4974, 127
        %v4978 = vpop.permute.xlu0 %4977
        %v4981 = vadd.f32 %v4897, %v4976
        %v4982 = vadd.f32 %v4898, %v4978
        %s4983 = sld [smem:[#allocation7 + $0x1a]]
        %v4984 = vstv %s4983
        %v4985 = vmul.f32 %v4984, %v3245
        %v4986 = vmul.f32 %v4984, %v3246
        %v4987 = vmul.f32 %v4984, %v3247
        %v4991 = vrot.slane %v4985, 2
        %v4992 = vrot.slane %v4986, 2
        %v4993 = vsel %vm794, %v4991, %v4992
        %v4994 = vrot.slane %v4987, 2
        %v4995 = vsel %vm794, %v4992, %v4994
        %4996 = vrot.lane.b32.xlu0 %v4993, 126
        %v4997 = vpop.permute.xlu0 %4996
        %4998 = vrot.lane.b32.xlu0 %v4995, 126
        %v4999 = vpop.permute.xlu0 %4998
        %v5002 = vadd.f32 %v4918, %v4997
        %v5003 = vadd.f32 %v4919, %v4999
        %s5004 = sld [smem:[#allocation7 + $0x3e]]
        %v5005 = vstv %s5004
        %v5006 = vmul.f32 %v5005, %v3245
        %v5007 = vmul.f32 %v5005, %v3246
        %v5008 = vmul.f32 %v5005, %v3247
        %v5012 = vrot.slane %v5006, 2
        %v5013 = vrot.slane %v5007, 2
        %v5014 = vsel %vm794, %v5012, %v5013
        %v5015 = vrot.slane %v5008, 2
        %v5016 = vsel %vm794, %v5013, %v5015
        %5017 = vrot.lane.b32.xlu0 %v5014, 126
        %v5018 = vpop.permute.xlu0 %5017
        %5019 = vrot.lane.b32.xlu0 %v5016, 126
        %v5020 = vpop.permute.xlu0 %5019
        %v5023 = vadd.f32 %v4939, %v5018
        %v5024 = vadd.f32 %v4940, %v5020
        %s5025 = sld [smem:[#allocation7 + $0x62]]
        %v5026 = vstv %s5025
        %v5027 = vmul.f32 %v5026, %v3245
        %v5028 = vmul.f32 %v5026, %v3246
        %v5029 = vmul.f32 %v5026, %v3247
        %v5033 = vrot.slane %v5027, 2
        %v5034 = vrot.slane %v5028, 2
        %v5035 = vsel %vm794, %v5033, %v5034
        %v5036 = vrot.slane %v5029, 2
        %v5037 = vsel %vm794, %v5034, %v5036
        %5038 = vrot.lane.b32.xlu0 %v5035, 126
        %v5039 = vpop.permute.xlu0 %5038
        %5040 = vrot.lane.b32.xlu0 %v5037, 126
        %v5041 = vpop.permute.xlu0 %5040
        %v5044 = vadd.f32 %v4960, %v5039
        %v5045 = vadd.f32 %v4961, %v5041
        %s5046 = sld [smem:[#allocation7 + $0x86]]
        %v5047 = vstv %s5046
        %v5048 = vmul.f32 %v5047, %v3245
        %v5049 = vmul.f32 %v5047, %v3246
        %v5050 = vmul.f32 %v5047, %v3247
        %v5054 = vrot.slane %v5048, 2
        %v5055 = vrot.slane %v5049, 2
        %v5056 = vsel %vm794, %v5054, %v5055
        %v5057 = vrot.slane %v5050, 2
        %v5058 = vsel %vm794, %v5055, %v5057
        %5059 = vrot.lane.b32.xlu0 %v5056, 126
        %v5060 = vpop.permute.xlu0 %5059
        %5061 = vrot.lane.b32.xlu0 %v5058, 126
        %v5062 = vpop.permute.xlu0 %5061
        %v5065 = vadd.f32 %v4981, %v5060
        %v5066 = vadd.f32 %v4982, %v5062
        %s5067 = sld [smem:[#allocation7 + $0x1b]]
        %v5068 = vstv %s5067
        %v5069 = vmul.f32 %v5068, %v3248
        %v5070 = vmul.f32 %v5068, %v3249
        %v5071 = vadd.f32 %v5002, %v5069
        %v5072 = vadd.f32 %v5003, %v5070
        %s5073 = sld [smem:[#allocation7 + $0x3f]]
        %v5074 = vstv %s5073
        %v5075 = vmul.f32 %v5074, %v3248
        %v5076 = vmul.f32 %v5074, %v3249
        %v5077 = vadd.f32 %v5023, %v5075
        %v5078 = vadd.f32 %v5024, %v5076
        %s5079 = sld [smem:[#allocation7 + $0x63]]
        %v5080 = vstv %s5079
        %v5081 = vmul.f32 %v5080, %v3248
        %v5082 = vmul.f32 %v5080, %v3249
        %v5083 = vadd.f32 %v5044, %v5081
        %v5084 = vadd.f32 %v5045, %v5082
        %s5085 = sld [smem:[#allocation7 + $0x87]]
        %v5086 = vstv %s5085
        %v5087 = vmul.f32 %v5086, %v3248
        %v5088 = vmul.f32 %v5086, %v3249
        %v5089 = vadd.f32 %v5065, %v5087
        %v5090 = vadd.f32 %v5066, %v5088
        %s5091 = sld [smem:[#allocation7 + $0x1c]]
        %v5092 = vstv %s5091
        %v5093 = vmul.f32 %v5092, %v3248
        %v5094 = vmul.f32 %v5092, %v3249
        %5097 = vrot.lane.b32.xlu0 %v5093, 127
        %v5098 = vpop.permute.xlu0 %5097
        %5099 = vrot.lane.b32.xlu0 %v5094, 127
        %v5100 = vpop.permute.xlu0 %5099
        %v5103 = vadd.f32 %v5071, %v5098
        %v5104 = vadd.f32 %v5072, %v5100
        %s5105 = sld [smem:[#allocation7 + $0x40]]
        %v5106 = vstv %s5105
        %v5107 = vmul.f32 %v5106, %v3248
        %v5108 = vmul.f32 %v5106, %v3249
        %5111 = vrot.lane.b32.xlu0 %v5107, 127
        %v5112 = vpop.permute.xlu0 %5111
        %5113 = vrot.lane.b32.xlu0 %v5108, 127
        %v5114 = vpop.permute.xlu0 %5113
        %v5117 = vadd.f32 %v5077, %v5112
        %v5118 = vadd.f32 %v5078, %v5114
        %s5119 = sld [smem:[#allocation7 + $0x64]]
        %v5120 = vstv %s5119
        %v5121 = vmul.f32 %v5120, %v3248
        %v5122 = vmul.f32 %v5120, %v3249
        %5125 = vrot.lane.b32.xlu0 %v5121, 127
        %v5126 = vpop.permute.xlu0 %5125
        %5127 = vrot.lane.b32.xlu0 %v5122, 127
        %v5128 = vpop.permute.xlu0 %5127
        %v5131 = vadd.f32 %v5083, %v5126
        %v5132 = vadd.f32 %v5084, %v5128
        %s5133 = sld [smem:[#allocation7 + $0x88]]
        %v5134 = vstv %s5133
        %v5135 = vmul.f32 %v5134, %v3248
        %v5136 = vmul.f32 %v5134, %v3249
        %5139 = vrot.lane.b32.xlu0 %v5135, 127
        %v5140 = vpop.permute.xlu0 %5139
        %5141 = vrot.lane.b32.xlu0 %v5136, 127
        %v5142 = vpop.permute.xlu0 %5141
        %v5145 = vadd.f32 %v5089, %v5140
        %v5146 = vadd.f32 %v5090, %v5142
        %s5147 = sld [smem:[#allocation7 + $0x1d]]
        %v5148 = vstv %s5147
        %v5149 = vmul.f32 %v5148, %v3248
        %v5150 = vmul.f32 %v5148, %v3249
        %5153 = vrot.lane.b32.xlu0 %v5149, 126
        %v5154 = vpop.permute.xlu0 %5153
        %5155 = vrot.lane.b32.xlu0 %v5150, 126
        %v5156 = vpop.permute.xlu0 %5155
        %v5159 = vadd.f32 %v5103, %v5154
        %v5160 = vadd.f32 %v5104, %v5156
        %s5161 = sld [smem:[#allocation7 + $0x41]]
        %v5162 = vstv %s5161
        %v5163 = vmul.f32 %v5162, %v3248
        %v5164 = vmul.f32 %v5162, %v3249
        %5167 = vrot.lane.b32.xlu0 %v5163, 126
        %v5168 = vpop.permute.xlu0 %5167
        %5169 = vrot.lane.b32.xlu0 %v5164, 126
        %v5170 = vpop.permute.xlu0 %5169
        %v5173 = vadd.f32 %v5117, %v5168
        %v5174 = vadd.f32 %v5118, %v5170
        %s5175 = sld [smem:[#allocation7 + $0x65]]
        %v5176 = vstv %s5175
        %v5177 = vmul.f32 %v5176, %v3248
        %v5178 = vmul.f32 %v5176, %v3249
        %5181 = vrot.lane.b32.xlu0 %v5177, 126
        %v5182 = vpop.permute.xlu0 %5181
        %5183 = vrot.lane.b32.xlu0 %v5178, 126
        %v5184 = vpop.permute.xlu0 %5183
        %v5187 = vadd.f32 %v5131, %v5182
        %v5188 = vadd.f32 %v5132, %v5184
        %s5189 = sld [smem:[#allocation7 + $0x89]]
        %v5190 = vstv %s5189
        %v5191 = vmul.f32 %v5190, %v3248
        %v5192 = vmul.f32 %v5190, %v3249
        %5195 = vrot.lane.b32.xlu0 %v5191, 126
        %v5196 = vpop.permute.xlu0 %5195
        %5197 = vrot.lane.b32.xlu0 %v5192, 126
        %v5198 = vpop.permute.xlu0 %5197
        %v5201 = vadd.f32 %v5145, %v5196
        %v5202 = vadd.f32 %v5146, %v5198
        %s5203 = sld [smem:[#allocation7 + $0x1e]]
        %v5204 = vstv %s5203
        %v5205 = vmul.f32 %v5204, %v3248
        %v5206 = vmul.f32 %v5204, %v3249
        %v5207 = vmul.f32 %v5204, %v3250
        %v5211 = vrot.slane %v5205, 1
        %v5212 = vrot.slane %v5206, 1
        %v5213 = vsel %vm557, %v5211, %v5212
        %v5214 = vrot.slane %v5207, 1
        %v5215 = vsel %vm557, %v5212, %v5214
        %v5218 = vadd.f32 %v5159, %v5213
        %v5219 = vadd.f32 %v5160, %v5215
        %s5220 = sld [smem:[#allocation7 + $0x42]]
        %v5221 = vstv %s5220
        %v5222 = vmul.f32 %v5221, %v3248
        %v5223 = vmul.f32 %v5221, %v3249
        %v5224 = vmul.f32 %v5221, %v3250
        %v5228 = vrot.slane %v5222, 1
        %v5229 = vrot.slane %v5223, 1
        %v5230 = vsel %vm557, %v5228, %v5229
        %v5231 = vrot.slane %v5224, 1
        %v5232 = vsel %vm557, %v5229, %v5231
        %v5235 = vadd.f32 %v5173, %v5230
        %v5236 = vadd.f32 %v5174, %v5232
        %s5237 = sld [smem:[#allocation7 + $0x66]]
        %v5238 = vstv %s5237
        %v5239 = vmul.f32 %v5238, %v3248
        %v5240 = vmul.f32 %v5238, %v3249
        %v5241 = vmul.f32 %v5238, %v3250
        %v5245 = vrot.slane %v5239, 1
        %v5246 = vrot.slane %v5240, 1
        %v5247 = vsel %vm557, %v5245, %v5246
        %v5248 = vrot.slane %v5241, 1
        %v5249 = vsel %vm557, %v5246, %v5248
        %v5252 = vadd.f32 %v5187, %v5247
        %v5253 = vadd.f32 %v5188, %v5249
        %s5254 = sld [smem:[#allocation7 + $0x8a]]
        %v5255 = vstv %s5254
        %v5256 = vmul.f32 %v5255, %v3248
        %v5257 = vmul.f32 %v5255, %v3249
        %v5258 = vmul.f32 %v5255, %v3250
        %v5262 = vrot.slane %v5256, 1
        %v5263 = vrot.slane %v5257, 1
        %v5264 = vsel %vm557, %v5262, %v5263
        %v5265 = vrot.slane %v5258, 1
        %v5266 = vsel %vm557, %v5263, %v5265
        %v5269 = vadd.f32 %v5201, %v5264
        %v5270 = vadd.f32 %v5202, %v5266
        %s5271 = sld [smem:[#allocation7 + $0x1f]]
        %v5272 = vstv %s5271
        %v5273 = vmul.f32 %v5272, %v3248
        %v5274 = vmul.f32 %v5272, %v3249
        %v5275 = vmul.f32 %v5272, %v3250
        %v5279 = vrot.slane %v5273, 1
        %v5280 = vrot.slane %v5274, 1
        %v5281 = vsel %vm557, %v5279, %v5280
        %v5282 = vrot.slane %v5275, 1
        %v5283 = vsel %vm557, %v5280, %v5282
        %5284 = vrot.lane.b32.xlu0 %v5281, 127
        %v5285 = vpop.permute.xlu0 %5284
        %5286 = vrot.lane.b32.xlu0 %v5283, 127
        %v5287 = vpop.permute.xlu0 %5286
        %v5290 = vadd.f32 %v5218, %v5285
        %v5291 = vadd.f32 %v5219, %v5287
        %s5292 = sld [smem:[#allocation7 + $0x43]]
        %v5293 = vstv %s5292
        %v5294 = vmul.f32 %v5293, %v3248
        %v5295 = vmul.f32 %v5293, %v3249
        %v5296 = vmul.f32 %v5293, %v3250
        %v5300 = vrot.slane %v5294, 1
        %v5301 = vrot.slane %v5295, 1
        %v5302 = vsel %vm557, %v5300, %v5301
        %v5303 = vrot.slane %v5296, 1
        %v5304 = vsel %vm557, %v5301, %v5303
        %5305 = vrot.lane.b32.xlu0 %v5302, 127
        %v5306 = vpop.permute.xlu0 %5305
        %5307 = vrot.lane.b32.xlu0 %v5304, 127
        %v5308 = vpop.permute.xlu0 %5307
        %v5311 = vadd.f32 %v5235, %v5306
        %v5312 = vadd.f32 %v5236, %v5308
        %s5313 = sld [smem:[#allocation7 + $0x67]]
        %v5314 = vstv %s5313
        %v5315 = vmul.f32 %v5314, %v3248
        %v5316 = vmul.f32 %v5314, %v3249
        %v5317 = vmul.f32 %v5314, %v3250
        %v5321 = vrot.slane %v5315, 1
        %v5322 = vrot.slane %v5316, 1
        %v5323 = vsel %vm557, %v5321, %v5322
        %v5324 = vrot.slane %v5317, 1
        %v5325 = vsel %vm557, %v5322, %v5324
        %5326 = vrot.lane.b32.xlu0 %v5323, 127
        %v5327 = vpop.permute.xlu0 %5326
        %5328 = vrot.lane.b32.xlu0 %v5325, 127
        %v5329 = vpop.permute.xlu0 %5328
        %v5332 = vadd.f32 %v5252, %v5327
        %v5333 = vadd.f32 %v5253, %v5329
        %s5334 = sld [smem:[#allocation7 + $0x8b]]
        %v5335 = vstv %s5334
        %v5336 = vmul.f32 %v5335, %v3248
        %v5337 = vmul.f32 %v5335, %v3249
        %v5338 = vmul.f32 %v5335, %v3250
        %v5342 = vrot.slane %v5336, 1
        %v5343 = vrot.slane %v5337, 1
        %v5344 = vsel %vm557, %v5342, %v5343
        %v5345 = vrot.slane %v5338, 1
        %v5346 = vsel %vm557, %v5343, %v5345
        %5347 = vrot.lane.b32.xlu0 %v5344, 127
        %v5348 = vpop.permute.xlu0 %5347
        %5349 = vrot.lane.b32.xlu0 %v5346, 127
        %v5350 = vpop.permute.xlu0 %5349
        %v5353 = vadd.f32 %v5269, %v5348
        %v5354 = vadd.f32 %v5270, %v5350
        %s5355 = sld [smem:[#allocation7 + $0x20]]
        %v5356 = vstv %s5355
        %v5357 = vmul.f32 %v5356, %v3248
        %v5358 = vmul.f32 %v5356, %v3249
        %v5359 = vmul.f32 %v5356, %v3250
        %v5363 = vrot.slane %v5357, 1
        %v5364 = vrot.slane %v5358, 1
        %v5365 = vsel %vm557, %v5363, %v5364
        %v5366 = vrot.slane %v5359, 1
        %v5367 = vsel %vm557, %v5364, %v5366
        %5368 = vrot.lane.b32.xlu0 %v5365, 126
        %v5369 = vpop.permute.xlu0 %5368
        %5370 = vrot.lane.b32.xlu0 %v5367, 126
        %v5371 = vpop.permute.xlu0 %5370
        %v5374 = vadd.f32 %v5290, %v5369
        %v5375 = vadd.f32 %v5291, %v5371
        %s5376 = sld [smem:[#allocation7 + $0x44]]
        %v5377 = vstv %s5376
        %v5378 = vmul.f32 %v5377, %v3248
        %v5379 = vmul.f32 %v5377, %v3249
        %v5380 = vmul.f32 %v5377, %v3250
        %v5384 = vrot.slane %v5378, 1
        %v5385 = vrot.slane %v5379, 1
        %v5386 = vsel %vm557, %v5384, %v5385
        %v5387 = vrot.slane %v5380, 1
        %v5388 = vsel %vm557, %v5385, %v5387
        %5389 = vrot.lane.b32.xlu0 %v5386, 126
        %v5390 = vpop.permute.xlu0 %5389
        %5391 = vrot.lane.b32.xlu0 %v5388, 126
        %v5392 = vpop.permute.xlu0 %5391
        %v5395 = vadd.f32 %v5311, %v5390
        %v5396 = vadd.f32 %v5312, %v5392
        %s5397 = sld [smem:[#allocation7 + $0x68]]
        %v5398 = vstv %s5397
        %v5399 = vmul.f32 %v5398, %v3248
        %v5400 = vmul.f32 %v5398, %v3249
        %v5401 = vmul.f32 %v5398, %v3250
        %v5405 = vrot.slane %v5399, 1
        %v5406 = vrot.slane %v5400, 1
        %v5407 = vsel %vm557, %v5405, %v5406
        %v5408 = vrot.slane %v5401, 1
        %v5409 = vsel %vm557, %v5406, %v5408
        %5410 = vrot.lane.b32.xlu0 %v5407, 126
        %v5411 = vpop.permute.xlu0 %5410
        %5412 = vrot.lane.b32.xlu0 %v5409, 126
        %v5413 = vpop.permute.xlu0 %5412
        %v5416 = vadd.f32 %v5332, %v5411
        %v5417 = vadd.f32 %v5333, %v5413
        %s5418 = sld [smem:[#allocation7 + $0x8c]]
        %v5419 = vstv %s5418
        %v5420 = vmul.f32 %v5419, %v3248
        %v5421 = vmul.f32 %v5419, %v3249
        %v5422 = vmul.f32 %v5419, %v3250
        %v5426 = vrot.slane %v5420, 1
        %v5427 = vrot.slane %v5421, 1
        %v5428 = vsel %vm557, %v5426, %v5427
        %v5429 = vrot.slane %v5422, 1
        %v5430 = vsel %vm557, %v5427, %v5429
        %5431 = vrot.lane.b32.xlu0 %v5428, 126
        %v5432 = vpop.permute.xlu0 %5431
        %5433 = vrot.lane.b32.xlu0 %v5430, 126
        %v5434 = vpop.permute.xlu0 %5433
        %v5437 = vadd.f32 %v5353, %v5432
        %v5438 = vadd.f32 %v5354, %v5434
        %s5439 = sld [smem:[#allocation7 + $0x21]]
        %v5440 = vstv %s5439
        %v5441 = vmul.f32 %v5440, %v3248
        %v5442 = vmul.f32 %v5440, %v3249
        %v5443 = vmul.f32 %v5440, %v3250
        %v5447 = vrot.slane %v5441, 2
        %v5448 = vrot.slane %v5442, 2
        %v5449 = vsel %vm794, %v5447, %v5448
        %v5450 = vrot.slane %v5443, 2
        %v5451 = vsel %vm794, %v5448, %v5450
        %v5454 = vadd.f32 %v5374, %v5449
        %v5455 = vadd.f32 %v5375, %v5451
        %s5456 = sld [smem:[#allocation7 + $0x45]]
        %v5457 = vstv %s5456
        %v5458 = vmul.f32 %v5457, %v3248
        %v5459 = vmul.f32 %v5457, %v3249
        %v5460 = vmul.f32 %v5457, %v3250
        %v5464 = vrot.slane %v5458, 2
        %v5465 = vrot.slane %v5459, 2
        %v5466 = vsel %vm794, %v5464, %v5465
        %v5467 = vrot.slane %v5460, 2
        %v5468 = vsel %vm794, %v5465, %v5467
        %v5471 = vadd.f32 %v5395, %v5466
        %v5472 = vadd.f32 %v5396, %v5468
        %s5473 = sld [smem:[#allocation7 + $0x69]]
        %v5474 = vstv %s5473
        %v5475 = vmul.f32 %v5474, %v3248
        %v5476 = vmul.f32 %v5474, %v3249
        %v5477 = vmul.f32 %v5474, %v3250
        %v5481 = vrot.slane %v5475, 2
        %v5482 = vrot.slane %v5476, 2
        %v5483 = vsel %vm794, %v5481, %v5482
        %v5484 = vrot.slane %v5477, 2
        %v5485 = vsel %vm794, %v5482, %v5484
        %v5488 = vadd.f32 %v5416, %v5483
        %v5489 = vadd.f32 %v5417, %v5485
        %s5490 = sld [smem:[#allocation7 + $0x8d]]
        %v5491 = vstv %s5490
        %v5492 = vmul.f32 %v5491, %v3248
        %v5493 = vmul.f32 %v5491, %v3249
        %v5494 = vmul.f32 %v5491, %v3250
        %v5498 = vrot.slane %v5492, 2
        %v5499 = vrot.slane %v5493, 2
        %v5500 = vsel %vm794, %v5498, %v5499
        %v5501 = vrot.slane %v5494, 2
        %v5502 = vsel %vm794, %v5499, %v5501
        %v5505 = vadd.f32 %v5437, %v5500
        %v5506 = vadd.f32 %v5438, %v5502
        %s5507 = sld [smem:[#allocation7 + $0x22]]
        %v5508 = vstv %s5507
        %v5509 = vmul.f32 %v5508, %v3248
        %v5510 = vmul.f32 %v5508, %v3249
        %v5511 = vmul.f32 %v5508, %v3250
        %v5515 = vrot.slane %v5509, 2
        %v5516 = vrot.slane %v5510, 2
        %v5517 = vsel %vm794, %v5515, %v5516
        %v5518 = vrot.slane %v5511, 2
        %v5519 = vsel %vm794, %v5516, %v5518
        %5520 = vrot.lane.b32.xlu0 %v5517, 127
        %v5521 = vpop.permute.xlu0 %5520
        %5522 = vrot.lane.b32.xlu0 %v5519, 127
        %v5523 = vpop.permute.xlu0 %5522
        %v5526 = vadd.f32 %v5454, %v5521
        %v5527 = vadd.f32 %v5455, %v5523
        %s5528 = sld [smem:[#allocation7 + $0x46]]
        %v5529 = vstv %s5528
        %v5530 = vmul.f32 %v5529, %v3248
        %v5531 = vmul.f32 %v5529, %v3249
        %v5532 = vmul.f32 %v5529, %v3250
        %v5536 = vrot.slane %v5530, 2
        %v5537 = vrot.slane %v5531, 2
        %v5538 = vsel %vm794, %v5536, %v5537
        %v5539 = vrot.slane %v5532, 2
        %v5540 = vsel %vm794, %v5537, %v5539
        %5541 = vrot.lane.b32.xlu0 %v5538, 127
        %v5542 = vpop.permute.xlu0 %5541
        %5543 = vrot.lane.b32.xlu0 %v5540, 127
        %v5544 = vpop.permute.xlu0 %5543
        %v5547 = vadd.f32 %v5471, %v5542
        %v5548 = vadd.f32 %v5472, %v5544
        %s5549 = sld [smem:[#allocation7 + $0x6a]]
        %v5550 = vstv %s5549
        %v5551 = vmul.f32 %v5550, %v3248
        %v5552 = vmul.f32 %v5550, %v3249
        %v5553 = vmul.f32 %v5550, %v3250
        %v5557 = vrot.slane %v5551, 2
        %v5558 = vrot.slane %v5552, 2
        %v5559 = vsel %vm794, %v5557, %v5558
        %v5560 = vrot.slane %v5553, 2
        %v5561 = vsel %vm794, %v5558, %v5560
        %5562 = vrot.lane.b32.xlu0 %v5559, 127
        %v5563 = vpop.permute.xlu0 %5562
        %5564 = vrot.lane.b32.xlu0 %v5561, 127
        %v5565 = vpop.permute.xlu0 %5564
        %v5568 = vadd.f32 %v5488, %v5563
        %v5569 = vadd.f32 %v5489, %v5565
        %s5570 = sld [smem:[#allocation7 + $0x8e]]
        %v5571 = vstv %s5570
        %v5572 = vmul.f32 %v5571, %v3248
        %v5573 = vmul.f32 %v5571, %v3249
        %v5574 = vmul.f32 %v5571, %v3250
        %v5578 = vrot.slane %v5572, 2
        %v5579 = vrot.slane %v5573, 2
        %v5580 = vsel %vm794, %v5578, %v5579
        %v5581 = vrot.slane %v5574, 2
        %v5582 = vsel %vm794, %v5579, %v5581
        %5583 = vrot.lane.b32.xlu0 %v5580, 127
        %v5584 = vpop.permute.xlu0 %5583
        %5585 = vrot.lane.b32.xlu0 %v5582, 127
        %v5586 = vpop.permute.xlu0 %5585
        %v5589 = vadd.f32 %v5505, %v5584
        %v5590 = vadd.f32 %v5506, %v5586
        %s5591 = sld [smem:[#allocation7 + $0x23]]
        %v5592 = vstv %s5591
        %v5593 = vmul.f32 %v5592, %v3248
        %v5594 = vmul.f32 %v5592, %v3249
        %v5595 = vmul.f32 %v5592, %v3250
        %v5599 = vrot.slane %v5593, 2
        %v5600 = vrot.slane %v5594, 2
        %v5601 = vsel %vm794, %v5599, %v5600
        %v5602 = vrot.slane %v5595, 2
        %v5603 = vsel %vm794, %v5600, %v5602
        %5604 = vrot.lane.b32.xlu0 %v5601, 126
        %v5605 = vpop.permute.xlu0 %5604
        %5606 = vrot.lane.b32.xlu0 %v5603, 126
        %v5607 = vpop.permute.xlu0 %5606
        %v5610 = vadd.f32 %v5526, %v5605
        %v5611 = vadd.f32 %v5527, %v5607
        %s5612 = sld [smem:[#allocation7 + $0x47]]
        %v5613 = vstv %s5612
        %v5614 = vmul.f32 %v5613, %v3248
        %v5615 = vmul.f32 %v5613, %v3249
        %v5616 = vmul.f32 %v5613, %v3250
        %v5620 = vrot.slane %v5614, 2
        %v5621 = vrot.slane %v5615, 2
        %v5622 = vsel %vm794, %v5620, %v5621
        %v5623 = vrot.slane %v5616, 2
        %v5624 = vsel %vm794, %v5621, %v5623
        %5625 = vrot.lane.b32.xlu0 %v5622, 126
        %v5626 = vpop.permute.xlu0 %5625
        %5627 = vrot.lane.b32.xlu0 %v5624, 126
        %v5628 = vpop.permute.xlu0 %5627
        %v5631 = vadd.f32 %v5547, %v5626
        %v5632 = vadd.f32 %v5548, %v5628
        %s5633 = sld [smem:[#allocation7 + $0x6b]]
        %v5634 = vstv %s5633
        %v5635 = vmul.f32 %v5634, %v3248
        %v5636 = vmul.f32 %v5634, %v3249
        %v5637 = vmul.f32 %v5634, %v3250
        %v5641 = vrot.slane %v5635, 2
        %v5642 = vrot.slane %v5636, 2
        %v5643 = vsel %vm794, %v5641, %v5642
        %v5644 = vrot.slane %v5637, 2
        %v5645 = vsel %vm794, %v5642, %v5644
        %5646 = vrot.lane.b32.xlu0 %v5643, 126
        %v5647 = vpop.permute.xlu0 %5646
        %5648 = vrot.lane.b32.xlu0 %v5645, 126
        %v5649 = vpop.permute.xlu0 %5648
        %v5652 = vadd.f32 %v5568, %v5647
        %v5653 = vadd.f32 %v5569, %v5649
        %s5654 = sld [smem:[#allocation7 + $0x8f]]
        %v5655 = vstv %s5654
        %v5656 = vmul.f32 %v5655, %v3248
        %v5657 = vmul.f32 %v5655, %v3249
        %v5658 = vmul.f32 %v5655, %v3250
        %v5662 = vrot.slane %v5656, 2
        %v5663 = vrot.slane %v5657, 2
        %v5664 = vsel %vm794, %v5662, %v5663
        %v5665 = vrot.slane %v5658, 2
        %v5666 = vsel %vm794, %v5663, %v5665
        %5667 = vrot.lane.b32.xlu0 %v5664, 126
        %v5668 = vpop.permute.xlu0 %5667
        %5669 = vrot.lane.b32.xlu0 %v5666, 126
        %v5670 = vpop.permute.xlu0 %5669
        %v5673 = vadd.f32 %v5589, %v5668
        %v5674 = vadd.f32 %v5590, %v5670
        %v5675 = vsel %vm2847, %v5610, 0.0
        %5676 = vadd.xlane.f32.xlu0 %v5675
        %v5677 = vpop.xlane.xlu0 %5676
        %v5678 = vsel %vm2847, %v5611, 0.0
        %5679 = vadd.xlane.f32.xlu0 %v5678
        %v5680 = vpop.xlane.xlu0 %5679
        %v5681 = vsel %vm2847, %v5631, 0.0
        %5682 = vadd.xlane.f32.xlu0 %v5681
        %v5683 = vpop.xlane.xlu0 %5682
        %v5684 = vsel %vm2847, %v5632, 0.0
        %5685 = vadd.xlane.f32.xlu0 %v5684
        %v5686 = vpop.xlane.xlu0 %5685
        %v5687 = vsel %vm2847, %v5652, 0.0
        %5688 = vadd.xlane.f32.xlu0 %v5687
        %v5689 = vpop.xlane.xlu0 %5688
        %v5690 = vsel %vm2847, %v5653, 0.0
        %5691 = vadd.xlane.f32.xlu0 %v5690
        %v5692 = vpop.xlane.xlu0 %5691
        %v5693 = vsel %vm2847, %v5673, 0.0
        %5694 = vadd.xlane.f32.xlu0 %v5693
        %v5695 = vpop.xlane.xlu0 %5694
        %v5696 = vsel %vm2847, %v5674, 0.0
        %5697 = vadd.xlane.f32.xlu0 %v5696
        %v5698 = vpop.xlane.xlu0 %5697
        %v5699 = vmul.f32 %v5677, %v2878
        %v5700 = vmul.f32 %v5680, %v2878
        %v5701 = vmul.f32 %v5683, %v2878
        %v5702 = vmul.f32 %v5686, %v2878
        %v5703 = vmul.f32 %v5689, %v2878
        %v5704 = vmul.f32 %v5692, %v2878
        %v5705 = vmul.f32 %v5695, %v2878
        %v5706 = vmul.f32 %v5698, %v2878
        %v5707 = vadd.f32 %v5699, %v5700
        %v5708 = vrot.slane %v5707, 4
        %v5709 = vadd.f32 %v5707, %v5708
        %v5710 = vrot.slane %v5709, 2
        %v5711 = vadd.f32 %v5709, %v5710
        %v5712 = vrot.slane %v5711, 1
        %v5713 = vadd.f32 %v5711, %v5712
        %v5714 = vadd.f32 %v5701, %v5702
        %v5715 = vrot.slane %v5714, 4
        %v5716 = vadd.f32 %v5714, %v5715
        %v5717 = vrot.slane %v5716, 2
        %v5718 = vadd.f32 %v5716, %v5717
        %v5719 = vrot.slane %v5718, 1
        %v5720 = vadd.f32 %v5718, %v5719
        %v5721 = vadd.f32 %v5703, %v5704
        %v5722 = vrot.slane %v5721, 4
        %v5723 = vadd.f32 %v5721, %v5722
        %v5724 = vrot.slane %v5723, 2
        %v5725 = vadd.f32 %v5723, %v5724
        %v5726 = vrot.slane %v5725, 1
        %v5727 = vadd.f32 %v5725, %v5726
        %v5728 = vadd.f32 %v5705, %v5706
        %v5729 = vrot.slane %v5728, 4
        %v5730 = vadd.f32 %v5728, %v5729
        %v5731 = vrot.slane %v5730, 2
        %v5732 = vadd.f32 %v5730, %v5731
        %v5733 = vrot.slane %v5732, 1
        %v5734 = vadd.f32 %v5732, %v5733
        %v5735 = vmul.f32 %v5713, %v2878
        %v5736 = vmul.f32 %v5720, %v2878
        %v5737 = vmul.f32 %v5727, %v2878
        %v5738 = vmul.f32 %v5734, %v2878
        %v5739 = vsub.f32 %v5610, %v5735
        %v5740 = vsub.f32 %v5611, %v5735
        %v5741 = vsub.f32 %v5631, %v5736
        %v5742 = vsub.f32 %v5632, %v5736
        %v5743 = vsub.f32 %v5652, %v5737
        %v5744 = vsub.f32 %v5653, %v5737
        %v5745 = vsub.f32 %v5673, %v5738
        %v5746 = vsub.f32 %v5674, %v5738
        %v5747 = vmul.f32 %v5739, %v5739
        %v5748 = vmul.f32 %v5740, %v5740
        %v5749 = vmul.f32 %v5741, %v5741
        %v5750 = vmul.f32 %v5742, %v5742
        %v5751 = vmul.f32 %v5743, %v5743
        %v5752 = vmul.f32 %v5744, %v5744
        %v5753 = vmul.f32 %v5745, %v5745
        %v5754 = vmul.f32 %v5746, %v5746
        %v5755 = vsel %vm2847, %v5747, 0.0
        %5756 = vadd.xlane.f32.xlu0 %v5755
        %v5757 = vpop.xlane.xlu0 %5756
        %v5758 = vsel %vm2847, %v5748, 0.0
        %5759 = vadd.xlane.f32.xlu0 %v5758
        %v5760 = vpop.xlane.xlu0 %5759
        %v5761 = vsel %vm2847, %v5749, 0.0
        %5762 = vadd.xlane.f32.xlu0 %v5761
        %v5763 = vpop.xlane.xlu0 %5762
        %v5764 = vsel %vm2847, %v5750, 0.0
        %5765 = vadd.xlane.f32.xlu0 %v5764
        %v5766 = vpop.xlane.xlu0 %5765
        %v5767 = vsel %vm2847, %v5751, 0.0
        %5768 = vadd.xlane.f32.xlu0 %v5767
        %v5769 = vpop.xlane.xlu0 %5768
        %v5770 = vsel %vm2847, %v5752, 0.0
        %5771 = vadd.xlane.f32.xlu0 %v5770
        %v5772 = vpop.xlane.xlu0 %5771
        %v5773 = vsel %vm2847, %v5753, 0.0
        %5774 = vadd.xlane.f32.xlu0 %v5773
        %v5775 = vpop.xlane.xlu0 %5774
        %v5776 = vsel %vm2847, %v5754, 0.0
        %5777 = vadd.xlane.f32.xlu0 %v5776
        %v5778 = vpop.xlane.xlu0 %5777
        %v5779 = vmul.f32 %v5757, %v2878
        %v5780 = vmul.f32 %v5760, %v2878
        %v5781 = vmul.f32 %v5763, %v2878
        %v5782 = vmul.f32 %v5766, %v2878
        %v5783 = vmul.f32 %v5769, %v2878
        %v5784 = vmul.f32 %v5772, %v2878
        %v5785 = vmul.f32 %v5775, %v2878
        %v5786 = vmul.f32 %v5778, %v2878
        %v5787 = vadd.f32 %v5779, %v5780
        %v5788 = vrot.slane %v5787, 4
        %v5789 = vadd.f32 %v5787, %v5788
        %v5790 = vrot.slane %v5789, 2
        %v5791 = vadd.f32 %v5789, %v5790
        %v5792 = vrot.slane %v5791, 1
        %v5793 = vadd.f32 %v5791, %v5792
        %v5794 = vadd.f32 %v5781, %v5782
        %v5795 = vrot.slane %v5794, 4
        %v5796 = vadd.f32 %v5794, %v5795
        %v5797 = vrot.slane %v5796, 2
        %v5798 = vadd.f32 %v5796, %v5797
        %v5799 = vrot.slane %v5798, 1
        %v5800 = vadd.f32 %v5798, %v5799
        %v5801 = vadd.f32 %v5783, %v5784
        %v5802 = vrot.slane %v5801, 4
        %v5803 = vadd.f32 %v5801, %v5802
        %v5804 = vrot.slane %v5803, 2
        %v5805 = vadd.f32 %v5803, %v5804
        %v5806 = vrot.slane %v5805, 1
        %v5807 = vadd.f32 %v5805, %v5806
        %v5808 = vadd.f32 %v5785, %v5786
        %v5809 = vrot.slane %v5808, 4
        %v5810 = vadd.f32 %v5808, %v5809
        %v5811 = vrot.slane %v5810, 2
        %v5812 = vadd.f32 %v5810, %v5811
        %v5813 = vrot.slane %v5812, 1
        %v5814 = vadd.f32 %v5812, %v5813
        %v5815 = vmul.f32 %v5793, %v2878
        %v5816 = vmul.f32 %v5800, %v2878
        %v5817 = vmul.f32 %v5807, %v2878
        %v5818 = vmul.f32 %v5814, %v2878
        %v5819 = vadd.f32 %v5815, 1e-05
        %v5820 = vadd.f32 %v5816, 1e-05
        %v5821 = vadd.f32 %v5817, 1e-05
        %v5822 = vadd.f32 %v5818, 1e-05
        %v5823 = vrsqrt.pop %v5819
        %v5824 = vmul.f32 %v5823, %v5819
        %v5825 = vmul.f32 %v5824, %v5823
        %v5826 = vmul.f32 0.5, %v5825
        %v5827 = vsub.f32 1.5, %v5826
        %v5828 = vmul.f32 %v5823, %v5827
        %vm5829 = vweird.f32 %v5819
        %vm5830 = vweird.f32 %v5823
        %vm5831 = vmor %vm5829, %vm5830
        %v5832 = vsel %vm5831, %v5823, %v5828
        %v5833 = vrsqrt.pop %v5820
        %v5834 = vmul.f32 %v5833, %v5820
        %v5835 = vmul.f32 %v5834, %v5833
        %v5836 = vmul.f32 0.5, %v5835
        %v5837 = vsub.f32 1.5, %v5836
        %v5838 = vmul.f32 %v5833, %v5837
        %vm5839 = vweird.f32 %v5820
        %vm5840 = vweird.f32 %v5833
        %vm5841 = vmor %vm5839, %vm5840
        %v5842 = vsel %vm5841, %v5833, %v5838
        %v5843 = vrsqrt.pop %v5821
        %v5844 = vmul.f32 %v5843, %v5821
        %v5845 = vmul.f32 %v5844, %v5843
        %v5846 = vmul.f32 0.5, %v5845
        %v5847 = vsub.f32 1.5, %v5846
        %v5848 = vmul.f32 %v5843, %v5847
        %vm5849 = vweird.f32 %v5821
        %vm5850 = vweird.f32 %v5843
        %vm5851 = vmor %vm5849, %vm5850
        %v5852 = vsel %vm5851, %v5843, %v5848
        %v5853 = vrsqrt.pop %v5822
        %v5854 = vmul.f32 %v5853, %v5822
        %v5855 = vmul.f32 %v5854, %v5853
        %v5856 = vmul.f32 0.5, %v5855
        %v5857 = vsub.f32 1.5, %v5856
        %v5858 = vmul.f32 %v5853, %v5857
        %vm5859 = vweird.f32 %v5822
        %vm5860 = vweird.f32 %v5853
        %vm5861 = vmor %vm5859, %vm5860
        %v5862 = vsel %vm5861, %v5853, %v5858
        %v5863 = vmul.f32 %v5739, %v5832
        %v5864 = vmul.f32 %v5740, %v5832
        %v5865 = vmul.f32 %v5741, %v5842
        %v5866 = vmul.f32 %v5742, %v5842
        %v5867 = vmul.f32 %v5743, %v5852
        %v5868 = vmul.f32 %v5744, %v5852
        %v5869 = vmul.f32 %v5745, %v5862
        %v5870 = vmul.f32 %v5746, %v5862
        %v5871 = vadd.f32 %v218, %v5863
        %v5872 = vadd.f32 %v219, %v5864
        %v5873 = vadd.f32 %v220, %v5865
        %v5874 = vadd.f32 %v221, %v5866
        %v5875 = vadd.f32 %v222, %v5867
        %v5876 = vadd.f32 %v223, %v5868
        %v5877 = vadd.f32 %v224, %v5869
        %v5878 = vadd.f32 %v225, %v5870
        %5879 = vst.msk [vmem:[%s217] sm:$0xff] %vm2847, %v5871
        %5880 = vst.msk [vmem:[%s217 + $0x8] sm:$0xff] %vm2847, %v5872
        %5881 = vst.msk [vmem:[%s217 + $0x10] sm:$0xff] %vm2847, %v5873
        %5882 = vst.msk [vmem:[%s217 + $0x18] sm:$0xff] %vm2847, %v5874
        %5883 = vst.msk [vmem:[%s217 + $0x20] sm:$0xff] %vm2847, %v5875
        %5884 = vst.msk [vmem:[%s217 + $0x28] sm:$0xff] %vm2847, %v5876
        %5885 = vst.msk [vmem:[%s217 + $0x30] sm:$0xff] %vm2847, %v5877
        %5886 = vst.msk [vmem:[%s217 + $0x38] sm:$0xff] %vm2847, %v5878
        %s5887 = sand.u32 %s98, 1
        %s5888 = scalar_lea.sflag [#allocation4], %s5887
        %s5889 = sand.u32 %s98, 1
        %s5890 = smul.addr %s5889, 64
        %s5891 = scalar_lea.vmem [#allocation9], %s5890
        // Predicated region
        $region45: #{tpu_custom_call.1} parent=31 // pred_check
          %p5892 = pneg %p108
        $region46: #{tpu_custom_call.1} parent=31 // pred_check_branch
          %5894 = sbr.rel (%p5892) target = $region48
        $region47: #{tpu_custom_call.1} parent=31 // pred_region
          %5896 = vsyncadd %s5888, 0
          %s5897 = smul.addr %s22, 8
          %s5898 = smul.addr %s5897, 8
          %s5899 = scalar_lea.hbm %s3, %s5898
          %s5900 = sshll.u32 %s5891, 4
          %s5901 = int_to_ptr.vmem [resolvable:$true] %s5900
          %s5902 = sshll.u32 %s5899, 4
          %s5903 = int_to_ptr.hbm [resolvable:$true] %s5902
          %5908 = dma.vmem_to_hbm [thread:$0]  %s5901, 1024, %s5903, %s5888, 128, 128, 8
        $region48: #{tpu_custom_call.1} parent=31 // pred_fallthru
          _
      $region32: #{tpu_custom_call.1} parent=5 // pred_fallthru
        _
      %p5909 = scmp.le.s32.totalorder 2, %s17
      // Predicated region
      $region49: #{tpu_custom_call.1} parent=5 // pred_check
        %p5910 = pneg %p5909
      $region50: #{tpu_custom_call.1} parent=5 // pred_check_branch
        %5912 = sbr.rel (%p5910) target = $region52
      $region51: #{tpu_custom_call.1} parent=5 // pred_region
        %s5913 = ssub.s32 %s17, 2
        // Predicated region
        $region53: #{tpu_custom_call.1} parent=51 // pred_check
          %p5914 = pneg %p114
        $region54: #{tpu_custom_call.1} parent=51 // pred_check_branch
          %5916 = sbr.rel (%p5914) target = $region56
        $region55: #{tpu_custom_call.1} parent=51 // pred_region
          %s5917 = sand.u32 %s99, 1
          %s5918 = scalar_lea.sflag [#allocation4], %s5917
          %s5919 = sand.u32 %s99, 1
          %s5920 = smul.addr %s5919, 64
          %s5921 = scalar_lea.vmem [#allocation9], %s5920
          %5923 = dma.done %s5918, 1024
        $region56: #{tpu_custom_call.1} parent=51 // pred_fallthru
          _
      $region52: #{tpu_custom_call.1} parent=5 // pred_fallthru
        _
    $region6: #{tpu_custom_call.1} parent=1 // loop_footer
      %s21 = sadd.s32 1, %s17
    $region7: #{tpu_custom_call.1} parent=1 // loop_footer_branch
      %16 = sbr.rel target = $region3
    $region8: #{tpu_custom_call.1} parent=1 // loop_exit
      _
    %5924 = vsyncpa [#allocation3], 1
    %s5925 = scalar_lea.sflag [#allocation3], 1
    %5926 = vsyncpa %s5925, 1
    %5927 = vsyncpa [#allocation4], 1
    %s5928 = scalar_lea.sflag [#allocation4], 1
    %5929 = vsyncpa %s5928, 1
    %5930 = vsyncpa [#allocation5], 1
    %s5931 = scalar_lea.sflag [#allocation5], 1
    %5932 = vsyncpa %s5931, 1
    %5933 = vsyncpa [#allocation8], 1

</llo_original>
